<compile_context>
chip_gen: v7x
topology: tpu7x:2x2x1
jax: 0.10.0
libtpu: 0.0.40
codegen_flags: <defaults>
</compile_context>

<pallas_src>
import numpy as np
import jax
import jax.numpy as jnp
from jax.experimental import pallas as pl
from jax.experimental.pallas import tpu as pltpu


# ---------------------------------------------------------------------------
# Parameter init (deterministic) -- mirrors the PyTorch __init__ (Python-3
# true division in `y = i / shape[3] % shape[2]`, exactly as written).
# ---------------------------------------------------------------------------
def init_bilinear(shape):
    n = int(np.prod(shape))
    weight = np.zeros(n, dtype="float32")
    f = np.ceil(shape[3] / 2.0)
    c = (2 * f - 1 - f % 2) / (2.0 * f)
    for i in range(n):
        x = i % shape[3]
        y = i / shape[3] % shape[2]
        weight[i] = (1 - abs(x / f - c)) * (1 - abs(y / f - c))
    return weight.reshape(shape)


# ---------------------------------------------------------------------------
# Pallas kernels
# ---------------------------------------------------------------------------
def _conv1x1_kernel(x_ref, w_ref, b_ref, o_ref):
    # x_ref: (1, Cin, TN), w_ref: (Ncls, Cin), b_ref: (Ncls, 1), o_ref: (1, Ncls, TN)
    # Lane (last) dim is a dense HW chunk: lane-dense loads/stores, no transposes.
    o_ref[0] = (
        jnp.dot(w_ref[...], x_ref[0], preferred_element_type=jnp.float32)
        + b_ref[...]
    )


def _make_fused_kernel(Cin, Ncls, K, s, P, Qy, Qx):
    """Fused (1x1 conv + ConvTranspose2d(K, stride=s)) for one batch element.

    Uses pre-composed weights Weff[ci,co,kyy,kxx] and per-phase bias maps, so the
    intermediate y = conv1x1(x) never exists.  Output-phase decomposition:
      out[co, s*qy+py, s*qx+px] =
        bias_phase[py,px,co,qy,qx]
        + sum_{ci,ky,kx} xpad[ci, P+qy-ky, P+qx-kx] * Weff[ci,co,s*ky+py,s*kx+px]
    The s*s phase planes are interleaved to the final NCHW layout in-kernel via 0/1
    spread matmuls on the MXU, so the kernel stores (1, Ncls, OH, OW) directly.
    """

    def kernel(weff_ref, biasq_ref, sy_ref, sx_ref, x_ref, o_ref):
        # weff_ref : SMEM (Cin*Ncls*K*K,)    flat [ci, co, kyy, kxx]
        # biasq_ref: VMEM (s*s*Ncls, Qy, Qx) per-phase bias maps (fetched once)
        # sy_ref   : VMEM (s, OH, Qy)        row-phase spread matrices (fetched once)
        # sx_ref   : VMEM (s, Qx, OW)        col-phase spread matrices (fetched once)
        # x_ref    : VMEM (1, Cin, Hp2, Wp2) zero-padded input (this batch element)
        # o_ref    : VMEM (1, Ncls, OH, OW)  final NCHW output (this batch element)

        # ---- Stage A: per-phase accumulation (VPU scalar-broadcast FMAs) ----
        accs = {}
        for py in range(s):
            tky = (K - 1 - py) // s + 1          # taps with 0 <= s*ky+py < K
            for px in range(s):
                tkx = (K - 1 - px) // s + 1
                # accumulators start at the precomputed per-phase bias map
                cur = [biasq_ref[(py * s + px) * Ncls + co] for co in range(Ncls)]
                for ky in range(tky):
                    for kx in range(tkx):
                        kyy, kxx = s * ky + py, s * kx + px
                        for ci in range(Cin):
                            win = x_ref[0, ci, pl.ds(P - ky, Qy), pl.ds(P - kx, Qx)]
                            for co in range(Ncls):
                                w = weff_ref[((ci * Ncls + co) * K + kyy) * K + kxx]
                                cur[co] = cur[co] + w * win
                for co in range(Ncls):
                    accs[(py, px, co)] = cur[co]

        # ---- Stage B: interleave phases to dense NCHW via 0/1 spread matmuls ----
        # out_co = sum_py SY[py] @ (sum_px acc[py,px,co] @ SX[px])
        # (exact selection; runs on the otherwise idle MXU; stores stay dense)
        for co in range(Ncls):
            out_co = None
            for py in range(s):
                g = None
                for px in range(s):
                    t = jnp.dot(accs[(py, px, co)], sx_ref[px],
                                preferred_element_type=jnp.float32)
                    g = t if g is None else g + t
                r = jnp.dot(sy_ref[py], g, preferred_element_type=jnp.float32)
                out_co = r if out_co is None else out_co + r
            o_ref[0, co] = out_co

    return kernel


# ---------------------------------------------------------------------------
# Wrapper (SideOutput.forward)
# ---------------------------------------------------------------------------
def side_output_forward(x, conv_w, conv_b, up_w=None, stride=None):
    """x: (B, Cin, H, W) f32; conv_w: (Ncls, Cin, 1, 1); conv_b: (Ncls,);
    up_w: (Ncls, Ncls, K, K) bilinear ConvTranspose2d weight or None."""
    B, Cin, H, W = x.shape
    Ncls = conv_w.shape[0]
    x = x.astype(jnp.float32)
    w2d = conv_w.reshape(Ncls, Cin).astype(jnp.float32)
    b1 = conv_b.astype(jnp.float32).reshape(Ncls)

    if up_w is None:
        # ---- 1x1 conv only: per-(batch, HW-tile) (Ncls,Cin) @ (Cin,TN) matmul ----
        HW = H * W
        x3 = x.reshape(B, Cin, HW)                         # free reshape (NCHW kept)
        b2d = b1.reshape(Ncls, 1)
        TN = HW if HW <= 2048 else 2048                    # lane-dense tiles (|128)
        grid = (B, pl.cdiv(HW, TN))
        y = pl.pallas_call(
            _conv1x1_kernel,
            out_shape=jax.ShapeDtypeStruct((B, Ncls, HW), jnp.float32),
            grid=grid,
            in_specs=[
                pl.BlockSpec((1, Cin, TN), lambda b, t: (b, 0, t)),
                pl.BlockSpec((Ncls, Cin), lambda b, t: (0, 0)),
                pl.BlockSpec((Ncls, 1), lambda b, t: (0, 0)),
            ],
            out_specs=pl.BlockSpec((1, Ncls, TN), lambda b, t: (b, 0, t)),
            compiler_params=pltpu.CompilerParams(
                dimension_semantics=("parallel", "parallel")),
        )(x3, w2d, b2d)
        return y.reshape(B, Ncls, H, W)                    # free reshape

    # ---- fused 1x1 conv + ConvTranspose2d(num_class, num_class, K, stride) ----
    assert up_w.shape[0] == Ncls and up_w.shape[1] == Ncls, (
        "ConvTranspose2d in/out channels must equal num_class")
    K = int(up_w.shape[2])
    s = int(stride)
    wt = up_w.astype(jnp.float32)
    OH, OW = (H - 1) * s + K, (W - 1) * s + K
    Tkm = -(-K // s)                      # ceil(K/s): taps per phase along one axis
    P = Tkm - 1                           # zero padding of x
    Qy, Qx = (H - 1) + Tkm, (W - 1) + Tkm # per-phase output extent
    Hp2, Wp2 = H + 2 * P, W + 2 * P

    # Pre-compose 1x1-conv weights into the transposed-conv weights (tiny einsum).
    weff = jnp.einsum("dc,doyx->coyx", w2d, wt)       # (Cin, Ncls, K, K)
    weff_flat = weff.reshape(-1)

    # Fold the bias into per-phase bias maps (constant across batch; computed once).
    wb = jnp.einsum("d,doyx->oyx", b1, wt)            # (Ncls, K, K)
    qy_i = jnp.arange(Qy)
    qx_i = jnp.arange(Qx)
    phase_blocks = []
    for py in range(s):
        tky = (K - 1 - py) // s + 1
        for px in range(s):
            tkx = (K - 1 - px) // s + 1
            acc = jnp.zeros((Ncls, Qy, Qx), jnp.float32)
            for ky in range(tky):
                my = ((qy_i >= ky) & (qy_i < H + ky)).astype(jnp.float32)     # (Qy,)
                for kx in range(tkx):
                    mx = ((qx_i >= kx) & (qx_i < W + kx)).astype(jnp.float32)  # (Qx,)
                    mask = my[:, None] * mx[None, :]
                    acc = acc + wb[:, s * ky + py, s * kx + px][:, None, None] * mask[None]
            phase_blocks.append(acc)
    bias_ph = jnp.concatenate(phase_blocks, axis=0)   # (s*s*Ncls, Qy, Qx)

    # 0/1 spread matrices for the in-kernel phase interleave (fetched once).
    oy = jnp.arange(OH)
    sy = jnp.stack([(oy[:, None] == s * qy_i[None, :] + py).astype(jnp.float32)
                    for py in range(s)], axis=0)       # (s, OH, Qy)
    ox = jnp.arange(OW)
    sx = jnp.stack([(s * qx_i[:, None] + px == ox[None, :]).astype(jnp.float32)
                    for px in range(s)], axis=0)       # (s, Qx, OW)

    # Zero-pad x by P (input is the smallest tensor; this is the only extra pass).
    xpad = jnp.pad(x, ((0, 0), (0, 0), (P, P), (P, P)))

    kernel = _make_fused_kernel(Cin, Ncls, K, s, P, Qy, Qx)

    # TODO(synk): spatially tile with a halo (Qy/Qx grid axes marked "parallel") for
    # production resolutions so blocks fit v7x's 64 MiB VMEM and both TCs get work.
    out = pl.pallas_call(
        kernel,
        out_shape=jax.ShapeDtypeStruct((B, Ncls, OH, OW), jnp.float32),
        grid=(B,),
        in_specs=[
            pl.BlockSpec(memory_space=pltpu.MemorySpace.SMEM),            # weff_flat
            pl.BlockSpec((s * s * Ncls, Qy, Qx), lambda b: (0, 0, 0)),    # bias_ph
            pl.BlockSpec((s, OH, Qy), lambda b: (0, 0, 0)),               # sy
            pl.BlockSpec((s, Qx, OW), lambda b: (0, 0, 0)),               # sx
            pl.BlockSpec((1, Cin, Hp2, Wp2), lambda b: (b, 0, 0, 0)),     # xpad
        ],
        out_specs=pl.BlockSpec((1, Ncls, OH, OW), lambda b: (b, 0, 0, 0)),
        compiler_params=pltpu.CompilerParams(dimension_semantics=("parallel",)),
    )(weff_flat, bias_ph, sy, sx, xpad)
    return out                                          # already NCHW, no transpose


# ---------------------------------------------------------------------------
# Pure numpy reference (PyTorch semantics) for validation
# ---------------------------------------------------------------------------
def _reference(x, conv_w, conv_b, up_w=None, stride=None):
    x = np.asarray(x)
    w1 = np.asarray(conv_w).reshape(conv_w.shape[0], conv_w.shape[1])
    b1 = np.asarray(conv_b)
    y = np.einsum("nchw,dc->ndhw", x, w1) + b1[None, :, None, None]
    if up_w is None:
        return y
    wt = np.asarray(up_w)
    B, C, H, W = y.shape
    k, s = wt.shape[2], int(stride)
    OH, OW = (H - 1) * s + k, (W - 1) * s + k
    out = np.zeros((B, C, OH, OW), np.float32)
    for iy in range(H):
        for ix in range(W):
            out[:, :, iy * s:iy * s + k, ix * s:ix * s + k] += np.einsum(
                "nc,cdyx->ndyx", y[:, :, iy, ix], wt
            )
    return out


# ---------------------------------------------------------------------------
# Demo
# ---------------------------------------------------------------------------
if __name__ == "__main__":
    B, CIN, H, W = 2, 4, 16, 16     # num_output = 4
    NCLS = 4                        # num_class
    KSZ, STRIDE = 4, 2              # upsample config

    key = jax.random.PRNGKey(0)
    kx, kw, kb = jax.random.split(key, 3)
    x = jax.random.normal(kx, (B, CIN, H, W), jnp.float32)
    conv_w = jax.random.normal(kw, (NCLS, CIN, 1, 1), jnp.float32) * 0.1
    conv_b = jax.random.normal(kb, (NCLS,), jnp.float32) * 0.1
    up_w = jnp.asarray(init_bilinear((NCLS, NCLS, KSZ, KSZ)))

    # upsample branch (fused 1x1 conv + bilinear ConvTranspose2d)
    out_up = side_output_forward(x, conv_w, conv_b, up_w=up_w, stride=STRIDE)
    out_up = jax.block_until_ready(out_up)
    ref_up = _reference(x, conv_w, conv_b, up_w=up_w, stride=STRIDE)
    assert out_up.shape == ref_up.shape
    assert np.allclose(np.asarray(out_up), ref_up, rtol=1e-4, atol=1e-4)

    # no-upsample branch (1x1 conv only)
    out_plain = side_output_forward(x, conv_w, conv_b)
    out_plain = jax.block_until_ready(out_plain)
    ref_plain = _reference(x, conv_w, conv_b)
    assert out_plain.shape == ref_plain.shape
    assert np.allclose(np.asarray(out_plain), ref_plain, rtol=1e-4, atol=1e-4)

    print("KERNEL_OK")
</pallas_src>

<mosaic_0001>
module attributes {stable_mosaic.version = 11 : i64} {
  func.func @kernel(%arg0: i32, %arg1: memref<256xf32, #tpu.memory_space<smem>>, %arg2: memref<16x17x17xf32, #tpu.memory_space<vmem>>, %arg3: memref<2x34x17xf32, #tpu.memory_space<vmem>>, %arg4: memref<2x17x34xf32, #tpu.memory_space<vmem>>, %arg5: memref<1x4x18x18xf32, #tpu.memory_space<vmem>>, %arg6: memref<1x4x34x34xf32, #tpu.memory_space<vmem>>) attributes {dimension_semantics = [#tpu.dimension_semantics<parallel>], iteration_bounds = array<i64: 2>, scalar_prefetch = 0 : i64, scratch_operands = 0 : i64, tpu.core_type = #tpu.core_type<tc>, window_params = [{transform_indices = @transform_0, window_bounds = array<i64: 256>}, {pipeline_mode = #tpu.pipeline_mode<synchronous>, transform_indices = @transform_1, window_bounds = array<i64: 16, 17, 17>}, {pipeline_mode = #tpu.pipeline_mode<synchronous>, transform_indices = @transform_2, window_bounds = array<i64: 2, 34, 17>}, {pipeline_mode = #tpu.pipeline_mode<synchronous>, transform_indices = @transform_3, window_bounds = array<i64: 2, 17, 34>}, {transform_indices = @transform_4, window_bounds = array<i64: 1, 4, 18, 18>}, {transform_indices = @transform_5, window_bounds = array<i64: 1, 4, 34, 34>}]} {
    %c0 = arith.constant 0 : index
    %c0_0 = arith.constant 0 : index
    %c0_1 = arith.constant 0 : index
    %0 = vector.load %arg2[%c0, %c0_0, %c0_1] : memref<16x17x17xf32, #tpu.memory_space<vmem>>, vector<1x17x17xf32>
    %1 = vector.shape_cast %0 : vector<1x17x17xf32> to vector<17x17xf32>
    %c1 = arith.constant 1 : index
    %c0_2 = arith.constant 0 : index
    %c0_3 = arith.constant 0 : index
    %2 = vector.load %arg2[%c1, %c0_2, %c0_3] : memref<16x17x17xf32, #tpu.memory_space<vmem>>, vector<1x17x17xf32>
    %3 = vector.shape_cast %2 : vector<1x17x17xf32> to vector<17x17xf32>
    %c2 = arith.constant 2 : index
    %c0_4 = arith.constant 0 : index
    %c0_5 = arith.constant 0 : index
    %4 = vector.load %arg2[%c2, %c0_4, %c0_5] : memref<16x17x17xf32, #tpu.memory_space<vmem>>, vector<1x17x17xf32>
    %5 = vector.shape_cast %4 : vector<1x17x17xf32> to vector<17x17xf32>
    %c3 = arith.constant 3 : index
    %c0_6 = arith.constant 0 : index
    %c0_7 = arith.constant 0 : index
    %6 = vector.load %arg2[%c3, %c0_6, %c0_7] : memref<16x17x17xf32, #tpu.memory_space<vmem>>, vector<1x17x17xf32>
    %7 = vector.shape_cast %6 : vector<1x17x17xf32> to vector<17x17xf32>
    %c0_8 = arith.constant 0 : index
    %c0_9 = arith.constant 0 : index
    %c1_10 = arith.constant 1 : index
    %c1_11 = arith.constant 1 : index
    %8 = vector.load %arg5[%c0_8, %c0_9, %c1_10, %c1_11] : memref<1x4x18x18xf32, #tpu.memory_space<vmem>>, vector<1x1x17x17xf32>
    %9 = vector.shape_cast %8 : vector<1x1x17x17xf32> to vector<17x17xf32>
    %c0_12 = arith.constant 0 : index
    %10 = memref.load %arg1[%c0_12] : memref<256xf32, #tpu.memory_space<smem>>
    %11 = vector.broadcast %10 : f32 to vector<17x17xf32>
    %12 = arith.mulf %11, %9 : vector<17x17xf32>
    %13 = arith.addf %1, %12 : vector<17x17xf32>
    %c16 = arith.constant 16 : index
    %14 = memref.load %arg1[%c16] : memref<256xf32, #tpu.memory_space<smem>>
    %15 = vector.broadcast %14 : f32 to vector<17x17xf32>
    %16 = arith.mulf %15, %9 : vector<17x17xf32>
    %17 = arith.addf %3, %16 : vector<17x17xf32>
    %c32 = arith.constant 32 : index
    %18 = memref.load %arg1[%c32] : memref<256xf32, #tpu.memory_space<smem>>
    %19 = vector.broadcast %18 : f32 to vector<17x17xf32>
    %20 = arith.mulf %19, %9 : vector<17x17xf32>
    %21 = arith.addf %5, %20 : vector<17x17xf32>
    %c48 = arith.constant 48 : index
    %22 = memref.load %arg1[%c48] : memref<256xf32, #tpu.memory_space<smem>>
    %23 = vector.broadcast %22 : f32 to vector<17x17xf32>
    %24 = arith.mulf %23, %9 : vector<17x17xf32>
    %25 = arith.addf %7, %24 : vector<17x17xf32>
    %c0_13 = arith.constant 0 : index
    %c1_14 = arith.constant 1 : index
    %c1_15 = arith.constant 1 : index
    %c1_16 = arith.constant 1 : index
    %26 = vector.load %arg5[%c0_13, %c1_14, %c1_15, %c1_16] : memref<1x4x18x18xf32, #tpu.memory_space<vmem>>, vector<1x1x17x17xf32>
    %27 = vector.shape_cast %26 : vector<1x1x17x17xf32> to vector<17x17xf32>
    %c64 = arith.constant 64 : index
    %28 = memref.load %arg1[%c64] : memref<256xf32, #tpu.memory_space<smem>>
    %29 = vector.broadcast %28 : f32 to vector<17x17xf32>
    %30 = arith.mulf %29, %27 : vector<17x17xf32>
    %31 = arith.addf %13, %30 : vector<17x17xf32>
    %c80 = arith.constant 80 : index
    %32 = memref.load %arg1[%c80] : memref<256xf32, #tpu.memory_space<smem>>
    %33 = vector.broadcast %32 : f32 to vector<17x17xf32>
    %34 = arith.mulf %33, %27 : vector<17x17xf32>
    %35 = arith.addf %17, %34 : vector<17x17xf32>
    %c96 = arith.constant 96 : index
    %36 = memref.load %arg1[%c96] : memref<256xf32, #tpu.memory_space<smem>>
    %37 = vector.broadcast %36 : f32 to vector<17x17xf32>
    %38 = arith.mulf %37, %27 : vector<17x17xf32>
    %39 = arith.addf %21, %38 : vector<17x17xf32>
    %c112 = arith.constant 112 : index
    %40 = memref.load %arg1[%c112] : memref<256xf32, #tpu.memory_space<smem>>
    %41 = vector.broadcast %40 : f32 to vector<17x17xf32>
    %42 = arith.mulf %41, %27 : vector<17x17xf32>
    %43 = arith.addf %25, %42 : vector<17x17xf32>
    %c0_17 = arith.constant 0 : index
    %c2_18 = arith.constant 2 : index
    %c1_19 = arith.constant 1 : index
    %c1_20 = arith.constant 1 : index
    %44 = vector.load %arg5[%c0_17, %c2_18, %c1_19, %c1_20] : memref<1x4x18x18xf32, #tpu.memory_space<vmem>>, vector<1x1x17x17xf32>
    %45 = vector.shape_cast %44 : vector<1x1x17x17xf32> to vector<17x17xf32>
    %c128 = arith.constant 128 : index
    %46 = memref.load %arg1[%c128] : memref<256xf32, #tpu.memory_space<smem>>
    %47 = vector.broadcast %46 : f32 to vector<17x17xf32>
    %48 = arith.mulf %47, %45 : vector<17x17xf32>
    %49 = arith.addf %31, %48 : vector<17x17xf32>
    %c144 = arith.constant 144 : index
    %50 = memref.load %arg1[%c144] : memref<256xf32, #tpu.memory_space<smem>>
    %51 = vector.broadcast %50 : f32 to vector<17x17xf32>
    %52 = arith.mulf %51, %45 : vector<17x17xf32>
    %53 = arith.addf %35, %52 : vector<17x17xf32>
    %c160 = arith.constant 160 : index
    %54 = memref.load %arg1[%c160] : memref<256xf32, #tpu.memory_space<smem>>
    %55 = vector.broadcast %54 : f32 to vector<17x17xf32>
    %56 = arith.mulf %55, %45 : vector<17x17xf32>
    %57 = arith.addf %39, %56 : vector<17x17xf32>
    %c176 = arith.constant 176 : index
    %58 = memref.load %arg1[%c176] : memref<256xf32, #tpu.memory_space<smem>>
    %59 = vector.broadcast %58 : f32 to vector<17x17xf32>
    %60 = arith.mulf %59, %45 : vector<17x17xf32>
    %61 = arith.addf %43, %60 : vector<17x17xf32>
    %c0_21 = arith.constant 0 : index
    %c3_22 = arith.constant 3 : index
    %c1_23 = arith.constant 1 : index
    %c1_24 = arith.constant 1 : index
    %62 = vector.load %arg5[%c0_21, %c3_22, %c1_23, %c1_24] : memref<1x4x18x18xf32, #tpu.memory_space<vmem>>, vector<1x1x17x17xf32>
    %63 = vector.shape_cast %62 : vector<1x1x17x17xf32> to vector<17x17xf32>
    %c192 = arith.constant 192 : index
    %64 = memref.load %arg1[%c192] : memref<256xf32, #tpu.memory_space<smem>>
    %65 = vector.broadcast %64 : f32 to vector<17x17xf32>
    %66 = arith.mulf %65, %63 : vector<17x17xf32>
    %67 = arith.addf %49, %66 : vector<17x17xf32>
    %c208 = arith.constant 208 : index
    %68 = memref.load %arg1[%c208] : memref<256xf32, #tpu.memory_space<smem>>
    %69 = vector.broadcast %68 : f32 to vector<17x17xf32>
    %70 = arith.mulf %69, %63 : vector<17x17xf32>
    %71 = arith.addf %53, %70 : vector<17x17xf32>
    %c224 = arith.constant 224 : index
    %72 = memref.load %arg1[%c224] : memref<256xf32, #tpu.memory_space<smem>>
    %73 = vector.broadcast %72 : f32 to vector<17x17xf32>
    %74 = arith.mulf %73, %63 : vector<17x17xf32>
    %75 = arith.addf %57, %74 : vector<17x17xf32>
    %c240 = arith.constant 240 : index
    %76 = memref.load %arg1[%c240] : memref<256xf32, #tpu.memory_space<smem>>
    %77 = vector.broadcast %76 : f32 to vector<17x17xf32>
    %78 = arith.mulf %77, %63 : vector<17x17xf32>
    %79 = arith.addf %61, %78 : vector<17x17xf32>
    %c0_25 = arith.constant 0 : index
    %c0_26 = arith.constant 0 : index
    %c1_27 = arith.constant 1 : index
    %c0_28 = arith.constant 0 : index
    %80 = vector.load %arg5[%c0_25, %c0_26, %c1_27, %c0_28] : memref<1x4x18x18xf32, #tpu.memory_space<vmem>>, vector<1x1x17x17xf32>
    %81 = vector.shape_cast %80 : vector<1x1x17x17xf32> to vector<17x17xf32>
    %c2_29 = arith.constant 2 : index
    %82 = memref.load %arg1[%c2_29] : memref<256xf32, #tpu.memory_space<smem>>
    %83 = vector.broadcast %82 : f32 to vector<17x17xf32>
    %84 = arith.mulf %83, %81 : vector<17x17xf32>
    %85 = arith.addf %67, %84 : vector<17x17xf32>
    %c18 = arith.constant 18 : index
    %86 = memref.load %arg1[%c18] : memref<256xf32, #tpu.memory_space<smem>>
    %87 = vector.broadcast %86 : f32 to vector<17x17xf32>
    %88 = arith.mulf %87, %81 : vector<17x17xf32>
    %89 = arith.addf %71, %88 : vector<17x17xf32>
    %c34 = arith.constant 34 : index
    %90 = memref.load %arg1[%c34] : memref<256xf32, #tpu.memory_space<smem>>
    %91 = vector.broadcast %90 : f32 to vector<17x17xf32>
    %92 = arith.mulf %91, %81 : vector<17x17xf32>
    %93 = arith.addf %75, %92 : vector<17x17xf32>
    %c50 = arith.constant 50 : index
    %94 = memref.load %arg1[%c50] : memref<256xf32, #tpu.memory_space<smem>>
    %95 = vector.broadcast %94 : f32 to vector<17x17xf32>
    %96 = arith.mulf %95, %81 : vector<17x17xf32>
    %97 = arith.addf %79, %96 : vector<17x17xf32>
    %c0_30 = arith.constant 0 : index
    %c1_31 = arith.constant 1 : index
    %c1_32 = arith.constant 1 : index
    %c0_33 = arith.constant 0 : index
    %98 = vector.load %arg5[%c0_30, %c1_31, %c1_32, %c0_33] : memref<1x4x18x18xf32, #tpu.memory_space<vmem>>, vector<1x1x17x17xf32>
    %99 = vector.shape_cast %98 : vector<1x1x17x17xf32> to vector<17x17xf32>
    %c66 = arith.constant 66 : index
    %100 = memref.load %arg1[%c66] : memref<256xf32, #tpu.memory_space<smem>>
    %101 = vector.broadcast %100 : f32 to vector<17x17xf32>
    %102 = arith.mulf %101, %99 : vector<17x17xf32>
    %103 = arith.addf %85, %102 : vector<17x17xf32>
    %c82 = arith.constant 82 : index
    %104 = memref.load %arg1[%c82] : memref<256xf32, #tpu.memory_space<smem>>
    %105 = vector.broadcast %104 : f32 to vector<17x17xf32>
    %106 = arith.mulf %105, %99 : vector<17x17xf32>
    %107 = arith.addf %89, %106 : vector<17x17xf32>
    %c98 = arith.constant 98 : index
    %108 = memref.load %arg1[%c98] : memref<256xf32, #tpu.memory_space<smem>>
    %109 = vector.broadcast %108 : f32 to vector<17x17xf32>
    %110 = arith.mulf %109, %99 : vector<17x17xf32>
    %111 = arith.addf %93, %110 : vector<17x17xf32>
    %c114 = arith.constant 114 : index
    %112 = memref.load %arg1[%c114] : memref<256xf32, #tpu.memory_space<smem>>
    %113 = vector.broadcast %112 : f32 to vector<17x17xf32>
    %114 = arith.mulf %113, %99 : vector<17x17xf32>
    %115 = arith.addf %97, %114 : vector<17x17xf32>
    %c0_34 = arith.constant 0 : index
    %c2_35 = arith.constant 2 : index
    %c1_36 = arith.constant 1 : index
    %c0_37 = arith.constant 0 : index
    %116 = vector.load %arg5[%c0_34, %c2_35, %c1_36, %c0_37] : memref<1x4x18x18xf32, #tpu.memory_space<vmem>>, vector<1x1x17x17xf32>
    %117 = vector.shape_cast %116 : vector<1x1x17x17xf32> to vector<17x17xf32>
    %c130 = arith.constant 130 : index
    %118 = memref.load %arg1[%c130] : memref<256xf32, #tpu.memory_space<smem>>
    %119 = vector.broadcast %118 : f32 to vector<17x17xf32>
    %120 = arith.mulf %119, %117 : vector<17x17xf32>
    %121 = arith.addf %103, %120 : vector<17x17xf32>
    %c146 = arith.constant 146 : index
    %122 = memref.load %arg1[%c146] : memref<256xf32, #tpu.memory_space<smem>>
    %123 = vector.broadcast %122 : f32 to vector<17x17xf32>
    %124 = arith.mulf %123, %117 : vector<17x17xf32>
    %125 = arith.addf %107, %124 : vector<17x17xf32>
    %c162 = arith.constant 162 : index
    %126 = memref.load %arg1[%c162] : memref<256xf32, #tpu.memory_space<smem>>
    %127 = vector.broadcast %126 : f32 to vector<17x17xf32>
    %128 = arith.mulf %127, %117 : vector<17x17xf32>
    %129 = arith.addf %111, %128 : vector<17x17xf32>
    %c178 = arith.constant 178 : index
    %130 = memref.load %arg1[%c178] : memref<256xf32, #tpu.memory_space<smem>>
    %131 = vector.broadcast %130 : f32 to vector<17x17xf32>
    %132 = arith.mulf %131, %117 : vector<17x17xf32>
    %133 = arith.addf %115, %132 : vector<17x17xf32>
    %c0_38 = arith.constant 0 : index
    %c3_39 = arith.constant 3 : index
    %c1_40 = arith.constant 1 : index
    %c0_41 = arith.constant 0 : index
    %134 = vector.load %arg5[%c0_38, %c3_39, %c1_40, %c0_41] : memref<1x4x18x18xf32, #tpu.memory_space<vmem>>, vector<1x1x17x17xf32>
    %135 = vector.shape_cast %134 : vector<1x1x17x17xf32> to vector<17x17xf32>
    %c194 = arith.constant 194 : index
    %136 = memref.load %arg1[%c194] : memref<256xf32, #tpu.memory_space<smem>>
    %137 = vector.broadcast %136 : f32 to vector<17x17xf32>
    %138 = arith.mulf %137, %135 : vector<17x17xf32>
    %139 = arith.addf %121, %138 : vector<17x17xf32>
    %c210 = arith.constant 210 : index
    %140 = memref.load %arg1[%c210] : memref<256xf32, #tpu.memory_space<smem>>
    %141 = vector.broadcast %140 : f32 to vector<17x17xf32>
    %142 = arith.mulf %141, %135 : vector<17x17xf32>
    %143 = arith.addf %125, %142 : vector<17x17xf32>
    %c226 = arith.constant 226 : index
    %144 = memref.load %arg1[%c226] : memref<256xf32, #tpu.memory_space<smem>>
    %145 = vector.broadcast %144 : f32 to vector<17x17xf32>
    %146 = arith.mulf %145, %135 : vector<17x17xf32>
    %147 = arith.addf %129, %146 : vector<17x17xf32>
    %c242 = arith.constant 242 : index
    %148 = memref.load %arg1[%c242] : memref<256xf32, #tpu.memory_space<smem>>
    %149 = vector.broadcast %148 : f32 to vector<17x17xf32>
    %150 = arith.mulf %149, %135 : vector<17x17xf32>
    %151 = arith.addf %133, %150 : vector<17x17xf32>
    %c0_42 = arith.constant 0 : index
    %c0_43 = arith.constant 0 : index
    %c0_44 = arith.constant 0 : index
    %c1_45 = arith.constant 1 : index
    %152 = vector.load %arg5[%c0_42, %c0_43, %c0_44, %c1_45] : memref<1x4x18x18xf32, #tpu.memory_space<vmem>>, vector<1x1x17x17xf32>
    %153 = vector.shape_cast %152 : vector<1x1x17x17xf32> to vector<17x17xf32>
    %c8 = arith.constant 8 : index
    %154 = memref.load %arg1[%c8] : memref<256xf32, #tpu.memory_space<smem>>
    %155 = vector.broadcast %154 : f32 to vector<17x17xf32>
    %156 = arith.mulf %155, %153 : vector<17x17xf32>
    %157 = arith.addf %139, %156 : vector<17x17xf32>
    %c24 = arith.constant 24 : index
    %158 = memref.load %arg1[%c24] : memref<256xf32, #tpu.memory_space<smem>>
    %159 = vector.broadcast %158 : f32 to vector<17x17xf32>
    %160 = arith.mulf %159, %153 : vector<17x17xf32>
    %161 = arith.addf %143, %160 : vector<17x17xf32>
    %c40 = arith.constant 40 : index
    %162 = memref.load %arg1[%c40] : memref<256xf32, #tpu.memory_space<smem>>
    %163 = vector.broadcast %162 : f32 to vector<17x17xf32>
    %164 = arith.mulf %163, %153 : vector<17x17xf32>
    %165 = arith.addf %147, %164 : vector<17x17xf32>
    %c56 = arith.constant 56 : index
    %166 = memref.load %arg1[%c56] : memref<256xf32, #tpu.memory_space<smem>>
    %167 = vector.broadcast %166 : f32 to vector<17x17xf32>
    %168 = arith.mulf %167, %153 : vector<17x17xf32>
    %169 = arith.addf %151, %168 : vector<17x17xf32>
    %c0_46 = arith.constant 0 : index
    %c1_47 = arith.constant 1 : index
    %c0_48 = arith.constant 0 : index
    %c1_49 = arith.constant 1 : index
    %170 = vector.load %arg5[%c0_46, %c1_47, %c0_48, %c1_49] : memref<1x4x18x18xf32, #tpu.memory_space<vmem>>, vector<1x1x17x17xf32>
    %171 = vector.shape_cast %170 : vector<1x1x17x17xf32> to vector<17x17xf32>
    %c72 = arith.constant 72 : index
    %172 = memref.load %arg1[%c72] : memref<256xf32, #tpu.memory_space<smem>>
    %173 = vector.broadcast %172 : f32 to vector<17x17xf32>
    %174 = arith.mulf %173, %171 : vector<17x17xf32>
    %175 = arith.addf %157, %174 : vector<17x17xf32>
    %c88 = arith.constant 88 : index
    %176 = memref.load %arg1[%c88] : memref<256xf32, #tpu.memory_space<smem>>
    %177 = vector.broadcast %176 : f32 to vector<17x17xf32>
    %178 = arith.mulf %177, %171 : vector<17x17xf32>
    %179 = arith.addf %161, %178 : vector<17x17xf32>
    %c104 = arith.constant 104 : index
    %180 = memref.load %arg1[%c104] : memref<256xf32, #tpu.memory_space<smem>>
    %181 = vector.broadcast %180 : f32 to vector<17x17xf32>
    %182 = arith.mulf %181, %171 : vector<17x17xf32>
    %183 = arith.addf %165, %182 : vector<17x17xf32>
    %c120 = arith.constant 120 : index
    %184 = memref.load %arg1[%c120] : memref<256xf32, #tpu.memory_space<smem>>
    %185 = vector.broadcast %184 : f32 to vector<17x17xf32>
    %186 = arith.mulf %185, %171 : vector<17x17xf32>
    %187 = arith.addf %169, %186 : vector<17x17xf32>
    %c0_50 = arith.constant 0 : index
    %c2_51 = arith.constant 2 : index
    %c0_52 = arith.constant 0 : index
    %c1_53 = arith.constant 1 : index
    %188 = vector.load %arg5[%c0_50, %c2_51, %c0_52, %c1_53] : memref<1x4x18x18xf32, #tpu.memory_space<vmem>>, vector<1x1x17x17xf32>
    %189 = vector.shape_cast %188 : vector<1x1x17x17xf32> to vector<17x17xf32>
    %c136 = arith.constant 136 : index
    %190 = memref.load %arg1[%c136] : memref<256xf32, #tpu.memory_space<smem>>
    %191 = vector.broadcast %190 : f32 to vector<17x17xf32>
    %192 = arith.mulf %191, %189 : vector<17x17xf32>
    %193 = arith.addf %175, %192 : vector<17x17xf32>
    %c152 = arith.constant 152 : index
    %194 = memref.load %arg1[%c152] : memref<256xf32, #tpu.memory_space<smem>>
    %195 = vector.broadcast %194 : f32 to vector<17x17xf32>
    %196 = arith.mulf %195, %189 : vector<17x17xf32>
    %197 = arith.addf %179, %196 : vector<17x17xf32>
    %c168 = arith.constant 168 : index
    %198 = memref.load %arg1[%c168] : memref<256xf32, #tpu.memory_space<smem>>
    %199 = vector.broadcast %198 : f32 to vector<17x17xf32>
    %200 = arith.mulf %199, %189 : vector<17x17xf32>
    %201 = arith.addf %183, %200 : vector<17x17xf32>
    %c184 = arith.constant 184 : index
    %202 = memref.load %arg1[%c184] : memref<256xf32, #tpu.memory_space<smem>>
    %203 = vector.broadcast %202 : f32 to vector<17x17xf32>
    %204 = arith.mulf %203, %189 : vector<17x17xf32>
    %205 = arith.addf %187, %204 : vector<17x17xf32>
    %c0_54 = arith.constant 0 : index
    %c3_55 = arith.constant 3 : index
    %c0_56 = arith.constant 0 : index
    %c1_57 = arith.constant 1 : index
    %206 = vector.load %arg5[%c0_54, %c3_55, %c0_56, %c1_57] : memref<1x4x18x18xf32, #tpu.memory_space<vmem>>, vector<1x1x17x17xf32>
    %207 = vector.shape_cast %206 : vector<1x1x17x17xf32> to vector<17x17xf32>
    %c200 = arith.constant 200 : index
    %208 = memref.load %arg1[%c200] : memref<256xf32, #tpu.memory_space<smem>>
    %209 = vector.broadcast %208 : f32 to vector<17x17xf32>
    %210 = arith.mulf %209, %207 : vector<17x17xf32>
    %211 = arith.addf %193, %210 : vector<17x17xf32>
    %c216 = arith.constant 216 : index
    %212 = memref.load %arg1[%c216] : memref<256xf32, #tpu.memory_space<smem>>
    %213 = vector.broadcast %212 : f32 to vector<17x17xf32>
    %214 = arith.mulf %213, %207 : vector<17x17xf32>
    %215 = arith.addf %197, %214 : vector<17x17xf32>
    %c232 = arith.constant 232 : index
    %216 = memref.load %arg1[%c232] : memref<256xf32, #tpu.memory_space<smem>>
    %217 = vector.broadcast %216 : f32 to vector<17x17xf32>
    %218 = arith.mulf %217, %207 : vector<17x17xf32>
    %219 = arith.addf %201, %218 : vector<17x17xf32>
    %c248 = arith.constant 248 : index
    %220 = memref.load %arg1[%c248] : memref<256xf32, #tpu.memory_space<smem>>
    %221 = vector.broadcast %220 : f32 to vector<17x17xf32>
    %222 = arith.mulf %221, %207 : vector<17x17xf32>
    %223 = arith.addf %205, %222 : vector<17x17xf32>
    %c0_58 = arith.constant 0 : index
    %c0_59 = arith.constant 0 : index
    %c0_60 = arith.constant 0 : index
    %c0_61 = arith.constant 0 : index
    %224 = vector.load %arg5[%c0_58, %c0_59, %c0_60, %c0_61] : memref<1x4x18x18xf32, #tpu.memory_space<vmem>>, vector<1x1x17x17xf32>
    %225 = vector.shape_cast %224 : vector<1x1x17x17xf32> to vector<17x17xf32>
    %c10 = arith.constant 10 : index
    %226 = memref.load %arg1[%c10] : memref<256xf32, #tpu.memory_space<smem>>
    %227 = vector.broadcast %226 : f32 to vector<17x17xf32>
    %228 = arith.mulf %227, %225 : vector<17x17xf32>
    %229 = arith.addf %211, %228 : vector<17x17xf32>
    %c26 = arith.constant 26 : index
    %230 = memref.load %arg1[%c26] : memref<256xf32, #tpu.memory_space<smem>>
    %231 = vector.broadcast %230 : f32 to vector<17x17xf32>
    %232 = arith.mulf %231, %225 : vector<17x17xf32>
    %233 = arith.addf %215, %232 : vector<17x17xf32>
    %c42 = arith.constant 42 : index
    %234 = memref.load %arg1[%c42] : memref<256xf32, #tpu.memory_space<smem>>
    %235 = vector.broadcast %234 : f32 to vector<17x17xf32>
    %236 = arith.mulf %235, %225 : vector<17x17xf32>
    %237 = arith.addf %219, %236 : vector<17x17xf32>
    %c58 = arith.constant 58 : index
    %238 = memref.load %arg1[%c58] : memref<256xf32, #tpu.memory_space<smem>>
    %239 = vector.broadcast %238 : f32 to vector<17x17xf32>
    %240 = arith.mulf %239, %225 : vector<17x17xf32>
    %241 = arith.addf %223, %240 : vector<17x17xf32>
    %c0_62 = arith.constant 0 : index
    %c1_63 = arith.constant 1 : index
    %c0_64 = arith.constant 0 : index
    %c0_65 = arith.constant 0 : index
    %242 = vector.load %arg5[%c0_62, %c1_63, %c0_64, %c0_65] : memref<1x4x18x18xf32, #tpu.memory_space<vmem>>, vector<1x1x17x17xf32>
    %243 = vector.shape_cast %242 : vector<1x1x17x17xf32> to vector<17x17xf32>
    %c74 = arith.constant 74 : index
    %244 = memref.load %arg1[%c74] : memref<256xf32, #tpu.memory_space<smem>>
    %245 = vector.broadcast %244 : f32 to vector<17x17xf32>
    %246 = arith.mulf %245, %243 : vector<17x17xf32>
    %247 = arith.addf %229, %246 : vector<17x17xf32>
    %c90 = arith.constant 90 : index
    %248 = memref.load %arg1[%c90] : memref<256xf32, #tpu.memory_space<smem>>
    %249 = vector.broadcast %248 : f32 to vector<17x17xf32>
    %250 = arith.mulf %249, %243 : vector<17x17xf32>
    %251 = arith.addf %233, %250 : vector<17x17xf32>
    %c106 = arith.constant 106 : index
    %252 = memref.load %arg1[%c106] : memref<256xf32, #tpu.memory_space<smem>>
    %253 = vector.broadcast %252 : f32 to vector<17x17xf32>
    %254 = arith.mulf %253, %243 : vector<17x17xf32>
    %255 = arith.addf %237, %254 : vector<17x17xf32>
    %c122 = arith.constant 122 : index
    %256 = memref.load %arg1[%c122] : memref<256xf32, #tpu.memory_space<smem>>
    %257 = vector.broadcast %256 : f32 to vector<17x17xf32>
    %258 = arith.mulf %257, %243 : vector<17x17xf32>
    %259 = arith.addf %241, %258 : vector<17x17xf32>
    %c0_66 = arith.constant 0 : index
    %c2_67 = arith.constant 2 : index
    %c0_68 = arith.constant 0 : index
    %c0_69 = arith.constant 0 : index
    %260 = vector.load %arg5[%c0_66, %c2_67, %c0_68, %c0_69] : memref<1x4x18x18xf32, #tpu.memory_space<vmem>>, vector<1x1x17x17xf32>
    %261 = vector.shape_cast %260 : vector<1x1x17x17xf32> to vector<17x17xf32>
    %c138 = arith.constant 138 : index
    %262 = memref.load %arg1[%c138] : memref<256xf32, #tpu.memory_space<smem>>
    %263 = vector.broadcast %262 : f32 to vector<17x17xf32>
    %264 = arith.mulf %263, %261 : vector<17x17xf32>
    %265 = arith.addf %247, %264 : vector<17x17xf32>
    %c154 = arith.constant 154 : index
    %266 = memref.load %arg1[%c154] : memref<256xf32, #tpu.memory_space<smem>>
    %267 = vector.broadcast %266 : f32 to vector<17x17xf32>
    %268 = arith.mulf %267, %261 : vector<17x17xf32>
    %269 = arith.addf %251, %268 : vector<17x17xf32>
    %c170 = arith.constant 170 : index
    %270 = memref.load %arg1[%c170] : memref<256xf32, #tpu.memory_space<smem>>
    %271 = vector.broadcast %270 : f32 to vector<17x17xf32>
    %272 = arith.mulf %271, %261 : vector<17x17xf32>
    %273 = arith.addf %255, %272 : vector<17x17xf32>
    %c186 = arith.constant 186 : index
    %274 = memref.load %arg1[%c186] : memref<256xf32, #tpu.memory_space<smem>>
    %275 = vector.broadcast %274 : f32 to vector<17x17xf32>
    %276 = arith.mulf %275, %261 : vector<17x17xf32>
    %277 = arith.addf %259, %276 : vector<17x17xf32>
    %c0_70 = arith.constant 0 : index
    %c3_71 = arith.constant 3 : index
    %c0_72 = arith.constant 0 : index
    %c0_73 = arith.constant 0 : index
    %278 = vector.load %arg5[%c0_70, %c3_71, %c0_72, %c0_73] : memref<1x4x18x18xf32, #tpu.memory_space<vmem>>, vector<1x1x17x17xf32>
    %279 = vector.shape_cast %278 : vector<1x1x17x17xf32> to vector<17x17xf32>
    %c202 = arith.constant 202 : index
    %280 = memref.load %arg1[%c202] : memref<256xf32, #tpu.memory_space<smem>>
    %281 = vector.broadcast %280 : f32 to vector<17x17xf32>
    %282 = arith.mulf %281, %279 : vector<17x17xf32>
    %283 = arith.addf %265, %282 : vector<17x17xf32>
    %c218 = arith.constant 218 : index
    %284 = memref.load %arg1[%c218] : memref<256xf32, #tpu.memory_space<smem>>
    %285 = vector.broadcast %284 : f32 to vector<17x17xf32>
    %286 = arith.mulf %285, %279 : vector<17x17xf32>
    %287 = arith.addf %269, %286 : vector<17x17xf32>
    %c234 = arith.constant 234 : index
    %288 = memref.load %arg1[%c234] : memref<256xf32, #tpu.memory_space<smem>>
    %289 = vector.broadcast %288 : f32 to vector<17x17xf32>
    %290 = arith.mulf %289, %279 : vector<17x17xf32>
    %291 = arith.addf %273, %290 : vector<17x17xf32>
    %c250 = arith.constant 250 : index
    %292 = memref.load %arg1[%c250] : memref<256xf32, #tpu.memory_space<smem>>
    %293 = vector.broadcast %292 : f32 to vector<17x17xf32>
    %294 = arith.mulf %293, %279 : vector<17x17xf32>
    %295 = arith.addf %277, %294 : vector<17x17xf32>
    %c4 = arith.constant 4 : index
    %c0_74 = arith.constant 0 : index
    %c0_75 = arith.constant 0 : index
    %296 = vector.load %arg2[%c4, %c0_74, %c0_75] : memref<16x17x17xf32, #tpu.memory_space<vmem>>, vector<1x17x17xf32>
    %297 = vector.shape_cast %296 : vector<1x17x17xf32> to vector<17x17xf32>
    %c5 = arith.constant 5 : index
    %c0_76 = arith.constant 0 : index
    %c0_77 = arith.constant 0 : index
    %298 = vector.load %arg2[%c5, %c0_76, %c0_77] : memref<16x17x17xf32, #tpu.memory_space<vmem>>, vector<1x17x17xf32>
    %299 = vector.shape_cast %298 : vector<1x17x17xf32> to vector<17x17xf32>
    %c6 = arith.constant 6 : index
    %c0_78 = arith.constant 0 : index
    %c0_79 = arith.constant 0 : index
    %300 = vector.load %arg2[%c6, %c0_78, %c0_79] : memref<16x17x17xf32, #tpu.memory_space<vmem>>, vector<1x17x17xf32>
    %301 = vector.shape_cast %300 : vector<1x17x17xf32> to vector<17x17xf32>
    %c7 = arith.constant 7 : index
    %c0_80 = arith.constant 0 : index
    %c0_81 = arith.constant 0 : index
    %302 = vector.load %arg2[%c7, %c0_80, %c0_81] : memref<16x17x17xf32, #tpu.memory_space<vmem>>, vector<1x17x17xf32>
    %303 = vector.shape_cast %302 : vector<1x17x17xf32> to vector<17x17xf32>
    %c0_82 = arith.constant 0 : index
    %c0_83 = arith.constant 0 : index
    %c1_84 = arith.constant 1 : index
    %c1_85 = arith.constant 1 : index
    %304 = vector.load %arg5[%c0_82, %c0_83, %c1_84, %c1_85] : memref<1x4x18x18xf32, #tpu.memory_space<vmem>>, vector<1x1x17x17xf32>
    %305 = vector.shape_cast %304 : vector<1x1x17x17xf32> to vector<17x17xf32>
    %c1_86 = arith.constant 1 : index
    %306 = memref.load %arg1[%c1_86] : memref<256xf32, #tpu.memory_space<smem>>
    %307 = vector.broadcast %306 : f32 to vector<17x17xf32>
    %308 = arith.mulf %307, %305 : vector<17x17xf32>
    %309 = arith.addf %297, %308 : vector<17x17xf32>
    %c17 = arith.constant 17 : index
    %310 = memref.load %arg1[%c17] : memref<256xf32, #tpu.memory_space<smem>>
    %311 = vector.broadcast %310 : f32 to vector<17x17xf32>
    %312 = arith.mulf %311, %305 : vector<17x17xf32>
    %313 = arith.addf %299, %312 : vector<17x17xf32>
    %c33 = arith.constant 33 : index
    %314 = memref.load %arg1[%c33] : memref<256xf32, #tpu.memory_space<smem>>
    %315 = vector.broadcast %314 : f32 to vector<17x17xf32>
    %316 = arith.mulf %315, %305 : vector<17x17xf32>
    %317 = arith.addf %301, %316 : vector<17x17xf32>
    %c49 = arith.constant 49 : index
    %318 = memref.load %arg1[%c49] : memref<256xf32, #tpu.memory_space<smem>>
    %319 = vector.broadcast %318 : f32 to vector<17x17xf32>
    %320 = arith.mulf %319, %305 : vector<17x17xf32>
    %321 = arith.addf %303, %320 : vector<17x17xf32>
    %c0_87 = arith.constant 0 : index
    %c1_88 = arith.constant 1 : index
    %c1_89 = arith.constant 1 : index
    %c1_90 = arith.constant 1 : index
    %322 = vector.load %arg5[%c0_87, %c1_88, %c1_89, %c1_90] : memref<1x4x18x18xf32, #tpu.memory_space<vmem>>, vector<1x1x17x17xf32>
    %323 = vector.shape_cast %322 : vector<1x1x17x17xf32> to vector<17x17xf32>
    %c65 = arith.constant 65 : index
    %324 = memref.load %arg1[%c65] : memref<256xf32, #tpu.memory_space<smem>>
    %325 = vector.broadcast %324 : f32 to vector<17x17xf32>
    %326 = arith.mulf %325, %323 : vector<17x17xf32>
    %327 = arith.addf %309, %326 : vector<17x17xf32>
    %c81 = arith.constant 81 : index
    %328 = memref.load %arg1[%c81] : memref<256xf32, #tpu.memory_space<smem>>
    %329 = vector.broadcast %328 : f32 to vector<17x17xf32>
    %330 = arith.mulf %329, %323 : vector<17x17xf32>
    %331 = arith.addf %313, %330 : vector<17x17xf32>
    %c97 = arith.constant 97 : index
    %332 = memref.load %arg1[%c97] : memref<256xf32, #tpu.memory_space<smem>>
    %333 = vector.broadcast %332 : f32 to vector<17x17xf32>
    %334 = arith.mulf %333, %323 : vector<17x17xf32>
    %335 = arith.addf %317, %334 : vector<17x17xf32>
    %c113 = arith.constant 113 : index
    %336 = memref.load %arg1[%c113] : memref<256xf32, #tpu.memory_space<smem>>
    %337 = vector.broadcast %336 : f32 to vector<17x17xf32>
    %338 = arith.mulf %337, %323 : vector<17x17xf32>
    %339 = arith.addf %321, %338 : vector<17x17xf32>
    %c0_91 = arith.constant 0 : index
    %c2_92 = arith.constant 2 : index
    %c1_93 = arith.constant 1 : index
    %c1_94 = arith.constant 1 : index
    %340 = vector.load %arg5[%c0_91, %c2_92, %c1_93, %c1_94] : memref<1x4x18x18xf32, #tpu.memory_space<vmem>>, vector<1x1x17x17xf32>
    %341 = vector.shape_cast %340 : vector<1x1x17x17xf32> to vector<17x17xf32>
    %c129 = arith.constant 129 : index
    %342 = memref.load %arg1[%c129] : memref<256xf32, #tpu.memory_space<smem>>
    %343 = vector.broadcast %342 : f32 to vector<17x17xf32>
    %344 = arith.mulf %343, %341 : vector<17x17xf32>
    %345 = arith.addf %327, %344 : vector<17x17xf32>
    %c145 = arith.constant 145 : index
    %346 = memref.load %arg1[%c145] : memref<256xf32, #tpu.memory_space<smem>>
    %347 = vector.broadcast %346 : f32 to vector<17x17xf32>
    %348 = arith.mulf %347, %341 : vector<17x17xf32>
    %349 = arith.addf %331, %348 : vector<17x17xf32>
    %c161 = arith.constant 161 : index
    %350 = memref.load %arg1[%c161] : memref<256xf32, #tpu.memory_space<smem>>
    %351 = vector.broadcast %350 : f32 to vector<17x17xf32>
    %352 = arith.mulf %351, %341 : vector<17x17xf32>
    %353 = arith.addf %335, %352 : vector<17x17xf32>
    %c177 = arith.constant 177 : index
    %354 = memref.load %arg1[%c177] : memref<256xf32, #tpu.memory_space<smem>>
    %355 = vector.broadcast %354 : f32 to vector<17x17xf32>
    %356 = arith.mulf %355, %341 : vector<17x17xf32>
    %357 = arith.addf %339, %356 : vector<17x17xf32>
    %c0_95 = arith.constant 0 : index
    %c3_96 = arith.constant 3 : index
    %c1_97 = arith.constant 1 : index
    %c1_98 = arith.constant 1 : index
    %358 = vector.load %arg5[%c0_95, %c3_96, %c1_97, %c1_98] : memref<1x4x18x18xf32, #tpu.memory_space<vmem>>, vector<1x1x17x17xf32>
    %359 = vector.shape_cast %358 : vector<1x1x17x17xf32> to vector<17x17xf32>
    %c193 = arith.constant 193 : index
    %360 = memref.load %arg1[%c193] : memref<256xf32, #tpu.memory_space<smem>>
    %361 = vector.broadcast %360 : f32 to vector<17x17xf32>
    %362 = arith.mulf %361, %359 : vector<17x17xf32>
    %363 = arith.addf %345, %362 : vector<17x17xf32>
    %c209 = arith.constant 209 : index
    %364 = memref.load %arg1[%c209] : memref<256xf32, #tpu.memory_space<smem>>
    %365 = vector.broadcast %364 : f32 to vector<17x17xf32>
    %366 = arith.mulf %365, %359 : vector<17x17xf32>
    %367 = arith.addf %349, %366 : vector<17x17xf32>
    %c225 = arith.constant 225 : index
    %368 = memref.load %arg1[%c225] : memref<256xf32, #tpu.memory_space<smem>>
    %369 = vector.broadcast %368 : f32 to vector<17x17xf32>
    %370 = arith.mulf %369, %359 : vector<17x17xf32>
    %371 = arith.addf %353, %370 : vector<17x17xf32>
    %c241 = arith.constant 241 : index
    %372 = memref.load %arg1[%c241] : memref<256xf32, #tpu.memory_space<smem>>
    %373 = vector.broadcast %372 : f32 to vector<17x17xf32>
    %374 = arith.mulf %373, %359 : vector<17x17xf32>
    %375 = arith.addf %357, %374 : vector<17x17xf32>
    %c0_99 = arith.constant 0 : index
    %c0_100 = arith.constant 0 : index
    %c1_101 = arith.constant 1 : index
    %c0_102 = arith.constant 0 : index
    %376 = vector.load %arg5[%c0_99, %c0_100, %c1_101, %c0_102] : memref<1x4x18x18xf32, #tpu.memory_space<vmem>>, vector<1x1x17x17xf32>
    %377 = vector.shape_cast %376 : vector<1x1x17x17xf32> to vector<17x17xf32>
    %c3_103 = arith.constant 3 : index
    %378 = memref.load %arg1[%c3_103] : memref<256xf32, #tpu.memory_space<smem>>
    %379 = vector.broadcast %378 : f32 to vector<17x17xf32>
    %380 = arith.mulf %379, %377 : vector<17x17xf32>
    %381 = arith.addf %363, %380 : vector<17x17xf32>
    %c19 = arith.constant 19 : index
    %382 = memref.load %arg1[%c19] : memref<256xf32, #tpu.memory_space<smem>>
    %383 = vector.broadcast %382 : f32 to vector<17x17xf32>
    %384 = arith.mulf %383, %377 : vector<17x17xf32>
    %385 = arith.addf %367, %384 : vector<17x17xf32>
    %c35 = arith.constant 35 : index
    %386 = memref.load %arg1[%c35] : memref<256xf32, #tpu.memory_space<smem>>
    %387 = vector.broadcast %386 : f32 to vector<17x17xf32>
    %388 = arith.mulf %387, %377 : vector<17x17xf32>
    %389 = arith.addf %371, %388 : vector<17x17xf32>
    %c51 = arith.constant 51 : index
    %390 = memref.load %arg1[%c51] : memref<256xf32, #tpu.memory_space<smem>>
    %391 = vector.broadcast %390 : f32 to vector<17x17xf32>
    %392 = arith.mulf %391, %377 : vector<17x17xf32>
    %393 = arith.addf %375, %392 : vector<17x17xf32>
    %c0_104 = arith.constant 0 : index
    %c1_105 = arith.constant 1 : index
    %c1_106 = arith.constant 1 : index
    %c0_107 = arith.constant 0 : index
    %394 = vector.load %arg5[%c0_104, %c1_105, %c1_106, %c0_107] : memref<1x4x18x18xf32, #tpu.memory_space<vmem>>, vector<1x1x17x17xf32>
    %395 = vector.shape_cast %394 : vector<1x1x17x17xf32> to vector<17x17xf32>
    %c67 = arith.constant 67 : index
    %396 = memref.load %arg1[%c67] : memref<256xf32, #tpu.memory_space<smem>>
    %397 = vector.broadcast %396 : f32 to vector<17x17xf32>
    %398 = arith.mulf %397, %395 : vector<17x17xf32>
    %399 = arith.addf %381, %398 : vector<17x17xf32>
    %c83 = arith.constant 83 : index
    %400 = memref.load %arg1[%c83] : memref<256xf32, #tpu.memory_space<smem>>
    %401 = vector.broadcast %400 : f32 to vector<17x17xf32>
    %402 = arith.mulf %401, %395 : vector<17x17xf32>
    %403 = arith.addf %385, %402 : vector<17x17xf32>
    %c99 = arith.constant 99 : index
    %404 = memref.load %arg1[%c99] : memref<256xf32, #tpu.memory_space<smem>>
    %405 = vector.broadcast %404 : f32 to vector<17x17xf32>
    %406 = arith.mulf %405, %395 : vector<17x17xf32>
    %407 = arith.addf %389, %406 : vector<17x17xf32>
    %c115 = arith.constant 115 : index
    %408 = memref.load %arg1[%c115] : memref<256xf32, #tpu.memory_space<smem>>
    %409 = vector.broadcast %408 : f32 to vector<17x17xf32>
    %410 = arith.mulf %409, %395 : vector<17x17xf32>
    %411 = arith.addf %393, %410 : vector<17x17xf32>
    %c0_108 = arith.constant 0 : index
    %c2_109 = arith.constant 2 : index
    %c1_110 = arith.constant 1 : index
    %c0_111 = arith.constant 0 : index
    %412 = vector.load %arg5[%c0_108, %c2_109, %c1_110, %c0_111] : memref<1x4x18x18xf32, #tpu.memory_space<vmem>>, vector<1x1x17x17xf32>
    %413 = vector.shape_cast %412 : vector<1x1x17x17xf32> to vector<17x17xf32>
    %c131 = arith.constant 131 : index
    %414 = memref.load %arg1[%c131] : memref<256xf32, #tpu.memory_space<smem>>
    %415 = vector.broadcast %414 : f32 to vector<17x17xf32>
    %416 = arith.mulf %415, %413 : vector<17x17xf32>
    %417 = arith.addf %399, %416 : vector<17x17xf32>
    %c147 = arith.constant 147 : index
    %418 = memref.load %arg1[%c147] : memref<256xf32, #tpu.memory_space<smem>>
    %419 = vector.broadcast %418 : f32 to vector<17x17xf32>
    %420 = arith.mulf %419, %413 : vector<17x17xf32>
    %421 = arith.addf %403, %420 : vector<17x17xf32>
    %c163 = arith.constant 163 : index
    %422 = memref.load %arg1[%c163] : memref<256xf32, #tpu.memory_space<smem>>
    %423 = vector.broadcast %422 : f32 to vector<17x17xf32>
    %424 = arith.mulf %423, %413 : vector<17x17xf32>
    %425 = arith.addf %407, %424 : vector<17x17xf32>
    %c179 = arith.constant 179 : index
    %426 = memref.load %arg1[%c179] : memref<256xf32, #tpu.memory_space<smem>>
    %427 = vector.broadcast %426 : f32 to vector<17x17xf32>
    %428 = arith.mulf %427, %413 : vector<17x17xf32>
    %429 = arith.addf %411, %428 : vector<17x17xf32>
    %c0_112 = arith.constant 0 : index
    %c3_113 = arith.constant 3 : index
    %c1_114 = arith.constant 1 : index
    %c0_115 = arith.constant 0 : index
    %430 = vector.load %arg5[%c0_112, %c3_113, %c1_114, %c0_115] : memref<1x4x18x18xf32, #tpu.memory_space<vmem>>, vector<1x1x17x17xf32>
    %431 = vector.shape_cast %430 : vector<1x1x17x17xf32> to vector<17x17xf32>
    %c195 = arith.constant 195 : index
    %432 = memref.load %arg1[%c195] : memref<256xf32, #tpu.memory_space<smem>>
    %433 = vector.broadcast %432 : f32 to vector<17x17xf32>
    %434 = arith.mulf %433, %431 : vector<17x17xf32>
    %435 = arith.addf %417, %434 : vector<17x17xf32>
    %c211 = arith.constant 211 : index
    %436 = memref.load %arg1[%c211] : memref<256xf32, #tpu.memory_space<smem>>
    %437 = vector.broadcast %436 : f32 to vector<17x17xf32>
    %438 = arith.mulf %437, %431 : vector<17x17xf32>
    %439 = arith.addf %421, %438 : vector<17x17xf32>
    %c227 = arith.constant 227 : index
    %440 = memref.load %arg1[%c227] : memref<256xf32, #tpu.memory_space<smem>>
    %441 = vector.broadcast %440 : f32 to vector<17x17xf32>
    %442 = arith.mulf %441, %431 : vector<17x17xf32>
    %443 = arith.addf %425, %442 : vector<17x17xf32>
    %c243 = arith.constant 243 : index
    %444 = memref.load %arg1[%c243] : memref<256xf32, #tpu.memory_space<smem>>
    %445 = vector.broadcast %444 : f32 to vector<17x17xf32>
    %446 = arith.mulf %445, %431 : vector<17x17xf32>
    %447 = arith.addf %429, %446 : vector<17x17xf32>
    %c0_116 = arith.constant 0 : index
    %c0_117 = arith.constant 0 : index
    %c0_118 = arith.constant 0 : index
    %c1_119 = arith.constant 1 : index
    %448 = vector.load %arg5[%c0_116, %c0_117, %c0_118, %c1_119] : memref<1x4x18x18xf32, #tpu.memory_space<vmem>>, vector<1x1x17x17xf32>
    %449 = vector.shape_cast %448 : vector<1x1x17x17xf32> to vector<17x17xf32>
    %c9 = arith.constant 9 : index
    %450 = memref.load %arg1[%c9] : memref<256xf32, #tpu.memory_space<smem>>
    %451 = vector.broadcast %450 : f32 to vector<17x17xf32>
    %452 = arith.mulf %451, %449 : vector<17x17xf32>
    %453 = arith.addf %435, %452 : vector<17x17xf32>
    %c25 = arith.constant 25 : index
    %454 = memref.load %arg1[%c25] : memref<256xf32, #tpu.memory_space<smem>>
    %455 = vector.broadcast %454 : f32 to vector<17x17xf32>
    %456 = arith.mulf %455, %449 : vector<17x17xf32>
    %457 = arith.addf %439, %456 : vector<17x17xf32>
    %c41 = arith.constant 41 : index
    %458 = memref.load %arg1[%c41] : memref<256xf32, #tpu.memory_space<smem>>
    %459 = vector.broadcast %458 : f32 to vector<17x17xf32>
    %460 = arith.mulf %459, %449 : vector<17x17xf32>
    %461 = arith.addf %443, %460 : vector<17x17xf32>
    %c57 = arith.constant 57 : index
    %462 = memref.load %arg1[%c57] : memref<256xf32, #tpu.memory_space<smem>>
    %463 = vector.broadcast %462 : f32 to vector<17x17xf32>
    %464 = arith.mulf %463, %449 : vector<17x17xf32>
    %465 = arith.addf %447, %464 : vector<17x17xf32>
    %c0_120 = arith.constant 0 : index
    %c1_121 = arith.constant 1 : index
    %c0_122 = arith.constant 0 : index
    %c1_123 = arith.constant 1 : index
    %466 = vector.load %arg5[%c0_120, %c1_121, %c0_122, %c1_123] : memref<1x4x18x18xf32, #tpu.memory_space<vmem>>, vector<1x1x17x17xf32>
    %467 = vector.shape_cast %466 : vector<1x1x17x17xf32> to vector<17x17xf32>
    %c73 = arith.constant 73 : index
    %468 = memref.load %arg1[%c73] : memref<256xf32, #tpu.memory_space<smem>>
    %469 = vector.broadcast %468 : f32 to vector<17x17xf32>
    %470 = arith.mulf %469, %467 : vector<17x17xf32>
    %471 = arith.addf %453, %470 : vector<17x17xf32>
    %c89 = arith.constant 89 : index
    %472 = memref.load %arg1[%c89] : memref<256xf32, #tpu.memory_space<smem>>
    %473 = vector.broadcast %472 : f32 to vector<17x17xf32>
    %474 = arith.mulf %473, %467 : vector<17x17xf32>
    %475 = arith.addf %457, %474 : vector<17x17xf32>
    %c105 = arith.constant 105 : index
    %476 = memref.load %arg1[%c105] : memref<256xf32, #tpu.memory_space<smem>>
    %477 = vector.broadcast %476 : f32 to vector<17x17xf32>
    %478 = arith.mulf %477, %467 : vector<17x17xf32>
    %479 = arith.addf %461, %478 : vector<17x17xf32>
    %c121 = arith.constant 121 : index
    %480 = memref.load %arg1[%c121] : memref<256xf32, #tpu.memory_space<smem>>
    %481 = vector.broadcast %480 : f32 to vector<17x17xf32>
    %482 = arith.mulf %481, %467 : vector<17x17xf32>
    %483 = arith.addf %465, %482 : vector<17x17xf32>
    %c0_124 = arith.constant 0 : index
    %c2_125 = arith.constant 2 : index
    %c0_126 = arith.constant 0 : index
    %c1_127 = arith.constant 1 : index
    %484 = vector.load %arg5[%c0_124, %c2_125, %c0_126, %c1_127] : memref<1x4x18x18xf32, #tpu.memory_space<vmem>>, vector<1x1x17x17xf32>
    %485 = vector.shape_cast %484 : vector<1x1x17x17xf32> to vector<17x17xf32>
    %c137 = arith.constant 137 : index
    %486 = memref.load %arg1[%c137] : memref<256xf32, #tpu.memory_space<smem>>
    %487 = vector.broadcast %486 : f32 to vector<17x17xf32>
    %488 = arith.mulf %487, %485 : vector<17x17xf32>
    %489 = arith.addf %471, %488 : vector<17x17xf32>
    %c153 = arith.constant 153 : index
    %490 = memref.load %arg1[%c153] : memref<256xf32, #tpu.memory_space<smem>>
    %491 = vector.broadcast %490 : f32 to vector<17x17xf32>
    %492 = arith.mulf %491, %485 : vector<17x17xf32>
    %493 = arith.addf %475, %492 : vector<17x17xf32>
    %c169 = arith.constant 169 : index
    %494 = memref.load %arg1[%c169] : memref<256xf32, #tpu.memory_space<smem>>
    %495 = vector.broadcast %494 : f32 to vector<17x17xf32>
    %496 = arith.mulf %495, %485 : vector<17x17xf32>
    %497 = arith.addf %479, %496 : vector<17x17xf32>
    %c185 = arith.constant 185 : index
    %498 = memref.load %arg1[%c185] : memref<256xf32, #tpu.memory_space<smem>>
    %499 = vector.broadcast %498 : f32 to vector<17x17xf32>
    %500 = arith.mulf %499, %485 : vector<17x17xf32>
    %501 = arith.addf %483, %500 : vector<17x17xf32>
    %c0_128 = arith.constant 0 : index
    %c3_129 = arith.constant 3 : index
    %c0_130 = arith.constant 0 : index
    %c1_131 = arith.constant 1 : index
    %502 = vector.load %arg5[%c0_128, %c3_129, %c0_130, %c1_131] : memref<1x4x18x18xf32, #tpu.memory_space<vmem>>, vector<1x1x17x17xf32>
    %503 = vector.shape_cast %502 : vector<1x1x17x17xf32> to vector<17x17xf32>
    %c201 = arith.constant 201 : index
    %504 = memref.load %arg1[%c201] : memref<256xf32, #tpu.memory_space<smem>>
    %505 = vector.broadcast %504 : f32 to vector<17x17xf32>
    %506 = arith.mulf %505, %503 : vector<17x17xf32>
    %507 = arith.addf %489, %506 : vector<17x17xf32>
    %c217 = arith.constant 217 : index
    %508 = memref.load %arg1[%c217] : memref<256xf32, #tpu.memory_space<smem>>
    %509 = vector.broadcast %508 : f32 to vector<17x17xf32>
    %510 = arith.mulf %509, %503 : vector<17x17xf32>
    %511 = arith.addf %493, %510 : vector<17x17xf32>
    %c233 = arith.constant 233 : index
    %512 = memref.load %arg1[%c233] : memref<256xf32, #tpu.memory_space<smem>>
    %513 = vector.broadcast %512 : f32 to vector<17x17xf32>
    %514 = arith.mulf %513, %503 : vector<17x17xf32>
    %515 = arith.addf %497, %514 : vector<17x17xf32>
    %c249 = arith.constant 249 : index
    %516 = memref.load %arg1[%c249] : memref<256xf32, #tpu.memory_space<smem>>
    %517 = vector.broadcast %516 : f32 to vector<17x17xf32>
    %518 = arith.mulf %517, %503 : vector<17x17xf32>
    %519 = arith.addf %501, %518 : vector<17x17xf32>
    %c0_132 = arith.constant 0 : index
    %c0_133 = arith.constant 0 : index
    %c0_134 = arith.constant 0 : index
    %c0_135 = arith.constant 0 : index
    %520 = vector.load %arg5[%c0_132, %c0_133, %c0_134, %c0_135] : memref<1x4x18x18xf32, #tpu.memory_space<vmem>>, vector<1x1x17x17xf32>
    %521 = vector.shape_cast %520 : vector<1x1x17x17xf32> to vector<17x17xf32>
    %c11 = arith.constant 11 : index
    %522 = memref.load %arg1[%c11] : memref<256xf32, #tpu.memory_space<smem>>
    %523 = vector.broadcast %522 : f32 to vector<17x17xf32>
    %524 = arith.mulf %523, %521 : vector<17x17xf32>
    %525 = arith.addf %507, %524 : vector<17x17xf32>
    %c27 = arith.constant 27 : index
    %526 = memref.load %arg1[%c27] : memref<256xf32, #tpu.memory_space<smem>>
    %527 = vector.broadcast %526 : f32 to vector<17x17xf32>
    %528 = arith.mulf %527, %521 : vector<17x17xf32>
    %529 = arith.addf %511, %528 : vector<17x17xf32>
    %c43 = arith.constant 43 : index
    %530 = memref.load %arg1[%c43] : memref<256xf32, #tpu.memory_space<smem>>
    %531 = vector.broadcast %530 : f32 to vector<17x17xf32>
    %532 = arith.mulf %531, %521 : vector<17x17xf32>
    %533 = arith.addf %515, %532 : vector<17x17xf32>
    %c59 = arith.constant 59 : index
    %534 = memref.load %arg1[%c59] : memref<256xf32, #tpu.memory_space<smem>>
    %535 = vector.broadcast %534 : f32 to vector<17x17xf32>
    %536 = arith.mulf %535, %521 : vector<17x17xf32>
    %537 = arith.addf %519, %536 : vector<17x17xf32>
    %c0_136 = arith.constant 0 : index
    %c1_137 = arith.constant 1 : index
    %c0_138 = arith.constant 0 : index
    %c0_139 = arith.constant 0 : index
    %538 = vector.load %arg5[%c0_136, %c1_137, %c0_138, %c0_139] : memref<1x4x18x18xf32, #tpu.memory_space<vmem>>, vector<1x1x17x17xf32>
    %539 = vector.shape_cast %538 : vector<1x1x17x17xf32> to vector<17x17xf32>
    %c75 = arith.constant 75 : index
    %540 = memref.load %arg1[%c75] : memref<256xf32, #tpu.memory_space<smem>>
    %541 = vector.broadcast %540 : f32 to vector<17x17xf32>
    %542 = arith.mulf %541, %539 : vector<17x17xf32>
    %543 = arith.addf %525, %542 : vector<17x17xf32>
    %c91 = arith.constant 91 : index
    %544 = memref.load %arg1[%c91] : memref<256xf32, #tpu.memory_space<smem>>
    %545 = vector.broadcast %544 : f32 to vector<17x17xf32>
    %546 = arith.mulf %545, %539 : vector<17x17xf32>
    %547 = arith.addf %529, %546 : vector<17x17xf32>
    %c107 = arith.constant 107 : index
    %548 = memref.load %arg1[%c107] : memref<256xf32, #tpu.memory_space<smem>>
    %549 = vector.broadcast %548 : f32 to vector<17x17xf32>
    %550 = arith.mulf %549, %539 : vector<17x17xf32>
    %551 = arith.addf %533, %550 : vector<17x17xf32>
    %c123 = arith.constant 123 : index
    %552 = memref.load %arg1[%c123] : memref<256xf32, #tpu.memory_space<smem>>
    %553 = vector.broadcast %552 : f32 to vector<17x17xf32>
    %554 = arith.mulf %553, %539 : vector<17x17xf32>
    %555 = arith.addf %537, %554 : vector<17x17xf32>
    %c0_140 = arith.constant 0 : index
    %c2_141 = arith.constant 2 : index
    %c0_142 = arith.constant 0 : index
    %c0_143 = arith.constant 0 : index
    %556 = vector.load %arg5[%c0_140, %c2_141, %c0_142, %c0_143] : memref<1x4x18x18xf32, #tpu.memory_space<vmem>>, vector<1x1x17x17xf32>
    %557 = vector.shape_cast %556 : vector<1x1x17x17xf32> to vector<17x17xf32>
    %c139 = arith.constant 139 : index
    %558 = memref.load %arg1[%c139] : memref<256xf32, #tpu.memory_space<smem>>
    %559 = vector.broadcast %558 : f32 to vector<17x17xf32>
    %560 = arith.mulf %559, %557 : vector<17x17xf32>
    %561 = arith.addf %543, %560 : vector<17x17xf32>
    %c155 = arith.constant 155 : index
    %562 = memref.load %arg1[%c155] : memref<256xf32, #tpu.memory_space<smem>>
    %563 = vector.broadcast %562 : f32 to vector<17x17xf32>
    %564 = arith.mulf %563, %557 : vector<17x17xf32>
    %565 = arith.addf %547, %564 : vector<17x17xf32>
    %c171 = arith.constant 171 : index
    %566 = memref.load %arg1[%c171] : memref<256xf32, #tpu.memory_space<smem>>
    %567 = vector.broadcast %566 : f32 to vector<17x17xf32>
    %568 = arith.mulf %567, %557 : vector<17x17xf32>
    %569 = arith.addf %551, %568 : vector<17x17xf32>
    %c187 = arith.constant 187 : index
    %570 = memref.load %arg1[%c187] : memref<256xf32, #tpu.memory_space<smem>>
    %571 = vector.broadcast %570 : f32 to vector<17x17xf32>
    %572 = arith.mulf %571, %557 : vector<17x17xf32>
    %573 = arith.addf %555, %572 : vector<17x17xf32>
    %c0_144 = arith.constant 0 : index
    %c3_145 = arith.constant 3 : index
    %c0_146 = arith.constant 0 : index
    %c0_147 = arith.constant 0 : index
    %574 = vector.load %arg5[%c0_144, %c3_145, %c0_146, %c0_147] : memref<1x4x18x18xf32, #tpu.memory_space<vmem>>, vector<1x1x17x17xf32>
    %575 = vector.shape_cast %574 : vector<1x1x17x17xf32> to vector<17x17xf32>
    %c203 = arith.constant 203 : index
    %576 = memref.load %arg1[%c203] : memref<256xf32, #tpu.memory_space<smem>>
    %577 = vector.broadcast %576 : f32 to vector<17x17xf32>
    %578 = arith.mulf %577, %575 : vector<17x17xf32>
    %579 = arith.addf %561, %578 : vector<17x17xf32>
    %c219 = arith.constant 219 : index
    %580 = memref.load %arg1[%c219] : memref<256xf32, #tpu.memory_space<smem>>
    %581 = vector.broadcast %580 : f32 to vector<17x17xf32>
    %582 = arith.mulf %581, %575 : vector<17x17xf32>
    %583 = arith.addf %565, %582 : vector<17x17xf32>
    %c235 = arith.constant 235 : index
    %584 = memref.load %arg1[%c235] : memref<256xf32, #tpu.memory_space<smem>>
    %585 = vector.broadcast %584 : f32 to vector<17x17xf32>
    %586 = arith.mulf %585, %575 : vector<17x17xf32>
    %587 = arith.addf %569, %586 : vector<17x17xf32>
    %c251 = arith.constant 251 : index
    %588 = memref.load %arg1[%c251] : memref<256xf32, #tpu.memory_space<smem>>
    %589 = vector.broadcast %588 : f32 to vector<17x17xf32>
    %590 = arith.mulf %589, %575 : vector<17x17xf32>
    %591 = arith.addf %573, %590 : vector<17x17xf32>
    %c8_148 = arith.constant 8 : index
    %c0_149 = arith.constant 0 : index
    %c0_150 = arith.constant 0 : index
    %592 = vector.load %arg2[%c8_148, %c0_149, %c0_150] : memref<16x17x17xf32, #tpu.memory_space<vmem>>, vector<1x17x17xf32>
    %593 = vector.shape_cast %592 : vector<1x17x17xf32> to vector<17x17xf32>
    %c9_151 = arith.constant 9 : index
    %c0_152 = arith.constant 0 : index
    %c0_153 = arith.constant 0 : index
    %594 = vector.load %arg2[%c9_151, %c0_152, %c0_153] : memref<16x17x17xf32, #tpu.memory_space<vmem>>, vector<1x17x17xf32>
    %595 = vector.shape_cast %594 : vector<1x17x17xf32> to vector<17x17xf32>
    %c10_154 = arith.constant 10 : index
    %c0_155 = arith.constant 0 : index
    %c0_156 = arith.constant 0 : index
    %596 = vector.load %arg2[%c10_154, %c0_155, %c0_156] : memref<16x17x17xf32, #tpu.memory_space<vmem>>, vector<1x17x17xf32>
    %597 = vector.shape_cast %596 : vector<1x17x17xf32> to vector<17x17xf32>
    %c11_157 = arith.constant 11 : index
    %c0_158 = arith.constant 0 : index
    %c0_159 = arith.constant 0 : index
    %598 = vector.load %arg2[%c11_157, %c0_158, %c0_159] : memref<16x17x17xf32, #tpu.memory_space<vmem>>, vector<1x17x17xf32>
    %599 = vector.shape_cast %598 : vector<1x17x17xf32> to vector<17x17xf32>
    %c0_160 = arith.constant 0 : index
    %c0_161 = arith.constant 0 : index
    %c1_162 = arith.constant 1 : index
    %c1_163 = arith.constant 1 : index
    %600 = vector.load %arg5[%c0_160, %c0_161, %c1_162, %c1_163] : memref<1x4x18x18xf32, #tpu.memory_space<vmem>>, vector<1x1x17x17xf32>
    %601 = vector.shape_cast %600 : vector<1x1x17x17xf32> to vector<17x17xf32>
    %c4_164 = arith.constant 4 : index
    %602 = memref.load %arg1[%c4_164] : memref<256xf32, #tpu.memory_space<smem>>
    %603 = vector.broadcast %602 : f32 to vector<17x17xf32>
    %604 = arith.mulf %603, %601 : vector<17x17xf32>
    %605 = arith.addf %593, %604 : vector<17x17xf32>
    %c20 = arith.constant 20 : index
    %606 = memref.load %arg1[%c20] : memref<256xf32, #tpu.memory_space<smem>>
    %607 = vector.broadcast %606 : f32 to vector<17x17xf32>
    %608 = arith.mulf %607, %601 : vector<17x17xf32>
    %609 = arith.addf %595, %608 : vector<17x17xf32>
    %c36 = arith.constant 36 : index
    %610 = memref.load %arg1[%c36] : memref<256xf32, #tpu.memory_space<smem>>
    %611 = vector.broadcast %610 : f32 to vector<17x17xf32>
    %612 = arith.mulf %611, %601 : vector<17x17xf32>
    %613 = arith.addf %597, %612 : vector<17x17xf32>
    %c52 = arith.constant 52 : index
    %614 = memref.load %arg1[%c52] : memref<256xf32, #tpu.memory_space<smem>>
    %615 = vector.broadcast %614 : f32 to vector<17x17xf32>
    %616 = arith.mulf %615, %601 : vector<17x17xf32>
    %617 = arith.addf %599, %616 : vector<17x17xf32>
    %c0_165 = arith.constant 0 : index
    %c1_166 = arith.constant 1 : index
    %c1_167 = arith.constant 1 : index
    %c1_168 = arith.constant 1 : index
    %618 = vector.load %arg5[%c0_165, %c1_166, %c1_167, %c1_168] : memref<1x4x18x18xf32, #tpu.memory_space<vmem>>, vector<1x1x17x17xf32>
    %619 = vector.shape_cast %618 : vector<1x1x17x17xf32> to vector<17x17xf32>
    %c68 = arith.constant 68 : index
    %620 = memref.load %arg1[%c68] : memref<256xf32, #tpu.memory_space<smem>>
    %621 = vector.broadcast %620 : f32 to vector<17x17xf32>
    %622 = arith.mulf %621, %619 : vector<17x17xf32>
    %623 = arith.addf %605, %622 : vector<17x17xf32>
    %c84 = arith.constant 84 : index
    %624 = memref.load %arg1[%c84] : memref<256xf32, #tpu.memory_space<smem>>
    %625 = vector.broadcast %624 : f32 to vector<17x17xf32>
    %626 = arith.mulf %625, %619 : vector<17x17xf32>
    %627 = arith.addf %609, %626 : vector<17x17xf32>
    %c100 = arith.constant 100 : index
    %628 = memref.load %arg1[%c100] : memref<256xf32, #tpu.memory_space<smem>>
    %629 = vector.broadcast %628 : f32 to vector<17x17xf32>
    %630 = arith.mulf %629, %619 : vector<17x17xf32>
    %631 = arith.addf %613, %630 : vector<17x17xf32>
    %c116 = arith.constant 116 : index
    %632 = memref.load %arg1[%c116] : memref<256xf32, #tpu.memory_space<smem>>
    %633 = vector.broadcast %632 : f32 to vector<17x17xf32>
    %634 = arith.mulf %633, %619 : vector<17x17xf32>
    %635 = arith.addf %617, %634 : vector<17x17xf32>
    %c0_169 = arith.constant 0 : index
    %c2_170 = arith.constant 2 : index
    %c1_171 = arith.constant 1 : index
    %c1_172 = arith.constant 1 : index
    %636 = vector.load %arg5[%c0_169, %c2_170, %c1_171, %c1_172] : memref<1x4x18x18xf32, #tpu.memory_space<vmem>>, vector<1x1x17x17xf32>
    %637 = vector.shape_cast %636 : vector<1x1x17x17xf32> to vector<17x17xf32>
    %c132 = arith.constant 132 : index
    %638 = memref.load %arg1[%c132] : memref<256xf32, #tpu.memory_space<smem>>
    %639 = vector.broadcast %638 : f32 to vector<17x17xf32>
    %640 = arith.mulf %639, %637 : vector<17x17xf32>
    %641 = arith.addf %623, %640 : vector<17x17xf32>
    %c148 = arith.constant 148 : index
    %642 = memref.load %arg1[%c148] : memref<256xf32, #tpu.memory_space<smem>>
    %643 = vector.broadcast %642 : f32 to vector<17x17xf32>
    %644 = arith.mulf %643, %637 : vector<17x17xf32>
    %645 = arith.addf %627, %644 : vector<17x17xf32>
    %c164 = arith.constant 164 : index
    %646 = memref.load %arg1[%c164] : memref<256xf32, #tpu.memory_space<smem>>
    %647 = vector.broadcast %646 : f32 to vector<17x17xf32>
    %648 = arith.mulf %647, %637 : vector<17x17xf32>
    %649 = arith.addf %631, %648 : vector<17x17xf32>
    %c180 = arith.constant 180 : index
    %650 = memref.load %arg1[%c180] : memref<256xf32, #tpu.memory_space<smem>>
    %651 = vector.broadcast %650 : f32 to vector<17x17xf32>
    %652 = arith.mulf %651, %637 : vector<17x17xf32>
    %653 = arith.addf %635, %652 : vector<17x17xf32>
    %c0_173 = arith.constant 0 : index
    %c3_174 = arith.constant 3 : index
    %c1_175 = arith.constant 1 : index
    %c1_176 = arith.constant 1 : index
    %654 = vector.load %arg5[%c0_173, %c3_174, %c1_175, %c1_176] : memref<1x4x18x18xf32, #tpu.memory_space<vmem>>, vector<1x1x17x17xf32>
    %655 = vector.shape_cast %654 : vector<1x1x17x17xf32> to vector<17x17xf32>
    %c196 = arith.constant 196 : index
    %656 = memref.load %arg1[%c196] : memref<256xf32, #tpu.memory_space<smem>>
    %657 = vector.broadcast %656 : f32 to vector<17x17xf32>
    %658 = arith.mulf %657, %655 : vector<17x17xf32>
    %659 = arith.addf %641, %658 : vector<17x17xf32>
    %c212 = arith.constant 212 : index
    %660 = memref.load %arg1[%c212] : memref<256xf32, #tpu.memory_space<smem>>
    %661 = vector.broadcast %660 : f32 to vector<17x17xf32>
    %662 = arith.mulf %661, %655 : vector<17x17xf32>
    %663 = arith.addf %645, %662 : vector<17x17xf32>
    %c228 = arith.constant 228 : index
    %664 = memref.load %arg1[%c228] : memref<256xf32, #tpu.memory_space<smem>>
    %665 = vector.broadcast %664 : f32 to vector<17x17xf32>
    %666 = arith.mulf %665, %655 : vector<17x17xf32>
    %667 = arith.addf %649, %666 : vector<17x17xf32>
    %c244 = arith.constant 244 : index
    %668 = memref.load %arg1[%c244] : memref<256xf32, #tpu.memory_space<smem>>
    %669 = vector.broadcast %668 : f32 to vector<17x17xf32>
    %670 = arith.mulf %669, %655 : vector<17x17xf32>
    %671 = arith.addf %653, %670 : vector<17x17xf32>
    %c0_177 = arith.constant 0 : index
    %c0_178 = arith.constant 0 : index
    %c1_179 = arith.constant 1 : index
    %c0_180 = arith.constant 0 : index
    %672 = vector.load %arg5[%c0_177, %c0_178, %c1_179, %c0_180] : memref<1x4x18x18xf32, #tpu.memory_space<vmem>>, vector<1x1x17x17xf32>
    %673 = vector.shape_cast %672 : vector<1x1x17x17xf32> to vector<17x17xf32>
    %c6_181 = arith.constant 6 : index
    %674 = memref.load %arg1[%c6_181] : memref<256xf32, #tpu.memory_space<smem>>
    %675 = vector.broadcast %674 : f32 to vector<17x17xf32>
    %676 = arith.mulf %675, %673 : vector<17x17xf32>
    %677 = arith.addf %659, %676 : vector<17x17xf32>
    %c22 = arith.constant 22 : index
    %678 = memref.load %arg1[%c22] : memref<256xf32, #tpu.memory_space<smem>>
    %679 = vector.broadcast %678 : f32 to vector<17x17xf32>
    %680 = arith.mulf %679, %673 : vector<17x17xf32>
    %681 = arith.addf %663, %680 : vector<17x17xf32>
    %c38 = arith.constant 38 : index
    %682 = memref.load %arg1[%c38] : memref<256xf32, #tpu.memory_space<smem>>
    %683 = vector.broadcast %682 : f32 to vector<17x17xf32>
    %684 = arith.mulf %683, %673 : vector<17x17xf32>
    %685 = arith.addf %667, %684 : vector<17x17xf32>
    %c54 = arith.constant 54 : index
    %686 = memref.load %arg1[%c54] : memref<256xf32, #tpu.memory_space<smem>>
    %687 = vector.broadcast %686 : f32 to vector<17x17xf32>
    %688 = arith.mulf %687, %673 : vector<17x17xf32>
    %689 = arith.addf %671, %688 : vector<17x17xf32>
    %c0_182 = arith.constant 0 : index
    %c1_183 = arith.constant 1 : index
    %c1_184 = arith.constant 1 : index
    %c0_185 = arith.constant 0 : index
    %690 = vector.load %arg5[%c0_182, %c1_183, %c1_184, %c0_185] : memref<1x4x18x18xf32, #tpu.memory_space<vmem>>, vector<1x1x17x17xf32>
    %691 = vector.shape_cast %690 : vector<1x1x17x17xf32> to vector<17x17xf32>
    %c70 = arith.constant 70 : index
    %692 = memref.load %arg1[%c70] : memref<256xf32, #tpu.memory_space<smem>>
    %693 = vector.broadcast %692 : f32 to vector<17x17xf32>
    %694 = arith.mulf %693, %691 : vector<17x17xf32>
    %695 = arith.addf %677, %694 : vector<17x17xf32>
    %c86 = arith.constant 86 : index
    %696 = memref.load %arg1[%c86] : memref<256xf32, #tpu.memory_space<smem>>
    %697 = vector.broadcast %696 : f32 to vector<17x17xf32>
    %698 = arith.mulf %697, %691 : vector<17x17xf32>
    %699 = arith.addf %681, %698 : vector<17x17xf32>
    %c102 = arith.constant 102 : index
    %700 = memref.load %arg1[%c102] : memref<256xf32, #tpu.memory_space<smem>>
    %701 = vector.broadcast %700 : f32 to vector<17x17xf32>
    %702 = arith.mulf %701, %691 : vector<17x17xf32>
    %703 = arith.addf %685, %702 : vector<17x17xf32>
    %c118 = arith.constant 118 : index
    %704 = memref.load %arg1[%c118] : memref<256xf32, #tpu.memory_space<smem>>
    %705 = vector.broadcast %704 : f32 to vector<17x17xf32>
    %706 = arith.mulf %705, %691 : vector<17x17xf32>
    %707 = arith.addf %689, %706 : vector<17x17xf32>
    %c0_186 = arith.constant 0 : index
    %c2_187 = arith.constant 2 : index
    %c1_188 = arith.constant 1 : index
    %c0_189 = arith.constant 0 : index
    %708 = vector.load %arg5[%c0_186, %c2_187, %c1_188, %c0_189] : memref<1x4x18x18xf32, #tpu.memory_space<vmem>>, vector<1x1x17x17xf32>
    %709 = vector.shape_cast %708 : vector<1x1x17x17xf32> to vector<17x17xf32>
    %c134 = arith.constant 134 : index
    %710 = memref.load %arg1[%c134] : memref<256xf32, #tpu.memory_space<smem>>
    %711 = vector.broadcast %710 : f32 to vector<17x17xf32>
    %712 = arith.mulf %711, %709 : vector<17x17xf32>
    %713 = arith.addf %695, %712 : vector<17x17xf32>
    %c150 = arith.constant 150 : index
    %714 = memref.load %arg1[%c150] : memref<256xf32, #tpu.memory_space<smem>>
    %715 = vector.broadcast %714 : f32 to vector<17x17xf32>
    %716 = arith.mulf %715, %709 : vector<17x17xf32>
    %717 = arith.addf %699, %716 : vector<17x17xf32>
    %c166 = arith.constant 166 : index
    %718 = memref.load %arg1[%c166] : memref<256xf32, #tpu.memory_space<smem>>
    %719 = vector.broadcast %718 : f32 to vector<17x17xf32>
    %720 = arith.mulf %719, %709 : vector<17x17xf32>
    %721 = arith.addf %703, %720 : vector<17x17xf32>
    %c182 = arith.constant 182 : index
    %722 = memref.load %arg1[%c182] : memref<256xf32, #tpu.memory_space<smem>>
    %723 = vector.broadcast %722 : f32 to vector<17x17xf32>
    %724 = arith.mulf %723, %709 : vector<17x17xf32>
    %725 = arith.addf %707, %724 : vector<17x17xf32>
    %c0_190 = arith.constant 0 : index
    %c3_191 = arith.constant 3 : index
    %c1_192 = arith.constant 1 : index
    %c0_193 = arith.constant 0 : index
    %726 = vector.load %arg5[%c0_190, %c3_191, %c1_192, %c0_193] : memref<1x4x18x18xf32, #tpu.memory_space<vmem>>, vector<1x1x17x17xf32>
    %727 = vector.shape_cast %726 : vector<1x1x17x17xf32> to vector<17x17xf32>
    %c198 = arith.constant 198 : index
    %728 = memref.load %arg1[%c198] : memref<256xf32, #tpu.memory_space<smem>>
    %729 = vector.broadcast %728 : f32 to vector<17x17xf32>
    %730 = arith.mulf %729, %727 : vector<17x17xf32>
    %731 = arith.addf %713, %730 : vector<17x17xf32>
    %c214 = arith.constant 214 : index
    %732 = memref.load %arg1[%c214] : memref<256xf32, #tpu.memory_space<smem>>
    %733 = vector.broadcast %732 : f32 to vector<17x17xf32>
    %734 = arith.mulf %733, %727 : vector<17x17xf32>
    %735 = arith.addf %717, %734 : vector<17x17xf32>
    %c230 = arith.constant 230 : index
    %736 = memref.load %arg1[%c230] : memref<256xf32, #tpu.memory_space<smem>>
    %737 = vector.broadcast %736 : f32 to vector<17x17xf32>
    %738 = arith.mulf %737, %727 : vector<17x17xf32>
    %739 = arith.addf %721, %738 : vector<17x17xf32>
    %c246 = arith.constant 246 : index
    %740 = memref.load %arg1[%c246] : memref<256xf32, #tpu.memory_space<smem>>
    %741 = vector.broadcast %740 : f32 to vector<17x17xf32>
    %742 = arith.mulf %741, %727 : vector<17x17xf32>
    %743 = arith.addf %725, %742 : vector<17x17xf32>
    %c0_194 = arith.constant 0 : index
    %c0_195 = arith.constant 0 : index
    %c0_196 = arith.constant 0 : index
    %c1_197 = arith.constant 1 : index
    %744 = vector.load %arg5[%c0_194, %c0_195, %c0_196, %c1_197] : memref<1x4x18x18xf32, #tpu.memory_space<vmem>>, vector<1x1x17x17xf32>
    %745 = vector.shape_cast %744 : vector<1x1x17x17xf32> to vector<17x17xf32>
    %c12 = arith.constant 12 : index
    %746 = memref.load %arg1[%c12] : memref<256xf32, #tpu.memory_space<smem>>
    %747 = vector.broadcast %746 : f32 to vector<17x17xf32>
    %748 = arith.mulf %747, %745 : vector<17x17xf32>
    %749 = arith.addf %731, %748 : vector<17x17xf32>
    %c28 = arith.constant 28 : index
    %750 = memref.load %arg1[%c28] : memref<256xf32, #tpu.memory_space<smem>>
    %751 = vector.broadcast %750 : f32 to vector<17x17xf32>
    %752 = arith.mulf %751, %745 : vector<17x17xf32>
    %753 = arith.addf %735, %752 : vector<17x17xf32>
    %c44 = arith.constant 44 : index
    %754 = memref.load %arg1[%c44] : memref<256xf32, #tpu.memory_space<smem>>
    %755 = vector.broadcast %754 : f32 to vector<17x17xf32>
    %756 = arith.mulf %755, %745 : vector<17x17xf32>
    %757 = arith.addf %739, %756 : vector<17x17xf32>
    %c60 = arith.constant 60 : index
    %758 = memref.load %arg1[%c60] : memref<256xf32, #tpu.memory_space<smem>>
    %759 = vector.broadcast %758 : f32 to vector<17x17xf32>
    %760 = arith.mulf %759, %745 : vector<17x17xf32>
    %761 = arith.addf %743, %760 : vector<17x17xf32>
    %c0_198 = arith.constant 0 : index
    %c1_199 = arith.constant 1 : index
    %c0_200 = arith.constant 0 : index
    %c1_201 = arith.constant 1 : index
    %762 = vector.load %arg5[%c0_198, %c1_199, %c0_200, %c1_201] : memref<1x4x18x18xf32, #tpu.memory_space<vmem>>, vector<1x1x17x17xf32>
    %763 = vector.shape_cast %762 : vector<1x1x17x17xf32> to vector<17x17xf32>
    %c76 = arith.constant 76 : index
    %764 = memref.load %arg1[%c76] : memref<256xf32, #tpu.memory_space<smem>>
    %765 = vector.broadcast %764 : f32 to vector<17x17xf32>
    %766 = arith.mulf %765, %763 : vector<17x17xf32>
    %767 = arith.addf %749, %766 : vector<17x17xf32>
    %c92 = arith.constant 92 : index
    %768 = memref.load %arg1[%c92] : memref<256xf32, #tpu.memory_space<smem>>
    %769 = vector.broadcast %768 : f32 to vector<17x17xf32>
    %770 = arith.mulf %769, %763 : vector<17x17xf32>
    %771 = arith.addf %753, %770 : vector<17x17xf32>
    %c108 = arith.constant 108 : index
    %772 = memref.load %arg1[%c108] : memref<256xf32, #tpu.memory_space<smem>>
    %773 = vector.broadcast %772 : f32 to vector<17x17xf32>
    %774 = arith.mulf %773, %763 : vector<17x17xf32>
    %775 = arith.addf %757, %774 : vector<17x17xf32>
    %c124 = arith.constant 124 : index
    %776 = memref.load %arg1[%c124] : memref<256xf32, #tpu.memory_space<smem>>
    %777 = vector.broadcast %776 : f32 to vector<17x17xf32>
    %778 = arith.mulf %777, %763 : vector<17x17xf32>
    %779 = arith.addf %761, %778 : vector<17x17xf32>
    %c0_202 = arith.constant 0 : index
    %c2_203 = arith.constant 2 : index
    %c0_204 = arith.constant 0 : index
    %c1_205 = arith.constant 1 : index
    %780 = vector.load %arg5[%c0_202, %c2_203, %c0_204, %c1_205] : memref<1x4x18x18xf32, #tpu.memory_space<vmem>>, vector<1x1x17x17xf32>
    %781 = vector.shape_cast %780 : vector<1x1x17x17xf32> to vector<17x17xf32>
    %c140 = arith.constant 140 : index
    %782 = memref.load %arg1[%c140] : memref<256xf32, #tpu.memory_space<smem>>
    %783 = vector.broadcast %782 : f32 to vector<17x17xf32>
    %784 = arith.mulf %783, %781 : vector<17x17xf32>
    %785 = arith.addf %767, %784 : vector<17x17xf32>
    %c156 = arith.constant 156 : index
    %786 = memref.load %arg1[%c156] : memref<256xf32, #tpu.memory_space<smem>>
    %787 = vector.broadcast %786 : f32 to vector<17x17xf32>
    %788 = arith.mulf %787, %781 : vector<17x17xf32>
    %789 = arith.addf %771, %788 : vector<17x17xf32>
    %c172 = arith.constant 172 : index
    %790 = memref.load %arg1[%c172] : memref<256xf32, #tpu.memory_space<smem>>
    %791 = vector.broadcast %790 : f32 to vector<17x17xf32>
    %792 = arith.mulf %791, %781 : vector<17x17xf32>
    %793 = arith.addf %775, %792 : vector<17x17xf32>
    %c188 = arith.constant 188 : index
    %794 = memref.load %arg1[%c188] : memref<256xf32, #tpu.memory_space<smem>>
    %795 = vector.broadcast %794 : f32 to vector<17x17xf32>
    %796 = arith.mulf %795, %781 : vector<17x17xf32>
    %797 = arith.addf %779, %796 : vector<17x17xf32>
    %c0_206 = arith.constant 0 : index
    %c3_207 = arith.constant 3 : index
    %c0_208 = arith.constant 0 : index
    %c1_209 = arith.constant 1 : index
    %798 = vector.load %arg5[%c0_206, %c3_207, %c0_208, %c1_209] : memref<1x4x18x18xf32, #tpu.memory_space<vmem>>, vector<1x1x17x17xf32>
    %799 = vector.shape_cast %798 : vector<1x1x17x17xf32> to vector<17x17xf32>
    %c204 = arith.constant 204 : index
    %800 = memref.load %arg1[%c204] : memref<256xf32, #tpu.memory_space<smem>>
    %801 = vector.broadcast %800 : f32 to vector<17x17xf32>
    %802 = arith.mulf %801, %799 : vector<17x17xf32>
    %803 = arith.addf %785, %802 : vector<17x17xf32>
    %c220 = arith.constant 220 : index
    %804 = memref.load %arg1[%c220] : memref<256xf32, #tpu.memory_space<smem>>
    %805 = vector.broadcast %804 : f32 to vector<17x17xf32>
    %806 = arith.mulf %805, %799 : vector<17x17xf32>
    %807 = arith.addf %789, %806 : vector<17x17xf32>
    %c236 = arith.constant 236 : index
    %808 = memref.load %arg1[%c236] : memref<256xf32, #tpu.memory_space<smem>>
    %809 = vector.broadcast %808 : f32 to vector<17x17xf32>
    %810 = arith.mulf %809, %799 : vector<17x17xf32>
    %811 = arith.addf %793, %810 : vector<17x17xf32>
    %c252 = arith.constant 252 : index
    %812 = memref.load %arg1[%c252] : memref<256xf32, #tpu.memory_space<smem>>
    %813 = vector.broadcast %812 : f32 to vector<17x17xf32>
    %814 = arith.mulf %813, %799 : vector<17x17xf32>
    %815 = arith.addf %797, %814 : vector<17x17xf32>
    %c0_210 = arith.constant 0 : index
    %c0_211 = arith.constant 0 : index
    %c0_212 = arith.constant 0 : index
    %c0_213 = arith.constant 0 : index
    %816 = vector.load %arg5[%c0_210, %c0_211, %c0_212, %c0_213] : memref<1x4x18x18xf32, #tpu.memory_space<vmem>>, vector<1x1x17x17xf32>
    %817 = vector.shape_cast %816 : vector<1x1x17x17xf32> to vector<17x17xf32>
    %c14 = arith.constant 14 : index
    %818 = memref.load %arg1[%c14] : memref<256xf32, #tpu.memory_space<smem>>
    %819 = vector.broadcast %818 : f32 to vector<17x17xf32>
    %820 = arith.mulf %819, %817 : vector<17x17xf32>
    %821 = arith.addf %803, %820 : vector<17x17xf32>
    %c30 = arith.constant 30 : index
    %822 = memref.load %arg1[%c30] : memref<256xf32, #tpu.memory_space<smem>>
    %823 = vector.broadcast %822 : f32 to vector<17x17xf32>
    %824 = arith.mulf %823, %817 : vector<17x17xf32>
    %825 = arith.addf %807, %824 : vector<17x17xf32>
    %c46 = arith.constant 46 : index
    %826 = memref.load %arg1[%c46] : memref<256xf32, #tpu.memory_space<smem>>
    %827 = vector.broadcast %826 : f32 to vector<17x17xf32>
    %828 = arith.mulf %827, %817 : vector<17x17xf32>
    %829 = arith.addf %811, %828 : vector<17x17xf32>
    %c62 = arith.constant 62 : index
    %830 = memref.load %arg1[%c62] : memref<256xf32, #tpu.memory_space<smem>>
    %831 = vector.broadcast %830 : f32 to vector<17x17xf32>
    %832 = arith.mulf %831, %817 : vector<17x17xf32>
    %833 = arith.addf %815, %832 : vector<17x17xf32>
    %c0_214 = arith.constant 0 : index
    %c1_215 = arith.constant 1 : index
    %c0_216 = arith.constant 0 : index
    %c0_217 = arith.constant 0 : index
    %834 = vector.load %arg5[%c0_214, %c1_215, %c0_216, %c0_217] : memref<1x4x18x18xf32, #tpu.memory_space<vmem>>, vector<1x1x17x17xf32>
    %835 = vector.shape_cast %834 : vector<1x1x17x17xf32> to vector<17x17xf32>
    %c78 = arith.constant 78 : index
    %836 = memref.load %arg1[%c78] : memref<256xf32, #tpu.memory_space<smem>>
    %837 = vector.broadcast %836 : f32 to vector<17x17xf32>
    %838 = arith.mulf %837, %835 : vector<17x17xf32>
    %839 = arith.addf %821, %838 : vector<17x17xf32>
    %c94 = arith.constant 94 : index
    %840 = memref.load %arg1[%c94] : memref<256xf32, #tpu.memory_space<smem>>
    %841 = vector.broadcast %840 : f32 to vector<17x17xf32>
    %842 = arith.mulf %841, %835 : vector<17x17xf32>
    %843 = arith.addf %825, %842 : vector<17x17xf32>
    %c110 = arith.constant 110 : index
    %844 = memref.load %arg1[%c110] : memref<256xf32, #tpu.memory_space<smem>>
    %845 = vector.broadcast %844 : f32 to vector<17x17xf32>
    %846 = arith.mulf %845, %835 : vector<17x17xf32>
    %847 = arith.addf %829, %846 : vector<17x17xf32>
    %c126 = arith.constant 126 : index
    %848 = memref.load %arg1[%c126] : memref<256xf32, #tpu.memory_space<smem>>
    %849 = vector.broadcast %848 : f32 to vector<17x17xf32>
    %850 = arith.mulf %849, %835 : vector<17x17xf32>
    %851 = arith.addf %833, %850 : vector<17x17xf32>
    %c0_218 = arith.constant 0 : index
    %c2_219 = arith.constant 2 : index
    %c0_220 = arith.constant 0 : index
    %c0_221 = arith.constant 0 : index
    %852 = vector.load %arg5[%c0_218, %c2_219, %c0_220, %c0_221] : memref<1x4x18x18xf32, #tpu.memory_space<vmem>>, vector<1x1x17x17xf32>
    %853 = vector.shape_cast %852 : vector<1x1x17x17xf32> to vector<17x17xf32>
    %c142 = arith.constant 142 : index
    %854 = memref.load %arg1[%c142] : memref<256xf32, #tpu.memory_space<smem>>
    %855 = vector.broadcast %854 : f32 to vector<17x17xf32>
    %856 = arith.mulf %855, %853 : vector<17x17xf32>
    %857 = arith.addf %839, %856 : vector<17x17xf32>
    %c158 = arith.constant 158 : index
    %858 = memref.load %arg1[%c158] : memref<256xf32, #tpu.memory_space<smem>>
    %859 = vector.broadcast %858 : f32 to vector<17x17xf32>
    %860 = arith.mulf %859, %853 : vector<17x17xf32>
    %861 = arith.addf %843, %860 : vector<17x17xf32>
    %c174 = arith.constant 174 : index
    %862 = memref.load %arg1[%c174] : memref<256xf32, #tpu.memory_space<smem>>
    %863 = vector.broadcast %862 : f32 to vector<17x17xf32>
    %864 = arith.mulf %863, %853 : vector<17x17xf32>
    %865 = arith.addf %847, %864 : vector<17x17xf32>
    %c190 = arith.constant 190 : index
    %866 = memref.load %arg1[%c190] : memref<256xf32, #tpu.memory_space<smem>>
    %867 = vector.broadcast %866 : f32 to vector<17x17xf32>
    %868 = arith.mulf %867, %853 : vector<17x17xf32>
    %869 = arith.addf %851, %868 : vector<17x17xf32>
    %c0_222 = arith.constant 0 : index
    %c3_223 = arith.constant 3 : index
    %c0_224 = arith.constant 0 : index
    %c0_225 = arith.constant 0 : index
    %870 = vector.load %arg5[%c0_222, %c3_223, %c0_224, %c0_225] : memref<1x4x18x18xf32, #tpu.memory_space<vmem>>, vector<1x1x17x17xf32>
    %871 = vector.shape_cast %870 : vector<1x1x17x17xf32> to vector<17x17xf32>
    %c206 = arith.constant 206 : index
    %872 = memref.load %arg1[%c206] : memref<256xf32, #tpu.memory_space<smem>>
    %873 = vector.broadcast %872 : f32 to vector<17x17xf32>
    %874 = arith.mulf %873, %871 : vector<17x17xf32>
    %875 = arith.addf %857, %874 : vector<17x17xf32>
    %c222 = arith.constant 222 : index
    %876 = memref.load %arg1[%c222] : memref<256xf32, #tpu.memory_space<smem>>
    %877 = vector.broadcast %876 : f32 to vector<17x17xf32>
    %878 = arith.mulf %877, %871 : vector<17x17xf32>
    %879 = arith.addf %861, %878 : vector<17x17xf32>
    %c238 = arith.constant 238 : index
    %880 = memref.load %arg1[%c238] : memref<256xf32, #tpu.memory_space<smem>>
    %881 = vector.broadcast %880 : f32 to vector<17x17xf32>
    %882 = arith.mulf %881, %871 : vector<17x17xf32>
    %883 = arith.addf %865, %882 : vector<17x17xf32>
    %c254 = arith.constant 254 : index
    %884 = memref.load %arg1[%c254] : memref<256xf32, #tpu.memory_space<smem>>
    %885 = vector.broadcast %884 : f32 to vector<17x17xf32>
    %886 = arith.mulf %885, %871 : vector<17x17xf32>
    %887 = arith.addf %869, %886 : vector<17x17xf32>
    %c12_226 = arith.constant 12 : index
    %c0_227 = arith.constant 0 : index
    %c0_228 = arith.constant 0 : index
    %888 = vector.load %arg2[%c12_226, %c0_227, %c0_228] : memref<16x17x17xf32, #tpu.memory_space<vmem>>, vector<1x17x17xf32>
    %889 = vector.shape_cast %888 : vector<1x17x17xf32> to vector<17x17xf32>
    %c13 = arith.constant 13 : index
    %c0_229 = arith.constant 0 : index
    %c0_230 = arith.constant 0 : index
    %890 = vector.load %arg2[%c13, %c0_229, %c0_230] : memref<16x17x17xf32, #tpu.memory_space<vmem>>, vector<1x17x17xf32>
    %891 = vector.shape_cast %890 : vector<1x17x17xf32> to vector<17x17xf32>
    %c14_231 = arith.constant 14 : index
    %c0_232 = arith.constant 0 : index
    %c0_233 = arith.constant 0 : index
    %892 = vector.load %arg2[%c14_231, %c0_232, %c0_233] : memref<16x17x17xf32, #tpu.memory_space<vmem>>, vector<1x17x17xf32>
    %893 = vector.shape_cast %892 : vector<1x17x17xf32> to vector<17x17xf32>
    %c15 = arith.constant 15 : index
    %c0_234 = arith.constant 0 : index
    %c0_235 = arith.constant 0 : index
    %894 = vector.load %arg2[%c15, %c0_234, %c0_235] : memref<16x17x17xf32, #tpu.memory_space<vmem>>, vector<1x17x17xf32>
    %895 = vector.shape_cast %894 : vector<1x17x17xf32> to vector<17x17xf32>
    %c0_236 = arith.constant 0 : index
    %c0_237 = arith.constant 0 : index
    %c1_238 = arith.constant 1 : index
    %c1_239 = arith.constant 1 : index
    %896 = vector.load %arg5[%c0_236, %c0_237, %c1_238, %c1_239] : memref<1x4x18x18xf32, #tpu.memory_space<vmem>>, vector<1x1x17x17xf32>
    %897 = vector.shape_cast %896 : vector<1x1x17x17xf32> to vector<17x17xf32>
    %c5_240 = arith.constant 5 : index
    %898 = memref.load %arg1[%c5_240] : memref<256xf32, #tpu.memory_space<smem>>
    %899 = vector.broadcast %898 : f32 to vector<17x17xf32>
    %900 = arith.mulf %899, %897 : vector<17x17xf32>
    %901 = arith.addf %889, %900 : vector<17x17xf32>
    %c21 = arith.constant 21 : index
    %902 = memref.load %arg1[%c21] : memref<256xf32, #tpu.memory_space<smem>>
    %903 = vector.broadcast %902 : f32 to vector<17x17xf32>
    %904 = arith.mulf %903, %897 : vector<17x17xf32>
    %905 = arith.addf %891, %904 : vector<17x17xf32>
    %c37 = arith.constant 37 : index
    %906 = memref.load %arg1[%c37] : memref<256xf32, #tpu.memory_space<smem>>
    %907 = vector.broadcast %906 : f32 to vector<17x17xf32>
    %908 = arith.mulf %907, %897 : vector<17x17xf32>
    %909 = arith.addf %893, %908 : vector<17x17xf32>
    %c53 = arith.constant 53 : index
    %910 = memref.load %arg1[%c53] : memref<256xf32, #tpu.memory_space<smem>>
    %911 = vector.broadcast %910 : f32 to vector<17x17xf32>
    %912 = arith.mulf %911, %897 : vector<17x17xf32>
    %913 = arith.addf %895, %912 : vector<17x17xf32>
    %c0_241 = arith.constant 0 : index
    %c1_242 = arith.constant 1 : index
    %c1_243 = arith.constant 1 : index
    %c1_244 = arith.constant 1 : index
    %914 = vector.load %arg5[%c0_241, %c1_242, %c1_243, %c1_244] : memref<1x4x18x18xf32, #tpu.memory_space<vmem>>, vector<1x1x17x17xf32>
    %915 = vector.shape_cast %914 : vector<1x1x17x17xf32> to vector<17x17xf32>
    %c69 = arith.constant 69 : index
    %916 = memref.load %arg1[%c69] : memref<256xf32, #tpu.memory_space<smem>>
    %917 = vector.broadcast %916 : f32 to vector<17x17xf32>
    %918 = arith.mulf %917, %915 : vector<17x17xf32>
    %919 = arith.addf %901, %918 : vector<17x17xf32>
    %c85 = arith.constant 85 : index
    %920 = memref.load %arg1[%c85] : memref<256xf32, #tpu.memory_space<smem>>
    %921 = vector.broadcast %920 : f32 to vector<17x17xf32>
    %922 = arith.mulf %921, %915 : vector<17x17xf32>
    %923 = arith.addf %905, %922 : vector<17x17xf32>
    %c101 = arith.constant 101 : index
    %924 = memref.load %arg1[%c101] : memref<256xf32, #tpu.memory_space<smem>>
    %925 = vector.broadcast %924 : f32 to vector<17x17xf32>
    %926 = arith.mulf %925, %915 : vector<17x17xf32>
    %927 = arith.addf %909, %926 : vector<17x17xf32>
    %c117 = arith.constant 117 : index
    %928 = memref.load %arg1[%c117] : memref<256xf32, #tpu.memory_space<smem>>
    %929 = vector.broadcast %928 : f32 to vector<17x17xf32>
    %930 = arith.mulf %929, %915 : vector<17x17xf32>
    %931 = arith.addf %913, %930 : vector<17x17xf32>
    %c0_245 = arith.constant 0 : index
    %c2_246 = arith.constant 2 : index
    %c1_247 = arith.constant 1 : index
    %c1_248 = arith.constant 1 : index
    %932 = vector.load %arg5[%c0_245, %c2_246, %c1_247, %c1_248] : memref<1x4x18x18xf32, #tpu.memory_space<vmem>>, vector<1x1x17x17xf32>
    %933 = vector.shape_cast %932 : vector<1x1x17x17xf32> to vector<17x17xf32>
    %c133 = arith.constant 133 : index
    %934 = memref.load %arg1[%c133] : memref<256xf32, #tpu.memory_space<smem>>
    %935 = vector.broadcast %934 : f32 to vector<17x17xf32>
    %936 = arith.mulf %935, %933 : vector<17x17xf32>
    %937 = arith.addf %919, %936 : vector<17x17xf32>
    %c149 = arith.constant 149 : index
    %938 = memref.load %arg1[%c149] : memref<256xf32, #tpu.memory_space<smem>>
    %939 = vector.broadcast %938 : f32 to vector<17x17xf32>
    %940 = arith.mulf %939, %933 : vector<17x17xf32>
    %941 = arith.addf %923, %940 : vector<17x17xf32>
    %c165 = arith.constant 165 : index
    %942 = memref.load %arg1[%c165] : memref<256xf32, #tpu.memory_space<smem>>
    %943 = vector.broadcast %942 : f32 to vector<17x17xf32>
    %944 = arith.mulf %943, %933 : vector<17x17xf32>
    %945 = arith.addf %927, %944 : vector<17x17xf32>
    %c181 = arith.constant 181 : index
    %946 = memref.load %arg1[%c181] : memref<256xf32, #tpu.memory_space<smem>>
    %947 = vector.broadcast %946 : f32 to vector<17x17xf32>
    %948 = arith.mulf %947, %933 : vector<17x17xf32>
    %949 = arith.addf %931, %948 : vector<17x17xf32>
    %c0_249 = arith.constant 0 : index
    %c3_250 = arith.constant 3 : index
    %c1_251 = arith.constant 1 : index
    %c1_252 = arith.constant 1 : index
    %950 = vector.load %arg5[%c0_249, %c3_250, %c1_251, %c1_252] : memref<1x4x18x18xf32, #tpu.memory_space<vmem>>, vector<1x1x17x17xf32>
    %951 = vector.shape_cast %950 : vector<1x1x17x17xf32> to vector<17x17xf32>
    %c197 = arith.constant 197 : index
    %952 = memref.load %arg1[%c197] : memref<256xf32, #tpu.memory_space<smem>>
    %953 = vector.broadcast %952 : f32 to vector<17x17xf32>
    %954 = arith.mulf %953, %951 : vector<17x17xf32>
    %955 = arith.addf %937, %954 : vector<17x17xf32>
    %c213 = arith.constant 213 : index
    %956 = memref.load %arg1[%c213] : memref<256xf32, #tpu.memory_space<smem>>
    %957 = vector.broadcast %956 : f32 to vector<17x17xf32>
    %958 = arith.mulf %957, %951 : vector<17x17xf32>
    %959 = arith.addf %941, %958 : vector<17x17xf32>
    %c229 = arith.constant 229 : index
    %960 = memref.load %arg1[%c229] : memref<256xf32, #tpu.memory_space<smem>>
    %961 = vector.broadcast %960 : f32 to vector<17x17xf32>
    %962 = arith.mulf %961, %951 : vector<17x17xf32>
    %963 = arith.addf %945, %962 : vector<17x17xf32>
    %c245 = arith.constant 245 : index
    %964 = memref.load %arg1[%c245] : memref<256xf32, #tpu.memory_space<smem>>
    %965 = vector.broadcast %964 : f32 to vector<17x17xf32>
    %966 = arith.mulf %965, %951 : vector<17x17xf32>
    %967 = arith.addf %949, %966 : vector<17x17xf32>
    %c0_253 = arith.constant 0 : index
    %c0_254 = arith.constant 0 : index
    %c1_255 = arith.constant 1 : index
    %c0_256 = arith.constant 0 : index
    %968 = vector.load %arg5[%c0_253, %c0_254, %c1_255, %c0_256] : memref<1x4x18x18xf32, #tpu.memory_space<vmem>>, vector<1x1x17x17xf32>
    %969 = vector.shape_cast %968 : vector<1x1x17x17xf32> to vector<17x17xf32>
    %c7_257 = arith.constant 7 : index
    %970 = memref.load %arg1[%c7_257] : memref<256xf32, #tpu.memory_space<smem>>
    %971 = vector.broadcast %970 : f32 to vector<17x17xf32>
    %972 = arith.mulf %971, %969 : vector<17x17xf32>
    %973 = arith.addf %955, %972 : vector<17x17xf32>
    %c23 = arith.constant 23 : index
    %974 = memref.load %arg1[%c23] : memref<256xf32, #tpu.memory_space<smem>>
    %975 = vector.broadcast %974 : f32 to vector<17x17xf32>
    %976 = arith.mulf %975, %969 : vector<17x17xf32>
    %977 = arith.addf %959, %976 : vector<17x17xf32>
    %c39 = arith.constant 39 : index
    %978 = memref.load %arg1[%c39] : memref<256xf32, #tpu.memory_space<smem>>
    %979 = vector.broadcast %978 : f32 to vector<17x17xf32>
    %980 = arith.mulf %979, %969 : vector<17x17xf32>
    %981 = arith.addf %963, %980 : vector<17x17xf32>
    %c55 = arith.constant 55 : index
    %982 = memref.load %arg1[%c55] : memref<256xf32, #tpu.memory_space<smem>>
    %983 = vector.broadcast %982 : f32 to vector<17x17xf32>
    %984 = arith.mulf %983, %969 : vector<17x17xf32>
    %985 = arith.addf %967, %984 : vector<17x17xf32>
    %c0_258 = arith.constant 0 : index
    %c1_259 = arith.constant 1 : index
    %c1_260 = arith.constant 1 : index
    %c0_261 = arith.constant 0 : index
    %986 = vector.load %arg5[%c0_258, %c1_259, %c1_260, %c0_261] : memref<1x4x18x18xf32, #tpu.memory_space<vmem>>, vector<1x1x17x17xf32>
    %987 = vector.shape_cast %986 : vector<1x1x17x17xf32> to vector<17x17xf32>
    %c71 = arith.constant 71 : index
    %988 = memref.load %arg1[%c71] : memref<256xf32, #tpu.memory_space<smem>>
    %989 = vector.broadcast %988 : f32 to vector<17x17xf32>
    %990 = arith.mulf %989, %987 : vector<17x17xf32>
    %991 = arith.addf %973, %990 : vector<17x17xf32>
    %c87 = arith.constant 87 : index
    %992 = memref.load %arg1[%c87] : memref<256xf32, #tpu.memory_space<smem>>
    %993 = vector.broadcast %992 : f32 to vector<17x17xf32>
    %994 = arith.mulf %993, %987 : vector<17x17xf32>
    %995 = arith.addf %977, %994 : vector<17x17xf32>
    %c103 = arith.constant 103 : index
    %996 = memref.load %arg1[%c103] : memref<256xf32, #tpu.memory_space<smem>>
    %997 = vector.broadcast %996 : f32 to vector<17x17xf32>
    %998 = arith.mulf %997, %987 : vector<17x17xf32>
    %999 = arith.addf %981, %998 : vector<17x17xf32>
    %c119 = arith.constant 119 : index
    %1000 = memref.load %arg1[%c119] : memref<256xf32, #tpu.memory_space<smem>>
    %1001 = vector.broadcast %1000 : f32 to vector<17x17xf32>
    %1002 = arith.mulf %1001, %987 : vector<17x17xf32>
    %1003 = arith.addf %985, %1002 : vector<17x17xf32>
    %c0_262 = arith.constant 0 : index
    %c2_263 = arith.constant 2 : index
    %c1_264 = arith.constant 1 : index
    %c0_265 = arith.constant 0 : index
    %1004 = vector.load %arg5[%c0_262, %c2_263, %c1_264, %c0_265] : memref<1x4x18x18xf32, #tpu.memory_space<vmem>>, vector<1x1x17x17xf32>
    %1005 = vector.shape_cast %1004 : vector<1x1x17x17xf32> to vector<17x17xf32>
    %c135 = arith.constant 135 : index
    %1006 = memref.load %arg1[%c135] : memref<256xf32, #tpu.memory_space<smem>>
    %1007 = vector.broadcast %1006 : f32 to vector<17x17xf32>
    %1008 = arith.mulf %1007, %1005 : vector<17x17xf32>
    %1009 = arith.addf %991, %1008 : vector<17x17xf32>
    %c151 = arith.constant 151 : index
    %1010 = memref.load %arg1[%c151] : memref<256xf32, #tpu.memory_space<smem>>
    %1011 = vector.broadcast %1010 : f32 to vector<17x17xf32>
    %1012 = arith.mulf %1011, %1005 : vector<17x17xf32>
    %1013 = arith.addf %995, %1012 : vector<17x17xf32>
    %c167 = arith.constant 167 : index
    %1014 = memref.load %arg1[%c167] : memref<256xf32, #tpu.memory_space<smem>>
    %1015 = vector.broadcast %1014 : f32 to vector<17x17xf32>
    %1016 = arith.mulf %1015, %1005 : vector<17x17xf32>
    %1017 = arith.addf %999, %1016 : vector<17x17xf32>
    %c183 = arith.constant 183 : index
    %1018 = memref.load %arg1[%c183] : memref<256xf32, #tpu.memory_space<smem>>
    %1019 = vector.broadcast %1018 : f32 to vector<17x17xf32>
    %1020 = arith.mulf %1019, %1005 : vector<17x17xf32>
    %1021 = arith.addf %1003, %1020 : vector<17x17xf32>
    %c0_266 = arith.constant 0 : index
    %c3_267 = arith.constant 3 : index
    %c1_268 = arith.constant 1 : index
    %c0_269 = arith.constant 0 : index
    %1022 = vector.load %arg5[%c0_266, %c3_267, %c1_268, %c0_269] : memref<1x4x18x18xf32, #tpu.memory_space<vmem>>, vector<1x1x17x17xf32>
    %1023 = vector.shape_cast %1022 : vector<1x1x17x17xf32> to vector<17x17xf32>
    %c199 = arith.constant 199 : index
    %1024 = memref.load %arg1[%c199] : memref<256xf32, #tpu.memory_space<smem>>
    %1025 = vector.broadcast %1024 : f32 to vector<17x17xf32>
    %1026 = arith.mulf %1025, %1023 : vector<17x17xf32>
    %1027 = arith.addf %1009, %1026 : vector<17x17xf32>
    %c215 = arith.constant 215 : index
    %1028 = memref.load %arg1[%c215] : memref<256xf32, #tpu.memory_space<smem>>
    %1029 = vector.broadcast %1028 : f32 to vector<17x17xf32>
    %1030 = arith.mulf %1029, %1023 : vector<17x17xf32>
    %1031 = arith.addf %1013, %1030 : vector<17x17xf32>
    %c231 = arith.constant 231 : index
    %1032 = memref.load %arg1[%c231] : memref<256xf32, #tpu.memory_space<smem>>
    %1033 = vector.broadcast %1032 : f32 to vector<17x17xf32>
    %1034 = arith.mulf %1033, %1023 : vector<17x17xf32>
    %1035 = arith.addf %1017, %1034 : vector<17x17xf32>
    %c247 = arith.constant 247 : index
    %1036 = memref.load %arg1[%c247] : memref<256xf32, #tpu.memory_space<smem>>
    %1037 = vector.broadcast %1036 : f32 to vector<17x17xf32>
    %1038 = arith.mulf %1037, %1023 : vector<17x17xf32>
    %1039 = arith.addf %1021, %1038 : vector<17x17xf32>
    %c0_270 = arith.constant 0 : index
    %c0_271 = arith.constant 0 : index
    %c0_272 = arith.constant 0 : index
    %c1_273 = arith.constant 1 : index
    %1040 = vector.load %arg5[%c0_270, %c0_271, %c0_272, %c1_273] : memref<1x4x18x18xf32, #tpu.memory_space<vmem>>, vector<1x1x17x17xf32>
    %1041 = vector.shape_cast %1040 : vector<1x1x17x17xf32> to vector<17x17xf32>
    %c13_274 = arith.constant 13 : index
    %1042 = memref.load %arg1[%c13_274] : memref<256xf32, #tpu.memory_space<smem>>
    %1043 = vector.broadcast %1042 : f32 to vector<17x17xf32>
    %1044 = arith.mulf %1043, %1041 : vector<17x17xf32>
    %1045 = arith.addf %1027, %1044 : vector<17x17xf32>
    %c29 = arith.constant 29 : index
    %1046 = memref.load %arg1[%c29] : memref<256xf32, #tpu.memory_space<smem>>
    %1047 = vector.broadcast %1046 : f32 to vector<17x17xf32>
    %1048 = arith.mulf %1047, %1041 : vector<17x17xf32>
    %1049 = arith.addf %1031, %1048 : vector<17x17xf32>
    %c45 = arith.constant 45 : index
    %1050 = memref.load %arg1[%c45] : memref<256xf32, #tpu.memory_space<smem>>
    %1051 = vector.broadcast %1050 : f32 to vector<17x17xf32>
    %1052 = arith.mulf %1051, %1041 : vector<17x17xf32>
    %1053 = arith.addf %1035, %1052 : vector<17x17xf32>
    %c61 = arith.constant 61 : index
    %1054 = memref.load %arg1[%c61] : memref<256xf32, #tpu.memory_space<smem>>
    %1055 = vector.broadcast %1054 : f32 to vector<17x17xf32>
    %1056 = arith.mulf %1055, %1041 : vector<17x17xf32>
    %1057 = arith.addf %1039, %1056 : vector<17x17xf32>
    %c0_275 = arith.constant 0 : index
    %c1_276 = arith.constant 1 : index
    %c0_277 = arith.constant 0 : index
    %c1_278 = arith.constant 1 : index
    %1058 = vector.load %arg5[%c0_275, %c1_276, %c0_277, %c1_278] : memref<1x4x18x18xf32, #tpu.memory_space<vmem>>, vector<1x1x17x17xf32>
    %1059 = vector.shape_cast %1058 : vector<1x1x17x17xf32> to vector<17x17xf32>
    %c77 = arith.constant 77 : index
    %1060 = memref.load %arg1[%c77] : memref<256xf32, #tpu.memory_space<smem>>
    %1061 = vector.broadcast %1060 : f32 to vector<17x17xf32>
    %1062 = arith.mulf %1061, %1059 : vector<17x17xf32>
    %1063 = arith.addf %1045, %1062 : vector<17x17xf32>
    %c93 = arith.constant 93 : index
    %1064 = memref.load %arg1[%c93] : memref<256xf32, #tpu.memory_space<smem>>
    %1065 = vector.broadcast %1064 : f32 to vector<17x17xf32>
    %1066 = arith.mulf %1065, %1059 : vector<17x17xf32>
    %1067 = arith.addf %1049, %1066 : vector<17x17xf32>
    %c109 = arith.constant 109 : index
    %1068 = memref.load %arg1[%c109] : memref<256xf32, #tpu.memory_space<smem>>
    %1069 = vector.broadcast %1068 : f32 to vector<17x17xf32>
    %1070 = arith.mulf %1069, %1059 : vector<17x17xf32>
    %1071 = arith.addf %1053, %1070 : vector<17x17xf32>
    %c125 = arith.constant 125 : index
    %1072 = memref.load %arg1[%c125] : memref<256xf32, #tpu.memory_space<smem>>
    %1073 = vector.broadcast %1072 : f32 to vector<17x17xf32>
    %1074 = arith.mulf %1073, %1059 : vector<17x17xf32>
    %1075 = arith.addf %1057, %1074 : vector<17x17xf32>
    %c0_279 = arith.constant 0 : index
    %c2_280 = arith.constant 2 : index
    %c0_281 = arith.constant 0 : index
    %c1_282 = arith.constant 1 : index
    %1076 = vector.load %arg5[%c0_279, %c2_280, %c0_281, %c1_282] : memref<1x4x18x18xf32, #tpu.memory_space<vmem>>, vector<1x1x17x17xf32>
    %1077 = vector.shape_cast %1076 : vector<1x1x17x17xf32> to vector<17x17xf32>
    %c141 = arith.constant 141 : index
    %1078 = memref.load %arg1[%c141] : memref<256xf32, #tpu.memory_space<smem>>
    %1079 = vector.broadcast %1078 : f32 to vector<17x17xf32>
    %1080 = arith.mulf %1079, %1077 : vector<17x17xf32>
    %1081 = arith.addf %1063, %1080 : vector<17x17xf32>
    %c157 = arith.constant 157 : index
    %1082 = memref.load %arg1[%c157] : memref<256xf32, #tpu.memory_space<smem>>
    %1083 = vector.broadcast %1082 : f32 to vector<17x17xf32>
    %1084 = arith.mulf %1083, %1077 : vector<17x17xf32>
    %1085 = arith.addf %1067, %1084 : vector<17x17xf32>
    %c173 = arith.constant 173 : index
    %1086 = memref.load %arg1[%c173] : memref<256xf32, #tpu.memory_space<smem>>
    %1087 = vector.broadcast %1086 : f32 to vector<17x17xf32>
    %1088 = arith.mulf %1087, %1077 : vector<17x17xf32>
    %1089 = arith.addf %1071, %1088 : vector<17x17xf32>
    %c189 = arith.constant 189 : index
    %1090 = memref.load %arg1[%c189] : memref<256xf32, #tpu.memory_space<smem>>
    %1091 = vector.broadcast %1090 : f32 to vector<17x17xf32>
    %1092 = arith.mulf %1091, %1077 : vector<17x17xf32>
    %1093 = arith.addf %1075, %1092 : vector<17x17xf32>
    %c0_283 = arith.constant 0 : index
    %c3_284 = arith.constant 3 : index
    %c0_285 = arith.constant 0 : index
    %c1_286 = arith.constant 1 : index
    %1094 = vector.load %arg5[%c0_283, %c3_284, %c0_285, %c1_286] : memref<1x4x18x18xf32, #tpu.memory_space<vmem>>, vector<1x1x17x17xf32>
    %1095 = vector.shape_cast %1094 : vector<1x1x17x17xf32> to vector<17x17xf32>
    %c205 = arith.constant 205 : index
    %1096 = memref.load %arg1[%c205] : memref<256xf32, #tpu.memory_space<smem>>
    %1097 = vector.broadcast %1096 : f32 to vector<17x17xf32>
    %1098 = arith.mulf %1097, %1095 : vector<17x17xf32>
    %1099 = arith.addf %1081, %1098 : vector<17x17xf32>
    %c221 = arith.constant 221 : index
    %1100 = memref.load %arg1[%c221] : memref<256xf32, #tpu.memory_space<smem>>
    %1101 = vector.broadcast %1100 : f32 to vector<17x17xf32>
    %1102 = arith.mulf %1101, %1095 : vector<17x17xf32>
    %1103 = arith.addf %1085, %1102 : vector<17x17xf32>
    %c237 = arith.constant 237 : index
    %1104 = memref.load %arg1[%c237] : memref<256xf32, #tpu.memory_space<smem>>
    %1105 = vector.broadcast %1104 : f32 to vector<17x17xf32>
    %1106 = arith.mulf %1105, %1095 : vector<17x17xf32>
    %1107 = arith.addf %1089, %1106 : vector<17x17xf32>
    %c253 = arith.constant 253 : index
    %1108 = memref.load %arg1[%c253] : memref<256xf32, #tpu.memory_space<smem>>
    %1109 = vector.broadcast %1108 : f32 to vector<17x17xf32>
    %1110 = arith.mulf %1109, %1095 : vector<17x17xf32>
    %1111 = arith.addf %1093, %1110 : vector<17x17xf32>
    %c0_287 = arith.constant 0 : index
    %c0_288 = arith.constant 0 : index
    %c0_289 = arith.constant 0 : index
    %c0_290 = arith.constant 0 : index
    %1112 = vector.load %arg5[%c0_287, %c0_288, %c0_289, %c0_290] : memref<1x4x18x18xf32, #tpu.memory_space<vmem>>, vector<1x1x17x17xf32>
    %1113 = vector.shape_cast %1112 : vector<1x1x17x17xf32> to vector<17x17xf32>
    %c15_291 = arith.constant 15 : index
    %1114 = memref.load %arg1[%c15_291] : memref<256xf32, #tpu.memory_space<smem>>
    %1115 = vector.broadcast %1114 : f32 to vector<17x17xf32>
    %1116 = arith.mulf %1115, %1113 : vector<17x17xf32>
    %1117 = arith.addf %1099, %1116 : vector<17x17xf32>
    %c31 = arith.constant 31 : index
    %1118 = memref.load %arg1[%c31] : memref<256xf32, #tpu.memory_space<smem>>
    %1119 = vector.broadcast %1118 : f32 to vector<17x17xf32>
    %1120 = arith.mulf %1119, %1113 : vector<17x17xf32>
    %1121 = arith.addf %1103, %1120 : vector<17x17xf32>
    %c47 = arith.constant 47 : index
    %1122 = memref.load %arg1[%c47] : memref<256xf32, #tpu.memory_space<smem>>
    %1123 = vector.broadcast %1122 : f32 to vector<17x17xf32>
    %1124 = arith.mulf %1123, %1113 : vector<17x17xf32>
    %1125 = arith.addf %1107, %1124 : vector<17x17xf32>
    %c63 = arith.constant 63 : index
    %1126 = memref.load %arg1[%c63] : memref<256xf32, #tpu.memory_space<smem>>
    %1127 = vector.broadcast %1126 : f32 to vector<17x17xf32>
    %1128 = arith.mulf %1127, %1113 : vector<17x17xf32>
    %1129 = arith.addf %1111, %1128 : vector<17x17xf32>
    %c0_292 = arith.constant 0 : index
    %c1_293 = arith.constant 1 : index
    %c0_294 = arith.constant 0 : index
    %c0_295 = arith.constant 0 : index
    %1130 = vector.load %arg5[%c0_292, %c1_293, %c0_294, %c0_295] : memref<1x4x18x18xf32, #tpu.memory_space<vmem>>, vector<1x1x17x17xf32>
    %1131 = vector.shape_cast %1130 : vector<1x1x17x17xf32> to vector<17x17xf32>
    %c79 = arith.constant 79 : index
    %1132 = memref.load %arg1[%c79] : memref<256xf32, #tpu.memory_space<smem>>
    %1133 = vector.broadcast %1132 : f32 to vector<17x17xf32>
    %1134 = arith.mulf %1133, %1131 : vector<17x17xf32>
    %1135 = arith.addf %1117, %1134 : vector<17x17xf32>
    %c95 = arith.constant 95 : index
    %1136 = memref.load %arg1[%c95] : memref<256xf32, #tpu.memory_space<smem>>
    %1137 = vector.broadcast %1136 : f32 to vector<17x17xf32>
    %1138 = arith.mulf %1137, %1131 : vector<17x17xf32>
    %1139 = arith.addf %1121, %1138 : vector<17x17xf32>
    %c111 = arith.constant 111 : index
    %1140 = memref.load %arg1[%c111] : memref<256xf32, #tpu.memory_space<smem>>
    %1141 = vector.broadcast %1140 : f32 to vector<17x17xf32>
    %1142 = arith.mulf %1141, %1131 : vector<17x17xf32>
    %1143 = arith.addf %1125, %1142 : vector<17x17xf32>
    %c127 = arith.constant 127 : index
    %1144 = memref.load %arg1[%c127] : memref<256xf32, #tpu.memory_space<smem>>
    %1145 = vector.broadcast %1144 : f32 to vector<17x17xf32>
    %1146 = arith.mulf %1145, %1131 : vector<17x17xf32>
    %1147 = arith.addf %1129, %1146 : vector<17x17xf32>
    %c0_296 = arith.constant 0 : index
    %c2_297 = arith.constant 2 : index
    %c0_298 = arith.constant 0 : index
    %c0_299 = arith.constant 0 : index
    %1148 = vector.load %arg5[%c0_296, %c2_297, %c0_298, %c0_299] : memref<1x4x18x18xf32, #tpu.memory_space<vmem>>, vector<1x1x17x17xf32>
    %1149 = vector.shape_cast %1148 : vector<1x1x17x17xf32> to vector<17x17xf32>
    %c143 = arith.constant 143 : index
    %1150 = memref.load %arg1[%c143] : memref<256xf32, #tpu.memory_space<smem>>
    %1151 = vector.broadcast %1150 : f32 to vector<17x17xf32>
    %1152 = arith.mulf %1151, %1149 : vector<17x17xf32>
    %1153 = arith.addf %1135, %1152 : vector<17x17xf32>
    %c159 = arith.constant 159 : index
    %1154 = memref.load %arg1[%c159] : memref<256xf32, #tpu.memory_space<smem>>
    %1155 = vector.broadcast %1154 : f32 to vector<17x17xf32>
    %1156 = arith.mulf %1155, %1149 : vector<17x17xf32>
    %1157 = arith.addf %1139, %1156 : vector<17x17xf32>
    %c175 = arith.constant 175 : index
    %1158 = memref.load %arg1[%c175] : memref<256xf32, #tpu.memory_space<smem>>
    %1159 = vector.broadcast %1158 : f32 to vector<17x17xf32>
    %1160 = arith.mulf %1159, %1149 : vector<17x17xf32>
    %1161 = arith.addf %1143, %1160 : vector<17x17xf32>
    %c191 = arith.constant 191 : index
    %1162 = memref.load %arg1[%c191] : memref<256xf32, #tpu.memory_space<smem>>
    %1163 = vector.broadcast %1162 : f32 to vector<17x17xf32>
    %1164 = arith.mulf %1163, %1149 : vector<17x17xf32>
    %1165 = arith.addf %1147, %1164 : vector<17x17xf32>
    %c0_300 = arith.constant 0 : index
    %c3_301 = arith.constant 3 : index
    %c0_302 = arith.constant 0 : index
    %c0_303 = arith.constant 0 : index
    %1166 = vector.load %arg5[%c0_300, %c3_301, %c0_302, %c0_303] : memref<1x4x18x18xf32, #tpu.memory_space<vmem>>, vector<1x1x17x17xf32>
    %1167 = vector.shape_cast %1166 : vector<1x1x17x17xf32> to vector<17x17xf32>
    %c207 = arith.constant 207 : index
    %1168 = memref.load %arg1[%c207] : memref<256xf32, #tpu.memory_space<smem>>
    %1169 = vector.broadcast %1168 : f32 to vector<17x17xf32>
    %1170 = arith.mulf %1169, %1167 : vector<17x17xf32>
    %1171 = arith.addf %1153, %1170 : vector<17x17xf32>
    %c223 = arith.constant 223 : index
    %1172 = memref.load %arg1[%c223] : memref<256xf32, #tpu.memory_space<smem>>
    %1173 = vector.broadcast %1172 : f32 to vector<17x17xf32>
    %1174 = arith.mulf %1173, %1167 : vector<17x17xf32>
    %1175 = arith.addf %1157, %1174 : vector<17x17xf32>
    %c239 = arith.constant 239 : index
    %1176 = memref.load %arg1[%c239] : memref<256xf32, #tpu.memory_space<smem>>
    %1177 = vector.broadcast %1176 : f32 to vector<17x17xf32>
    %1178 = arith.mulf %1177, %1167 : vector<17x17xf32>
    %1179 = arith.addf %1161, %1178 : vector<17x17xf32>
    %c255 = arith.constant 255 : index
    %1180 = memref.load %arg1[%c255] : memref<256xf32, #tpu.memory_space<smem>>
    %1181 = vector.broadcast %1180 : f32 to vector<17x17xf32>
    %1182 = arith.mulf %1181, %1167 : vector<17x17xf32>
    %1183 = arith.addf %1165, %1182 : vector<17x17xf32>
    %c0_304 = arith.constant 0 : index
    %c0_305 = arith.constant 0 : index
    %c0_306 = arith.constant 0 : index
    %1184 = vector.load %arg4[%c0_304, %c0_305, %c0_306] : memref<2x17x34xf32, #tpu.memory_space<vmem>>, vector<1x17x34xf32>
    %1185 = vector.shape_cast %1184 : vector<1x17x34xf32> to vector<17x34xf32>
    %cst = arith.constant dense<0.000000e+00> : vector<17x34xf32>
    %1186 = tpu.matmul %283, %1185, %cst {dimension_numbers = #tpu.dot_dimension_numbers<[1], [0], [0], [1], [0, 0, 1, 1], [], []>} : vector<17x17xf32>, vector<17x34xf32>, vector<17x34xf32> -> vector<17x34xf32>
    %c1_307 = arith.constant 1 : index
    %c0_308 = arith.constant 0 : index
    %c0_309 = arith.constant 0 : index
    %1187 = vector.load %arg4[%c1_307, %c0_308, %c0_309] : memref<2x17x34xf32, #tpu.memory_space<vmem>>, vector<1x17x34xf32>
    %1188 = vector.shape_cast %1187 : vector<1x17x34xf32> to vector<17x34xf32>
    %cst_310 = arith.constant dense<0.000000e+00> : vector<17x34xf32>
    %1189 = tpu.matmul %579, %1188, %cst_310 {dimension_numbers = #tpu.dot_dimension_numbers<[1], [0], [0], [1], [0, 0, 1, 1], [], []>} : vector<17x17xf32>, vector<17x34xf32>, vector<17x34xf32> -> vector<17x34xf32>
    %1190 = arith.addf %1186, %1189 : vector<17x34xf32>
    %c0_311 = arith.constant 0 : index
    %c0_312 = arith.constant 0 : index
    %c0_313 = arith.constant 0 : index
    %1191 = vector.load %arg3[%c0_311, %c0_312, %c0_313] : memref<2x34x17xf32, #tpu.memory_space<vmem>>, vector<1x34x17xf32>
    %1192 = vector.shape_cast %1191 : vector<1x34x17xf32> to vector<34x17xf32>
    %cst_314 = arith.constant dense<0.000000e+00> : vector<34x34xf32>
    %1193 = tpu.matmul %1192, %1190, %cst_314 {dimension_numbers = #tpu.dot_dimension_numbers<[1], [0], [0], [1], [0, 0, 1, 1], [], []>} : vector<34x17xf32>, vector<17x34xf32>, vector<34x34xf32> -> vector<34x34xf32>
    %c0_315 = arith.constant 0 : index
    %c0_316 = arith.constant 0 : index
    %c0_317 = arith.constant 0 : index
    %1194 = vector.load %arg4[%c0_315, %c0_316, %c0_317] : memref<2x17x34xf32, #tpu.memory_space<vmem>>, vector<1x17x34xf32>
    %1195 = vector.shape_cast %1194 : vector<1x17x34xf32> to vector<17x34xf32>
    %cst_318 = arith.constant dense<0.000000e+00> : vector<17x34xf32>
    %1196 = tpu.matmul %875, %1195, %cst_318 {dimension_numbers = #tpu.dot_dimension_numbers<[1], [0], [0], [1], [0, 0, 1, 1], [], []>} : vector<17x17xf32>, vector<17x34xf32>, vector<17x34xf32> -> vector<17x34xf32>
    %c1_319 = arith.constant 1 : index
    %c0_320 = arith.constant 0 : index
    %c0_321 = arith.constant 0 : index
    %1197 = vector.load %arg4[%c1_319, %c0_320, %c0_321] : memref<2x17x34xf32, #tpu.memory_space<vmem>>, vector<1x17x34xf32>
    %1198 = vector.shape_cast %1197 : vector<1x17x34xf32> to vector<17x34xf32>
    %cst_322 = arith.constant dense<0.000000e+00> : vector<17x34xf32>
    %1199 = tpu.matmul %1171, %1198, %cst_322 {dimension_numbers = #tpu.dot_dimension_numbers<[1], [0], [0], [1], [0, 0, 1, 1], [], []>} : vector<17x17xf32>, vector<17x34xf32>, vector<17x34xf32> -> vector<17x34xf32>
    %1200 = arith.addf %1196, %1199 : vector<17x34xf32>
    %c1_323 = arith.constant 1 : index
    %c0_324 = arith.constant 0 : index
    %c0_325 = arith.constant 0 : index
    %1201 = vector.load %arg3[%c1_323, %c0_324, %c0_325] : memref<2x34x17xf32, #tpu.memory_space<vmem>>, vector<1x34x17xf32>
    %1202 = vector.shape_cast %1201 : vector<1x34x17xf32> to vector<34x17xf32>
    %cst_326 = arith.constant dense<0.000000e+00> : vector<34x34xf32>
    %1203 = tpu.matmul %1202, %1200, %cst_326 {dimension_numbers = #tpu.dot_dimension_numbers<[1], [0], [0], [1], [0, 0, 1, 1], [], []>} : vector<34x17xf32>, vector<17x34xf32>, vector<34x34xf32> -> vector<34x34xf32>
    %1204 = arith.addf %1193, %1203 : vector<34x34xf32>
    %c0_327 = arith.constant 0 : index
    %c0_328 = arith.constant 0 : index
    %c0_329 = arith.constant 0 : index
    %c0_330 = arith.constant 0 : index
    %1205 = vector.load %arg6[%c0_327, %c0_328, %c0_329, %c0_330] : memref<1x4x34x34xf32, #tpu.memory_space<vmem>>, vector<1x1x34x34xf32>
    %1206 = vector.shape_cast %1205 : vector<1x1x34x34xf32> to vector<34x34xf32>
    %1207 = vector.shape_cast %1204 : vector<34x34xf32> to vector<1x1x34x34xf32>
    tpu.vector_store %arg6[%c0_327, %c0_328, %c0_329, %c0_330], %1207 {strides = array<i32>} : memref<1x4x34x34xf32, #tpu.memory_space<vmem>>, vector<1x1x34x34xf32>,
    %c0_331 = arith.constant 0 : index
    %c0_332 = arith.constant 0 : index
    %c0_333 = arith.constant 0 : index
    %1208 = vector.load %arg4[%c0_331, %c0_332, %c0_333] : memref<2x17x34xf32, #tpu.memory_space<vmem>>, vector<1x17x34xf32>
    %1209 = vector.shape_cast %1208 : vector<1x17x34xf32> to vector<17x34xf32>
    %cst_334 = arith.constant dense<0.000000e+00> : vector<17x34xf32>
    %1210 = tpu.matmul %287, %1209, %cst_334 {dimension_numbers = #tpu.dot_dimension_numbers<[1], [0], [0], [1], [0, 0, 1, 1], [], []>} : vector<17x17xf32>, vector<17x34xf32>, vector<17x34xf32> -> vector<17x34xf32>
    %c1_335 = arith.constant 1 : index
    %c0_336 = arith.constant 0 : index
    %c0_337 = arith.constant 0 : index
    %1211 = vector.load %arg4[%c1_335, %c0_336, %c0_337] : memref<2x17x34xf32, #tpu.memory_space<vmem>>, vector<1x17x34xf32>
    %1212 = vector.shape_cast %1211 : vector<1x17x34xf32> to vector<17x34xf32>
    %cst_338 = arith.constant dense<0.000000e+00> : vector<17x34xf32>
    %1213 = tpu.matmul %583, %1212, %cst_338 {dimension_numbers = #tpu.dot_dimension_numbers<[1], [0], [0], [1], [0, 0, 1, 1], [], []>} : vector<17x17xf32>, vector<17x34xf32>, vector<17x34xf32> -> vector<17x34xf32>
    %1214 = arith.addf %1210, %1213 : vector<17x34xf32>
    %c0_339 = arith.constant 0 : index
    %c0_340 = arith.constant 0 : index
    %c0_341 = arith.constant 0 : index
    %1215 = vector.load %arg3[%c0_339, %c0_340, %c0_341] : memref<2x34x17xf32, #tpu.memory_space<vmem>>, vector<1x34x17xf32>
    %1216 = vector.shape_cast %1215 : vector<1x34x17xf32> to vector<34x17xf32>
    %cst_342 = arith.constant dense<0.000000e+00> : vector<34x34xf32>
    %1217 = tpu.matmul %1216, %1214, %cst_342 {dimension_numbers = #tpu.dot_dimension_numbers<[1], [0], [0], [1], [0, 0, 1, 1], [], []>} : vector<34x17xf32>, vector<17x34xf32>, vector<34x34xf32> -> vector<34x34xf32>
    %c0_343 = arith.constant 0 : index
    %c0_344 = arith.constant 0 : index
    %c0_345 = arith.constant 0 : index
    %1218 = vector.load %arg4[%c0_343, %c0_344, %c0_345] : memref<2x17x34xf32, #tpu.memory_space<vmem>>, vector<1x17x34xf32>
    %1219 = vector.shape_cast %1218 : vector<1x17x34xf32> to vector<17x34xf32>
    %cst_346 = arith.constant dense<0.000000e+00> : vector<17x34xf32>
    %1220 = tpu.matmul %879, %1219, %cst_346 {dimension_numbers = #tpu.dot_dimension_numbers<[1], [0], [0], [1], [0, 0, 1, 1], [], []>} : vector<17x17xf32>, vector<17x34xf32>, vector<17x34xf32> -> vector<17x34xf32>
    %c1_347 = arith.constant 1 : index
    %c0_348 = arith.constant 0 : index
    %c0_349 = arith.constant 0 : index
    %1221 = vector.load %arg4[%c1_347, %c0_348, %c0_349] : memref<2x17x34xf32, #tpu.memory_space<vmem>>, vector<1x17x34xf32>
    %1222 = vector.shape_cast %1221 : vector<1x17x34xf32> to vector<17x34xf32>
    %cst_350 = arith.constant dense<0.000000e+00> : vector<17x34xf32>
    %1223 = tpu.matmul %1175, %1222, %cst_350 {dimension_numbers = #tpu.dot_dimension_numbers<[1], [0], [0], [1], [0, 0, 1, 1], [], []>} : vector<17x17xf32>, vector<17x34xf32>, vector<17x34xf32> -> vector<17x34xf32>
    %1224 = arith.addf %1220, %1223 : vector<17x34xf32>
    %c1_351 = arith.constant 1 : index
    %c0_352 = arith.constant 0 : index
    %c0_353 = arith.constant 0 : index
    %1225 = vector.load %arg3[%c1_351, %c0_352, %c0_353] : memref<2x34x17xf32, #tpu.memory_space<vmem>>, vector<1x34x17xf32>
    %1226 = vector.shape_cast %1225 : vector<1x34x17xf32> to vector<34x17xf32>
    %cst_354 = arith.constant dense<0.000000e+00> : vector<34x34xf32>
    %1227 = tpu.matmul %1226, %1224, %cst_354 {dimension_numbers = #tpu.dot_dimension_numbers<[1], [0], [0], [1], [0, 0, 1, 1], [], []>} : vector<34x17xf32>, vector<17x34xf32>, vector<34x34xf32> -> vector<34x34xf32>
    %1228 = arith.addf %1217, %1227 : vector<34x34xf32>
    %c0_355 = arith.constant 0 : index
    %c1_356 = arith.constant 1 : index
    %c0_357 = arith.constant 0 : index
    %c0_358 = arith.constant 0 : index
    %1229 = vector.load %arg6[%c0_355, %c1_356, %c0_357, %c0_358] : memref<1x4x34x34xf32, #tpu.memory_space<vmem>>, vector<1x1x34x34xf32>
    %1230 = vector.shape_cast %1229 : vector<1x1x34x34xf32> to vector<34x34xf32>
    %1231 = vector.shape_cast %1228 : vector<34x34xf32> to vector<1x1x34x34xf32>
    tpu.vector_store %arg6[%c0_355, %c1_356, %c0_357, %c0_358], %1231 {strides = array<i32>} : memref<1x4x34x34xf32, #tpu.memory_space<vmem>>, vector<1x1x34x34xf32>,
    %c0_359 = arith.constant 0 : index
    %c0_360 = arith.constant 0 : index
    %c0_361 = arith.constant 0 : index
    %1232 = vector.load %arg4[%c0_359, %c0_360, %c0_361] : memref<2x17x34xf32, #tpu.memory_space<vmem>>, vector<1x17x34xf32>
    %1233 = vector.shape_cast %1232 : vector<1x17x34xf32> to vector<17x34xf32>
    %cst_362 = arith.constant dense<0.000000e+00> : vector<17x34xf32>
    %1234 = tpu.matmul %291, %1233, %cst_362 {dimension_numbers = #tpu.dot_dimension_numbers<[1], [0], [0], [1], [0, 0, 1, 1], [], []>} : vector<17x17xf32>, vector<17x34xf32>, vector<17x34xf32> -> vector<17x34xf32>
    %c1_363 = arith.constant 1 : index
    %c0_364 = arith.constant 0 : index
    %c0_365 = arith.constant 0 : index
    %1235 = vector.load %arg4[%c1_363, %c0_364, %c0_365] : memref<2x17x34xf32, #tpu.memory_space<vmem>>, vector<1x17x34xf32>
    %1236 = vector.shape_cast %1235 : vector<1x17x34xf32> to vector<17x34xf32>
    %cst_366 = arith.constant dense<0.000000e+00> : vector<17x34xf32>
    %1237 = tpu.matmul %587, %1236, %cst_366 {dimension_numbers = #tpu.dot_dimension_numbers<[1], [0], [0], [1], [0, 0, 1, 1], [], []>} : vector<17x17xf32>, vector<17x34xf32>, vector<17x34xf32> -> vector<17x34xf32>
    %1238 = arith.addf %1234, %1237 : vector<17x34xf32>
    %c0_367 = arith.constant 0 : index
    %c0_368 = arith.constant 0 : index
    %c0_369 = arith.constant 0 : index
    %1239 = vector.load %arg3[%c0_367, %c0_368, %c0_369] : memref<2x34x17xf32, #tpu.memory_space<vmem>>, vector<1x34x17xf32>
    %1240 = vector.shape_cast %1239 : vector<1x34x17xf32> to vector<34x17xf32>
    %cst_370 = arith.constant dense<0.000000e+00> : vector<34x34xf32>
    %1241 = tpu.matmul %1240, %1238, %cst_370 {dimension_numbers = #tpu.dot_dimension_numbers<[1], [0], [0], [1], [0, 0, 1, 1], [], []>} : vector<34x17xf32>, vector<17x34xf32>, vector<34x34xf32> -> vector<34x34xf32>
    %c0_371 = arith.constant 0 : index
    %c0_372 = arith.constant 0 : index
    %c0_373 = arith.constant 0 : index
    %1242 = vector.load %arg4[%c0_371, %c0_372, %c0_373] : memref<2x17x34xf32, #tpu.memory_space<vmem>>, vector<1x17x34xf32>
    %1243 = vector.shape_cast %1242 : vector<1x17x34xf32> to vector<17x34xf32>
    %cst_374 = arith.constant dense<0.000000e+00> : vector<17x34xf32>
    %1244 = tpu.matmul %883, %1243, %cst_374 {dimension_numbers = #tpu.dot_dimension_numbers<[1], [0], [0], [1], [0, 0, 1, 1], [], []>} : vector<17x17xf32>, vector<17x34xf32>, vector<17x34xf32> -> vector<17x34xf32>
    %c1_375 = arith.constant 1 : index
    %c0_376 = arith.constant 0 : index
    %c0_377 = arith.constant 0 : index
    %1245 = vector.load %arg4[%c1_375, %c0_376, %c0_377] : memref<2x17x34xf32, #tpu.memory_space<vmem>>, vector<1x17x34xf32>
    %1246 = vector.shape_cast %1245 : vector<1x17x34xf32> to vector<17x34xf32>
    %cst_378 = arith.constant dense<0.000000e+00> : vector<17x34xf32>
    %1247 = tpu.matmul %1179, %1246, %cst_378 {dimension_numbers = #tpu.dot_dimension_numbers<[1], [0], [0], [1], [0, 0, 1, 1], [], []>} : vector<17x17xf32>, vector<17x34xf32>, vector<17x34xf32> -> vector<17x34xf32>
    %1248 = arith.addf %1244, %1247 : vector<17x34xf32>
    %c1_379 = arith.constant 1 : index
    %c0_380 = arith.constant 0 : index
    %c0_381 = arith.constant 0 : index
    %1249 = vector.load %arg3[%c1_379, %c0_380, %c0_381] : memref<2x34x17xf32, #tpu.memory_space<vmem>>, vector<1x34x17xf32>
    %1250 = vector.shape_cast %1249 : vector<1x34x17xf32> to vector<34x17xf32>
    %cst_382 = arith.constant dense<0.000000e+00> : vector<34x34xf32>
    %1251 = tpu.matmul %1250, %1248, %cst_382 {dimension_numbers = #tpu.dot_dimension_numbers<[1], [0], [0], [1], [0, 0, 1, 1], [], []>} : vector<34x17xf32>, vector<17x34xf32>, vector<34x34xf32> -> vector<34x34xf32>
    %1252 = arith.addf %1241, %1251 : vector<34x34xf32>
    %c0_383 = arith.constant 0 : index
    %c2_384 = arith.constant 2 : index
    %c0_385 = arith.constant 0 : index
    %c0_386 = arith.constant 0 : index
    %1253 = vector.load %arg6[%c0_383, %c2_384, %c0_385, %c0_386] : memref<1x4x34x34xf32, #tpu.memory_space<vmem>>, vector<1x1x34x34xf32>
    %1254 = vector.shape_cast %1253 : vector<1x1x34x34xf32> to vector<34x34xf32>
    %1255 = vector.shape_cast %1252 : vector<34x34xf32> to vector<1x1x34x34xf32>
    tpu.vector_store %arg6[%c0_383, %c2_384, %c0_385, %c0_386], %1255 {strides = array<i32>} : memref<1x4x34x34xf32, #tpu.memory_space<vmem>>, vector<1x1x34x34xf32>,
    %c0_387 = arith.constant 0 : index
    %c0_388 = arith.constant 0 : index
    %c0_389 = arith.constant 0 : index
    %1256 = vector.load %arg4[%c0_387, %c0_388, %c0_389] : memref<2x17x34xf32, #tpu.memory_space<vmem>>, vector<1x17x34xf32>
    %1257 = vector.shape_cast %1256 : vector<1x17x34xf32> to vector<17x34xf32>
    %cst_390 = arith.constant dense<0.000000e+00> : vector<17x34xf32>
    %1258 = tpu.matmul %295, %1257, %cst_390 {dimension_numbers = #tpu.dot_dimension_numbers<[1], [0], [0], [1], [0, 0, 1, 1], [], []>} : vector<17x17xf32>, vector<17x34xf32>, vector<17x34xf32> -> vector<17x34xf32>
    %c1_391 = arith.constant 1 : index
    %c0_392 = arith.constant 0 : index
    %c0_393 = arith.constant 0 : index
    %1259 = vector.load %arg4[%c1_391, %c0_392, %c0_393] : memref<2x17x34xf32, #tpu.memory_space<vmem>>, vector<1x17x34xf32>
    %1260 = vector.shape_cast %1259 : vector<1x17x34xf32> to vector<17x34xf32>
    %cst_394 = arith.constant dense<0.000000e+00> : vector<17x34xf32>
    %1261 = tpu.matmul %591, %1260, %cst_394 {dimension_numbers = #tpu.dot_dimension_numbers<[1], [0], [0], [1], [0, 0, 1, 1], [], []>} : vector<17x17xf32>, vector<17x34xf32>, vector<17x34xf32> -> vector<17x34xf32>
    %1262 = arith.addf %1258, %1261 : vector<17x34xf32>
    %c0_395 = arith.constant 0 : index
    %c0_396 = arith.constant 0 : index
    %c0_397 = arith.constant 0 : index
    %1263 = vector.load %arg3[%c0_395, %c0_396, %c0_397] : memref<2x34x17xf32, #tpu.memory_space<vmem>>, vector<1x34x17xf32>
    %1264 = vector.shape_cast %1263 : vector<1x34x17xf32> to vector<34x17xf32>
    %cst_398 = arith.constant dense<0.000000e+00> : vector<34x34xf32>
    %1265 = tpu.matmul %1264, %1262, %cst_398 {dimension_numbers = #tpu.dot_dimension_numbers<[1], [0], [0], [1], [0, 0, 1, 1], [], []>} : vector<34x17xf32>, vector<17x34xf32>, vector<34x34xf32> -> vector<34x34xf32>
    %c0_399 = arith.constant 0 : index
    %c0_400 = arith.constant 0 : index
    %c0_401 = arith.constant 0 : index
    %1266 = vector.load %arg4[%c0_399, %c0_400, %c0_401] : memref<2x17x34xf32, #tpu.memory_space<vmem>>, vector<1x17x34xf32>
    %1267 = vector.shape_cast %1266 : vector<1x17x34xf32> to vector<17x34xf32>
    %cst_402 = arith.constant dense<0.000000e+00> : vector<17x34xf32>
    %1268 = tpu.matmul %887, %1267, %cst_402 {dimension_numbers = #tpu.dot_dimension_numbers<[1], [0], [0], [1], [0, 0, 1, 1], [], []>} : vector<17x17xf32>, vector<17x34xf32>, vector<17x34xf32> -> vector<17x34xf32>
    %c1_403 = arith.constant 1 : index
    %c0_404 = arith.constant 0 : index
    %c0_405 = arith.constant 0 : index
    %1269 = vector.load %arg4[%c1_403, %c0_404, %c0_405] : memref<2x17x34xf32, #tpu.memory_space<vmem>>, vector<1x17x34xf32>
    %1270 = vector.shape_cast %1269 : vector<1x17x34xf32> to vector<17x34xf32>
    %cst_406 = arith.constant dense<0.000000e+00> : vector<17x34xf32>
    %1271 = tpu.matmul %1183, %1270, %cst_406 {dimension_numbers = #tpu.dot_dimension_numbers<[1], [0], [0], [1], [0, 0, 1, 1], [], []>} : vector<17x17xf32>, vector<17x34xf32>, vector<17x34xf32> -> vector<17x34xf32>
    %1272 = arith.addf %1268, %1271 : vector<17x34xf32>
    %c1_407 = arith.constant 1 : index
    %c0_408 = arith.constant 0 : index
    %c0_409 = arith.constant 0 : index
    %1273 = vector.load %arg3[%c1_407, %c0_408, %c0_409] : memref<2x34x17xf32, #tpu.memory_space<vmem>>, vector<1x34x17xf32>
    %1274 = vector.shape_cast %1273 : vector<1x34x17xf32> to vector<34x17xf32>
    %cst_410 = arith.constant dense<0.000000e+00> : vector<34x34xf32>
    %1275 = tpu.matmul %1274, %1272, %cst_410 {dimension_numbers = #tpu.dot_dimension_numbers<[1], [0], [0], [1], [0, 0, 1, 1], [], []>} : vector<34x17xf32>, vector<17x34xf32>, vector<34x34xf32> -> vector<34x34xf32>
    %1276 = arith.addf %1265, %1275 : vector<34x34xf32>
    %c0_411 = arith.constant 0 : index
    %c3_412 = arith.constant 3 : index
    %c0_413 = arith.constant 0 : index
    %c0_414 = arith.constant 0 : index
    %1277 = vector.load %arg6[%c0_411, %c3_412, %c0_413, %c0_414] : memref<1x4x34x34xf32, #tpu.memory_space<vmem>>, vector<1x1x34x34xf32>
    %1278 = vector.shape_cast %1277 : vector<1x1x34x34xf32> to vector<34x34xf32>
    %1279 = vector.shape_cast %1276 : vector<34x34xf32> to vector<1x1x34x34xf32>
    tpu.vector_store %arg6[%c0_411, %c3_412, %c0_413, %c0_414], %1279 {strides = array<i32>} : memref<1x4x34x34xf32, #tpu.memory_space<vmem>>, vector<1x1x34x34xf32>,
    return
  }
  func.func @transform_0(%arg0: i32) -> i32 {
    %c0_i32 = arith.constant 0 : i32
    %c0_i32_0 = arith.constant 0 : i32
    return %c0_i32 : i32
  }
  func.func @transform_1(%arg0: i32) -> (i32, i32, i32) {
    %c0_i32 = arith.constant 0 : i32
    %c0_i32_0 = arith.constant 0 : i32
    %c0_i32_1 = arith.constant 0 : i32
    %c0_i32_2 = arith.constant 0 : i32
    return %c0_i32, %c0_i32_0, %c0_i32_1 : i32, i32, i32
  }
  func.func @transform_2(%arg0: i32) -> (i32, i32, i32) {
    %c0_i32 = arith.constant 0 : i32
    %c0_i32_0 = arith.constant 0 : i32
    %c0_i32_1 = arith.constant 0 : i32
    %c0_i32_2 = arith.constant 0 : i32
    return %c0_i32, %c0_i32_0, %c0_i32_1 : i32, i32, i32
  }
  func.func @transform_3(%arg0: i32) -> (i32, i32, i32) {
    %c0_i32 = arith.constant 0 : i32
    %c0_i32_0 = arith.constant 0 : i32
    %c0_i32_1 = arith.constant 0 : i32
    %c0_i32_2 = arith.constant 0 : i32
    return %c0_i32, %c0_i32_0, %c0_i32_1 : i32, i32, i32
  }
  func.func @transform_4(%arg0: i32) -> (i32, i32, i32, i32) {
    %c0_i32 = arith.constant 0 : i32
    %c0_i32_0 = arith.constant 0 : i32
    %c0_i32_1 = arith.constant 0 : i32
    %c0_i32_2 = arith.constant 0 : i32
    return %arg0, %c0_i32, %c0_i32_0, %c0_i32_1 : i32, i32, i32, i32
  }
  func.func @transform_5(%arg0: i32) -> (i32, i32, i32, i32) {
    %c0_i32 = arith.constant 0 : i32
    %c0_i32_0 = arith.constant 0 : i32
    %c0_i32_1 = arith.constant 0 : i32
    %c0_i32_2 = arith.constant 0 : i32
    return %arg0, %c0_i32, %c0_i32_0, %c0_i32_1 : i32, i32, i32, i32
  }
}

</mosaic_0001>

<llo_original>
// kernel: tpu_custom_call.1
$region0: #{tpu_custom_call.1}
  #allocation0 [shape = 'u32[]', space=smem, size = 0x4, offset = 0x4, fixed_abs, tag = 'smem constant byte address 0x4 - core index']
  #allocation1 [shape = 'u32[144,128]{1,0:T(1,128)}', space=vmem, size = 0x12000, scoped, tag = 'internal scratch']
  %s0 = inlined_call_operand.vmem [shape: f32[256], index: 0, kind: input, shape index: {}]
  %s1 = inlined_call_operand.vmem [shape: f32[16,17,17], index: 1, kind: input, shape index: {}]
  %s2 = inlined_call_operand.vmem [shape: f32[2,34,17], index: 2, kind: input, shape index: {}]
  %s3 = inlined_call_operand.vmem [shape: f32[2,17,34], index: 3, kind: input, shape index: {}]
  %s4 = inlined_call_operand.vmem [shape: f32[2,4,18,18], index: 4, kind: input, shape index: {}]
  %s5 = inlined_call_operand.vmem [shape: f32[2,4,34,34], index: 5, kind: output, shape index: {}]
  %s6 = sld [smem:[#allocation0]]
  $region57: #{tpu_custom_call.1} parent=0
    _
  %s8 = ssub.s32 1, %s6
  %s9 = scalar_select 0, %s8, %s6
  $region1: #{tpu_custom_call.1} parent=0
    #allocation2 [shape = 'u8[1024]{0}', space=smem, size = 0x400, scoped, tag = 'input window, operand 0, single buffered']
    #allocation3 [shape = 's32[2]{0}', space=sflag, size = 0x8, scoped, tag = 'scoped memory for tpu_custom_call.1']
    %10 = vsyncpa [#allocation3], 0
    loop: start=0, step=1, limit=4
    $region2: #{tpu_custom_call.1} parent=1 // loop_pre_header
      _
    $region3: #{tpu_custom_call.1} parent=1 // loop_header
      %s12 = sphi 0, %s16
      %p13 = scmp.ge.s32.totalorder %s12, 4
      %s20 = sphi 0, %s20
      %s22 = sphi 0, %s20
      %s23 = sphi 0, %s22
      %s37 = sphi 0, %s23
      %s41 = sphi 0, %s41
      %s43 = sphi 0, %s41
      %s44 = sphi 0, %s43
      %s58 = sphi 0, %s44
      %s62 = sphi 0, %s62
      %s64 = sphi 0, %s62
      %s65 = sphi 0, %s64
      %s79 = sphi 0, %s65
      %s83 = sphi 0, %s83
      %s85 = sphi 0, %s83
      %s86 = sphi 0, %s85
      %s100 = sphi 0, %s86
      %s106 = sphi 0, %s108
      %s109 = sphi 0, %s106
      %s110 = sphi 0, %s109
      %s126 = sphi 0, %s110
      %s132 = sphi 0, %s134
      %s135 = sphi 0, %s132
      %s136 = sphi 0, %s135
      %s152 = sphi 0, %s136
    $region4: #{tpu_custom_call.1} parent=1 // loop_header_branch
      %15 = sbr.rel (%p13) target = $region8
    $region5: #{tpu_custom_call.1} parent=1 // loop_body
      %s17 = ssub.s32 %s12, 1
      %s18 = ssub.s32 %s12, 2
      %s19 = sadd.s32 %s12, 1
      %s21 = sadd.s32 %s20, 1
      %p24 = scmp.eq.s32.totalorder %s12, 1
      %p25 = scmp.ne.s32.totalorder %s20, %s22
      %p26 = scmp.eq.s32.totalorder %s12, 0
      %p27 = por %p25, %p26
      %p28 = scmp.ne.s32.totalorder %s20, %s22
      %p29 = scmp.eq.s32.totalorder %s17, 1
      %p30 = por %p28, %p29
      %p31 = scmp.ne.s32.totalorder %s22, %s23
      %p32 = scmp.eq.s32.totalorder %s17, 0
      %p33 = por %p31, %p32
      %p34 = scmp.ne.s32.totalorder %s22, %s23
      %p35 = scmp.eq.s32.totalorder %s18, 1
      %p36 = por %p34, %p35
      %p38 = scmp.ne.s32.totalorder %s23, %s37
      %p39 = scmp.eq.s32.totalorder %s18, 0
      %p40 = por %p38, %p39
      %s42 = sadd.s32 %s41, 1
      %p45 = scmp.eq.s32.totalorder %s12, 1
      %p46 = scmp.ne.s32.totalorder %s41, %s43
      %p47 = scmp.eq.s32.totalorder %s12, 0
      %p48 = por %p46, %p47
      %p49 = scmp.ne.s32.totalorder %s41, %s43
      %p50 = scmp.eq.s32.totalorder %s17, 1
      %p51 = por %p49, %p50
      %p52 = scmp.ne.s32.totalorder %s43, %s44
      %p53 = scmp.eq.s32.totalorder %s17, 0
      %p54 = por %p52, %p53
      %p55 = scmp.ne.s32.totalorder %s43, %s44
      %p56 = scmp.eq.s32.totalorder %s18, 1
      %p57 = por %p55, %p56
      %p59 = scmp.ne.s32.totalorder %s44, %s58
      %p60 = scmp.eq.s32.totalorder %s18, 0
      %p61 = por %p59, %p60
      %s63 = sadd.s32 %s62, 1
      %p66 = scmp.eq.s32.totalorder %s12, 1
      %p67 = scmp.ne.s32.totalorder %s62, %s64
      %p68 = scmp.eq.s32.totalorder %s12, 0
      %p69 = por %p67, %p68
      %p70 = scmp.ne.s32.totalorder %s62, %s64
      %p71 = scmp.eq.s32.totalorder %s17, 1
      %p72 = por %p70, %p71
      %p73 = scmp.ne.s32.totalorder %s64, %s65
      %p74 = scmp.eq.s32.totalorder %s17, 0
      %p75 = por %p73, %p74
      %p76 = scmp.ne.s32.totalorder %s64, %s65
      %p77 = scmp.eq.s32.totalorder %s18, 1
      %p78 = por %p76, %p77
      %p80 = scmp.ne.s32.totalorder %s65, %s79
      %p81 = scmp.eq.s32.totalorder %s18, 0
      %p82 = por %p80, %p81
      %s84 = sadd.s32 %s83, 1
      %p87 = scmp.eq.s32.totalorder %s12, 1
      %p88 = scmp.ne.s32.totalorder %s83, %s85
      %p89 = scmp.eq.s32.totalorder %s12, 0
      %p90 = por %p88, %p89
      %p91 = scmp.ne.s32.totalorder %s83, %s85
      %p92 = scmp.eq.s32.totalorder %s17, 1
      %p93 = por %p91, %p92
      %p94 = scmp.ne.s32.totalorder %s85, %s86
      %p95 = scmp.eq.s32.totalorder %s17, 0
      %p96 = por %p94, %p95
      %p97 = scmp.ne.s32.totalorder %s85, %s86
      %p98 = scmp.eq.s32.totalorder %s18, 1
      %p99 = por %p97, %p98
      %p101 = scmp.ne.s32.totalorder %s86, %s100
      %p102 = scmp.eq.s32.totalorder %s18, 0
      %p103 = por %p101, %p102
      %s104 = ssub.s32 %s12, %s19
      %p105 = scmp.eq.s32.totalorder %s104, 0
      %s107 = sadd.s32 %s106, 1
      %s108 = scalar_select %p105, %s106, %s107
      %p111 = pneg %p105
      %p112 = scmp.eq.s32.totalorder %s12, 1
      %p113 = por %p111, %p112
      %p114 = scmp.ne.s32.totalorder %s106, %s109
      %p115 = scmp.eq.s32.totalorder %s12, 0
      %p116 = por %p114, %p115
      %p117 = scmp.ne.s32.totalorder %s106, %s109
      %p118 = scmp.eq.s32.totalorder %s17, 1
      %p119 = por %p117, %p118
      %p120 = scmp.ne.s32.totalorder %s109, %s110
      %p121 = scmp.eq.s32.totalorder %s17, 0
      %p122 = por %p120, %p121
      %p123 = scmp.ne.s32.totalorder %s109, %s110
      %p124 = scmp.eq.s32.totalorder %s18, 1
      %p125 = por %p123, %p124
      %p127 = scmp.ne.s32.totalorder %s110, %s126
      %p128 = scmp.eq.s32.totalorder %s18, 0
      %p129 = por %p127, %p128
      %s130 = ssub.s32 %s12, %s19
      %p131 = scmp.eq.s32.totalorder %s130, 0
      %s133 = sadd.s32 %s132, 1
      %s134 = scalar_select %p131, %s132, %s133
      %p137 = pneg %p131
      %p138 = scmp.eq.s32.totalorder %s12, 1
      %p139 = por %p137, %p138
      %p140 = scmp.ne.s32.totalorder %s132, %s135
      %p141 = scmp.eq.s32.totalorder %s12, 0
      %p142 = por %p140, %p141
      %p143 = scmp.ne.s32.totalorder %s132, %s135
      %p144 = scmp.eq.s32.totalorder %s17, 1
      %p145 = por %p143, %p144
      %p146 = scmp.ne.s32.totalorder %s135, %s136
      %p147 = scmp.eq.s32.totalorder %s17, 0
      %p148 = por %p146, %p147
      %p149 = scmp.ne.s32.totalorder %s135, %s136
      %p150 = scmp.eq.s32.totalorder %s18, 1
      %p151 = por %p149, %p150
      %p153 = scmp.ne.s32.totalorder %s136, %s152
      %p154 = scmp.eq.s32.totalorder %s18, 0
      %p155 = por %p153, %p154
      %p156 = scmp.le.s32.totalorder 1, %s12
      %p157 = scmp.lt.s32.totalorder %s12, 3
      %p158 = pnand %p156, %p157
      %p159 = pneg %p158
      // Predicated region
      $region9: #{tpu_custom_call.1} parent=5 // pred_check
        _
      $region10: #{tpu_custom_call.1} parent=5 // pred_check_branch
        %161 = sbr.rel (%p158) target = $region12
      $region11: #{tpu_custom_call.1} parent=5 // pred_region
        %s162 = ssub.s32 %s12, 1
        // Predicated region
        $region13: #{tpu_custom_call.1} parent=11 // pred_check
          %p163 = pneg %p33
        $region14: #{tpu_custom_call.1} parent=11 // pred_check_branch
          %165 = sbr.rel (%p163) target = $region16
        $region15: #{tpu_custom_call.1} parent=11 // pred_region
          %s167 = ssub.s32 32, 32
          %168 = vsyncadd [#allocation3], %s167
          %s170 = sshll.u32 %s0, 4
          %s171 = int_to_ptr.vmem [resolvable:$true] %s170
          %173 = dma.vmem_to_smem %s171, 32, [#allocation2], [#allocation3]
        $region16: #{tpu_custom_call.1} parent=11 // pred_fallthru
          _
        // Predicated region
        $region17: #{tpu_custom_call.1} parent=11 // pred_check
          %p174 = pneg %p54
        $region18: #{tpu_custom_call.1} parent=11 // pred_check_branch
          %176 = sbr.rel (%p174) target = $region20
        $region19: #{tpu_custom_call.1} parent=11 // pred_region
          _
        $region20: #{tpu_custom_call.1} parent=11 // pred_fallthru
          _
        // Predicated region
        $region21: #{tpu_custom_call.1} parent=11 // pred_check
          %p177 = pneg %p75
        $region22: #{tpu_custom_call.1} parent=11 // pred_check_branch
          %179 = sbr.rel (%p177) target = $region24
        $region23: #{tpu_custom_call.1} parent=11 // pred_region
          _
        $region24: #{tpu_custom_call.1} parent=11 // pred_fallthru
          _
        // Predicated region
        $region25: #{tpu_custom_call.1} parent=11 // pred_check
          %p180 = pneg %p96
        $region26: #{tpu_custom_call.1} parent=11 // pred_check_branch
          %182 = sbr.rel (%p180) target = $region28
        $region27: #{tpu_custom_call.1} parent=11 // pred_region
          _
        $region28: #{tpu_custom_call.1} parent=11 // pred_fallthru
          _
      $region12: #{tpu_custom_call.1} parent=5 // pred_fallthru
        _
      %p183 = scmp.lt.s32.totalorder %s12, 2
      // Predicated region
      $region29: #{tpu_custom_call.1} parent=5 // pred_check
        %p184 = pneg %p183
      $region30: #{tpu_custom_call.1} parent=5 // pred_check_branch
        %186 = sbr.rel (%p184) target = $region32
      $region31: #{tpu_custom_call.1} parent=5 // pred_region
        // Predicated region
        $region33: #{tpu_custom_call.1} parent=31 // pred_check
          %p187 = pneg %p116
        $region34: #{tpu_custom_call.1} parent=31 // pred_check_branch
          %189 = sbr.rel (%p187) target = $region36
        $region35: #{tpu_custom_call.1} parent=31 // pred_region
          %p190 = scmp.lt.s32.totalorder %s12, 1
          %s191 = scalar_select %p190, %s12, 1
          %s192 = smul.addr %s191, 12
          %s193 = smul.addr %s192, 8
          %s194 = scalar_lea.vmem %s4, %s193
        $region36: #{tpu_custom_call.1} parent=31 // pred_fallthru
          _
      $region32: #{tpu_custom_call.1} parent=5 // pred_fallthru
        _
      %p195 = scmp.le.s32.totalorder 1, %s12
      %p196 = scmp.lt.s32.totalorder %s12, 3
      %p197 = pnand %p195, %p196
      %p198 = pneg %p197
      // Predicated region
      $region37: #{tpu_custom_call.1} parent=5 // pred_check
        _
      $region38: #{tpu_custom_call.1} parent=5 // pred_check_branch
        %200 = sbr.rel (%p197) target = $region40
      $region39: #{tpu_custom_call.1} parent=5 // pred_region
        %s201 = ssub.s32 %s12, 1
        // Predicated region
        $region41: #{tpu_custom_call.1} parent=39 // pred_check
          %p202 = pneg %p33
        $region42: #{tpu_custom_call.1} parent=39 // pred_check_branch
          %204 = sbr.rel (%p202) target = $region44
        $region43: #{tpu_custom_call.1} parent=39 // pred_region
          %205 = dma.done [#allocation3], 32
        $region44: #{tpu_custom_call.1} parent=39 // pred_fallthru
          _
        %206 = sfence
        %p207 = pneg %p33
        %p208 = pneg %p30
        %p209 = pneg %p54
        %p210 = pneg %p51
        %p211 = pneg %p75
        %p212 = pneg %p72
        %p213 = pneg %p96
        %p214 = pneg %p93
        %p215 = scmp.lt.s32.totalorder %s17, 1
        %s216 = scalar_select %p215, %s17, 1
        %s217 = smul.addr %s216, 12
        %s218 = smul.addr %s217, 8
        %s219 = scalar_lea.vmem %s4, %s218
        %p220 = pneg %p122
        %p221 = pneg %p119
        %p222 = pneg %p148
        %p223 = pneg %p145
        %p224 = scmp.lt.s32.totalorder %s17, 1
        %s225 = scalar_select %p224, %s17, 1
        %s226 = smul.addr %s225, 20
        %s227 = smul.addr %s226, 8
        %s228 = scalar_lea.vmem %s5, %s227
        %p229 = scmp.lt.s32.totalorder %s17, 1
        %s230 = scalar_select %p229, %s17, 1
        %s231 = smul.addr %s230, 12
        %s232 = smul.addr %s231, 8
        %s233 = scalar_lea.vmem %s4, %s232
        %p234 = scmp.lt.s32.totalorder %s17, 1
        %s235 = scalar_select %p234, %s17, 1
        %s236 = smul.addr %s235, 20
        %s237 = smul.addr %s236, 8
        %s238 = scalar_lea.vmem %s5, %s237
        %v239 = vld [vmem:[%s1] sm:$0xff]
        %v240 = vld [vmem:[%s1 + $0x8] sm:$0xff]
        %v241 = vld [vmem:[%s1 + $0x10] sm:$0x1]
        %s242 = scalar_lea.vmem %s1, 24
        %v243 = vld [vmem:[%s242] sm:$0xff]
        %v244 = vld [vmem:[%s242 + $0x8] sm:$0xff]
        %v245 = vld [vmem:[%s242 + $0x10] sm:$0x1]
        %s246 = scalar_lea.vmem %s1, 48
        %v247 = vld [vmem:[%s246] sm:$0xff]
        %v248 = vld [vmem:[%s246 + $0x8] sm:$0xff]
        %v249 = vld [vmem:[%s246 + $0x10] sm:$0x1]
        %s250 = scalar_lea.vmem %s1, 72
        %v251 = vld [vmem:[%s250] sm:$0xff]
        %v252 = vld [vmem:[%s250 + $0x8] sm:$0xff]
        %v253 = vld [vmem:[%s250 + $0x10] sm:$0x1]
        %v254 = vld [vmem:[%s233 + $0x1] sm:$0xff]
        %v255 = vld [vmem:[%s233 + $0x9] sm:$0xff]
        %v256 = vld [vmem:[%s233 + $0x11] sm:$0x1]
        %s257 = sld [smem:[#allocation2]]
        %v258 = vstv %s257
        %v259 = vmul.f32 %v258, %v254
        %v260 = vmul.f32 %v258, %v255
        %v261 = vmul.f32 %v258, %v256
        %265 = vrot.lane.b32.xlu0 %v259, 127
        %v266 = vpop.permute.xlu0 %265
        %267 = vrot.lane.b32.xlu0 %v260, 127
        %v268 = vpop.permute.xlu0 %267
        %269 = vrot.lane.b32.xlu0 %v261, 127
        %v270 = vpop.permute.xlu0 %269
        %v274 = vadd.f32 %v239, %v266
        %v275 = vadd.f32 %v240, %v268
        %v276 = vadd.f32 %v241, %v270
        %s277 = sld [smem:[#allocation2 + $0x10]]
        %v278 = vstv %s277
        %v279 = vmul.f32 %v278, %v254
        %v280 = vmul.f32 %v278, %v255
        %v281 = vmul.f32 %v278, %v256
        %285 = vrot.lane.b32.xlu0 %v279, 127
        %v286 = vpop.permute.xlu0 %285
        %287 = vrot.lane.b32.xlu0 %v280, 127
        %v288 = vpop.permute.xlu0 %287
        %289 = vrot.lane.b32.xlu0 %v281, 127
        %v290 = vpop.permute.xlu0 %289
        %v294 = vadd.f32 %v243, %v286
        %v295 = vadd.f32 %v244, %v288
        %v296 = vadd.f32 %v245, %v290
        %s297 = sld [smem:[#allocation2 + $0x20]]
        %v298 = vstv %s297
        %v299 = vmul.f32 %v298, %v254
        %v300 = vmul.f32 %v298, %v255
        %v301 = vmul.f32 %v298, %v256
        %305 = vrot.lane.b32.xlu0 %v299, 127
        %v306 = vpop.permute.xlu0 %305
        %307 = vrot.lane.b32.xlu0 %v300, 127
        %v308 = vpop.permute.xlu0 %307
        %309 = vrot.lane.b32.xlu0 %v301, 127
        %v310 = vpop.permute.xlu0 %309
        %v314 = vadd.f32 %v247, %v306
        %v315 = vadd.f32 %v248, %v308
        %v316 = vadd.f32 %v249, %v310
        %s317 = sld [smem:[#allocation2 + $0x30]]
        %v318 = vstv %s317
        %v319 = vmul.f32 %v318, %v254
        %v320 = vmul.f32 %v318, %v255
        %v321 = vmul.f32 %v318, %v256
        %325 = vrot.lane.b32.xlu0 %v319, 127
        %v326 = vpop.permute.xlu0 %325
        %327 = vrot.lane.b32.xlu0 %v320, 127
        %v328 = vpop.permute.xlu0 %327
        %329 = vrot.lane.b32.xlu0 %v321, 127
        %v330 = vpop.permute.xlu0 %329
        %v334 = vadd.f32 %v251, %v326
        %v335 = vadd.f32 %v252, %v328
        %v336 = vadd.f32 %v253, %v330
        %s337 = scalar_lea.vmem %s233, 24
        %v338 = vld [vmem:[%s337 + $0x1] sm:$0xff]
        %v339 = vld [vmem:[%s337 + $0x9] sm:$0xff]
        %v340 = vld [vmem:[%s337 + $0x11] sm:$0x1]
        %s341 = sld [smem:[#allocation2 + $0x40]]
        %v342 = vstv %s341
        %v343 = vmul.f32 %v342, %v338
        %v344 = vmul.f32 %v342, %v339
        %v345 = vmul.f32 %v342, %v340
        %349 = vrot.lane.b32.xlu0 %v343, 127
        %v350 = vpop.permute.xlu0 %349
        %351 = vrot.lane.b32.xlu0 %v344, 127
        %v352 = vpop.permute.xlu0 %351
        %353 = vrot.lane.b32.xlu0 %v345, 127
        %v354 = vpop.permute.xlu0 %353
        %v358 = vadd.f32 %v274, %v350
        %v359 = vadd.f32 %v275, %v352
        %v360 = vadd.f32 %v276, %v354
        %s361 = sld [smem:[#allocation2 + $0x50]]
        %v362 = vstv %s361
        %v363 = vmul.f32 %v362, %v338
        %v364 = vmul.f32 %v362, %v339
        %v365 = vmul.f32 %v362, %v340
        %369 = vrot.lane.b32.xlu0 %v363, 127
        %v370 = vpop.permute.xlu0 %369
        %371 = vrot.lane.b32.xlu0 %v364, 127
        %v372 = vpop.permute.xlu0 %371
        %373 = vrot.lane.b32.xlu0 %v365, 127
        %v374 = vpop.permute.xlu0 %373
        %v378 = vadd.f32 %v294, %v370
        %v379 = vadd.f32 %v295, %v372
        %v380 = vadd.f32 %v296, %v374
        %s381 = sld [smem:[#allocation2 + $0x60]]
        %v382 = vstv %s381
        %v383 = vmul.f32 %v382, %v338
        %v384 = vmul.f32 %v382, %v339
        %v385 = vmul.f32 %v382, %v340
        %389 = vrot.lane.b32.xlu0 %v383, 127
        %v390 = vpop.permute.xlu0 %389
        %391 = vrot.lane.b32.xlu0 %v384, 127
        %v392 = vpop.permute.xlu0 %391
        %393 = vrot.lane.b32.xlu0 %v385, 127
        %v394 = vpop.permute.xlu0 %393
        %v398 = vadd.f32 %v314, %v390
        %v399 = vadd.f32 %v315, %v392
        %v400 = vadd.f32 %v316, %v394
        %s401 = sld [smem:[#allocation2 + $0x70]]
        %v402 = vstv %s401
        %v403 = vmul.f32 %v402, %v338
        %v404 = vmul.f32 %v402, %v339
        %v405 = vmul.f32 %v402, %v340
        %409 = vrot.lane.b32.xlu0 %v403, 127
        %v410 = vpop.permute.xlu0 %409
        %411 = vrot.lane.b32.xlu0 %v404, 127
        %v412 = vpop.permute.xlu0 %411
        %413 = vrot.lane.b32.xlu0 %v405, 127
        %v414 = vpop.permute.xlu0 %413
        %v418 = vadd.f32 %v334, %v410
        %v419 = vadd.f32 %v335, %v412
        %v420 = vadd.f32 %v336, %v414
        %s421 = scalar_lea.vmem %s233, 48
        %v422 = vld [vmem:[%s421 + $0x1] sm:$0xff]
        %v423 = vld [vmem:[%s421 + $0x9] sm:$0xff]
        %v424 = vld [vmem:[%s421 + $0x11] sm:$0x1]
        %s425 = sld [smem:[#allocation2 + $0x80]]
        %v426 = vstv %s425
        %v427 = vmul.f32 %v426, %v422
        %v428 = vmul.f32 %v426, %v423
        %v429 = vmul.f32 %v426, %v424
        %433 = vrot.lane.b32.xlu0 %v427, 127
        %v434 = vpop.permute.xlu0 %433
        %435 = vrot.lane.b32.xlu0 %v428, 127
        %v436 = vpop.permute.xlu0 %435
        %437 = vrot.lane.b32.xlu0 %v429, 127
        %v438 = vpop.permute.xlu0 %437
        %v442 = vadd.f32 %v358, %v434
        %v443 = vadd.f32 %v359, %v436
        %v444 = vadd.f32 %v360, %v438
        %s445 = sld [smem:[#allocation2 + $0x90]]
        %v446 = vstv %s445
        %v447 = vmul.f32 %v446, %v422
        %v448 = vmul.f32 %v446, %v423
        %v449 = vmul.f32 %v446, %v424
        %453 = vrot.lane.b32.xlu0 %v447, 127
        %v454 = vpop.permute.xlu0 %453
        %455 = vrot.lane.b32.xlu0 %v448, 127
        %v456 = vpop.permute.xlu0 %455
        %457 = vrot.lane.b32.xlu0 %v449, 127
        %v458 = vpop.permute.xlu0 %457
        %v462 = vadd.f32 %v378, %v454
        %v463 = vadd.f32 %v379, %v456
        %v464 = vadd.f32 %v380, %v458
        %s465 = sld [smem:[#allocation2 + $0xa0]]
        %v466 = vstv %s465
        %v467 = vmul.f32 %v466, %v422
        %v468 = vmul.f32 %v466, %v423
        %v469 = vmul.f32 %v466, %v424
        %473 = vrot.lane.b32.xlu0 %v467, 127
        %v474 = vpop.permute.xlu0 %473
        %475 = vrot.lane.b32.xlu0 %v468, 127
        %v476 = vpop.permute.xlu0 %475
        %477 = vrot.lane.b32.xlu0 %v469, 127
        %v478 = vpop.permute.xlu0 %477
        %v482 = vadd.f32 %v398, %v474
        %v483 = vadd.f32 %v399, %v476
        %v484 = vadd.f32 %v400, %v478
        %s485 = sld [smem:[#allocation2 + $0xb0]]
        %v486 = vstv %s485
        %v487 = vmul.f32 %v486, %v422
        %v488 = vmul.f32 %v486, %v423
        %v489 = vmul.f32 %v486, %v424
        %493 = vrot.lane.b32.xlu0 %v487, 127
        %v494 = vpop.permute.xlu0 %493
        %495 = vrot.lane.b32.xlu0 %v488, 127
        %v496 = vpop.permute.xlu0 %495
        %497 = vrot.lane.b32.xlu0 %v489, 127
        %v498 = vpop.permute.xlu0 %497
        %v502 = vadd.f32 %v418, %v494
        %v503 = vadd.f32 %v419, %v496
        %v504 = vadd.f32 %v420, %v498
        %s505 = scalar_lea.vmem %s233, 72
        %v506 = vld [vmem:[%s505 + $0x1] sm:$0xff]
        %v507 = vld [vmem:[%s505 + $0x9] sm:$0xff]
        %v508 = vld [vmem:[%s505 + $0x11] sm:$0x1]
        %s509 = sld [smem:[#allocation2 + $0xc0]]
        %v510 = vstv %s509
        %v511 = vmul.f32 %v510, %v506
        %v512 = vmul.f32 %v510, %v507
        %v513 = vmul.f32 %v510, %v508
        %517 = vrot.lane.b32.xlu0 %v511, 127
        %v518 = vpop.permute.xlu0 %517
        %519 = vrot.lane.b32.xlu0 %v512, 127
        %v520 = vpop.permute.xlu0 %519
        %521 = vrot.lane.b32.xlu0 %v513, 127
        %v522 = vpop.permute.xlu0 %521
        %v526 = vadd.f32 %v442, %v518
        %v527 = vadd.f32 %v443, %v520
        %v528 = vadd.f32 %v444, %v522
        %s529 = sld [smem:[#allocation2 + $0xd0]]
        %v530 = vstv %s529
        %v531 = vmul.f32 %v530, %v506
        %v532 = vmul.f32 %v530, %v507
        %v533 = vmul.f32 %v530, %v508
        %537 = vrot.lane.b32.xlu0 %v531, 127
        %v538 = vpop.permute.xlu0 %537
        %539 = vrot.lane.b32.xlu0 %v532, 127
        %v540 = vpop.permute.xlu0 %539
        %541 = vrot.lane.b32.xlu0 %v533, 127
        %v542 = vpop.permute.xlu0 %541
        %v546 = vadd.f32 %v462, %v538
        %v547 = vadd.f32 %v463, %v540
        %v548 = vadd.f32 %v464, %v542
        %s549 = sld [smem:[#allocation2 + $0xe0]]
        %v550 = vstv %s549
        %v551 = vmul.f32 %v550, %v506
        %v552 = vmul.f32 %v550, %v507
        %v553 = vmul.f32 %v550, %v508
        %557 = vrot.lane.b32.xlu0 %v551, 127
        %v558 = vpop.permute.xlu0 %557
        %559 = vrot.lane.b32.xlu0 %v552, 127
        %v560 = vpop.permute.xlu0 %559
        %561 = vrot.lane.b32.xlu0 %v553, 127
        %v562 = vpop.permute.xlu0 %561
        %v566 = vadd.f32 %v482, %v558
        %v567 = vadd.f32 %v483, %v560
        %v568 = vadd.f32 %v484, %v562
        %s569 = sld [smem:[#allocation2 + $0xf0]]
        %v570 = vstv %s569
        %v571 = vmul.f32 %v570, %v506
        %v572 = vmul.f32 %v570, %v507
        %v573 = vmul.f32 %v570, %v508
        %577 = vrot.lane.b32.xlu0 %v571, 127
        %v578 = vpop.permute.xlu0 %577
        %579 = vrot.lane.b32.xlu0 %v572, 127
        %v580 = vpop.permute.xlu0 %579
        %581 = vrot.lane.b32.xlu0 %v573, 127
        %v582 = vpop.permute.xlu0 %581
        %v586 = vadd.f32 %v502, %v578
        %v587 = vadd.f32 %v503, %v580
        %v588 = vadd.f32 %v504, %v582
        %s589 = sld [smem:[#allocation2 + $0x2]]
        %v590 = vstv %s589
        %v591 = vmul.f32 %v590, %v254
        %v592 = vmul.f32 %v590, %v255
        %v593 = vmul.f32 %v590, %v256
        %v594 = vadd.f32 %v526, %v591
        %v595 = vadd.f32 %v527, %v592
        %v596 = vadd.f32 %v528, %v593
        %s597 = sld [smem:[#allocation2 + $0x12]]
        %v598 = vstv %s597
        %v599 = vmul.f32 %v598, %v254
        %v600 = vmul.f32 %v598, %v255
        %v601 = vmul.f32 %v598, %v256
        %v602 = vadd.f32 %v546, %v599
        %v603 = vadd.f32 %v547, %v600
        %v604 = vadd.f32 %v548, %v601
        %s605 = sld [smem:[#allocation2 + $0x22]]
        %v606 = vstv %s605
        %v607 = vmul.f32 %v606, %v254
        %v608 = vmul.f32 %v606, %v255
        %v609 = vmul.f32 %v606, %v256
        %v610 = vadd.f32 %v566, %v607
        %v611 = vadd.f32 %v567, %v608
        %v612 = vadd.f32 %v568, %v609
        %s613 = sld [smem:[#allocation2 + $0x32]]
        %v614 = vstv %s613
        %v615 = vmul.f32 %v614, %v254
        %v616 = vmul.f32 %v614, %v255
        %v617 = vmul.f32 %v614, %v256
        %v618 = vadd.f32 %v586, %v615
        %v619 = vadd.f32 %v587, %v616
        %v620 = vadd.f32 %v588, %v617
        %s621 = sld [smem:[#allocation2 + $0x42]]
        %v622 = vstv %s621
        %v623 = vmul.f32 %v622, %v338
        %v624 = vmul.f32 %v622, %v339
        %v625 = vmul.f32 %v622, %v340
        %v626 = vadd.f32 %v594, %v623
        %v627 = vadd.f32 %v595, %v624
        %v628 = vadd.f32 %v596, %v625
        %s629 = sld [smem:[#allocation2 + $0x52]]
        %v630 = vstv %s629
        %v631 = vmul.f32 %v630, %v338
        %v632 = vmul.f32 %v630, %v339
        %v633 = vmul.f32 %v630, %v340
        %v634 = vadd.f32 %v602, %v631
        %v635 = vadd.f32 %v603, %v632
        %v636 = vadd.f32 %v604, %v633
        %s637 = sld [smem:[#allocation2 + $0x62]]
        %v638 = vstv %s637
        %v639 = vmul.f32 %v638, %v338
        %v640 = vmul.f32 %v638, %v339
        %v641 = vmul.f32 %v638, %v340
        %v642 = vadd.f32 %v610, %v639
        %v643 = vadd.f32 %v611, %v640
        %v644 = vadd.f32 %v612, %v641
        %s645 = sld [smem:[#allocation2 + $0x72]]
        %v646 = vstv %s645
        %v647 = vmul.f32 %v646, %v338
        %v648 = vmul.f32 %v646, %v339
        %v649 = vmul.f32 %v646, %v340
        %v650 = vadd.f32 %v618, %v647
        %v651 = vadd.f32 %v619, %v648
        %v652 = vadd.f32 %v620, %v649
        %s653 = sld [smem:[#allocation2 + $0x82]]
        %v654 = vstv %s653
        %v655 = vmul.f32 %v654, %v422
        %v656 = vmul.f32 %v654, %v423
        %v657 = vmul.f32 %v654, %v424
        %v658 = vadd.f32 %v626, %v655
        %v659 = vadd.f32 %v627, %v656
        %v660 = vadd.f32 %v628, %v657
        %s661 = sld [smem:[#allocation2 + $0x92]]
        %v662 = vstv %s661
        %v663 = vmul.f32 %v662, %v422
        %v664 = vmul.f32 %v662, %v423
        %v665 = vmul.f32 %v662, %v424
        %v666 = vadd.f32 %v634, %v663
        %v667 = vadd.f32 %v635, %v664
        %v668 = vadd.f32 %v636, %v665
        %s669 = sld [smem:[#allocation2 + $0xa2]]
        %v670 = vstv %s669
        %v671 = vmul.f32 %v670, %v422
        %v672 = vmul.f32 %v670, %v423
        %v673 = vmul.f32 %v670, %v424
        %v674 = vadd.f32 %v642, %v671
        %v675 = vadd.f32 %v643, %v672
        %v676 = vadd.f32 %v644, %v673
        %s677 = sld [smem:[#allocation2 + $0xb2]]
        %v678 = vstv %s677
        %v679 = vmul.f32 %v678, %v422
        %v680 = vmul.f32 %v678, %v423
        %v681 = vmul.f32 %v678, %v424
        %v682 = vadd.f32 %v650, %v679
        %v683 = vadd.f32 %v651, %v680
        %v684 = vadd.f32 %v652, %v681
        %s685 = sld [smem:[#allocation2 + $0xc2]]
        %v686 = vstv %s685
        %v687 = vmul.f32 %v686, %v506
        %v688 = vmul.f32 %v686, %v507
        %v689 = vmul.f32 %v686, %v508
        %v690 = vadd.f32 %v658, %v687
        %v691 = vadd.f32 %v659, %v688
        %v692 = vadd.f32 %v660, %v689
        %s693 = sld [smem:[#allocation2 + $0xd2]]
        %v694 = vstv %s693
        %v695 = vmul.f32 %v694, %v506
        %v696 = vmul.f32 %v694, %v507
        %v697 = vmul.f32 %v694, %v508
        %v698 = vadd.f32 %v666, %v695
        %v699 = vadd.f32 %v667, %v696
        %v700 = vadd.f32 %v668, %v697
        %s701 = sld [smem:[#allocation2 + $0xe2]]
        %v702 = vstv %s701
        %v703 = vmul.f32 %v702, %v506
        %v704 = vmul.f32 %v702, %v507
        %v705 = vmul.f32 %v702, %v508
        %v706 = vadd.f32 %v674, %v703
        %v707 = vadd.f32 %v675, %v704
        %v708 = vadd.f32 %v676, %v705
        %s709 = sld [smem:[#allocation2 + $0xf2]]
        %v710 = vstv %s709
        %v711 = vmul.f32 %v710, %v506
        %v712 = vmul.f32 %v710, %v507
        %v713 = vmul.f32 %v710, %v508
        %v714 = vadd.f32 %v682, %v711
        %v715 = vadd.f32 %v683, %v712
        %v716 = vadd.f32 %v684, %v713
        %v717 = vld [vmem:[%s233] sm:$0xff]
        %v718 = vld [vmem:[%s233 + $0x8] sm:$0xff]
        %v719 = vld [vmem:[%s233 + $0x10] sm:$0x1]
        %s720 = sld [smem:[#allocation2 + $0x8]]
        %v721 = vstv %s720
        %v722 = vmul.f32 %v721, %v717
        %v723 = vmul.f32 %v721, %v718
        %v724 = vmul.f32 %v721, %v719
        %728 = vrot.lane.b32.xlu0 %v722, 127
        %v729 = vpop.permute.xlu0 %728
        %730 = vrot.lane.b32.xlu0 %v723, 127
        %v731 = vpop.permute.xlu0 %730
        %732 = vrot.lane.b32.xlu0 %v724, 127
        %v733 = vpop.permute.xlu0 %732
        %v737 = vadd.f32 %v690, %v729
        %v738 = vadd.f32 %v691, %v731
        %v739 = vadd.f32 %v692, %v733
        %s740 = sld [smem:[#allocation2 + $0x18]]
        %v741 = vstv %s740
        %v742 = vmul.f32 %v741, %v717
        %v743 = vmul.f32 %v741, %v718
        %v744 = vmul.f32 %v741, %v719
        %748 = vrot.lane.b32.xlu0 %v742, 127
        %v749 = vpop.permute.xlu0 %748
        %750 = vrot.lane.b32.xlu0 %v743, 127
        %v751 = vpop.permute.xlu0 %750
        %752 = vrot.lane.b32.xlu0 %v744, 127
        %v753 = vpop.permute.xlu0 %752
        %v757 = vadd.f32 %v698, %v749
        %v758 = vadd.f32 %v699, %v751
        %v759 = vadd.f32 %v700, %v753
        %s760 = sld [smem:[#allocation2 + $0x28]]
        %v761 = vstv %s760
        %v762 = vmul.f32 %v761, %v717
        %v763 = vmul.f32 %v761, %v718
        %v764 = vmul.f32 %v761, %v719
        %768 = vrot.lane.b32.xlu0 %v762, 127
        %v769 = vpop.permute.xlu0 %768
        %770 = vrot.lane.b32.xlu0 %v763, 127
        %v771 = vpop.permute.xlu0 %770
        %772 = vrot.lane.b32.xlu0 %v764, 127
        %v773 = vpop.permute.xlu0 %772
        %v777 = vadd.f32 %v706, %v769
        %v778 = vadd.f32 %v707, %v771
        %v779 = vadd.f32 %v708, %v773
        %s780 = sld [smem:[#allocation2 + $0x38]]
        %v781 = vstv %s780
        %v782 = vmul.f32 %v781, %v717
        %v783 = vmul.f32 %v781, %v718
        %v784 = vmul.f32 %v781, %v719
        %788 = vrot.lane.b32.xlu0 %v782, 127
        %v789 = vpop.permute.xlu0 %788
        %790 = vrot.lane.b32.xlu0 %v783, 127
        %v791 = vpop.permute.xlu0 %790
        %792 = vrot.lane.b32.xlu0 %v784, 127
        %v793 = vpop.permute.xlu0 %792
        %v797 = vadd.f32 %v714, %v789
        %v798 = vadd.f32 %v715, %v791
        %v799 = vadd.f32 %v716, %v793
        %v800 = vld [vmem:[%s337] sm:$0xff]
        %v801 = vld [vmem:[%s337 + $0x8] sm:$0xff]
        %v802 = vld [vmem:[%s337 + $0x10] sm:$0x1]
        %s803 = sld [smem:[#allocation2 + $0x48]]
        %v804 = vstv %s803
        %v805 = vmul.f32 %v804, %v800
        %v806 = vmul.f32 %v804, %v801
        %v807 = vmul.f32 %v804, %v802
        %811 = vrot.lane.b32.xlu0 %v805, 127
        %v812 = vpop.permute.xlu0 %811
        %813 = vrot.lane.b32.xlu0 %v806, 127
        %v814 = vpop.permute.xlu0 %813
        %815 = vrot.lane.b32.xlu0 %v807, 127
        %v816 = vpop.permute.xlu0 %815
        %v820 = vadd.f32 %v737, %v812
        %v821 = vadd.f32 %v738, %v814
        %v822 = vadd.f32 %v739, %v816
        %s823 = sld [smem:[#allocation2 + $0x58]]
        %v824 = vstv %s823
        %v825 = vmul.f32 %v824, %v800
        %v826 = vmul.f32 %v824, %v801
        %v827 = vmul.f32 %v824, %v802
        %831 = vrot.lane.b32.xlu0 %v825, 127
        %v832 = vpop.permute.xlu0 %831
        %833 = vrot.lane.b32.xlu0 %v826, 127
        %v834 = vpop.permute.xlu0 %833
        %835 = vrot.lane.b32.xlu0 %v827, 127
        %v836 = vpop.permute.xlu0 %835
        %v840 = vadd.f32 %v757, %v832
        %v841 = vadd.f32 %v758, %v834
        %v842 = vadd.f32 %v759, %v836
        %s843 = sld [smem:[#allocation2 + $0x68]]
        %v844 = vstv %s843
        %v845 = vmul.f32 %v844, %v800
        %v846 = vmul.f32 %v844, %v801
        %v847 = vmul.f32 %v844, %v802
        %851 = vrot.lane.b32.xlu0 %v845, 127
        %v852 = vpop.permute.xlu0 %851
        %853 = vrot.lane.b32.xlu0 %v846, 127
        %v854 = vpop.permute.xlu0 %853
        %855 = vrot.lane.b32.xlu0 %v847, 127
        %v856 = vpop.permute.xlu0 %855
        %v860 = vadd.f32 %v777, %v852
        %v861 = vadd.f32 %v778, %v854
        %v862 = vadd.f32 %v779, %v856
        %s863 = sld [smem:[#allocation2 + $0x78]]
        %v864 = vstv %s863
        %v865 = vmul.f32 %v864, %v800
        %v866 = vmul.f32 %v864, %v801
        %v867 = vmul.f32 %v864, %v802
        %871 = vrot.lane.b32.xlu0 %v865, 127
        %v872 = vpop.permute.xlu0 %871
        %873 = vrot.lane.b32.xlu0 %v866, 127
        %v874 = vpop.permute.xlu0 %873
        %875 = vrot.lane.b32.xlu0 %v867, 127
        %v876 = vpop.permute.xlu0 %875
        %v880 = vadd.f32 %v797, %v872
        %v881 = vadd.f32 %v798, %v874
        %v882 = vadd.f32 %v799, %v876
        %v883 = vld [vmem:[%s421] sm:$0xff]
        %v884 = vld [vmem:[%s421 + $0x8] sm:$0xff]
        %v885 = vld [vmem:[%s421 + $0x10] sm:$0x1]
        %s886 = sld [smem:[#allocation2 + $0x88]]
        %v887 = vstv %s886
        %v888 = vmul.f32 %v887, %v883
        %v889 = vmul.f32 %v887, %v884
        %v890 = vmul.f32 %v887, %v885
        %894 = vrot.lane.b32.xlu0 %v888, 127
        %v895 = vpop.permute.xlu0 %894
        %896 = vrot.lane.b32.xlu0 %v889, 127
        %v897 = vpop.permute.xlu0 %896
        %898 = vrot.lane.b32.xlu0 %v890, 127
        %v899 = vpop.permute.xlu0 %898
        %v903 = vadd.f32 %v820, %v895
        %v904 = vadd.f32 %v821, %v897
        %v905 = vadd.f32 %v822, %v899
        %s906 = sld [smem:[#allocation2 + $0x98]]
        %v907 = vstv %s906
        %v908 = vmul.f32 %v907, %v883
        %v909 = vmul.f32 %v907, %v884
        %v910 = vmul.f32 %v907, %v885
        %914 = vrot.lane.b32.xlu0 %v908, 127
        %v915 = vpop.permute.xlu0 %914
        %916 = vrot.lane.b32.xlu0 %v909, 127
        %v917 = vpop.permute.xlu0 %916
        %918 = vrot.lane.b32.xlu0 %v910, 127
        %v919 = vpop.permute.xlu0 %918
        %v923 = vadd.f32 %v840, %v915
        %v924 = vadd.f32 %v841, %v917
        %v925 = vadd.f32 %v842, %v919
        %s926 = sld [smem:[#allocation2 + $0xa8]]
        %v927 = vstv %s926
        %v928 = vmul.f32 %v927, %v883
        %v929 = vmul.f32 %v927, %v884
        %v930 = vmul.f32 %v927, %v885
        %934 = vrot.lane.b32.xlu0 %v928, 127
        %v935 = vpop.permute.xlu0 %934
        %936 = vrot.lane.b32.xlu0 %v929, 127
        %v937 = vpop.permute.xlu0 %936
        %938 = vrot.lane.b32.xlu0 %v930, 127
        %v939 = vpop.permute.xlu0 %938
        %v943 = vadd.f32 %v860, %v935
        %v944 = vadd.f32 %v861, %v937
        %v945 = vadd.f32 %v862, %v939
        %s946 = sld [smem:[#allocation2 + $0xb8]]
        %v947 = vstv %s946
        %v948 = vmul.f32 %v947, %v883
        %v949 = vmul.f32 %v947, %v884
        %v950 = vmul.f32 %v947, %v885
        %954 = vrot.lane.b32.xlu0 %v948, 127
        %v955 = vpop.permute.xlu0 %954
        %956 = vrot.lane.b32.xlu0 %v949, 127
        %v957 = vpop.permute.xlu0 %956
        %958 = vrot.lane.b32.xlu0 %v950, 127
        %v959 = vpop.permute.xlu0 %958
        %v963 = vadd.f32 %v880, %v955
        %v964 = vadd.f32 %v881, %v957
        %v965 = vadd.f32 %v882, %v959
        %v966 = vld [vmem:[%s505] sm:$0xff]
        %v967 = vld [vmem:[%s505 + $0x8] sm:$0xff]
        %v968 = vld [vmem:[%s505 + $0x10] sm:$0x1]
        %s969 = sld [smem:[#allocation2 + $0xc8]]
        %v970 = vstv %s969
        %v971 = vmul.f32 %v970, %v966
        %v972 = vmul.f32 %v970, %v967
        %v973 = vmul.f32 %v970, %v968
        %977 = vrot.lane.b32.xlu0 %v971, 127
        %v978 = vpop.permute.xlu0 %977
        %979 = vrot.lane.b32.xlu0 %v972, 127
        %v980 = vpop.permute.xlu0 %979
        %981 = vrot.lane.b32.xlu0 %v973, 127
        %v982 = vpop.permute.xlu0 %981
        %v986 = vadd.f32 %v903, %v978
        %v987 = vadd.f32 %v904, %v980
        %v988 = vadd.f32 %v905, %v982
        %s989 = sld [smem:[#allocation2 + $0xd8]]
        %v990 = vstv %s989
        %v991 = vmul.f32 %v990, %v966
        %v992 = vmul.f32 %v990, %v967
        %v993 = vmul.f32 %v990, %v968
        %997 = vrot.lane.b32.xlu0 %v991, 127
        %v998 = vpop.permute.xlu0 %997
        %999 = vrot.lane.b32.xlu0 %v992, 127
        %v1000 = vpop.permute.xlu0 %999
        %1001 = vrot.lane.b32.xlu0 %v993, 127
        %v1002 = vpop.permute.xlu0 %1001
        %v1006 = vadd.f32 %v923, %v998
        %v1007 = vadd.f32 %v924, %v1000
        %v1008 = vadd.f32 %v925, %v1002
        %s1009 = sld [smem:[#allocation2 + $0xe8]]
        %v1010 = vstv %s1009
        %v1011 = vmul.f32 %v1010, %v966
        %v1012 = vmul.f32 %v1010, %v967
        %v1013 = vmul.f32 %v1010, %v968
        %1017 = vrot.lane.b32.xlu0 %v1011, 127
        %v1018 = vpop.permute.xlu0 %1017
        %1019 = vrot.lane.b32.xlu0 %v1012, 127
        %v1020 = vpop.permute.xlu0 %1019
        %1021 = vrot.lane.b32.xlu0 %v1013, 127
        %v1022 = vpop.permute.xlu0 %1021
        %v1026 = vadd.f32 %v943, %v1018
        %v1027 = vadd.f32 %v944, %v1020
        %v1028 = vadd.f32 %v945, %v1022
        %s1029 = sld [smem:[#allocation2 + $0xf8]]
        %v1030 = vstv %s1029
        %v1031 = vmul.f32 %v1030, %v966
        %v1032 = vmul.f32 %v1030, %v967
        %v1033 = vmul.f32 %v1030, %v968
        %1037 = vrot.lane.b32.xlu0 %v1031, 127
        %v1038 = vpop.permute.xlu0 %1037
        %1039 = vrot.lane.b32.xlu0 %v1032, 127
        %v1040 = vpop.permute.xlu0 %1039
        %1041 = vrot.lane.b32.xlu0 %v1033, 127
        %v1042 = vpop.permute.xlu0 %1041
        %v1046 = vadd.f32 %v963, %v1038
        %v1047 = vadd.f32 %v964, %v1040
        %v1048 = vadd.f32 %v965, %v1042
        %s1049 = sld [smem:[#allocation2 + $0xa]]
        %v1050 = vstv %s1049
        %v1051 = vmul.f32 %v1050, %v717
        %v1052 = vmul.f32 %v1050, %v718
        %v1053 = vmul.f32 %v1050, %v719
        %v1054 = vadd.f32 %v986, %v1051
        %v1055 = vadd.f32 %v987, %v1052
        %v1056 = vadd.f32 %v988, %v1053
        %s1057 = sld [smem:[#allocation2 + $0x1a]]
        %v1058 = vstv %s1057
        %v1059 = vmul.f32 %v1058, %v717
        %v1060 = vmul.f32 %v1058, %v718
        %v1061 = vmul.f32 %v1058, %v719
        %v1062 = vadd.f32 %v1006, %v1059
        %v1063 = vadd.f32 %v1007, %v1060
        %v1064 = vadd.f32 %v1008, %v1061
        %s1065 = sld [smem:[#allocation2 + $0x2a]]
        %v1066 = vstv %s1065
        %v1067 = vmul.f32 %v1066, %v717
        %v1068 = vmul.f32 %v1066, %v718
        %v1069 = vmul.f32 %v1066, %v719
        %v1070 = vadd.f32 %v1026, %v1067
        %v1071 = vadd.f32 %v1027, %v1068
        %v1072 = vadd.f32 %v1028, %v1069
        %s1073 = sld [smem:[#allocation2 + $0x3a]]
        %v1074 = vstv %s1073
        %v1075 = vmul.f32 %v1074, %v717
        %v1076 = vmul.f32 %v1074, %v718
        %v1077 = vmul.f32 %v1074, %v719
        %v1078 = vadd.f32 %v1046, %v1075
        %v1079 = vadd.f32 %v1047, %v1076
        %v1080 = vadd.f32 %v1048, %v1077
        %s1081 = sld [smem:[#allocation2 + $0x4a]]
        %v1082 = vstv %s1081
        %v1083 = vmul.f32 %v1082, %v800
        %v1084 = vmul.f32 %v1082, %v801
        %v1085 = vmul.f32 %v1082, %v802
        %v1086 = vadd.f32 %v1054, %v1083
        %v1087 = vadd.f32 %v1055, %v1084
        %v1088 = vadd.f32 %v1056, %v1085
        %s1089 = sld [smem:[#allocation2 + $0x5a]]
        %v1090 = vstv %s1089
        %v1091 = vmul.f32 %v1090, %v800
        %v1092 = vmul.f32 %v1090, %v801
        %v1093 = vmul.f32 %v1090, %v802
        %v1094 = vadd.f32 %v1062, %v1091
        %v1095 = vadd.f32 %v1063, %v1092
        %v1096 = vadd.f32 %v1064, %v1093
        %s1097 = sld [smem:[#allocation2 + $0x6a]]
        %v1098 = vstv %s1097
        %v1099 = vmul.f32 %v1098, %v800
        %v1100 = vmul.f32 %v1098, %v801
        %v1101 = vmul.f32 %v1098, %v802
        %v1102 = vadd.f32 %v1070, %v1099
        %v1103 = vadd.f32 %v1071, %v1100
        %v1104 = vadd.f32 %v1072, %v1101
        %s1105 = sld [smem:[#allocation2 + $0x7a]]
        %v1106 = vstv %s1105
        %v1107 = vmul.f32 %v1106, %v800
        %v1108 = vmul.f32 %v1106, %v801
        %v1109 = vmul.f32 %v1106, %v802
        %v1110 = vadd.f32 %v1078, %v1107
        %v1111 = vadd.f32 %v1079, %v1108
        %v1112 = vadd.f32 %v1080, %v1109
        %s1113 = sld [smem:[#allocation2 + $0x8a]]
        %v1114 = vstv %s1113
        %v1115 = vmul.f32 %v1114, %v883
        %v1116 = vmul.f32 %v1114, %v884
        %v1117 = vmul.f32 %v1114, %v885
        %v1118 = vadd.f32 %v1086, %v1115
        %v1119 = vadd.f32 %v1087, %v1116
        %v1120 = vadd.f32 %v1088, %v1117
        %s1121 = sld [smem:[#allocation2 + $0x9a]]
        %v1122 = vstv %s1121
        %v1123 = vmul.f32 %v1122, %v883
        %v1124 = vmul.f32 %v1122, %v884
        %v1125 = vmul.f32 %v1122, %v885
        %v1126 = vadd.f32 %v1094, %v1123
        %v1127 = vadd.f32 %v1095, %v1124
        %v1128 = vadd.f32 %v1096, %v1125
        %s1129 = sld [smem:[#allocation2 + $0xaa]]
        %v1130 = vstv %s1129
        %v1131 = vmul.f32 %v1130, %v883
        %v1132 = vmul.f32 %v1130, %v884
        %v1133 = vmul.f32 %v1130, %v885
        %v1134 = vadd.f32 %v1102, %v1131
        %v1135 = vadd.f32 %v1103, %v1132
        %v1136 = vadd.f32 %v1104, %v1133
        %s1137 = sld [smem:[#allocation2 + $0xba]]
        %v1138 = vstv %s1137
        %v1139 = vmul.f32 %v1138, %v883
        %v1140 = vmul.f32 %v1138, %v884
        %v1141 = vmul.f32 %v1138, %v885
        %v1142 = vadd.f32 %v1110, %v1139
        %v1143 = vadd.f32 %v1111, %v1140
        %v1144 = vadd.f32 %v1112, %v1141
        %s1145 = sld [smem:[#allocation2 + $0xca]]
        %v1146 = vstv %s1145
        %v1147 = vmul.f32 %v1146, %v966
        %v1148 = vmul.f32 %v1146, %v967
        %v1149 = vmul.f32 %v1146, %v968
        %v1150 = vadd.f32 %v1118, %v1147
        %v1151 = vadd.f32 %v1119, %v1148
        %v1152 = vadd.f32 %v1120, %v1149
        %s1153 = sld [smem:[#allocation2 + $0xda]]
        %v1154 = vstv %s1153
        %v1155 = vmul.f32 %v1154, %v966
        %v1156 = vmul.f32 %v1154, %v967
        %v1157 = vmul.f32 %v1154, %v968
        %v1158 = vadd.f32 %v1126, %v1155
        %v1159 = vadd.f32 %v1127, %v1156
        %v1160 = vadd.f32 %v1128, %v1157
        %s1161 = sld [smem:[#allocation2 + $0xea]]
        %v1162 = vstv %s1161
        %v1163 = vmul.f32 %v1162, %v966
        %v1164 = vmul.f32 %v1162, %v967
        %v1165 = vmul.f32 %v1162, %v968
        %v1166 = vadd.f32 %v1134, %v1163
        %v1167 = vadd.f32 %v1135, %v1164
        %v1168 = vadd.f32 %v1136, %v1165
        %s1169 = sld [smem:[#allocation2 + $0xfa]]
        %v1170 = vstv %s1169
        %v1171 = vmul.f32 %v1170, %v966
        %v1172 = vmul.f32 %v1170, %v967
        %v1173 = vmul.f32 %v1170, %v968
        %v1174 = vadd.f32 %v1142, %v1171
        %v1175 = vadd.f32 %v1143, %v1172
        %v1176 = vadd.f32 %v1144, %v1173
        %s1177 = scalar_lea.vmem %s1, 96
        %v1178 = vld [vmem:[%s1177] sm:$0xff]
        %v1179 = vld [vmem:[%s1177 + $0x8] sm:$0xff]
        %v1180 = vld [vmem:[%s1177 + $0x10] sm:$0x1]
        %s1181 = scalar_lea.vmem %s1, 120
        %v1182 = vld [vmem:[%s1181] sm:$0xff]
        %v1183 = vld [vmem:[%s1181 + $0x8] sm:$0xff]
        %v1184 = vld [vmem:[%s1181 + $0x10] sm:$0x1]
        %s1185 = scalar_lea.vmem %s1, 144
        %v1186 = vld [vmem:[%s1185] sm:$0xff]
        %v1187 = vld [vmem:[%s1185 + $0x8] sm:$0xff]
        %v1188 = vld [vmem:[%s1185 + $0x10] sm:$0x1]
        %s1189 = scalar_lea.vmem %s1, 168
        %v1190 = vld [vmem:[%s1189] sm:$0xff]
        %v1191 = vld [vmem:[%s1189 + $0x8] sm:$0xff]
        %v1192 = vld [vmem:[%s1189 + $0x10] sm:$0x1]
        %s1193 = sld [smem:[#allocation2 + $0x1]]
        %v1194 = vstv %s1193
        %v1195 = vmul.f32 %v1194, %v254
        %v1196 = vmul.f32 %v1194, %v255
        %v1197 = vmul.f32 %v1194, %v256
        %1201 = vrot.lane.b32.xlu0 %v1195, 127
        %v1202 = vpop.permute.xlu0 %1201
        %1203 = vrot.lane.b32.xlu0 %v1196, 127
        %v1204 = vpop.permute.xlu0 %1203
        %1205 = vrot.lane.b32.xlu0 %v1197, 127
        %v1206 = vpop.permute.xlu0 %1205
        %v1210 = vadd.f32 %v1178, %v1202
        %v1211 = vadd.f32 %v1179, %v1204
        %v1212 = vadd.f32 %v1180, %v1206
        %s1213 = sld [smem:[#allocation2 + $0x11]]
        %v1214 = vstv %s1213
        %v1215 = vmul.f32 %v1214, %v254
        %v1216 = vmul.f32 %v1214, %v255
        %v1217 = vmul.f32 %v1214, %v256
        %1221 = vrot.lane.b32.xlu0 %v1215, 127
        %v1222 = vpop.permute.xlu0 %1221
        %1223 = vrot.lane.b32.xlu0 %v1216, 127
        %v1224 = vpop.permute.xlu0 %1223
        %1225 = vrot.lane.b32.xlu0 %v1217, 127
        %v1226 = vpop.permute.xlu0 %1225
        %v1230 = vadd.f32 %v1182, %v1222
        %v1231 = vadd.f32 %v1183, %v1224
        %v1232 = vadd.f32 %v1184, %v1226
        %s1233 = sld [smem:[#allocation2 + $0x21]]
        %v1234 = vstv %s1233
        %v1235 = vmul.f32 %v1234, %v254
        %v1236 = vmul.f32 %v1234, %v255
        %v1237 = vmul.f32 %v1234, %v256
        %1241 = vrot.lane.b32.xlu0 %v1235, 127
        %v1242 = vpop.permute.xlu0 %1241
        %1243 = vrot.lane.b32.xlu0 %v1236, 127
        %v1244 = vpop.permute.xlu0 %1243
        %1245 = vrot.lane.b32.xlu0 %v1237, 127
        %v1246 = vpop.permute.xlu0 %1245
        %v1250 = vadd.f32 %v1186, %v1242
        %v1251 = vadd.f32 %v1187, %v1244
        %v1252 = vadd.f32 %v1188, %v1246
        %s1253 = sld [smem:[#allocation2 + $0x31]]
        %v1254 = vstv %s1253
        %v1255 = vmul.f32 %v1254, %v254
        %v1256 = vmul.f32 %v1254, %v255
        %v1257 = vmul.f32 %v1254, %v256
        %1261 = vrot.lane.b32.xlu0 %v1255, 127
        %v1262 = vpop.permute.xlu0 %1261
        %1263 = vrot.lane.b32.xlu0 %v1256, 127
        %v1264 = vpop.permute.xlu0 %1263
        %1265 = vrot.lane.b32.xlu0 %v1257, 127
        %v1266 = vpop.permute.xlu0 %1265
        %v1270 = vadd.f32 %v1190, %v1262
        %v1271 = vadd.f32 %v1191, %v1264
        %v1272 = vadd.f32 %v1192, %v1266
        %s1273 = sld [smem:[#allocation2 + $0x41]]
        %v1274 = vstv %s1273
        %v1275 = vmul.f32 %v1274, %v338
        %v1276 = vmul.f32 %v1274, %v339
        %v1277 = vmul.f32 %v1274, %v340
        %1281 = vrot.lane.b32.xlu0 %v1275, 127
        %v1282 = vpop.permute.xlu0 %1281
        %1283 = vrot.lane.b32.xlu0 %v1276, 127
        %v1284 = vpop.permute.xlu0 %1283
        %1285 = vrot.lane.b32.xlu0 %v1277, 127
        %v1286 = vpop.permute.xlu0 %1285
        %v1290 = vadd.f32 %v1210, %v1282
        %v1291 = vadd.f32 %v1211, %v1284
        %v1292 = vadd.f32 %v1212, %v1286
        %s1293 = sld [smem:[#allocation2 + $0x51]]
        %v1294 = vstv %s1293
        %v1295 = vmul.f32 %v1294, %v338
        %v1296 = vmul.f32 %v1294, %v339
        %v1297 = vmul.f32 %v1294, %v340
        %1301 = vrot.lane.b32.xlu0 %v1295, 127
        %v1302 = vpop.permute.xlu0 %1301
        %1303 = vrot.lane.b32.xlu0 %v1296, 127
        %v1304 = vpop.permute.xlu0 %1303
        %1305 = vrot.lane.b32.xlu0 %v1297, 127
        %v1306 = vpop.permute.xlu0 %1305
        %v1310 = vadd.f32 %v1230, %v1302
        %v1311 = vadd.f32 %v1231, %v1304
        %v1312 = vadd.f32 %v1232, %v1306
        %s1313 = sld [smem:[#allocation2 + $0x61]]
        %v1314 = vstv %s1313
        %v1315 = vmul.f32 %v1314, %v338
        %v1316 = vmul.f32 %v1314, %v339
        %v1317 = vmul.f32 %v1314, %v340
        %1321 = vrot.lane.b32.xlu0 %v1315, 127
        %v1322 = vpop.permute.xlu0 %1321
        %1323 = vrot.lane.b32.xlu0 %v1316, 127
        %v1324 = vpop.permute.xlu0 %1323
        %1325 = vrot.lane.b32.xlu0 %v1317, 127
        %v1326 = vpop.permute.xlu0 %1325
        %v1330 = vadd.f32 %v1250, %v1322
        %v1331 = vadd.f32 %v1251, %v1324
        %v1332 = vadd.f32 %v1252, %v1326
        %s1333 = sld [smem:[#allocation2 + $0x71]]
        %v1334 = vstv %s1333
        %v1335 = vmul.f32 %v1334, %v338
        %v1336 = vmul.f32 %v1334, %v339
        %v1337 = vmul.f32 %v1334, %v340
        %1341 = vrot.lane.b32.xlu0 %v1335, 127
        %v1342 = vpop.permute.xlu0 %1341
        %1343 = vrot.lane.b32.xlu0 %v1336, 127
        %v1344 = vpop.permute.xlu0 %1343
        %1345 = vrot.lane.b32.xlu0 %v1337, 127
        %v1346 = vpop.permute.xlu0 %1345
        %v1350 = vadd.f32 %v1270, %v1342
        %v1351 = vadd.f32 %v1271, %v1344
        %v1352 = vadd.f32 %v1272, %v1346
        %s1353 = sld [smem:[#allocation2 + $0x81]]
        %v1354 = vstv %s1353
        %v1355 = vmul.f32 %v1354, %v422
        %v1356 = vmul.f32 %v1354, %v423
        %v1357 = vmul.f32 %v1354, %v424
        %1361 = vrot.lane.b32.xlu0 %v1355, 127
        %v1362 = vpop.permute.xlu0 %1361
        %1363 = vrot.lane.b32.xlu0 %v1356, 127
        %v1364 = vpop.permute.xlu0 %1363
        %1365 = vrot.lane.b32.xlu0 %v1357, 127
        %v1366 = vpop.permute.xlu0 %1365
        %v1370 = vadd.f32 %v1290, %v1362
        %v1371 = vadd.f32 %v1291, %v1364
        %v1372 = vadd.f32 %v1292, %v1366
        %s1373 = sld [smem:[#allocation2 + $0x91]]
        %v1374 = vstv %s1373
        %v1375 = vmul.f32 %v1374, %v422
        %v1376 = vmul.f32 %v1374, %v423
        %v1377 = vmul.f32 %v1374, %v424
        %1381 = vrot.lane.b32.xlu0 %v1375, 127
        %v1382 = vpop.permute.xlu0 %1381
        %1383 = vrot.lane.b32.xlu0 %v1376, 127
        %v1384 = vpop.permute.xlu0 %1383
        %1385 = vrot.lane.b32.xlu0 %v1377, 127
        %v1386 = vpop.permute.xlu0 %1385
        %v1390 = vadd.f32 %v1310, %v1382
        %v1391 = vadd.f32 %v1311, %v1384
        %v1392 = vadd.f32 %v1312, %v1386
        %s1393 = sld [smem:[#allocation2 + $0xa1]]
        %v1394 = vstv %s1393
        %v1395 = vmul.f32 %v1394, %v422
        %v1396 = vmul.f32 %v1394, %v423
        %v1397 = vmul.f32 %v1394, %v424
        %1401 = vrot.lane.b32.xlu0 %v1395, 127
        %v1402 = vpop.permute.xlu0 %1401
        %1403 = vrot.lane.b32.xlu0 %v1396, 127
        %v1404 = vpop.permute.xlu0 %1403
        %1405 = vrot.lane.b32.xlu0 %v1397, 127
        %v1406 = vpop.permute.xlu0 %1405
        %v1410 = vadd.f32 %v1330, %v1402
        %v1411 = vadd.f32 %v1331, %v1404
        %v1412 = vadd.f32 %v1332, %v1406
        %s1413 = sld [smem:[#allocation2 + $0xb1]]
        %v1414 = vstv %s1413
        %v1415 = vmul.f32 %v1414, %v422
        %v1416 = vmul.f32 %v1414, %v423
        %v1417 = vmul.f32 %v1414, %v424
        %1421 = vrot.lane.b32.xlu0 %v1415, 127
        %v1422 = vpop.permute.xlu0 %1421
        %1423 = vrot.lane.b32.xlu0 %v1416, 127
        %v1424 = vpop.permute.xlu0 %1423
        %1425 = vrot.lane.b32.xlu0 %v1417, 127
        %v1426 = vpop.permute.xlu0 %1425
        %v1430 = vadd.f32 %v1350, %v1422
        %v1431 = vadd.f32 %v1351, %v1424
        %v1432 = vadd.f32 %v1352, %v1426
        %s1433 = sld [smem:[#allocation2 + $0xc1]]
        %v1434 = vstv %s1433
        %v1435 = vmul.f32 %v1434, %v506
        %v1436 = vmul.f32 %v1434, %v507
        %v1437 = vmul.f32 %v1434, %v508
        %1441 = vrot.lane.b32.xlu0 %v1435, 127
        %v1442 = vpop.permute.xlu0 %1441
        %1443 = vrot.lane.b32.xlu0 %v1436, 127
        %v1444 = vpop.permute.xlu0 %1443
        %1445 = vrot.lane.b32.xlu0 %v1437, 127
        %v1446 = vpop.permute.xlu0 %1445
        %v1450 = vadd.f32 %v1370, %v1442
        %v1451 = vadd.f32 %v1371, %v1444
        %v1452 = vadd.f32 %v1372, %v1446
        %s1453 = sld [smem:[#allocation2 + $0xd1]]
        %v1454 = vstv %s1453
        %v1455 = vmul.f32 %v1454, %v506
        %v1456 = vmul.f32 %v1454, %v507
        %v1457 = vmul.f32 %v1454, %v508
        %1461 = vrot.lane.b32.xlu0 %v1455, 127
        %v1462 = vpop.permute.xlu0 %1461
        %1463 = vrot.lane.b32.xlu0 %v1456, 127
        %v1464 = vpop.permute.xlu0 %1463
        %1465 = vrot.lane.b32.xlu0 %v1457, 127
        %v1466 = vpop.permute.xlu0 %1465
        %v1470 = vadd.f32 %v1390, %v1462
        %v1471 = vadd.f32 %v1391, %v1464
        %v1472 = vadd.f32 %v1392, %v1466
        %s1473 = sld [smem:[#allocation2 + $0xe1]]
        %v1474 = vstv %s1473
        %v1475 = vmul.f32 %v1474, %v506
        %v1476 = vmul.f32 %v1474, %v507
        %v1477 = vmul.f32 %v1474, %v508
        %1481 = vrot.lane.b32.xlu0 %v1475, 127
        %v1482 = vpop.permute.xlu0 %1481
        %1483 = vrot.lane.b32.xlu0 %v1476, 127
        %v1484 = vpop.permute.xlu0 %1483
        %1485 = vrot.lane.b32.xlu0 %v1477, 127
        %v1486 = vpop.permute.xlu0 %1485
        %v1490 = vadd.f32 %v1410, %v1482
        %v1491 = vadd.f32 %v1411, %v1484
        %v1492 = vadd.f32 %v1412, %v1486
        %s1493 = sld [smem:[#allocation2 + $0xf1]]
        %v1494 = vstv %s1493
        %v1495 = vmul.f32 %v1494, %v506
        %v1496 = vmul.f32 %v1494, %v507
        %v1497 = vmul.f32 %v1494, %v508
        %1501 = vrot.lane.b32.xlu0 %v1495, 127
        %v1502 = vpop.permute.xlu0 %1501
        %1503 = vrot.lane.b32.xlu0 %v1496, 127
        %v1504 = vpop.permute.xlu0 %1503
        %1505 = vrot.lane.b32.xlu0 %v1497, 127
        %v1506 = vpop.permute.xlu0 %1505
        %v1510 = vadd.f32 %v1430, %v1502
        %v1511 = vadd.f32 %v1431, %v1504
        %v1512 = vadd.f32 %v1432, %v1506
        %s1513 = sld [smem:[#allocation2 + $0x3]]
        %v1514 = vstv %s1513
        %v1515 = vmul.f32 %v1514, %v254
        %v1516 = vmul.f32 %v1514, %v255
        %v1517 = vmul.f32 %v1514, %v256
        %v1518 = vadd.f32 %v1450, %v1515
        %v1519 = vadd.f32 %v1451, %v1516
        %v1520 = vadd.f32 %v1452, %v1517
        %s1521 = sld [smem:[#allocation2 + $0x13]]
        %v1522 = vstv %s1521
        %v1523 = vmul.f32 %v1522, %v254
        %v1524 = vmul.f32 %v1522, %v255
        %v1525 = vmul.f32 %v1522, %v256
        %v1526 = vadd.f32 %v1470, %v1523
        %v1527 = vadd.f32 %v1471, %v1524
        %v1528 = vadd.f32 %v1472, %v1525
        %s1529 = sld [smem:[#allocation2 + $0x23]]
        %v1530 = vstv %s1529
        %v1531 = vmul.f32 %v1530, %v254
        %v1532 = vmul.f32 %v1530, %v255
        %v1533 = vmul.f32 %v1530, %v256
        %v1534 = vadd.f32 %v1490, %v1531
        %v1535 = vadd.f32 %v1491, %v1532
        %v1536 = vadd.f32 %v1492, %v1533
        %s1537 = sld [smem:[#allocation2 + $0x33]]
        %v1538 = vstv %s1537
        %v1539 = vmul.f32 %v1538, %v254
        %v1540 = vmul.f32 %v1538, %v255
        %v1541 = vmul.f32 %v1538, %v256
        %v1542 = vadd.f32 %v1510, %v1539
        %v1543 = vadd.f32 %v1511, %v1540
        %v1544 = vadd.f32 %v1512, %v1541
        %s1545 = sld [smem:[#allocation2 + $0x43]]
        %v1546 = vstv %s1545
        %v1547 = vmul.f32 %v1546, %v338
        %v1548 = vmul.f32 %v1546, %v339
        %v1549 = vmul.f32 %v1546, %v340
        %v1550 = vadd.f32 %v1518, %v1547
        %v1551 = vadd.f32 %v1519, %v1548
        %v1552 = vadd.f32 %v1520, %v1549
        %s1553 = sld [smem:[#allocation2 + $0x53]]
        %v1554 = vstv %s1553
        %v1555 = vmul.f32 %v1554, %v338
        %v1556 = vmul.f32 %v1554, %v339
        %v1557 = vmul.f32 %v1554, %v340
        %v1558 = vadd.f32 %v1526, %v1555
        %v1559 = vadd.f32 %v1527, %v1556
        %v1560 = vadd.f32 %v1528, %v1557
        %s1561 = sld [smem:[#allocation2 + $0x63]]
        %v1562 = vstv %s1561
        %v1563 = vmul.f32 %v1562, %v338
        %v1564 = vmul.f32 %v1562, %v339
        %v1565 = vmul.f32 %v1562, %v340
        %v1566 = vadd.f32 %v1534, %v1563
        %v1567 = vadd.f32 %v1535, %v1564
        %v1568 = vadd.f32 %v1536, %v1565
        %s1569 = sld [smem:[#allocation2 + $0x73]]
        %v1570 = vstv %s1569
        %v1571 = vmul.f32 %v1570, %v338
        %v1572 = vmul.f32 %v1570, %v339
        %v1573 = vmul.f32 %v1570, %v340
        %v1574 = vadd.f32 %v1542, %v1571
        %v1575 = vadd.f32 %v1543, %v1572
        %v1576 = vadd.f32 %v1544, %v1573
        %s1577 = sld [smem:[#allocation2 + $0x83]]
        %v1578 = vstv %s1577
        %v1579 = vmul.f32 %v1578, %v422
        %v1580 = vmul.f32 %v1578, %v423
        %v1581 = vmul.f32 %v1578, %v424
        %v1582 = vadd.f32 %v1550, %v1579
        %v1583 = vadd.f32 %v1551, %v1580
        %v1584 = vadd.f32 %v1552, %v1581
        %s1585 = sld [smem:[#allocation2 + $0x93]]
        %v1586 = vstv %s1585
        %v1587 = vmul.f32 %v1586, %v422
        %v1588 = vmul.f32 %v1586, %v423
        %v1589 = vmul.f32 %v1586, %v424
        %v1590 = vadd.f32 %v1558, %v1587
        %v1591 = vadd.f32 %v1559, %v1588
        %v1592 = vadd.f32 %v1560, %v1589
        %s1593 = sld [smem:[#allocation2 + $0xa3]]
        %v1594 = vstv %s1593
        %v1595 = vmul.f32 %v1594, %v422
        %v1596 = vmul.f32 %v1594, %v423
        %v1597 = vmul.f32 %v1594, %v424
        %v1598 = vadd.f32 %v1566, %v1595
        %v1599 = vadd.f32 %v1567, %v1596
        %v1600 = vadd.f32 %v1568, %v1597
        %s1601 = sld [smem:[#allocation2 + $0xb3]]
        %v1602 = vstv %s1601
        %v1603 = vmul.f32 %v1602, %v422
        %v1604 = vmul.f32 %v1602, %v423
        %v1605 = vmul.f32 %v1602, %v424
        %v1606 = vadd.f32 %v1574, %v1603
        %v1607 = vadd.f32 %v1575, %v1604
        %v1608 = vadd.f32 %v1576, %v1605
        %s1609 = sld [smem:[#allocation2 + $0xc3]]
        %v1610 = vstv %s1609
        %v1611 = vmul.f32 %v1610, %v506
        %v1612 = vmul.f32 %v1610, %v507
        %v1613 = vmul.f32 %v1610, %v508
        %v1614 = vadd.f32 %v1582, %v1611
        %v1615 = vadd.f32 %v1583, %v1612
        %v1616 = vadd.f32 %v1584, %v1613
        %s1617 = sld [smem:[#allocation2 + $0xd3]]
        %v1618 = vstv %s1617
        %v1619 = vmul.f32 %v1618, %v506
        %v1620 = vmul.f32 %v1618, %v507
        %v1621 = vmul.f32 %v1618, %v508
        %v1622 = vadd.f32 %v1590, %v1619
        %v1623 = vadd.f32 %v1591, %v1620
        %v1624 = vadd.f32 %v1592, %v1621
        %s1625 = sld [smem:[#allocation2 + $0xe3]]
        %v1626 = vstv %s1625
        %v1627 = vmul.f32 %v1626, %v506
        %v1628 = vmul.f32 %v1626, %v507
        %v1629 = vmul.f32 %v1626, %v508
        %v1630 = vadd.f32 %v1598, %v1627
        %v1631 = vadd.f32 %v1599, %v1628
        %v1632 = vadd.f32 %v1600, %v1629
        %s1633 = sld [smem:[#allocation2 + $0xf3]]
        %v1634 = vstv %s1633
        %v1635 = vmul.f32 %v1634, %v506
        %v1636 = vmul.f32 %v1634, %v507
        %v1637 = vmul.f32 %v1634, %v508
        %v1638 = vadd.f32 %v1606, %v1635
        %v1639 = vadd.f32 %v1607, %v1636
        %v1640 = vadd.f32 %v1608, %v1637
        %s1641 = sld [smem:[#allocation2 + $0x9]]
        %v1642 = vstv %s1641
        %v1643 = vmul.f32 %v1642, %v717
        %v1644 = vmul.f32 %v1642, %v718
        %v1645 = vmul.f32 %v1642, %v719
        %1649 = vrot.lane.b32.xlu0 %v1643, 127
        %v1650 = vpop.permute.xlu0 %1649
        %1651 = vrot.lane.b32.xlu0 %v1644, 127
        %v1652 = vpop.permute.xlu0 %1651
        %1653 = vrot.lane.b32.xlu0 %v1645, 127
        %v1654 = vpop.permute.xlu0 %1653
        %v1658 = vadd.f32 %v1614, %v1650
        %v1659 = vadd.f32 %v1615, %v1652
        %v1660 = vadd.f32 %v1616, %v1654
        %s1661 = sld [smem:[#allocation2 + $0x19]]
        %v1662 = vstv %s1661
        %v1663 = vmul.f32 %v1662, %v717
        %v1664 = vmul.f32 %v1662, %v718
        %v1665 = vmul.f32 %v1662, %v719
        %1669 = vrot.lane.b32.xlu0 %v1663, 127
        %v1670 = vpop.permute.xlu0 %1669
        %1671 = vrot.lane.b32.xlu0 %v1664, 127
        %v1672 = vpop.permute.xlu0 %1671
        %1673 = vrot.lane.b32.xlu0 %v1665, 127
        %v1674 = vpop.permute.xlu0 %1673
        %v1678 = vadd.f32 %v1622, %v1670
        %v1679 = vadd.f32 %v1623, %v1672
        %v1680 = vadd.f32 %v1624, %v1674
        %s1681 = sld [smem:[#allocation2 + $0x29]]
        %v1682 = vstv %s1681
        %v1683 = vmul.f32 %v1682, %v717
        %v1684 = vmul.f32 %v1682, %v718
        %v1685 = vmul.f32 %v1682, %v719
        %1689 = vrot.lane.b32.xlu0 %v1683, 127
        %v1690 = vpop.permute.xlu0 %1689
        %1691 = vrot.lane.b32.xlu0 %v1684, 127
        %v1692 = vpop.permute.xlu0 %1691
        %1693 = vrot.lane.b32.xlu0 %v1685, 127
        %v1694 = vpop.permute.xlu0 %1693
        %v1698 = vadd.f32 %v1630, %v1690
        %v1699 = vadd.f32 %v1631, %v1692
        %v1700 = vadd.f32 %v1632, %v1694
        %s1701 = sld [smem:[#allocation2 + $0x39]]
        %v1702 = vstv %s1701
        %v1703 = vmul.f32 %v1702, %v717
        %v1704 = vmul.f32 %v1702, %v718
        %v1705 = vmul.f32 %v1702, %v719
        %1709 = vrot.lane.b32.xlu0 %v1703, 127
        %v1710 = vpop.permute.xlu0 %1709
        %1711 = vrot.lane.b32.xlu0 %v1704, 127
        %v1712 = vpop.permute.xlu0 %1711
        %1713 = vrot.lane.b32.xlu0 %v1705, 127
        %v1714 = vpop.permute.xlu0 %1713
        %v1718 = vadd.f32 %v1638, %v1710
        %v1719 = vadd.f32 %v1639, %v1712
        %v1720 = vadd.f32 %v1640, %v1714
        %s1721 = sld [smem:[#allocation2 + $0x49]]
        %v1722 = vstv %s1721
        %v1723 = vmul.f32 %v1722, %v800
        %v1724 = vmul.f32 %v1722, %v801
        %v1725 = vmul.f32 %v1722, %v802
        %1729 = vrot.lane.b32.xlu0 %v1723, 127
        %v1730 = vpop.permute.xlu0 %1729
        %1731 = vrot.lane.b32.xlu0 %v1724, 127
        %v1732 = vpop.permute.xlu0 %1731
        %1733 = vrot.lane.b32.xlu0 %v1725, 127
        %v1734 = vpop.permute.xlu0 %1733
        %v1738 = vadd.f32 %v1658, %v1730
        %v1739 = vadd.f32 %v1659, %v1732
        %v1740 = vadd.f32 %v1660, %v1734
        %s1741 = sld [smem:[#allocation2 + $0x59]]
        %v1742 = vstv %s1741
        %v1743 = vmul.f32 %v1742, %v800
        %v1744 = vmul.f32 %v1742, %v801
        %v1745 = vmul.f32 %v1742, %v802
        %1749 = vrot.lane.b32.xlu0 %v1743, 127
        %v1750 = vpop.permute.xlu0 %1749
        %1751 = vrot.lane.b32.xlu0 %v1744, 127
        %v1752 = vpop.permute.xlu0 %1751
        %1753 = vrot.lane.b32.xlu0 %v1745, 127
        %v1754 = vpop.permute.xlu0 %1753
        %v1758 = vadd.f32 %v1678, %v1750
        %v1759 = vadd.f32 %v1679, %v1752
        %v1760 = vadd.f32 %v1680, %v1754
        %s1761 = sld [smem:[#allocation2 + $0x69]]
        %v1762 = vstv %s1761
        %v1763 = vmul.f32 %v1762, %v800
        %v1764 = vmul.f32 %v1762, %v801
        %v1765 = vmul.f32 %v1762, %v802
        %1769 = vrot.lane.b32.xlu0 %v1763, 127
        %v1770 = vpop.permute.xlu0 %1769
        %1771 = vrot.lane.b32.xlu0 %v1764, 127
        %v1772 = vpop.permute.xlu0 %1771
        %1773 = vrot.lane.b32.xlu0 %v1765, 127
        %v1774 = vpop.permute.xlu0 %1773
        %v1778 = vadd.f32 %v1698, %v1770
        %v1779 = vadd.f32 %v1699, %v1772
        %v1780 = vadd.f32 %v1700, %v1774
        %s1781 = sld [smem:[#allocation2 + $0x79]]
        %v1782 = vstv %s1781
        %v1783 = vmul.f32 %v1782, %v800
        %v1784 = vmul.f32 %v1782, %v801
        %v1785 = vmul.f32 %v1782, %v802
        %1789 = vrot.lane.b32.xlu0 %v1783, 127
        %v1790 = vpop.permute.xlu0 %1789
        %1791 = vrot.lane.b32.xlu0 %v1784, 127
        %v1792 = vpop.permute.xlu0 %1791
        %1793 = vrot.lane.b32.xlu0 %v1785, 127
        %v1794 = vpop.permute.xlu0 %1793
        %v1798 = vadd.f32 %v1718, %v1790
        %v1799 = vadd.f32 %v1719, %v1792
        %v1800 = vadd.f32 %v1720, %v1794
        %s1801 = sld [smem:[#allocation2 + $0x89]]
        %v1802 = vstv %s1801
        %v1803 = vmul.f32 %v1802, %v883
        %v1804 = vmul.f32 %v1802, %v884
        %v1805 = vmul.f32 %v1802, %v885
        %1809 = vrot.lane.b32.xlu0 %v1803, 127
        %v1810 = vpop.permute.xlu0 %1809
        %1811 = vrot.lane.b32.xlu0 %v1804, 127
        %v1812 = vpop.permute.xlu0 %1811
        %1813 = vrot.lane.b32.xlu0 %v1805, 127
        %v1814 = vpop.permute.xlu0 %1813
        %v1818 = vadd.f32 %v1738, %v1810
        %v1819 = vadd.f32 %v1739, %v1812
        %v1820 = vadd.f32 %v1740, %v1814
        %s1821 = sld [smem:[#allocation2 + $0x99]]
        %v1822 = vstv %s1821
        %v1823 = vmul.f32 %v1822, %v883
        %v1824 = vmul.f32 %v1822, %v884
        %v1825 = vmul.f32 %v1822, %v885
        %1829 = vrot.lane.b32.xlu0 %v1823, 127
        %v1830 = vpop.permute.xlu0 %1829
        %1831 = vrot.lane.b32.xlu0 %v1824, 127
        %v1832 = vpop.permute.xlu0 %1831
        %1833 = vrot.lane.b32.xlu0 %v1825, 127
        %v1834 = vpop.permute.xlu0 %1833
        %v1838 = vadd.f32 %v1758, %v1830
        %v1839 = vadd.f32 %v1759, %v1832
        %v1840 = vadd.f32 %v1760, %v1834
        %s1841 = sld [smem:[#allocation2 + $0xa9]]
        %v1842 = vstv %s1841
        %v1843 = vmul.f32 %v1842, %v883
        %v1844 = vmul.f32 %v1842, %v884
        %v1845 = vmul.f32 %v1842, %v885
        %1849 = vrot.lane.b32.xlu0 %v1843, 127
        %v1850 = vpop.permute.xlu0 %1849
        %1851 = vrot.lane.b32.xlu0 %v1844, 127
        %v1852 = vpop.permute.xlu0 %1851
        %1853 = vrot.lane.b32.xlu0 %v1845, 127
        %v1854 = vpop.permute.xlu0 %1853
        %v1858 = vadd.f32 %v1778, %v1850
        %v1859 = vadd.f32 %v1779, %v1852
        %v1860 = vadd.f32 %v1780, %v1854
        %s1861 = sld [smem:[#allocation2 + $0xb9]]
        %v1862 = vstv %s1861
        %v1863 = vmul.f32 %v1862, %v883
        %v1864 = vmul.f32 %v1862, %v884
        %v1865 = vmul.f32 %v1862, %v885
        %1869 = vrot.lane.b32.xlu0 %v1863, 127
        %v1870 = vpop.permute.xlu0 %1869
        %1871 = vrot.lane.b32.xlu0 %v1864, 127
        %v1872 = vpop.permute.xlu0 %1871
        %1873 = vrot.lane.b32.xlu0 %v1865, 127
        %v1874 = vpop.permute.xlu0 %1873
        %v1878 = vadd.f32 %v1798, %v1870
        %v1879 = vadd.f32 %v1799, %v1872
        %v1880 = vadd.f32 %v1800, %v1874
        %s1881 = sld [smem:[#allocation2 + $0xc9]]
        %v1882 = vstv %s1881
        %v1883 = vmul.f32 %v1882, %v966
        %v1884 = vmul.f32 %v1882, %v967
        %v1885 = vmul.f32 %v1882, %v968
        %1889 = vrot.lane.b32.xlu0 %v1883, 127
        %v1890 = vpop.permute.xlu0 %1889
        %1891 = vrot.lane.b32.xlu0 %v1884, 127
        %v1892 = vpop.permute.xlu0 %1891
        %1893 = vrot.lane.b32.xlu0 %v1885, 127
        %v1894 = vpop.permute.xlu0 %1893
        %v1898 = vadd.f32 %v1818, %v1890
        %v1899 = vadd.f32 %v1819, %v1892
        %v1900 = vadd.f32 %v1820, %v1894
        %s1901 = sld [smem:[#allocation2 + $0xd9]]
        %v1902 = vstv %s1901
        %v1903 = vmul.f32 %v1902, %v966
        %v1904 = vmul.f32 %v1902, %v967
        %v1905 = vmul.f32 %v1902, %v968
        %1909 = vrot.lane.b32.xlu0 %v1903, 127
        %v1910 = vpop.permute.xlu0 %1909
        %1911 = vrot.lane.b32.xlu0 %v1904, 127
        %v1912 = vpop.permute.xlu0 %1911
        %1913 = vrot.lane.b32.xlu0 %v1905, 127
        %v1914 = vpop.permute.xlu0 %1913
        %v1918 = vadd.f32 %v1838, %v1910
        %v1919 = vadd.f32 %v1839, %v1912
        %v1920 = vadd.f32 %v1840, %v1914
        %s1921 = sld [smem:[#allocation2 + $0xe9]]
        %v1922 = vstv %s1921
        %v1923 = vmul.f32 %v1922, %v966
        %v1924 = vmul.f32 %v1922, %v967
        %v1925 = vmul.f32 %v1922, %v968
        %1929 = vrot.lane.b32.xlu0 %v1923, 127
        %v1930 = vpop.permute.xlu0 %1929
        %1931 = vrot.lane.b32.xlu0 %v1924, 127
        %v1932 = vpop.permute.xlu0 %1931
        %1933 = vrot.lane.b32.xlu0 %v1925, 127
        %v1934 = vpop.permute.xlu0 %1933
        %v1938 = vadd.f32 %v1858, %v1930
        %v1939 = vadd.f32 %v1859, %v1932
        %v1940 = vadd.f32 %v1860, %v1934
        %s1941 = sld [smem:[#allocation2 + $0xf9]]
        %v1942 = vstv %s1941
        %v1943 = vmul.f32 %v1942, %v966
        %v1944 = vmul.f32 %v1942, %v967
        %v1945 = vmul.f32 %v1942, %v968
        %1949 = vrot.lane.b32.xlu0 %v1943, 127
        %v1950 = vpop.permute.xlu0 %1949
        %1951 = vrot.lane.b32.xlu0 %v1944, 127
        %v1952 = vpop.permute.xlu0 %1951
        %1953 = vrot.lane.b32.xlu0 %v1945, 127
        %v1954 = vpop.permute.xlu0 %1953
        %v1958 = vadd.f32 %v1878, %v1950
        %v1959 = vadd.f32 %v1879, %v1952
        %v1960 = vadd.f32 %v1880, %v1954
        %s1961 = sld [smem:[#allocation2 + $0xb]]
        %v1962 = vstv %s1961
        %v1963 = vmul.f32 %v1962, %v717
        %v1964 = vmul.f32 %v1962, %v718
        %v1965 = vmul.f32 %v1962, %v719
        %v1966 = vadd.f32 %v1898, %v1963
        %v1967 = vadd.f32 %v1899, %v1964
        %v1968 = vadd.f32 %v1900, %v1965
        %s1969 = sld [smem:[#allocation2 + $0x1b]]
        %v1970 = vstv %s1969
        %v1971 = vmul.f32 %v1970, %v717
        %v1972 = vmul.f32 %v1970, %v718
        %v1973 = vmul.f32 %v1970, %v719
        %v1974 = vadd.f32 %v1918, %v1971
        %v1975 = vadd.f32 %v1919, %v1972
        %v1976 = vadd.f32 %v1920, %v1973
        %s1977 = sld [smem:[#allocation2 + $0x2b]]
        %v1978 = vstv %s1977
        %v1979 = vmul.f32 %v1978, %v717
        %v1980 = vmul.f32 %v1978, %v718
        %v1981 = vmul.f32 %v1978, %v719
        %v1982 = vadd.f32 %v1938, %v1979
        %v1983 = vadd.f32 %v1939, %v1980
        %v1984 = vadd.f32 %v1940, %v1981
        %s1985 = sld [smem:[#allocation2 + $0x3b]]
        %v1986 = vstv %s1985
        %v1987 = vmul.f32 %v1986, %v717
        %v1988 = vmul.f32 %v1986, %v718
        %v1989 = vmul.f32 %v1986, %v719
        %v1990 = vadd.f32 %v1958, %v1987
        %v1991 = vadd.f32 %v1959, %v1988
        %v1992 = vadd.f32 %v1960, %v1989
        %s1993 = sld [smem:[#allocation2 + $0x4b]]
        %v1994 = vstv %s1993
        %v1995 = vmul.f32 %v1994, %v800
        %v1996 = vmul.f32 %v1994, %v801
        %v1997 = vmul.f32 %v1994, %v802
        %v1998 = vadd.f32 %v1966, %v1995
        %v1999 = vadd.f32 %v1967, %v1996
        %v2000 = vadd.f32 %v1968, %v1997
        %s2001 = sld [smem:[#allocation2 + $0x5b]]
        %v2002 = vstv %s2001
        %v2003 = vmul.f32 %v2002, %v800
        %v2004 = vmul.f32 %v2002, %v801
        %v2005 = vmul.f32 %v2002, %v802
        %v2006 = vadd.f32 %v1974, %v2003
        %v2007 = vadd.f32 %v1975, %v2004
        %v2008 = vadd.f32 %v1976, %v2005
        %s2009 = sld [smem:[#allocation2 + $0x6b]]
        %v2010 = vstv %s2009
        %v2011 = vmul.f32 %v2010, %v800
        %v2012 = vmul.f32 %v2010, %v801
        %v2013 = vmul.f32 %v2010, %v802
        %v2014 = vadd.f32 %v1982, %v2011
        %v2015 = vadd.f32 %v1983, %v2012
        %v2016 = vadd.f32 %v1984, %v2013
        %s2017 = sld [smem:[#allocation2 + $0x7b]]
        %v2018 = vstv %s2017
        %v2019 = vmul.f32 %v2018, %v800
        %v2020 = vmul.f32 %v2018, %v801
        %v2021 = vmul.f32 %v2018, %v802
        %v2022 = vadd.f32 %v1990, %v2019
        %v2023 = vadd.f32 %v1991, %v2020
        %v2024 = vadd.f32 %v1992, %v2021
        %s2025 = sld [smem:[#allocation2 + $0x8b]]
        %v2026 = vstv %s2025
        %v2027 = vmul.f32 %v2026, %v883
        %v2028 = vmul.f32 %v2026, %v884
        %v2029 = vmul.f32 %v2026, %v885
        %v2030 = vadd.f32 %v1998, %v2027
        %v2031 = vadd.f32 %v1999, %v2028
        %v2032 = vadd.f32 %v2000, %v2029
        %s2033 = sld [smem:[#allocation2 + $0x9b]]
        %v2034 = vstv %s2033
        %v2035 = vmul.f32 %v2034, %v883
        %v2036 = vmul.f32 %v2034, %v884
        %v2037 = vmul.f32 %v2034, %v885
        %v2038 = vadd.f32 %v2006, %v2035
        %v2039 = vadd.f32 %v2007, %v2036
        %v2040 = vadd.f32 %v2008, %v2037
        %s2041 = sld [smem:[#allocation2 + $0xab]]
        %v2042 = vstv %s2041
        %v2043 = vmul.f32 %v2042, %v883
        %v2044 = vmul.f32 %v2042, %v884
        %v2045 = vmul.f32 %v2042, %v885
        %v2046 = vadd.f32 %v2014, %v2043
        %v2047 = vadd.f32 %v2015, %v2044
        %v2048 = vadd.f32 %v2016, %v2045
        %s2049 = sld [smem:[#allocation2 + $0xbb]]
        %v2050 = vstv %s2049
        %v2051 = vmul.f32 %v2050, %v883
        %v2052 = vmul.f32 %v2050, %v884
        %v2053 = vmul.f32 %v2050, %v885
        %v2054 = vadd.f32 %v2022, %v2051
        %v2055 = vadd.f32 %v2023, %v2052
        %v2056 = vadd.f32 %v2024, %v2053
        %s2057 = sld [smem:[#allocation2 + $0xcb]]
        %v2058 = vstv %s2057
        %v2059 = vmul.f32 %v2058, %v966
        %v2060 = vmul.f32 %v2058, %v967
        %v2061 = vmul.f32 %v2058, %v968
        %v2062 = vadd.f32 %v2030, %v2059
        %v2063 = vadd.f32 %v2031, %v2060
        %v2064 = vadd.f32 %v2032, %v2061
        %s2065 = sld [smem:[#allocation2 + $0xdb]]
        %v2066 = vstv %s2065
        %v2067 = vmul.f32 %v2066, %v966
        %v2068 = vmul.f32 %v2066, %v967
        %v2069 = vmul.f32 %v2066, %v968
        %v2070 = vadd.f32 %v2038, %v2067
        %v2071 = vadd.f32 %v2039, %v2068
        %v2072 = vadd.f32 %v2040, %v2069
        %s2073 = sld [smem:[#allocation2 + $0xeb]]
        %v2074 = vstv %s2073
        %v2075 = vmul.f32 %v2074, %v966
        %v2076 = vmul.f32 %v2074, %v967
        %v2077 = vmul.f32 %v2074, %v968
        %v2078 = vadd.f32 %v2046, %v2075
        %v2079 = vadd.f32 %v2047, %v2076
        %v2080 = vadd.f32 %v2048, %v2077
        %s2081 = sld [smem:[#allocation2 + $0xfb]]
        %v2082 = vstv %s2081
        %v2083 = vmul.f32 %v2082, %v966
        %v2084 = vmul.f32 %v2082, %v967
        %v2085 = vmul.f32 %v2082, %v968
        %v2086 = vadd.f32 %v2054, %v2083
        %v2087 = vadd.f32 %v2055, %v2084
        %v2088 = vadd.f32 %v2056, %v2085
        %s2089 = scalar_lea.vmem %s1, 192
        %v2090 = vld [vmem:[%s2089] sm:$0xff]
        %v2091 = vld [vmem:[%s2089 + $0x8] sm:$0xff]
        %v2092 = vld [vmem:[%s2089 + $0x10] sm:$0x1]
        %s2093 = scalar_lea.vmem %s1, 216
        %v2094 = vld [vmem:[%s2093] sm:$0xff]
        %v2095 = vld [vmem:[%s2093 + $0x8] sm:$0xff]
        %v2096 = vld [vmem:[%s2093 + $0x10] sm:$0x1]
        %s2097 = scalar_lea.vmem %s1, 240
        %v2098 = vld [vmem:[%s2097] sm:$0xff]
        %v2099 = vld [vmem:[%s2097 + $0x8] sm:$0xff]
        %v2100 = vld [vmem:[%s2097 + $0x10] sm:$0x1]
        %s2101 = scalar_lea.vmem %s1, 264
        %v2102 = vld [vmem:[%s2101] sm:$0xff]
        %v2103 = vld [vmem:[%s2101 + $0x8] sm:$0xff]
        %v2104 = vld [vmem:[%s2101 + $0x10] sm:$0x1]
        %s2105 = sld [smem:[#allocation2 + $0x4]]
        %v2106 = vstv %s2105
        %v2107 = vmul.f32 %v2106, %v254
        %v2108 = vmul.f32 %v2106, %v255
        %v2109 = vmul.f32 %v2106, %v256
        %2113 = vrot.lane.b32.xlu0 %v2107, 127
        %v2114 = vpop.permute.xlu0 %2113
        %2115 = vrot.lane.b32.xlu0 %v2108, 127
        %v2116 = vpop.permute.xlu0 %2115
        %2117 = vrot.lane.b32.xlu0 %v2109, 127
        %v2118 = vpop.permute.xlu0 %2117
        %v2122 = vadd.f32 %v2090, %v2114
        %v2123 = vadd.f32 %v2091, %v2116
        %v2124 = vadd.f32 %v2092, %v2118
        %s2125 = sld [smem:[#allocation2 + $0x14]]
        %v2126 = vstv %s2125
        %v2127 = vmul.f32 %v2126, %v254
        %v2128 = vmul.f32 %v2126, %v255
        %v2129 = vmul.f32 %v2126, %v256
        %2133 = vrot.lane.b32.xlu0 %v2127, 127
        %v2134 = vpop.permute.xlu0 %2133
        %2135 = vrot.lane.b32.xlu0 %v2128, 127
        %v2136 = vpop.permute.xlu0 %2135
        %2137 = vrot.lane.b32.xlu0 %v2129, 127
        %v2138 = vpop.permute.xlu0 %2137
        %v2142 = vadd.f32 %v2094, %v2134
        %v2143 = vadd.f32 %v2095, %v2136
        %v2144 = vadd.f32 %v2096, %v2138
        %s2145 = sld [smem:[#allocation2 + $0x24]]
        %v2146 = vstv %s2145
        %v2147 = vmul.f32 %v2146, %v254
        %v2148 = vmul.f32 %v2146, %v255
        %v2149 = vmul.f32 %v2146, %v256
        %2153 = vrot.lane.b32.xlu0 %v2147, 127
        %v2154 = vpop.permute.xlu0 %2153
        %2155 = vrot.lane.b32.xlu0 %v2148, 127
        %v2156 = vpop.permute.xlu0 %2155
        %2157 = vrot.lane.b32.xlu0 %v2149, 127
        %v2158 = vpop.permute.xlu0 %2157
        %v2162 = vadd.f32 %v2098, %v2154
        %v2163 = vadd.f32 %v2099, %v2156
        %v2164 = vadd.f32 %v2100, %v2158
        %s2165 = sld [smem:[#allocation2 + $0x34]]
        %v2166 = vstv %s2165
        %v2167 = vmul.f32 %v2166, %v254
        %v2168 = vmul.f32 %v2166, %v255
        %v2169 = vmul.f32 %v2166, %v256
        %2173 = vrot.lane.b32.xlu0 %v2167, 127
        %v2174 = vpop.permute.xlu0 %2173
        %2175 = vrot.lane.b32.xlu0 %v2168, 127
        %v2176 = vpop.permute.xlu0 %2175
        %2177 = vrot.lane.b32.xlu0 %v2169, 127
        %v2178 = vpop.permute.xlu0 %2177
        %v2182 = vadd.f32 %v2102, %v2174
        %v2183 = vadd.f32 %v2103, %v2176
        %v2184 = vadd.f32 %v2104, %v2178
        %s2185 = sld [smem:[#allocation2 + $0x44]]
        %v2186 = vstv %s2185
        %v2187 = vmul.f32 %v2186, %v338
        %v2188 = vmul.f32 %v2186, %v339
        %v2189 = vmul.f32 %v2186, %v340
        %2193 = vrot.lane.b32.xlu0 %v2187, 127
        %v2194 = vpop.permute.xlu0 %2193
        %2195 = vrot.lane.b32.xlu0 %v2188, 127
        %v2196 = vpop.permute.xlu0 %2195
        %2197 = vrot.lane.b32.xlu0 %v2189, 127
        %v2198 = vpop.permute.xlu0 %2197
        %v2202 = vadd.f32 %v2122, %v2194
        %v2203 = vadd.f32 %v2123, %v2196
        %v2204 = vadd.f32 %v2124, %v2198
        %s2205 = sld [smem:[#allocation2 + $0x54]]
        %v2206 = vstv %s2205
        %v2207 = vmul.f32 %v2206, %v338
        %v2208 = vmul.f32 %v2206, %v339
        %v2209 = vmul.f32 %v2206, %v340
        %2213 = vrot.lane.b32.xlu0 %v2207, 127
        %v2214 = vpop.permute.xlu0 %2213
        %2215 = vrot.lane.b32.xlu0 %v2208, 127
        %v2216 = vpop.permute.xlu0 %2215
        %2217 = vrot.lane.b32.xlu0 %v2209, 127
        %v2218 = vpop.permute.xlu0 %2217
        %v2222 = vadd.f32 %v2142, %v2214
        %v2223 = vadd.f32 %v2143, %v2216
        %v2224 = vadd.f32 %v2144, %v2218
        %s2225 = sld [smem:[#allocation2 + $0x64]]
        %v2226 = vstv %s2225
        %v2227 = vmul.f32 %v2226, %v338
        %v2228 = vmul.f32 %v2226, %v339
        %v2229 = vmul.f32 %v2226, %v340
        %2233 = vrot.lane.b32.xlu0 %v2227, 127
        %v2234 = vpop.permute.xlu0 %2233
        %2235 = vrot.lane.b32.xlu0 %v2228, 127
        %v2236 = vpop.permute.xlu0 %2235
        %2237 = vrot.lane.b32.xlu0 %v2229, 127
        %v2238 = vpop.permute.xlu0 %2237
        %v2242 = vadd.f32 %v2162, %v2234
        %v2243 = vadd.f32 %v2163, %v2236
        %v2244 = vadd.f32 %v2164, %v2238
        %s2245 = sld [smem:[#allocation2 + $0x74]]
        %v2246 = vstv %s2245
        %v2247 = vmul.f32 %v2246, %v338
        %v2248 = vmul.f32 %v2246, %v339
        %v2249 = vmul.f32 %v2246, %v340
        %2253 = vrot.lane.b32.xlu0 %v2247, 127
        %v2254 = vpop.permute.xlu0 %2253
        %2255 = vrot.lane.b32.xlu0 %v2248, 127
        %v2256 = vpop.permute.xlu0 %2255
        %2257 = vrot.lane.b32.xlu0 %v2249, 127
        %v2258 = vpop.permute.xlu0 %2257
        %v2262 = vadd.f32 %v2182, %v2254
        %v2263 = vadd.f32 %v2183, %v2256
        %v2264 = vadd.f32 %v2184, %v2258
        %s2265 = sld [smem:[#allocation2 + $0x84]]
        %v2266 = vstv %s2265
        %v2267 = vmul.f32 %v2266, %v422
        %v2268 = vmul.f32 %v2266, %v423
        %v2269 = vmul.f32 %v2266, %v424
        %2273 = vrot.lane.b32.xlu0 %v2267, 127
        %v2274 = vpop.permute.xlu0 %2273
        %2275 = vrot.lane.b32.xlu0 %v2268, 127
        %v2276 = vpop.permute.xlu0 %2275
        %2277 = vrot.lane.b32.xlu0 %v2269, 127
        %v2278 = vpop.permute.xlu0 %2277
        %v2282 = vadd.f32 %v2202, %v2274
        %v2283 = vadd.f32 %v2203, %v2276
        %v2284 = vadd.f32 %v2204, %v2278
        %s2285 = sld [smem:[#allocation2 + $0x94]]
        %v2286 = vstv %s2285
        %v2287 = vmul.f32 %v2286, %v422
        %v2288 = vmul.f32 %v2286, %v423
        %v2289 = vmul.f32 %v2286, %v424
        %2293 = vrot.lane.b32.xlu0 %v2287, 127
        %v2294 = vpop.permute.xlu0 %2293
        %2295 = vrot.lane.b32.xlu0 %v2288, 127
        %v2296 = vpop.permute.xlu0 %2295
        %2297 = vrot.lane.b32.xlu0 %v2289, 127
        %v2298 = vpop.permute.xlu0 %2297
        %v2302 = vadd.f32 %v2222, %v2294
        %v2303 = vadd.f32 %v2223, %v2296
        %v2304 = vadd.f32 %v2224, %v2298
        %s2305 = sld [smem:[#allocation2 + $0xa4]]
        %v2306 = vstv %s2305
        %v2307 = vmul.f32 %v2306, %v422
        %v2308 = vmul.f32 %v2306, %v423
        %v2309 = vmul.f32 %v2306, %v424
        %2313 = vrot.lane.b32.xlu0 %v2307, 127
        %v2314 = vpop.permute.xlu0 %2313
        %2315 = vrot.lane.b32.xlu0 %v2308, 127
        %v2316 = vpop.permute.xlu0 %2315
        %2317 = vrot.lane.b32.xlu0 %v2309, 127
        %v2318 = vpop.permute.xlu0 %2317
        %v2322 = vadd.f32 %v2242, %v2314
        %v2323 = vadd.f32 %v2243, %v2316
        %v2324 = vadd.f32 %v2244, %v2318
        %s2325 = sld [smem:[#allocation2 + $0xb4]]
        %v2326 = vstv %s2325
        %v2327 = vmul.f32 %v2326, %v422
        %v2328 = vmul.f32 %v2326, %v423
        %v2329 = vmul.f32 %v2326, %v424
        %2333 = vrot.lane.b32.xlu0 %v2327, 127
        %v2334 = vpop.permute.xlu0 %2333
        %2335 = vrot.lane.b32.xlu0 %v2328, 127
        %v2336 = vpop.permute.xlu0 %2335
        %2337 = vrot.lane.b32.xlu0 %v2329, 127
        %v2338 = vpop.permute.xlu0 %2337
        %v2342 = vadd.f32 %v2262, %v2334
        %v2343 = vadd.f32 %v2263, %v2336
        %v2344 = vadd.f32 %v2264, %v2338
        %s2345 = sld [smem:[#allocation2 + $0xc4]]
        %v2346 = vstv %s2345
        %v2347 = vmul.f32 %v2346, %v506
        %v2348 = vmul.f32 %v2346, %v507
        %v2349 = vmul.f32 %v2346, %v508
        %2353 = vrot.lane.b32.xlu0 %v2347, 127
        %v2354 = vpop.permute.xlu0 %2353
        %2355 = vrot.lane.b32.xlu0 %v2348, 127
        %v2356 = vpop.permute.xlu0 %2355
        %2357 = vrot.lane.b32.xlu0 %v2349, 127
        %v2358 = vpop.permute.xlu0 %2357
        %v2362 = vadd.f32 %v2282, %v2354
        %v2363 = vadd.f32 %v2283, %v2356
        %v2364 = vadd.f32 %v2284, %v2358
        %s2365 = sld [smem:[#allocation2 + $0xd4]]
        %v2366 = vstv %s2365
        %v2367 = vmul.f32 %v2366, %v506
        %v2368 = vmul.f32 %v2366, %v507
        %v2369 = vmul.f32 %v2366, %v508
        %2373 = vrot.lane.b32.xlu0 %v2367, 127
        %v2374 = vpop.permute.xlu0 %2373
        %2375 = vrot.lane.b32.xlu0 %v2368, 127
        %v2376 = vpop.permute.xlu0 %2375
        %2377 = vrot.lane.b32.xlu0 %v2369, 127
        %v2378 = vpop.permute.xlu0 %2377
        %v2382 = vadd.f32 %v2302, %v2374
        %v2383 = vadd.f32 %v2303, %v2376
        %v2384 = vadd.f32 %v2304, %v2378
        %s2385 = sld [smem:[#allocation2 + $0xe4]]
        %v2386 = vstv %s2385
        %v2387 = vmul.f32 %v2386, %v506
        %v2388 = vmul.f32 %v2386, %v507
        %v2389 = vmul.f32 %v2386, %v508
        %2393 = vrot.lane.b32.xlu0 %v2387, 127
        %v2394 = vpop.permute.xlu0 %2393
        %2395 = vrot.lane.b32.xlu0 %v2388, 127
        %v2396 = vpop.permute.xlu0 %2395
        %2397 = vrot.lane.b32.xlu0 %v2389, 127
        %v2398 = vpop.permute.xlu0 %2397
        %v2402 = vadd.f32 %v2322, %v2394
        %v2403 = vadd.f32 %v2323, %v2396
        %v2404 = vadd.f32 %v2324, %v2398
        %s2405 = sld [smem:[#allocation2 + $0xf4]]
        %v2406 = vstv %s2405
        %v2407 = vmul.f32 %v2406, %v506
        %v2408 = vmul.f32 %v2406, %v507
        %v2409 = vmul.f32 %v2406, %v508
        %2413 = vrot.lane.b32.xlu0 %v2407, 127
        %v2414 = vpop.permute.xlu0 %2413
        %2415 = vrot.lane.b32.xlu0 %v2408, 127
        %v2416 = vpop.permute.xlu0 %2415
        %2417 = vrot.lane.b32.xlu0 %v2409, 127
        %v2418 = vpop.permute.xlu0 %2417
        %v2422 = vadd.f32 %v2342, %v2414
        %v2423 = vadd.f32 %v2343, %v2416
        %v2424 = vadd.f32 %v2344, %v2418
        %s2425 = sld [smem:[#allocation2 + $0x6]]
        %v2426 = vstv %s2425
        %v2427 = vmul.f32 %v2426, %v254
        %v2428 = vmul.f32 %v2426, %v255
        %v2429 = vmul.f32 %v2426, %v256
        %v2430 = vadd.f32 %v2362, %v2427
        %v2431 = vadd.f32 %v2363, %v2428
        %v2432 = vadd.f32 %v2364, %v2429
        %s2433 = sld [smem:[#allocation2 + $0x16]]
        %v2434 = vstv %s2433
        %v2435 = vmul.f32 %v2434, %v254
        %v2436 = vmul.f32 %v2434, %v255
        %v2437 = vmul.f32 %v2434, %v256
        %v2438 = vadd.f32 %v2382, %v2435
        %v2439 = vadd.f32 %v2383, %v2436
        %v2440 = vadd.f32 %v2384, %v2437
        %s2441 = sld [smem:[#allocation2 + $0x26]]
        %v2442 = vstv %s2441
        %v2443 = vmul.f32 %v2442, %v254
        %v2444 = vmul.f32 %v2442, %v255
        %v2445 = vmul.f32 %v2442, %v256
        %v2446 = vadd.f32 %v2402, %v2443
        %v2447 = vadd.f32 %v2403, %v2444
        %v2448 = vadd.f32 %v2404, %v2445
        %s2449 = sld [smem:[#allocation2 + $0x36]]
        %v2450 = vstv %s2449
        %v2451 = vmul.f32 %v2450, %v254
        %v2452 = vmul.f32 %v2450, %v255
        %v2453 = vmul.f32 %v2450, %v256
        %v2454 = vadd.f32 %v2422, %v2451
        %v2455 = vadd.f32 %v2423, %v2452
        %v2456 = vadd.f32 %v2424, %v2453
        %s2457 = sld [smem:[#allocation2 + $0x46]]
        %v2458 = vstv %s2457
        %v2459 = vmul.f32 %v2458, %v338
        %v2460 = vmul.f32 %v2458, %v339
        %v2461 = vmul.f32 %v2458, %v340
        %v2462 = vadd.f32 %v2430, %v2459
        %v2463 = vadd.f32 %v2431, %v2460
        %v2464 = vadd.f32 %v2432, %v2461
        %s2465 = sld [smem:[#allocation2 + $0x56]]
        %v2466 = vstv %s2465
        %v2467 = vmul.f32 %v2466, %v338
        %v2468 = vmul.f32 %v2466, %v339
        %v2469 = vmul.f32 %v2466, %v340
        %v2470 = vadd.f32 %v2438, %v2467
        %v2471 = vadd.f32 %v2439, %v2468
        %v2472 = vadd.f32 %v2440, %v2469
        %s2473 = sld [smem:[#allocation2 + $0x66]]
        %v2474 = vstv %s2473
        %v2475 = vmul.f32 %v2474, %v338
        %v2476 = vmul.f32 %v2474, %v339
        %v2477 = vmul.f32 %v2474, %v340
        %v2478 = vadd.f32 %v2446, %v2475
        %v2479 = vadd.f32 %v2447, %v2476
        %v2480 = vadd.f32 %v2448, %v2477
        %s2481 = sld [smem:[#allocation2 + $0x76]]
        %v2482 = vstv %s2481
        %v2483 = vmul.f32 %v2482, %v338
        %v2484 = vmul.f32 %v2482, %v339
        %v2485 = vmul.f32 %v2482, %v340
        %v2486 = vadd.f32 %v2454, %v2483
        %v2487 = vadd.f32 %v2455, %v2484
        %v2488 = vadd.f32 %v2456, %v2485
        %s2489 = sld [smem:[#allocation2 + $0x86]]
        %v2490 = vstv %s2489
        %v2491 = vmul.f32 %v2490, %v422
        %v2492 = vmul.f32 %v2490, %v423
        %v2493 = vmul.f32 %v2490, %v424
        %v2494 = vadd.f32 %v2462, %v2491
        %v2495 = vadd.f32 %v2463, %v2492
        %v2496 = vadd.f32 %v2464, %v2493
        %s2497 = sld [smem:[#allocation2 + $0x96]]
        %v2498 = vstv %s2497
        %v2499 = vmul.f32 %v2498, %v422
        %v2500 = vmul.f32 %v2498, %v423
        %v2501 = vmul.f32 %v2498, %v424
        %v2502 = vadd.f32 %v2470, %v2499
        %v2503 = vadd.f32 %v2471, %v2500
        %v2504 = vadd.f32 %v2472, %v2501
        %s2505 = sld [smem:[#allocation2 + $0xa6]]
        %v2506 = vstv %s2505
        %v2507 = vmul.f32 %v2506, %v422
        %v2508 = vmul.f32 %v2506, %v423
        %v2509 = vmul.f32 %v2506, %v424
        %v2510 = vadd.f32 %v2478, %v2507
        %v2511 = vadd.f32 %v2479, %v2508
        %v2512 = vadd.f32 %v2480, %v2509
        %s2513 = sld [smem:[#allocation2 + $0xb6]]
        %v2514 = vstv %s2513
        %v2515 = vmul.f32 %v2514, %v422
        %v2516 = vmul.f32 %v2514, %v423
        %v2517 = vmul.f32 %v2514, %v424
        %v2518 = vadd.f32 %v2486, %v2515
        %v2519 = vadd.f32 %v2487, %v2516
        %v2520 = vadd.f32 %v2488, %v2517
        %s2521 = sld [smem:[#allocation2 + $0xc6]]
        %v2522 = vstv %s2521
        %v2523 = vmul.f32 %v2522, %v506
        %v2524 = vmul.f32 %v2522, %v507
        %v2525 = vmul.f32 %v2522, %v508
        %v2526 = vadd.f32 %v2494, %v2523
        %v2527 = vadd.f32 %v2495, %v2524
        %v2528 = vadd.f32 %v2496, %v2525
        %s2529 = sld [smem:[#allocation2 + $0xd6]]
        %v2530 = vstv %s2529
        %v2531 = vmul.f32 %v2530, %v506
        %v2532 = vmul.f32 %v2530, %v507
        %v2533 = vmul.f32 %v2530, %v508
        %v2534 = vadd.f32 %v2502, %v2531
        %v2535 = vadd.f32 %v2503, %v2532
        %v2536 = vadd.f32 %v2504, %v2533
        %s2537 = sld [smem:[#allocation2 + $0xe6]]
        %v2538 = vstv %s2537
        %v2539 = vmul.f32 %v2538, %v506
        %v2540 = vmul.f32 %v2538, %v507
        %v2541 = vmul.f32 %v2538, %v508
        %v2542 = vadd.f32 %v2510, %v2539
        %v2543 = vadd.f32 %v2511, %v2540
        %v2544 = vadd.f32 %v2512, %v2541
        %s2545 = sld [smem:[#allocation2 + $0xf6]]
        %v2546 = vstv %s2545
        %v2547 = vmul.f32 %v2546, %v506
        %v2548 = vmul.f32 %v2546, %v507
        %v2549 = vmul.f32 %v2546, %v508
        %v2550 = vadd.f32 %v2518, %v2547
        %v2551 = vadd.f32 %v2519, %v2548
        %v2552 = vadd.f32 %v2520, %v2549
        %s2553 = sld [smem:[#allocation2 + $0xc]]
        %v2554 = vstv %s2553
        %v2555 = vmul.f32 %v2554, %v717
        %v2556 = vmul.f32 %v2554, %v718
        %v2557 = vmul.f32 %v2554, %v719
        %2561 = vrot.lane.b32.xlu0 %v2555, 127
        %v2562 = vpop.permute.xlu0 %2561
        %2563 = vrot.lane.b32.xlu0 %v2556, 127
        %v2564 = vpop.permute.xlu0 %2563
        %2565 = vrot.lane.b32.xlu0 %v2557, 127
        %v2566 = vpop.permute.xlu0 %2565
        %v2570 = vadd.f32 %v2526, %v2562
        %v2571 = vadd.f32 %v2527, %v2564
        %v2572 = vadd.f32 %v2528, %v2566
        %s2573 = sld [smem:[#allocation2 + $0x1c]]
        %v2574 = vstv %s2573
        %v2575 = vmul.f32 %v2574, %v717
        %v2576 = vmul.f32 %v2574, %v718
        %v2577 = vmul.f32 %v2574, %v719
        %2581 = vrot.lane.b32.xlu0 %v2575, 127
        %v2582 = vpop.permute.xlu0 %2581
        %2583 = vrot.lane.b32.xlu0 %v2576, 127
        %v2584 = vpop.permute.xlu0 %2583
        %2585 = vrot.lane.b32.xlu0 %v2577, 127
        %v2586 = vpop.permute.xlu0 %2585
        %v2590 = vadd.f32 %v2534, %v2582
        %v2591 = vadd.f32 %v2535, %v2584
        %v2592 = vadd.f32 %v2536, %v2586
        %s2593 = sld [smem:[#allocation2 + $0x2c]]
        %v2594 = vstv %s2593
        %v2595 = vmul.f32 %v2594, %v717
        %v2596 = vmul.f32 %v2594, %v718
        %v2597 = vmul.f32 %v2594, %v719
        %2601 = vrot.lane.b32.xlu0 %v2595, 127
        %v2602 = vpop.permute.xlu0 %2601
        %2603 = vrot.lane.b32.xlu0 %v2596, 127
        %v2604 = vpop.permute.xlu0 %2603
        %2605 = vrot.lane.b32.xlu0 %v2597, 127
        %v2606 = vpop.permute.xlu0 %2605
        %v2610 = vadd.f32 %v2542, %v2602
        %v2611 = vadd.f32 %v2543, %v2604
        %v2612 = vadd.f32 %v2544, %v2606
        %s2613 = sld [smem:[#allocation2 + $0x3c]]
        %v2614 = vstv %s2613
        %v2615 = vmul.f32 %v2614, %v717
        %v2616 = vmul.f32 %v2614, %v718
        %v2617 = vmul.f32 %v2614, %v719
        %2621 = vrot.lane.b32.xlu0 %v2615, 127
        %v2622 = vpop.permute.xlu0 %2621
        %2623 = vrot.lane.b32.xlu0 %v2616, 127
        %v2624 = vpop.permute.xlu0 %2623
        %2625 = vrot.lane.b32.xlu0 %v2617, 127
        %v2626 = vpop.permute.xlu0 %2625
        %v2630 = vadd.f32 %v2550, %v2622
        %v2631 = vadd.f32 %v2551, %v2624
        %v2632 = vadd.f32 %v2552, %v2626
        %s2633 = sld [smem:[#allocation2 + $0x4c]]
        %v2634 = vstv %s2633
        %v2635 = vmul.f32 %v2634, %v800
        %v2636 = vmul.f32 %v2634, %v801
        %v2637 = vmul.f32 %v2634, %v802
        %2641 = vrot.lane.b32.xlu0 %v2635, 127
        %v2642 = vpop.permute.xlu0 %2641
        %2643 = vrot.lane.b32.xlu0 %v2636, 127
        %v2644 = vpop.permute.xlu0 %2643
        %2645 = vrot.lane.b32.xlu0 %v2637, 127
        %v2646 = vpop.permute.xlu0 %2645
        %v2650 = vadd.f32 %v2570, %v2642
        %v2651 = vadd.f32 %v2571, %v2644
        %v2652 = vadd.f32 %v2572, %v2646
        %s2653 = sld [smem:[#allocation2 + $0x5c]]
        %v2654 = vstv %s2653
        %v2655 = vmul.f32 %v2654, %v800
        %v2656 = vmul.f32 %v2654, %v801
        %v2657 = vmul.f32 %v2654, %v802
        %2661 = vrot.lane.b32.xlu0 %v2655, 127
        %v2662 = vpop.permute.xlu0 %2661
        %2663 = vrot.lane.b32.xlu0 %v2656, 127
        %v2664 = vpop.permute.xlu0 %2663
        %2665 = vrot.lane.b32.xlu0 %v2657, 127
        %v2666 = vpop.permute.xlu0 %2665
        %v2670 = vadd.f32 %v2590, %v2662
        %v2671 = vadd.f32 %v2591, %v2664
        %v2672 = vadd.f32 %v2592, %v2666
        %s2673 = sld [smem:[#allocation2 + $0x6c]]
        %v2674 = vstv %s2673
        %v2675 = vmul.f32 %v2674, %v800
        %v2676 = vmul.f32 %v2674, %v801
        %v2677 = vmul.f32 %v2674, %v802
        %2681 = vrot.lane.b32.xlu0 %v2675, 127
        %v2682 = vpop.permute.xlu0 %2681
        %2683 = vrot.lane.b32.xlu0 %v2676, 127
        %v2684 = vpop.permute.xlu0 %2683
        %2685 = vrot.lane.b32.xlu0 %v2677, 127
        %v2686 = vpop.permute.xlu0 %2685
        %v2690 = vadd.f32 %v2610, %v2682
        %v2691 = vadd.f32 %v2611, %v2684
        %v2692 = vadd.f32 %v2612, %v2686
        %s2693 = sld [smem:[#allocation2 + $0x7c]]
        %v2694 = vstv %s2693
        %v2695 = vmul.f32 %v2694, %v800
        %v2696 = vmul.f32 %v2694, %v801
        %v2697 = vmul.f32 %v2694, %v802
        %2701 = vrot.lane.b32.xlu0 %v2695, 127
        %v2702 = vpop.permute.xlu0 %2701
        %2703 = vrot.lane.b32.xlu0 %v2696, 127
        %v2704 = vpop.permute.xlu0 %2703
        %2705 = vrot.lane.b32.xlu0 %v2697, 127
        %v2706 = vpop.permute.xlu0 %2705
        %v2710 = vadd.f32 %v2630, %v2702
        %v2711 = vadd.f32 %v2631, %v2704
        %v2712 = vadd.f32 %v2632, %v2706
        %s2713 = sld [smem:[#allocation2 + $0x8c]]
        %v2714 = vstv %s2713
        %v2715 = vmul.f32 %v2714, %v883
        %v2716 = vmul.f32 %v2714, %v884
        %v2717 = vmul.f32 %v2714, %v885
        %2721 = vrot.lane.b32.xlu0 %v2715, 127
        %v2722 = vpop.permute.xlu0 %2721
        %2723 = vrot.lane.b32.xlu0 %v2716, 127
        %v2724 = vpop.permute.xlu0 %2723
        %2725 = vrot.lane.b32.xlu0 %v2717, 127
        %v2726 = vpop.permute.xlu0 %2725
        %v2730 = vadd.f32 %v2650, %v2722
        %v2731 = vadd.f32 %v2651, %v2724
        %v2732 = vadd.f32 %v2652, %v2726
        %s2733 = sld [smem:[#allocation2 + $0x9c]]
        %v2734 = vstv %s2733
        %v2735 = vmul.f32 %v2734, %v883
        %v2736 = vmul.f32 %v2734, %v884
        %v2737 = vmul.f32 %v2734, %v885
        %2741 = vrot.lane.b32.xlu0 %v2735, 127
        %v2742 = vpop.permute.xlu0 %2741
        %2743 = vrot.lane.b32.xlu0 %v2736, 127
        %v2744 = vpop.permute.xlu0 %2743
        %2745 = vrot.lane.b32.xlu0 %v2737, 127
        %v2746 = vpop.permute.xlu0 %2745
        %v2750 = vadd.f32 %v2670, %v2742
        %v2751 = vadd.f32 %v2671, %v2744
        %v2752 = vadd.f32 %v2672, %v2746
        %s2753 = sld [smem:[#allocation2 + $0xac]]
        %v2754 = vstv %s2753
        %v2755 = vmul.f32 %v2754, %v883
        %v2756 = vmul.f32 %v2754, %v884
        %v2757 = vmul.f32 %v2754, %v885
        %2761 = vrot.lane.b32.xlu0 %v2755, 127
        %v2762 = vpop.permute.xlu0 %2761
        %2763 = vrot.lane.b32.xlu0 %v2756, 127
        %v2764 = vpop.permute.xlu0 %2763
        %2765 = vrot.lane.b32.xlu0 %v2757, 127
        %v2766 = vpop.permute.xlu0 %2765
        %v2770 = vadd.f32 %v2690, %v2762
        %v2771 = vadd.f32 %v2691, %v2764
        %v2772 = vadd.f32 %v2692, %v2766
        %s2773 = sld [smem:[#allocation2 + $0xbc]]
        %v2774 = vstv %s2773
        %v2775 = vmul.f32 %v2774, %v883
        %v2776 = vmul.f32 %v2774, %v884
        %v2777 = vmul.f32 %v2774, %v885
        %2781 = vrot.lane.b32.xlu0 %v2775, 127
        %v2782 = vpop.permute.xlu0 %2781
        %2783 = vrot.lane.b32.xlu0 %v2776, 127
        %v2784 = vpop.permute.xlu0 %2783
        %2785 = vrot.lane.b32.xlu0 %v2777, 127
        %v2786 = vpop.permute.xlu0 %2785
        %v2790 = vadd.f32 %v2710, %v2782
        %v2791 = vadd.f32 %v2711, %v2784
        %v2792 = vadd.f32 %v2712, %v2786
        %s2793 = sld [smem:[#allocation2 + $0xcc]]
        %v2794 = vstv %s2793
        %v2795 = vmul.f32 %v2794, %v966
        %v2796 = vmul.f32 %v2794, %v967
        %v2797 = vmul.f32 %v2794, %v968
        %2801 = vrot.lane.b32.xlu0 %v2795, 127
        %v2802 = vpop.permute.xlu0 %2801
        %2803 = vrot.lane.b32.xlu0 %v2796, 127
        %v2804 = vpop.permute.xlu0 %2803
        %2805 = vrot.lane.b32.xlu0 %v2797, 127
        %v2806 = vpop.permute.xlu0 %2805
        %v2810 = vadd.f32 %v2730, %v2802
        %v2811 = vadd.f32 %v2731, %v2804
        %v2812 = vadd.f32 %v2732, %v2806
        %s2813 = sld [smem:[#allocation2 + $0xdc]]
        %v2814 = vstv %s2813
        %v2815 = vmul.f32 %v2814, %v966
        %v2816 = vmul.f32 %v2814, %v967
        %v2817 = vmul.f32 %v2814, %v968
        %2821 = vrot.lane.b32.xlu0 %v2815, 127
        %v2822 = vpop.permute.xlu0 %2821
        %2823 = vrot.lane.b32.xlu0 %v2816, 127
        %v2824 = vpop.permute.xlu0 %2823
        %2825 = vrot.lane.b32.xlu0 %v2817, 127
        %v2826 = vpop.permute.xlu0 %2825
        %v2830 = vadd.f32 %v2750, %v2822
        %v2831 = vadd.f32 %v2751, %v2824
        %v2832 = vadd.f32 %v2752, %v2826
        %s2833 = sld [smem:[#allocation2 + $0xec]]
        %v2834 = vstv %s2833
        %v2835 = vmul.f32 %v2834, %v966
        %v2836 = vmul.f32 %v2834, %v967
        %v2837 = vmul.f32 %v2834, %v968
        %2841 = vrot.lane.b32.xlu0 %v2835, 127
        %v2842 = vpop.permute.xlu0 %2841
        %2843 = vrot.lane.b32.xlu0 %v2836, 127
        %v2844 = vpop.permute.xlu0 %2843
        %2845 = vrot.lane.b32.xlu0 %v2837, 127
        %v2846 = vpop.permute.xlu0 %2845
        %v2850 = vadd.f32 %v2770, %v2842
        %v2851 = vadd.f32 %v2771, %v2844
        %v2852 = vadd.f32 %v2772, %v2846
        %s2853 = sld [smem:[#allocation2 + $0xfc]]
        %v2854 = vstv %s2853
        %v2855 = vmul.f32 %v2854, %v966
        %v2856 = vmul.f32 %v2854, %v967
        %v2857 = vmul.f32 %v2854, %v968
        %2861 = vrot.lane.b32.xlu0 %v2855, 127
        %v2862 = vpop.permute.xlu0 %2861
        %2863 = vrot.lane.b32.xlu0 %v2856, 127
        %v2864 = vpop.permute.xlu0 %2863
        %2865 = vrot.lane.b32.xlu0 %v2857, 127
        %v2866 = vpop.permute.xlu0 %2865
        %v2870 = vadd.f32 %v2790, %v2862
        %v2871 = vadd.f32 %v2791, %v2864
        %v2872 = vadd.f32 %v2792, %v2866
        %s2873 = sld [smem:[#allocation2 + $0xe]]
        %v2874 = vstv %s2873
        %v2875 = vmul.f32 %v2874, %v717
        %v2876 = vmul.f32 %v2874, %v718
        %v2877 = vmul.f32 %v2874, %v719
        %v2878 = vadd.f32 %v2810, %v2875
        %v2879 = vadd.f32 %v2811, %v2876
        %v2880 = vadd.f32 %v2812, %v2877
        %s2881 = sld [smem:[#allocation2 + $0x1e]]
        %v2882 = vstv %s2881
        %v2883 = vmul.f32 %v2882, %v717
        %v2884 = vmul.f32 %v2882, %v718
        %v2885 = vmul.f32 %v2882, %v719
        %v2886 = vadd.f32 %v2830, %v2883
        %v2887 = vadd.f32 %v2831, %v2884
        %v2888 = vadd.f32 %v2832, %v2885
        %s2889 = sld [smem:[#allocation2 + $0x2e]]
        %v2890 = vstv %s2889
        %v2891 = vmul.f32 %v2890, %v717
        %v2892 = vmul.f32 %v2890, %v718
        %v2893 = vmul.f32 %v2890, %v719
        %v2894 = vadd.f32 %v2850, %v2891
        %v2895 = vadd.f32 %v2851, %v2892
        %v2896 = vadd.f32 %v2852, %v2893
        %s2897 = sld [smem:[#allocation2 + $0x3e]]
        %v2898 = vstv %s2897
        %v2899 = vmul.f32 %v2898, %v717
        %v2900 = vmul.f32 %v2898, %v718
        %v2901 = vmul.f32 %v2898, %v719
        %v2902 = vadd.f32 %v2870, %v2899
        %v2903 = vadd.f32 %v2871, %v2900
        %v2904 = vadd.f32 %v2872, %v2901
        %s2905 = sld [smem:[#allocation2 + $0x4e]]
        %v2906 = vstv %s2905
        %v2907 = vmul.f32 %v2906, %v800
        %v2908 = vmul.f32 %v2906, %v801
        %v2909 = vmul.f32 %v2906, %v802
        %v2910 = vadd.f32 %v2878, %v2907
        %v2911 = vadd.f32 %v2879, %v2908
        %v2912 = vadd.f32 %v2880, %v2909
        %s2913 = sld [smem:[#allocation2 + $0x5e]]
        %v2914 = vstv %s2913
        %v2915 = vmul.f32 %v2914, %v800
        %v2916 = vmul.f32 %v2914, %v801
        %v2917 = vmul.f32 %v2914, %v802
        %v2918 = vadd.f32 %v2886, %v2915
        %v2919 = vadd.f32 %v2887, %v2916
        %v2920 = vadd.f32 %v2888, %v2917
        %s2921 = sld [smem:[#allocation2 + $0x6e]]
        %v2922 = vstv %s2921
        %v2923 = vmul.f32 %v2922, %v800
        %v2924 = vmul.f32 %v2922, %v801
        %v2925 = vmul.f32 %v2922, %v802
        %v2926 = vadd.f32 %v2894, %v2923
        %v2927 = vadd.f32 %v2895, %v2924
        %v2928 = vadd.f32 %v2896, %v2925
        %s2929 = sld [smem:[#allocation2 + $0x7e]]
        %v2930 = vstv %s2929
        %v2931 = vmul.f32 %v2930, %v800
        %v2932 = vmul.f32 %v2930, %v801
        %v2933 = vmul.f32 %v2930, %v802
        %v2934 = vadd.f32 %v2902, %v2931
        %v2935 = vadd.f32 %v2903, %v2932
        %v2936 = vadd.f32 %v2904, %v2933
        %s2937 = sld [smem:[#allocation2 + $0x8e]]
        %v2938 = vstv %s2937
        %v2939 = vmul.f32 %v2938, %v883
        %v2940 = vmul.f32 %v2938, %v884
        %v2941 = vmul.f32 %v2938, %v885
        %v2942 = vadd.f32 %v2910, %v2939
        %v2943 = vadd.f32 %v2911, %v2940
        %v2944 = vadd.f32 %v2912, %v2941
        %s2945 = sld [smem:[#allocation2 + $0x9e]]
        %v2946 = vstv %s2945
        %v2947 = vmul.f32 %v2946, %v883
        %v2948 = vmul.f32 %v2946, %v884
        %v2949 = vmul.f32 %v2946, %v885
        %v2950 = vadd.f32 %v2918, %v2947
        %v2951 = vadd.f32 %v2919, %v2948
        %v2952 = vadd.f32 %v2920, %v2949
        %s2953 = sld [smem:[#allocation2 + $0xae]]
        %v2954 = vstv %s2953
        %v2955 = vmul.f32 %v2954, %v883
        %v2956 = vmul.f32 %v2954, %v884
        %v2957 = vmul.f32 %v2954, %v885
        %v2958 = vadd.f32 %v2926, %v2955
        %v2959 = vadd.f32 %v2927, %v2956
        %v2960 = vadd.f32 %v2928, %v2957
        %s2961 = sld [smem:[#allocation2 + $0xbe]]
        %v2962 = vstv %s2961
        %v2963 = vmul.f32 %v2962, %v883
        %v2964 = vmul.f32 %v2962, %v884
        %v2965 = vmul.f32 %v2962, %v885
        %v2966 = vadd.f32 %v2934, %v2963
        %v2967 = vadd.f32 %v2935, %v2964
        %v2968 = vadd.f32 %v2936, %v2965
        %s2969 = sld [smem:[#allocation2 + $0xce]]
        %v2970 = vstv %s2969
        %v2971 = vmul.f32 %v2970, %v966
        %v2972 = vmul.f32 %v2970, %v967
        %v2973 = vmul.f32 %v2970, %v968
        %v2974 = vadd.f32 %v2942, %v2971
        %v2975 = vadd.f32 %v2943, %v2972
        %v2976 = vadd.f32 %v2944, %v2973
        %s2977 = sld [smem:[#allocation2 + $0xde]]
        %v2978 = vstv %s2977
        %v2979 = vmul.f32 %v2978, %v966
        %v2980 = vmul.f32 %v2978, %v967
        %v2981 = vmul.f32 %v2978, %v968
        %v2982 = vadd.f32 %v2950, %v2979
        %v2983 = vadd.f32 %v2951, %v2980
        %v2984 = vadd.f32 %v2952, %v2981
        %s2985 = sld [smem:[#allocation2 + $0xee]]
        %v2986 = vstv %s2985
        %v2987 = vmul.f32 %v2986, %v966
        %v2988 = vmul.f32 %v2986, %v967
        %v2989 = vmul.f32 %v2986, %v968
        %v2990 = vadd.f32 %v2958, %v2987
        %v2991 = vadd.f32 %v2959, %v2988
        %v2992 = vadd.f32 %v2960, %v2989
        %s2993 = sld [smem:[#allocation2 + $0xfe]]
        %v2994 = vstv %s2993
        %v2995 = vmul.f32 %v2994, %v966
        %v2996 = vmul.f32 %v2994, %v967
        %v2997 = vmul.f32 %v2994, %v968
        %v2998 = vadd.f32 %v2966, %v2995
        %v2999 = vadd.f32 %v2967, %v2996
        %v3000 = vadd.f32 %v2968, %v2997
        %s3001 = scalar_lea.vmem %s1, 288
        %v3002 = vld [vmem:[%s3001] sm:$0xff]
        %v3003 = vld [vmem:[%s3001 + $0x8] sm:$0xff]
        %v3004 = vld [vmem:[%s3001 + $0x10] sm:$0x1]
        %s3005 = scalar_lea.vmem %s1, 312
        %v3006 = vld [vmem:[%s3005] sm:$0xff]
        %v3007 = vld [vmem:[%s3005 + $0x8] sm:$0xff]
        %v3008 = vld [vmem:[%s3005 + $0x10] sm:$0x1]
        %s3009 = scalar_lea.vmem %s1, 336
        %v3010 = vld [vmem:[%s3009] sm:$0xff]
        %v3011 = vld [vmem:[%s3009 + $0x8] sm:$0xff]
        %v3012 = vld [vmem:[%s3009 + $0x10] sm:$0x1]
        %s3013 = scalar_lea.vmem %s1, 360
        %v3014 = vld [vmem:[%s3013] sm:$0xff]
        %v3015 = vld [vmem:[%s3013 + $0x8] sm:$0xff]
        %v3016 = vld [vmem:[%s3013 + $0x10] sm:$0x1]
        %s3017 = sld [smem:[#allocation2 + $0x5]]
        %v3018 = vstv %s3017
        %v3019 = vmul.f32 %v3018, %v254
        %v3020 = vmul.f32 %v3018, %v255
        %v3021 = vmul.f32 %v3018, %v256
        %3025 = vrot.lane.b32.xlu0 %v3019, 127
        %v3026 = vpop.permute.xlu0 %3025
        %3027 = vrot.lane.b32.xlu0 %v3020, 127
        %v3028 = vpop.permute.xlu0 %3027
        %3029 = vrot.lane.b32.xlu0 %v3021, 127
        %v3030 = vpop.permute.xlu0 %3029
        %v3034 = vadd.f32 %v3002, %v3026
        %v3035 = vadd.f32 %v3003, %v3028
        %v3036 = vadd.f32 %v3004, %v3030
        %s3037 = sld [smem:[#allocation2 + $0x15]]
        %v3038 = vstv %s3037
        %v3039 = vmul.f32 %v3038, %v254
        %v3040 = vmul.f32 %v3038, %v255
        %v3041 = vmul.f32 %v3038, %v256
        %3045 = vrot.lane.b32.xlu0 %v3039, 127
        %v3046 = vpop.permute.xlu0 %3045
        %3047 = vrot.lane.b32.xlu0 %v3040, 127
        %v3048 = vpop.permute.xlu0 %3047
        %3049 = vrot.lane.b32.xlu0 %v3041, 127
        %v3050 = vpop.permute.xlu0 %3049
        %v3054 = vadd.f32 %v3006, %v3046
        %v3055 = vadd.f32 %v3007, %v3048
        %v3056 = vadd.f32 %v3008, %v3050
        %s3057 = sld [smem:[#allocation2 + $0x25]]
        %v3058 = vstv %s3057
        %v3059 = vmul.f32 %v3058, %v254
        %v3060 = vmul.f32 %v3058, %v255
        %v3061 = vmul.f32 %v3058, %v256
        %3065 = vrot.lane.b32.xlu0 %v3059, 127
        %v3066 = vpop.permute.xlu0 %3065
        %3067 = vrot.lane.b32.xlu0 %v3060, 127
        %v3068 = vpop.permute.xlu0 %3067
        %3069 = vrot.lane.b32.xlu0 %v3061, 127
        %v3070 = vpop.permute.xlu0 %3069
        %v3074 = vadd.f32 %v3010, %v3066
        %v3075 = vadd.f32 %v3011, %v3068
        %v3076 = vadd.f32 %v3012, %v3070
        %s3077 = sld [smem:[#allocation2 + $0x35]]
        %v3078 = vstv %s3077
        %v3079 = vmul.f32 %v3078, %v254
        %v3080 = vmul.f32 %v3078, %v255
        %v3081 = vmul.f32 %v3078, %v256
        %3085 = vrot.lane.b32.xlu0 %v3079, 127
        %v3086 = vpop.permute.xlu0 %3085
        %3087 = vrot.lane.b32.xlu0 %v3080, 127
        %v3088 = vpop.permute.xlu0 %3087
        %3089 = vrot.lane.b32.xlu0 %v3081, 127
        %v3090 = vpop.permute.xlu0 %3089
        %v3094 = vadd.f32 %v3014, %v3086
        %v3095 = vadd.f32 %v3015, %v3088
        %v3096 = vadd.f32 %v3016, %v3090
        %s3097 = sld [smem:[#allocation2 + $0x45]]
        %v3098 = vstv %s3097
        %v3099 = vmul.f32 %v3098, %v338
        %v3100 = vmul.f32 %v3098, %v339
        %v3101 = vmul.f32 %v3098, %v340
        %3105 = vrot.lane.b32.xlu0 %v3099, 127
        %v3106 = vpop.permute.xlu0 %3105
        %3107 = vrot.lane.b32.xlu0 %v3100, 127
        %v3108 = vpop.permute.xlu0 %3107
        %3109 = vrot.lane.b32.xlu0 %v3101, 127
        %v3110 = vpop.permute.xlu0 %3109
        %v3114 = vadd.f32 %v3034, %v3106
        %v3115 = vadd.f32 %v3035, %v3108
        %v3116 = vadd.f32 %v3036, %v3110
        %s3117 = sld [smem:[#allocation2 + $0x55]]
        %v3118 = vstv %s3117
        %v3119 = vmul.f32 %v3118, %v338
        %v3120 = vmul.f32 %v3118, %v339
        %v3121 = vmul.f32 %v3118, %v340
        %3125 = vrot.lane.b32.xlu0 %v3119, 127
        %v3126 = vpop.permute.xlu0 %3125
        %3127 = vrot.lane.b32.xlu0 %v3120, 127
        %v3128 = vpop.permute.xlu0 %3127
        %3129 = vrot.lane.b32.xlu0 %v3121, 127
        %v3130 = vpop.permute.xlu0 %3129
        %v3134 = vadd.f32 %v3054, %v3126
        %v3135 = vadd.f32 %v3055, %v3128
        %v3136 = vadd.f32 %v3056, %v3130
        %s3137 = sld [smem:[#allocation2 + $0x65]]
        %v3138 = vstv %s3137
        %v3139 = vmul.f32 %v3138, %v338
        %v3140 = vmul.f32 %v3138, %v339
        %v3141 = vmul.f32 %v3138, %v340
        %3145 = vrot.lane.b32.xlu0 %v3139, 127
        %v3146 = vpop.permute.xlu0 %3145
        %3147 = vrot.lane.b32.xlu0 %v3140, 127
        %v3148 = vpop.permute.xlu0 %3147
        %3149 = vrot.lane.b32.xlu0 %v3141, 127
        %v3150 = vpop.permute.xlu0 %3149
        %v3154 = vadd.f32 %v3074, %v3146
        %v3155 = vadd.f32 %v3075, %v3148
        %v3156 = vadd.f32 %v3076, %v3150
        %s3157 = sld [smem:[#allocation2 + $0x75]]
        %v3158 = vstv %s3157
        %v3159 = vmul.f32 %v3158, %v338
        %v3160 = vmul.f32 %v3158, %v339
        %v3161 = vmul.f32 %v3158, %v340
        %3165 = vrot.lane.b32.xlu0 %v3159, 127
        %v3166 = vpop.permute.xlu0 %3165
        %3167 = vrot.lane.b32.xlu0 %v3160, 127
        %v3168 = vpop.permute.xlu0 %3167
        %3169 = vrot.lane.b32.xlu0 %v3161, 127
        %v3170 = vpop.permute.xlu0 %3169
        %v3174 = vadd.f32 %v3094, %v3166
        %v3175 = vadd.f32 %v3095, %v3168
        %v3176 = vadd.f32 %v3096, %v3170
        %s3177 = sld [smem:[#allocation2 + $0x85]]
        %v3178 = vstv %s3177
        %v3179 = vmul.f32 %v3178, %v422
        %v3180 = vmul.f32 %v3178, %v423
        %v3181 = vmul.f32 %v3178, %v424
        %3185 = vrot.lane.b32.xlu0 %v3179, 127
        %v3186 = vpop.permute.xlu0 %3185
        %3187 = vrot.lane.b32.xlu0 %v3180, 127
        %v3188 = vpop.permute.xlu0 %3187
        %3189 = vrot.lane.b32.xlu0 %v3181, 127
        %v3190 = vpop.permute.xlu0 %3189
        %v3194 = vadd.f32 %v3114, %v3186
        %v3195 = vadd.f32 %v3115, %v3188
        %v3196 = vadd.f32 %v3116, %v3190
        %s3197 = sld [smem:[#allocation2 + $0x95]]
        %v3198 = vstv %s3197
        %v3199 = vmul.f32 %v3198, %v422
        %v3200 = vmul.f32 %v3198, %v423
        %v3201 = vmul.f32 %v3198, %v424
        %3205 = vrot.lane.b32.xlu0 %v3199, 127
        %v3206 = vpop.permute.xlu0 %3205
        %3207 = vrot.lane.b32.xlu0 %v3200, 127
        %v3208 = vpop.permute.xlu0 %3207
        %3209 = vrot.lane.b32.xlu0 %v3201, 127
        %v3210 = vpop.permute.xlu0 %3209
        %v3214 = vadd.f32 %v3134, %v3206
        %v3215 = vadd.f32 %v3135, %v3208
        %v3216 = vadd.f32 %v3136, %v3210
        %s3217 = sld [smem:[#allocation2 + $0xa5]]
        %v3218 = vstv %s3217
        %v3219 = vmul.f32 %v3218, %v422
        %v3220 = vmul.f32 %v3218, %v423
        %v3221 = vmul.f32 %v3218, %v424
        %3225 = vrot.lane.b32.xlu0 %v3219, 127
        %v3226 = vpop.permute.xlu0 %3225
        %3227 = vrot.lane.b32.xlu0 %v3220, 127
        %v3228 = vpop.permute.xlu0 %3227
        %3229 = vrot.lane.b32.xlu0 %v3221, 127
        %v3230 = vpop.permute.xlu0 %3229
        %v3234 = vadd.f32 %v3154, %v3226
        %v3235 = vadd.f32 %v3155, %v3228
        %v3236 = vadd.f32 %v3156, %v3230
        %s3237 = sld [smem:[#allocation2 + $0xb5]]
        %v3238 = vstv %s3237
        %v3239 = vmul.f32 %v3238, %v422
        %v3240 = vmul.f32 %v3238, %v423
        %v3241 = vmul.f32 %v3238, %v424
        %3245 = vrot.lane.b32.xlu0 %v3239, 127
        %v3246 = vpop.permute.xlu0 %3245
        %3247 = vrot.lane.b32.xlu0 %v3240, 127
        %v3248 = vpop.permute.xlu0 %3247
        %3249 = vrot.lane.b32.xlu0 %v3241, 127
        %v3250 = vpop.permute.xlu0 %3249
        %v3254 = vadd.f32 %v3174, %v3246
        %v3255 = vadd.f32 %v3175, %v3248
        %v3256 = vadd.f32 %v3176, %v3250
        %s3257 = sld [smem:[#allocation2 + $0xc5]]
        %v3258 = vstv %s3257
        %v3259 = vmul.f32 %v3258, %v506
        %v3260 = vmul.f32 %v3258, %v507
        %v3261 = vmul.f32 %v3258, %v508
        %3265 = vrot.lane.b32.xlu0 %v3259, 127
        %v3266 = vpop.permute.xlu0 %3265
        %3267 = vrot.lane.b32.xlu0 %v3260, 127
        %v3268 = vpop.permute.xlu0 %3267
        %3269 = vrot.lane.b32.xlu0 %v3261, 127
        %v3270 = vpop.permute.xlu0 %3269
        %v3274 = vadd.f32 %v3194, %v3266
        %v3275 = vadd.f32 %v3195, %v3268
        %v3276 = vadd.f32 %v3196, %v3270
        %s3277 = sld [smem:[#allocation2 + $0xd5]]
        %v3278 = vstv %s3277
        %v3279 = vmul.f32 %v3278, %v506
        %v3280 = vmul.f32 %v3278, %v507
        %v3281 = vmul.f32 %v3278, %v508
        %3285 = vrot.lane.b32.xlu0 %v3279, 127
        %v3286 = vpop.permute.xlu0 %3285
        %3287 = vrot.lane.b32.xlu0 %v3280, 127
        %v3288 = vpop.permute.xlu0 %3287
        %3289 = vrot.lane.b32.xlu0 %v3281, 127
        %v3290 = vpop.permute.xlu0 %3289
        %v3294 = vadd.f32 %v3214, %v3286
        %v3295 = vadd.f32 %v3215, %v3288
        %v3296 = vadd.f32 %v3216, %v3290
        %s3297 = sld [smem:[#allocation2 + $0xe5]]
        %v3298 = vstv %s3297
        %v3299 = vmul.f32 %v3298, %v506
        %v3300 = vmul.f32 %v3298, %v507
        %v3301 = vmul.f32 %v3298, %v508
        %3305 = vrot.lane.b32.xlu0 %v3299, 127
        %v3306 = vpop.permute.xlu0 %3305
        %3307 = vrot.lane.b32.xlu0 %v3300, 127
        %v3308 = vpop.permute.xlu0 %3307
        %3309 = vrot.lane.b32.xlu0 %v3301, 127
        %v3310 = vpop.permute.xlu0 %3309
        %v3314 = vadd.f32 %v3234, %v3306
        %v3315 = vadd.f32 %v3235, %v3308
        %v3316 = vadd.f32 %v3236, %v3310
        %s3317 = sld [smem:[#allocation2 + $0xf5]]
        %v3318 = vstv %s3317
        %v3319 = vmul.f32 %v3318, %v506
        %v3320 = vmul.f32 %v3318, %v507
        %v3321 = vmul.f32 %v3318, %v508
        %3325 = vrot.lane.b32.xlu0 %v3319, 127
        %v3326 = vpop.permute.xlu0 %3325
        %3327 = vrot.lane.b32.xlu0 %v3320, 127
        %v3328 = vpop.permute.xlu0 %3327
        %3329 = vrot.lane.b32.xlu0 %v3321, 127
        %v3330 = vpop.permute.xlu0 %3329
        %v3334 = vadd.f32 %v3254, %v3326
        %v3335 = vadd.f32 %v3255, %v3328
        %v3336 = vadd.f32 %v3256, %v3330
        %s3337 = sld [smem:[#allocation2 + $0x7]]
        %v3338 = vstv %s3337
        %v3339 = vmul.f32 %v3338, %v254
        %v3340 = vmul.f32 %v3338, %v255
        %v3341 = vmul.f32 %v3338, %v256
        %v3342 = vadd.f32 %v3274, %v3339
        %v3343 = vadd.f32 %v3275, %v3340
        %v3344 = vadd.f32 %v3276, %v3341
        %s3345 = sld [smem:[#allocation2 + $0x17]]
        %v3346 = vstv %s3345
        %v3347 = vmul.f32 %v3346, %v254
        %v3348 = vmul.f32 %v3346, %v255
        %v3349 = vmul.f32 %v3346, %v256
        %v3350 = vadd.f32 %v3294, %v3347
        %v3351 = vadd.f32 %v3295, %v3348
        %v3352 = vadd.f32 %v3296, %v3349
        %s3353 = sld [smem:[#allocation2 + $0x27]]
        %v3354 = vstv %s3353
        %v3355 = vmul.f32 %v3354, %v254
        %v3356 = vmul.f32 %v3354, %v255
        %v3357 = vmul.f32 %v3354, %v256
        %v3358 = vadd.f32 %v3314, %v3355
        %v3359 = vadd.f32 %v3315, %v3356
        %v3360 = vadd.f32 %v3316, %v3357
        %s3361 = sld [smem:[#allocation2 + $0x37]]
        %v3362 = vstv %s3361
        %v3363 = vmul.f32 %v3362, %v254
        %v3364 = vmul.f32 %v3362, %v255
        %v3365 = vmul.f32 %v3362, %v256
        %v3366 = vadd.f32 %v3334, %v3363
        %v3367 = vadd.f32 %v3335, %v3364
        %v3368 = vadd.f32 %v3336, %v3365
        %s3369 = sld [smem:[#allocation2 + $0x47]]
        %v3370 = vstv %s3369
        %v3371 = vmul.f32 %v3370, %v338
        %v3372 = vmul.f32 %v3370, %v339
        %v3373 = vmul.f32 %v3370, %v340
        %v3374 = vadd.f32 %v3342, %v3371
        %v3375 = vadd.f32 %v3343, %v3372
        %v3376 = vadd.f32 %v3344, %v3373
        %s3377 = sld [smem:[#allocation2 + $0x57]]
        %v3378 = vstv %s3377
        %v3379 = vmul.f32 %v3378, %v338
        %v3380 = vmul.f32 %v3378, %v339
        %v3381 = vmul.f32 %v3378, %v340
        %v3382 = vadd.f32 %v3350, %v3379
        %v3383 = vadd.f32 %v3351, %v3380
        %v3384 = vadd.f32 %v3352, %v3381
        %s3385 = sld [smem:[#allocation2 + $0x67]]
        %v3386 = vstv %s3385
        %v3387 = vmul.f32 %v3386, %v338
        %v3388 = vmul.f32 %v3386, %v339
        %v3389 = vmul.f32 %v3386, %v340
        %v3390 = vadd.f32 %v3358, %v3387
        %v3391 = vadd.f32 %v3359, %v3388
        %v3392 = vadd.f32 %v3360, %v3389
        %s3393 = sld [smem:[#allocation2 + $0x77]]
        %v3394 = vstv %s3393
        %v3395 = vmul.f32 %v3394, %v338
        %v3396 = vmul.f32 %v3394, %v339
        %v3397 = vmul.f32 %v3394, %v340
        %v3398 = vadd.f32 %v3366, %v3395
        %v3399 = vadd.f32 %v3367, %v3396
        %v3400 = vadd.f32 %v3368, %v3397
        %s3401 = sld [smem:[#allocation2 + $0x87]]
        %v3402 = vstv %s3401
        %v3403 = vmul.f32 %v3402, %v422
        %v3404 = vmul.f32 %v3402, %v423
        %v3405 = vmul.f32 %v3402, %v424
        %v3406 = vadd.f32 %v3374, %v3403
        %v3407 = vadd.f32 %v3375, %v3404
        %v3408 = vadd.f32 %v3376, %v3405
        %s3409 = sld [smem:[#allocation2 + $0x97]]
        %v3410 = vstv %s3409
        %v3411 = vmul.f32 %v3410, %v422
        %v3412 = vmul.f32 %v3410, %v423
        %v3413 = vmul.f32 %v3410, %v424
        %v3414 = vadd.f32 %v3382, %v3411
        %v3415 = vadd.f32 %v3383, %v3412
        %v3416 = vadd.f32 %v3384, %v3413
        %s3417 = sld [smem:[#allocation2 + $0xa7]]
        %v3418 = vstv %s3417
        %v3419 = vmul.f32 %v3418, %v422
        %v3420 = vmul.f32 %v3418, %v423
        %v3421 = vmul.f32 %v3418, %v424
        %v3422 = vadd.f32 %v3390, %v3419
        %v3423 = vadd.f32 %v3391, %v3420
        %v3424 = vadd.f32 %v3392, %v3421
        %s3425 = sld [smem:[#allocation2 + $0xb7]]
        %v3426 = vstv %s3425
        %v3427 = vmul.f32 %v3426, %v422
        %v3428 = vmul.f32 %v3426, %v423
        %v3429 = vmul.f32 %v3426, %v424
        %v3430 = vadd.f32 %v3398, %v3427
        %v3431 = vadd.f32 %v3399, %v3428
        %v3432 = vadd.f32 %v3400, %v3429
        %s3433 = sld [smem:[#allocation2 + $0xc7]]
        %v3434 = vstv %s3433
        %v3435 = vmul.f32 %v3434, %v506
        %v3436 = vmul.f32 %v3434, %v507
        %v3437 = vmul.f32 %v3434, %v508
        %v3438 = vadd.f32 %v3406, %v3435
        %v3439 = vadd.f32 %v3407, %v3436
        %v3440 = vadd.f32 %v3408, %v3437
        %s3441 = sld [smem:[#allocation2 + $0xd7]]
        %v3442 = vstv %s3441
        %v3443 = vmul.f32 %v3442, %v506
        %v3444 = vmul.f32 %v3442, %v507
        %v3445 = vmul.f32 %v3442, %v508
        %v3446 = vadd.f32 %v3414, %v3443
        %v3447 = vadd.f32 %v3415, %v3444
        %v3448 = vadd.f32 %v3416, %v3445
        %s3449 = sld [smem:[#allocation2 + $0xe7]]
        %v3450 = vstv %s3449
        %v3451 = vmul.f32 %v3450, %v506
        %v3452 = vmul.f32 %v3450, %v507
        %v3453 = vmul.f32 %v3450, %v508
        %v3454 = vadd.f32 %v3422, %v3451
        %v3455 = vadd.f32 %v3423, %v3452
        %v3456 = vadd.f32 %v3424, %v3453
        %s3457 = sld [smem:[#allocation2 + $0xf7]]
        %v3458 = vstv %s3457
        %v3459 = vmul.f32 %v3458, %v506
        %v3460 = vmul.f32 %v3458, %v507
        %v3461 = vmul.f32 %v3458, %v508
        %v3462 = vadd.f32 %v3430, %v3459
        %v3463 = vadd.f32 %v3431, %v3460
        %v3464 = vadd.f32 %v3432, %v3461
        %s3465 = sld [smem:[#allocation2 + $0xd]]
        %v3466 = vstv %s3465
        %v3467 = vmul.f32 %v3466, %v717
        %v3468 = vmul.f32 %v3466, %v718
        %v3469 = vmul.f32 %v3466, %v719
        %3473 = vrot.lane.b32.xlu0 %v3467, 127
        %v3474 = vpop.permute.xlu0 %3473
        %3475 = vrot.lane.b32.xlu0 %v3468, 127
        %v3476 = vpop.permute.xlu0 %3475
        %3477 = vrot.lane.b32.xlu0 %v3469, 127
        %v3478 = vpop.permute.xlu0 %3477
        %v3482 = vadd.f32 %v3438, %v3474
        %v3483 = vadd.f32 %v3439, %v3476
        %v3484 = vadd.f32 %v3440, %v3478
        %s3485 = sld [smem:[#allocation2 + $0x1d]]
        %v3486 = vstv %s3485
        %v3487 = vmul.f32 %v3486, %v717
        %v3488 = vmul.f32 %v3486, %v718
        %v3489 = vmul.f32 %v3486, %v719
        %3493 = vrot.lane.b32.xlu0 %v3487, 127
        %v3494 = vpop.permute.xlu0 %3493
        %3495 = vrot.lane.b32.xlu0 %v3488, 127
        %v3496 = vpop.permute.xlu0 %3495
        %3497 = vrot.lane.b32.xlu0 %v3489, 127
        %v3498 = vpop.permute.xlu0 %3497
        %v3502 = vadd.f32 %v3446, %v3494
        %v3503 = vadd.f32 %v3447, %v3496
        %v3504 = vadd.f32 %v3448, %v3498
        %s3505 = sld [smem:[#allocation2 + $0x2d]]
        %v3506 = vstv %s3505
        %v3507 = vmul.f32 %v3506, %v717
        %v3508 = vmul.f32 %v3506, %v718
        %v3509 = vmul.f32 %v3506, %v719
        %3513 = vrot.lane.b32.xlu0 %v3507, 127
        %v3514 = vpop.permute.xlu0 %3513
        %3515 = vrot.lane.b32.xlu0 %v3508, 127
        %v3516 = vpop.permute.xlu0 %3515
        %3517 = vrot.lane.b32.xlu0 %v3509, 127
        %v3518 = vpop.permute.xlu0 %3517
        %v3522 = vadd.f32 %v3454, %v3514
        %v3523 = vadd.f32 %v3455, %v3516
        %v3524 = vadd.f32 %v3456, %v3518
        %s3525 = sld [smem:[#allocation2 + $0x3d]]
        %v3526 = vstv %s3525
        %v3527 = vmul.f32 %v3526, %v717
        %v3528 = vmul.f32 %v3526, %v718
        %v3529 = vmul.f32 %v3526, %v719
        %3533 = vrot.lane.b32.xlu0 %v3527, 127
        %v3534 = vpop.permute.xlu0 %3533
        %3535 = vrot.lane.b32.xlu0 %v3528, 127
        %v3536 = vpop.permute.xlu0 %3535
        %3537 = vrot.lane.b32.xlu0 %v3529, 127
        %v3538 = vpop.permute.xlu0 %3537
        %v3542 = vadd.f32 %v3462, %v3534
        %v3543 = vadd.f32 %v3463, %v3536
        %v3544 = vadd.f32 %v3464, %v3538
        %s3545 = sld [smem:[#allocation2 + $0x4d]]
        %v3546 = vstv %s3545
        %v3547 = vmul.f32 %v3546, %v800
        %v3548 = vmul.f32 %v3546, %v801
        %v3549 = vmul.f32 %v3546, %v802
        %3553 = vrot.lane.b32.xlu0 %v3547, 127
        %v3554 = vpop.permute.xlu0 %3553
        %3555 = vrot.lane.b32.xlu0 %v3548, 127
        %v3556 = vpop.permute.xlu0 %3555
        %3557 = vrot.lane.b32.xlu0 %v3549, 127
        %v3558 = vpop.permute.xlu0 %3557
        %v3562 = vadd.f32 %v3482, %v3554
        %v3563 = vadd.f32 %v3483, %v3556
        %v3564 = vadd.f32 %v3484, %v3558
        %s3565 = sld [smem:[#allocation2 + $0x5d]]
        %v3566 = vstv %s3565
        %v3567 = vmul.f32 %v3566, %v800
        %v3568 = vmul.f32 %v3566, %v801
        %v3569 = vmul.f32 %v3566, %v802
        %3573 = vrot.lane.b32.xlu0 %v3567, 127
        %v3574 = vpop.permute.xlu0 %3573
        %3575 = vrot.lane.b32.xlu0 %v3568, 127
        %v3576 = vpop.permute.xlu0 %3575
        %3577 = vrot.lane.b32.xlu0 %v3569, 127
        %v3578 = vpop.permute.xlu0 %3577
        %v3582 = vadd.f32 %v3502, %v3574
        %v3583 = vadd.f32 %v3503, %v3576
        %v3584 = vadd.f32 %v3504, %v3578
        %s3585 = sld [smem:[#allocation2 + $0x6d]]
        %v3586 = vstv %s3585
        %v3587 = vmul.f32 %v3586, %v800
        %v3588 = vmul.f32 %v3586, %v801
        %v3589 = vmul.f32 %v3586, %v802
        %3593 = vrot.lane.b32.xlu0 %v3587, 127
        %v3594 = vpop.permute.xlu0 %3593
        %3595 = vrot.lane.b32.xlu0 %v3588, 127
        %v3596 = vpop.permute.xlu0 %3595
        %3597 = vrot.lane.b32.xlu0 %v3589, 127
        %v3598 = vpop.permute.xlu0 %3597
        %v3602 = vadd.f32 %v3522, %v3594
        %v3603 = vadd.f32 %v3523, %v3596
        %v3604 = vadd.f32 %v3524, %v3598
        %s3605 = sld [smem:[#allocation2 + $0x7d]]
        %v3606 = vstv %s3605
        %v3607 = vmul.f32 %v3606, %v800
        %v3608 = vmul.f32 %v3606, %v801
        %v3609 = vmul.f32 %v3606, %v802
        %3613 = vrot.lane.b32.xlu0 %v3607, 127
        %v3614 = vpop.permute.xlu0 %3613
        %3615 = vrot.lane.b32.xlu0 %v3608, 127
        %v3616 = vpop.permute.xlu0 %3615
        %3617 = vrot.lane.b32.xlu0 %v3609, 127
        %v3618 = vpop.permute.xlu0 %3617
        %v3622 = vadd.f32 %v3542, %v3614
        %v3623 = vadd.f32 %v3543, %v3616
        %v3624 = vadd.f32 %v3544, %v3618
        %s3625 = sld [smem:[#allocation2 + $0x8d]]
        %v3626 = vstv %s3625
        %v3627 = vmul.f32 %v3626, %v883
        %v3628 = vmul.f32 %v3626, %v884
        %v3629 = vmul.f32 %v3626, %v885
        %3633 = vrot.lane.b32.xlu0 %v3627, 127
        %v3634 = vpop.permute.xlu0 %3633
        %3635 = vrot.lane.b32.xlu0 %v3628, 127
        %v3636 = vpop.permute.xlu0 %3635
        %3637 = vrot.lane.b32.xlu0 %v3629, 127
        %v3638 = vpop.permute.xlu0 %3637
        %v3642 = vadd.f32 %v3562, %v3634
        %v3643 = vadd.f32 %v3563, %v3636
        %v3644 = vadd.f32 %v3564, %v3638
        %s3645 = sld [smem:[#allocation2 + $0x9d]]
        %v3646 = vstv %s3645
        %v3647 = vmul.f32 %v3646, %v883
        %v3648 = vmul.f32 %v3646, %v884
        %v3649 = vmul.f32 %v3646, %v885
        %3653 = vrot.lane.b32.xlu0 %v3647, 127
        %v3654 = vpop.permute.xlu0 %3653
        %3655 = vrot.lane.b32.xlu0 %v3648, 127
        %v3656 = vpop.permute.xlu0 %3655
        %3657 = vrot.lane.b32.xlu0 %v3649, 127
        %v3658 = vpop.permute.xlu0 %3657
        %v3662 = vadd.f32 %v3582, %v3654
        %v3663 = vadd.f32 %v3583, %v3656
        %v3664 = vadd.f32 %v3584, %v3658
        %s3665 = sld [smem:[#allocation2 + $0xad]]
        %v3666 = vstv %s3665
        %v3667 = vmul.f32 %v3666, %v883
        %v3668 = vmul.f32 %v3666, %v884
        %v3669 = vmul.f32 %v3666, %v885
        %3673 = vrot.lane.b32.xlu0 %v3667, 127
        %v3674 = vpop.permute.xlu0 %3673
        %3675 = vrot.lane.b32.xlu0 %v3668, 127
        %v3676 = vpop.permute.xlu0 %3675
        %3677 = vrot.lane.b32.xlu0 %v3669, 127
        %v3678 = vpop.permute.xlu0 %3677
        %v3682 = vadd.f32 %v3602, %v3674
        %v3683 = vadd.f32 %v3603, %v3676
        %v3684 = vadd.f32 %v3604, %v3678
        %s3685 = sld [smem:[#allocation2 + $0xbd]]
        %v3686 = vstv %s3685
        %v3687 = vmul.f32 %v3686, %v883
        %v3688 = vmul.f32 %v3686, %v884
        %v3689 = vmul.f32 %v3686, %v885
        %3693 = vrot.lane.b32.xlu0 %v3687, 127
        %v3694 = vpop.permute.xlu0 %3693
        %3695 = vrot.lane.b32.xlu0 %v3688, 127
        %v3696 = vpop.permute.xlu0 %3695
        %3697 = vrot.lane.b32.xlu0 %v3689, 127
        %v3698 = vpop.permute.xlu0 %3697
        %v3702 = vadd.f32 %v3622, %v3694
        %v3703 = vadd.f32 %v3623, %v3696
        %v3704 = vadd.f32 %v3624, %v3698
        %s3705 = sld [smem:[#allocation2 + $0xcd]]
        %v3706 = vstv %s3705
        %v3707 = vmul.f32 %v3706, %v966
        %v3708 = vmul.f32 %v3706, %v967
        %v3709 = vmul.f32 %v3706, %v968
        %3713 = vrot.lane.b32.xlu0 %v3707, 127
        %v3714 = vpop.permute.xlu0 %3713
        %3715 = vrot.lane.b32.xlu0 %v3708, 127
        %v3716 = vpop.permute.xlu0 %3715
        %3717 = vrot.lane.b32.xlu0 %v3709, 127
        %v3718 = vpop.permute.xlu0 %3717
        %v3722 = vadd.f32 %v3642, %v3714
        %v3723 = vadd.f32 %v3643, %v3716
        %v3724 = vadd.f32 %v3644, %v3718
        %s3725 = sld [smem:[#allocation2 + $0xdd]]
        %v3726 = vstv %s3725
        %v3727 = vmul.f32 %v3726, %v966
        %v3728 = vmul.f32 %v3726, %v967
        %v3729 = vmul.f32 %v3726, %v968
        %3733 = vrot.lane.b32.xlu0 %v3727, 127
        %v3734 = vpop.permute.xlu0 %3733
        %3735 = vrot.lane.b32.xlu0 %v3728, 127
        %v3736 = vpop.permute.xlu0 %3735
        %3737 = vrot.lane.b32.xlu0 %v3729, 127
        %v3738 = vpop.permute.xlu0 %3737
        %v3742 = vadd.f32 %v3662, %v3734
        %v3743 = vadd.f32 %v3663, %v3736
        %v3744 = vadd.f32 %v3664, %v3738
        %s3745 = sld [smem:[#allocation2 + $0xed]]
        %v3746 = vstv %s3745
        %v3747 = vmul.f32 %v3746, %v966
        %v3748 = vmul.f32 %v3746, %v967
        %v3749 = vmul.f32 %v3746, %v968
        %3753 = vrot.lane.b32.xlu0 %v3747, 127
        %v3754 = vpop.permute.xlu0 %3753
        %3755 = vrot.lane.b32.xlu0 %v3748, 127
        %v3756 = vpop.permute.xlu0 %3755
        %3757 = vrot.lane.b32.xlu0 %v3749, 127
        %v3758 = vpop.permute.xlu0 %3757
        %v3762 = vadd.f32 %v3682, %v3754
        %v3763 = vadd.f32 %v3683, %v3756
        %v3764 = vadd.f32 %v3684, %v3758
        %s3765 = sld [smem:[#allocation2 + $0xfd]]
        %v3766 = vstv %s3765
        %v3767 = vmul.f32 %v3766, %v966
        %v3768 = vmul.f32 %v3766, %v967
        %v3769 = vmul.f32 %v3766, %v968
        %3773 = vrot.lane.b32.xlu0 %v3767, 127
        %v3774 = vpop.permute.xlu0 %3773
        %3775 = vrot.lane.b32.xlu0 %v3768, 127
        %v3776 = vpop.permute.xlu0 %3775
        %3777 = vrot.lane.b32.xlu0 %v3769, 127
        %v3778 = vpop.permute.xlu0 %3777
        %v3782 = vadd.f32 %v3702, %v3774
        %v3783 = vadd.f32 %v3703, %v3776
        %v3784 = vadd.f32 %v3704, %v3778
        %s3785 = sld [smem:[#allocation2 + $0xf]]
        %v3786 = vstv %s3785
        %v3787 = vmul.f32 %v3786, %v717
        %v3788 = vmul.f32 %v3786, %v718
        %v3789 = vmul.f32 %v3786, %v719
        %v3790 = vadd.f32 %v3722, %v3787
        %v3791 = vadd.f32 %v3723, %v3788
        %v3792 = vadd.f32 %v3724, %v3789
        %s3793 = sld [smem:[#allocation2 + $0x1f]]
        %v3794 = vstv %s3793
        %v3795 = vmul.f32 %v3794, %v717
        %v3796 = vmul.f32 %v3794, %v718
        %v3797 = vmul.f32 %v3794, %v719
        %v3798 = vadd.f32 %v3742, %v3795
        %v3799 = vadd.f32 %v3743, %v3796
        %v3800 = vadd.f32 %v3744, %v3797
        %s3801 = sld [smem:[#allocation2 + $0x2f]]
        %v3802 = vstv %s3801
        %v3803 = vmul.f32 %v3802, %v717
        %v3804 = vmul.f32 %v3802, %v718
        %v3805 = vmul.f32 %v3802, %v719
        %v3806 = vadd.f32 %v3762, %v3803
        %v3807 = vadd.f32 %v3763, %v3804
        %v3808 = vadd.f32 %v3764, %v3805
        %s3809 = sld [smem:[#allocation2 + $0x3f]]
        %v3810 = vstv %s3809
        %v3811 = vmul.f32 %v3810, %v717
        %v3812 = vmul.f32 %v3810, %v718
        %v3813 = vmul.f32 %v3810, %v719
        %v3814 = vadd.f32 %v3782, %v3811
        %v3815 = vadd.f32 %v3783, %v3812
        %v3816 = vadd.f32 %v3784, %v3813
        %s3817 = sld [smem:[#allocation2 + $0x4f]]
        %v3818 = vstv %s3817
        %v3819 = vmul.f32 %v3818, %v800
        %v3820 = vmul.f32 %v3818, %v801
        %v3821 = vmul.f32 %v3818, %v802
        %v3822 = vadd.f32 %v3790, %v3819
        %v3823 = vadd.f32 %v3791, %v3820
        %v3824 = vadd.f32 %v3792, %v3821
        %s3825 = sld [smem:[#allocation2 + $0x5f]]
        %v3826 = vstv %s3825
        %v3827 = vmul.f32 %v3826, %v800
        %v3828 = vmul.f32 %v3826, %v801
        %v3829 = vmul.f32 %v3826, %v802
        %v3830 = vadd.f32 %v3798, %v3827
        %v3831 = vadd.f32 %v3799, %v3828
        %v3832 = vadd.f32 %v3800, %v3829
        %s3833 = sld [smem:[#allocation2 + $0x6f]]
        %v3834 = vstv %s3833
        %v3835 = vmul.f32 %v3834, %v800
        %v3836 = vmul.f32 %v3834, %v801
        %v3837 = vmul.f32 %v3834, %v802
        %v3838 = vadd.f32 %v3806, %v3835
        %v3839 = vadd.f32 %v3807, %v3836
        %v3840 = vadd.f32 %v3808, %v3837
        %s3841 = sld [smem:[#allocation2 + $0x7f]]
        %v3842 = vstv %s3841
        %v3843 = vmul.f32 %v3842, %v800
        %v3844 = vmul.f32 %v3842, %v801
        %v3845 = vmul.f32 %v3842, %v802
        %v3846 = vadd.f32 %v3814, %v3843
        %v3847 = vadd.f32 %v3815, %v3844
        %v3848 = vadd.f32 %v3816, %v3845
        %s3849 = sld [smem:[#allocation2 + $0x8f]]
        %v3850 = vstv %s3849
        %v3851 = vmul.f32 %v3850, %v883
        %v3852 = vmul.f32 %v3850, %v884
        %v3853 = vmul.f32 %v3850, %v885
        %v3854 = vadd.f32 %v3822, %v3851
        %v3855 = vadd.f32 %v3823, %v3852
        %v3856 = vadd.f32 %v3824, %v3853
        %s3857 = sld [smem:[#allocation2 + $0x9f]]
        %v3858 = vstv %s3857
        %v3859 = vmul.f32 %v3858, %v883
        %v3860 = vmul.f32 %v3858, %v884
        %v3861 = vmul.f32 %v3858, %v885
        %v3862 = vadd.f32 %v3830, %v3859
        %v3863 = vadd.f32 %v3831, %v3860
        %v3864 = vadd.f32 %v3832, %v3861
        %s3865 = sld [smem:[#allocation2 + $0xaf]]
        %v3866 = vstv %s3865
        %v3867 = vmul.f32 %v3866, %v883
        %v3868 = vmul.f32 %v3866, %v884
        %v3869 = vmul.f32 %v3866, %v885
        %v3870 = vadd.f32 %v3838, %v3867
        %v3871 = vadd.f32 %v3839, %v3868
        %v3872 = vadd.f32 %v3840, %v3869
        %s3873 = sld [smem:[#allocation2 + $0xbf]]
        %v3874 = vstv %s3873
        %v3875 = vmul.f32 %v3874, %v883
        %v3876 = vmul.f32 %v3874, %v884
        %v3877 = vmul.f32 %v3874, %v885
        %v3878 = vadd.f32 %v3846, %v3875
        %v3879 = vadd.f32 %v3847, %v3876
        %v3880 = vadd.f32 %v3848, %v3877
        %s3881 = sld [smem:[#allocation2 + $0xcf]]
        %v3882 = vstv %s3881
        %v3883 = vmul.f32 %v3882, %v966
        %v3884 = vmul.f32 %v3882, %v967
        %v3885 = vmul.f32 %v3882, %v968
        %v3886 = vadd.f32 %v3854, %v3883
        %v3887 = vadd.f32 %v3855, %v3884
        %v3888 = vadd.f32 %v3856, %v3885
        %s3889 = sld [smem:[#allocation2 + $0xdf]]
        %v3890 = vstv %s3889
        %v3891 = vmul.f32 %v3890, %v966
        %v3892 = vmul.f32 %v3890, %v967
        %v3893 = vmul.f32 %v3890, %v968
        %v3894 = vadd.f32 %v3862, %v3891
        %v3895 = vadd.f32 %v3863, %v3892
        %v3896 = vadd.f32 %v3864, %v3893
        %s3897 = sld [smem:[#allocation2 + $0xef]]
        %v3898 = vstv %s3897
        %v3899 = vmul.f32 %v3898, %v966
        %v3900 = vmul.f32 %v3898, %v967
        %v3901 = vmul.f32 %v3898, %v968
        %v3902 = vadd.f32 %v3870, %v3899
        %v3903 = vadd.f32 %v3871, %v3900
        %v3904 = vadd.f32 %v3872, %v3901
        %s3905 = sld [smem:[#allocation2 + $0xff]]
        %v3906 = vstv %s3905
        %v3907 = vmul.f32 %v3906, %v966
        %v3908 = vmul.f32 %v3906, %v967
        %v3909 = vmul.f32 %v3906, %v968
        %v3910 = vadd.f32 %v3878, %v3907
        %v3911 = vadd.f32 %v3879, %v3908
        %v3912 = vadd.f32 %v3880, %v3909
        %v3913 = vld [vmem:[%s3] sm:$0xff]
        %v3914 = vld [vmem:[%s3 + $0x8] sm:$0xff]
        %v3915 = vld [vmem:[%s3 + $0x10] sm:$0x1]
        %s3916 = scalar_lea.vmem %s3, 24
        %v3917 = vld [vmem:[%s3916] sm:$0xff]
        %v3918 = vld [vmem:[%s3916 + $0x8] sm:$0xff]
        %v3919 = vld [vmem:[%s3916 + $0x10] sm:$0x1]
        %vm3920 = vcmask 138240
        %v3922 = vsel %vm3920, %v2062, 0
        %v3925 = vsel %vm3920, %v2063, 0
        %v3928 = vsel %vm3920, %v2064, 0
        %vm3930 = vcmask 1040384
        %v3932 = vsel %vm3930, %v3919, 0
        %3934 = vmatprep.subr.mxu0 0.0
        %3935 = vmatpush1.msra.mxu0 %v3917
        %3936 = vmatprep.subr.mxu0 0.0
        %3937 = vmatpush1.msra.mxu0 %v3918
        %3938 = vmatprep.subr.mxu0 0.0
        %3939 = vmatpush1.msra.mxu0 %v3932
        %3940 = vmatprep.subr.mxu0 0.0
        %3941 = vmatpush1.msra.mxu0 0.0
        %3942 = vmatprep.subr.mxu0 0.0
        %3943 = vmatpush1.msra.mxu0 0.0
        %3944 = vmatprep.subr.mxu0 0.0
        %3945 = vmatpush1.msra.mxu0 0.0
        %3946 = vmatprep.subr.mxu0 0.0
        %3947 = vmatpush1.msra.mxu0 0.0
        %3948 = vmatprep.subr.mxu0 0.0
        %3949 = vmatpush1.msra.mxu0 0.0
        %3950 = vmatprep.subr.mxu0 0.0
        %3951 = vmatpush1.msra.mxu0 0.0
        %3952 = vmatprep.subr.mxu0 0.0
        %3953 = vmatpush1.msra.mxu0 0.0
        %3954 = vmatprep.subr.mxu0 0.0
        %3955 = vmatpush1.msra.mxu0 0.0
        %3956 = vmatprep.subr.mxu0 0.0
        %3957 = vmatpush1.msra.mxu0 0.0
        %3958 = vmatprep.subr.mxu0 0.0
        %3959 = vmatpush1.msra.mxu0 0.0
        %3960 = vmatprep.subr.mxu0 0.0
        %3961 = vmatpush1.msra.mxu0 0.0
        %3962 = vmatprep.subr.mxu0 0.0
        %3963 = vmatpush1.msra.mxu0 0.0
        %3964 = vmatprep.subr.mxu0 0.0
        %3965 = vmatpush1.msra.mxu0 0.0
        %3966 = vmatprep.subr.mxu0 0.0
        %3967 = vmatpush1.msra.mxu0 0.0
        %3968 = vmatprep.subr.mxu0 0.0
        %3969 = vmatpush1.msra.mxu0 0.0
        %3970 = vmatprep.subr.mxu0 0.0
        %3971 = vmatpush1.msra.mxu0 0.0
        %3972 = vmatprep.subr.mxu0 0.0
        %3973 = vmatpush1.msra.mxu0 0.0
        %3974 = vmatprep.subr.mxu0 0.0
        %3975 = vmatpush1.msra.mxu0 0.0
        %3976 = vmatprep.subr.mxu0 0.0
        %3977 = vmatpush1.msra.mxu0 0.0
        %3978 = vmatprep.subr.mxu0 0.0
        %3979 = vmatpush1.msra.mxu0 0.0
        %3980 = vmatprep.subr.mxu0 0.0
        %3981 = vmatpush1.msra.mxu0 0.0
        %3982 = vmatprep.subr.mxu0 0.0
        %3983 = vmatpush1.msra.mxu0 0.0
        %3984 = vmatprep.subr.mxu0 0.0
        %3985 = vmatpush1.msra.mxu0 0.0
        %3986 = vmatprep.subr.mxu0 0.0
        %3987 = vmatpush1.msra.mxu0 0.0
        %3988 = vmatprep.subr.mxu0 0.0
        %3989 = vmatpush1.msra.mxu0 0.0
        %3990 = vmatprep.subr.mxu0 0.0
        %3991 = vmatpush1.msra.mxu0 0.0
        %3992 = vmatprep.subr.mxu0 0.0
        %3993 = vmatpush1.msra.mxu0 0.0
        %3994 = vmatprep.subr.mxu0 0.0
        %3995 = vmatpush1.msra.mxu0 0.0
        %3996 = vmatprep.subr.mxu0 0.0
        %3997 = vmatpush1.msra.mxu0 0.0
        %3998 = vmatprep.mubr.f32.mxu0 0.0
        %3999 = vmatmul.mubr.f32.gmra.mrb[0].mxu0 %v3922
        %v4000 = vpop.f32.mrb[0].mxu0
        %v4001 = vadd.f32 0.0, %v4000
        %v4002 = vpop.f32.mrb[0].mxu0
        %4003 = vmatprep.mubr.f32.mxu0 0.0
        %4004 = vmatmul.mubr.f32.gmra.mrb[0].mxu0 %v3925
        %v4005 = vpop.f32.mrb[0].mxu0
        %v4006 = vadd.f32 0.0, %v4005
        %v4007 = vpop.f32.mrb[0].mxu0
        %4008 = vmatprep.mubr.f32.mxu0 0.0
        %4009 = vmatmul.mubr.f32.gmra.mrb[0].mxu0 %v3928
        %v4010 = vpop.f32.mrb[0].mxu0
        %v4011 = vadd.f32 0.0, %v4010
        %v4012 = vpop.f32.mrb[0].mxu0
        %4013 = vdwg.mxu0
        %v4015 = vsel %vm3920, %v1150, 0
        %v4018 = vsel %vm3920, %v1151, 0
        %v4021 = vsel %vm3920, %v1152, 0
        %v4024 = vsel %vm3930, %v3915, 0
        %4026 = vmatprep.subr.mxu0 0.0
        %4027 = vmatpush1.msra.mxu0 %v3913
        %4028 = vmatprep.subr.mxu0 0.0
        %4029 = vmatpush1.msra.mxu0 %v3914
        %4030 = vmatprep.subr.mxu0 0.0
        %4031 = vmatpush1.msra.mxu0 %v4024
        %4032 = vmatprep.subr.mxu0 0.0
        %4033 = vmatpush1.msra.mxu0 0.0
        %4034 = vmatprep.subr.mxu0 0.0
        %4035 = vmatpush1.msra.mxu0 0.0
        %4036 = vmatprep.subr.mxu0 0.0
        %4037 = vmatpush1.msra.mxu0 0.0
        %4038 = vmatprep.subr.mxu0 0.0
        %4039 = vmatpush1.msra.mxu0 0.0
        %4040 = vmatprep.subr.mxu0 0.0
        %4041 = vmatpush1.msra.mxu0 0.0
        %4042 = vmatprep.subr.mxu0 0.0
        %4043 = vmatpush1.msra.mxu0 0.0
        %4044 = vmatprep.subr.mxu0 0.0
        %4045 = vmatpush1.msra.mxu0 0.0
        %4046 = vmatprep.subr.mxu0 0.0
        %4047 = vmatpush1.msra.mxu0 0.0
        %4048 = vmatprep.subr.mxu0 0.0
        %4049 = vmatpush1.msra.mxu0 0.0
        %4050 = vmatprep.subr.mxu0 0.0
        %4051 = vmatpush1.msra.mxu0 0.0
        %4052 = vmatprep.subr.mxu0 0.0
        %4053 = vmatpush1.msra.mxu0 0.0
        %4054 = vmatprep.subr.mxu0 0.0
        %4055 = vmatpush1.msra.mxu0 0.0
        %4056 = vmatprep.subr.mxu0 0.0
        %4057 = vmatpush1.msra.mxu0 0.0
        %4058 = vmatprep.subr.mxu0 0.0
        %4059 = vmatpush1.msra.mxu0 0.0
        %4060 = vmatprep.subr.mxu0 0.0
        %4061 = vmatpush1.msra.mxu0 0.0
        %4062 = vmatprep.subr.mxu0 0.0
        %4063 = vmatpush1.msra.mxu0 0.0
        %4064 = vmatprep.subr.mxu0 0.0
        %4065 = vmatpush1.msra.mxu0 0.0
        %4066 = vmatprep.subr.mxu0 0.0
        %4067 = vmatpush1.msra.mxu0 0.0
        %4068 = vmatprep.subr.mxu0 0.0
        %4069 = vmatpush1.msra.mxu0 0.0
        %4070 = vmatprep.subr.mxu0 0.0
        %4071 = vmatpush1.msra.mxu0 0.0
        %4072 = vmatprep.subr.mxu0 0.0
        %4073 = vmatpush1.msra.mxu0 0.0
        %4074 = vmatprep.subr.mxu0 0.0
        %4075 = vmatpush1.msra.mxu0 0.0
        %4076 = vmatprep.subr.mxu0 0.0
        %4077 = vmatpush1.msra.mxu0 0.0
        %4078 = vmatprep.subr.mxu0 0.0
        %4079 = vmatpush1.msra.mxu0 0.0
        %4080 = vmatprep.subr.mxu0 0.0
        %4081 = vmatpush1.msra.mxu0 0.0
        %4082 = vmatprep.subr.mxu0 0.0
        %4083 = vmatpush1.msra.mxu0 0.0
        %4084 = vmatprep.subr.mxu0 0.0
        %4085 = vmatpush1.msra.mxu0 0.0
        %4086 = vmatprep.subr.mxu0 0.0
        %4087 = vmatpush1.msra.mxu0 0.0
        %4088 = vmatprep.subr.mxu0 0.0
        %4089 = vmatpush1.msra.mxu0 0.0
        %4090 = vmatprep.mubr.f32.mxu0 0.0
        %4091 = vmatmul.mubr.f32.gmra.mrb[0].mxu0 %v4015
        %v4092 = vpop.f32.mrb[0].mxu0
        %v4093 = vadd.f32 %v4001, %v4092
        %v4094 = vpop.f32.mrb[0].mxu0
        %4095 = vmatprep.mubr.f32.mxu0 0.0
        %4096 = vmatmul.mubr.f32.gmra.mrb[0].mxu0 %v4018
        %v4097 = vpop.f32.mrb[0].mxu0
        %v4098 = vadd.f32 %v4006, %v4097
        %v4099 = vpop.f32.mrb[0].mxu0
        %4100 = vmatprep.mubr.f32.mxu0 0.0
        %4101 = vmatmul.mubr.f32.gmra.mrb[0].mxu0 %v4021
        %v4102 = vpop.f32.mrb[0].mxu0
        %v4103 = vadd.f32 %v4011, %v4102
        %v4104 = vpop.f32.mrb[0].mxu0
        %4105 = vdwg.mxu0
        %v4106 = vld [vmem:[%s2] sm:$0xff]
        %v4107 = vld [vmem:[%s2 + $0x8] sm:$0xff]
        %v4108 = vld [vmem:[%s2 + $0x10] sm:$0xff]
        %v4109 = vld [vmem:[%s2 + $0x18] sm:$0xff]
        %v4110 = vld [vmem:[%s2 + $0x20] sm:$0x3]
        %v4112 = vsel %vm3920, %v3886, 0
        %v4115 = vsel %vm3920, %v3887, 0
        %v4118 = vsel %vm3920, %v3888, 0
        %4120 = vmatprep.subr.mxu0 0.0
        %4121 = vmatpush1.msra.mxu0 %v3917
        %4122 = vmatprep.subr.mxu0 0.0
        %4123 = vmatpush1.msra.mxu0 %v3918
        %4124 = vmatprep.subr.mxu0 0.0
        %4125 = vmatpush1.msra.mxu0 %v3932
        %4126 = vmatprep.subr.mxu0 0.0
        %4127 = vmatpush1.msra.mxu0 0.0
        %4128 = vmatprep.subr.mxu0 0.0
        %4129 = vmatpush1.msra.mxu0 0.0
        %4130 = vmatprep.subr.mxu0 0.0
        %4131 = vmatpush1.msra.mxu0 0.0
        %4132 = vmatprep.subr.mxu0 0.0
        %4133 = vmatpush1.msra.mxu0 0.0
        %4134 = vmatprep.subr.mxu0 0.0
        %4135 = vmatpush1.msra.mxu0 0.0
        %4136 = vmatprep.subr.mxu0 0.0
        %4137 = vmatpush1.msra.mxu0 0.0
        %4138 = vmatprep.subr.mxu0 0.0
        %4139 = vmatpush1.msra.mxu0 0.0
        %4140 = vmatprep.subr.mxu0 0.0
        %4141 = vmatpush1.msra.mxu0 0.0
        %4142 = vmatprep.subr.mxu0 0.0
        %4143 = vmatpush1.msra.mxu0 0.0
        %4144 = vmatprep.subr.mxu0 0.0
        %4145 = vmatpush1.msra.mxu0 0.0
        %4146 = vmatprep.subr.mxu0 0.0
        %4147 = vmatpush1.msra.mxu0 0.0
        %4148 = vmatprep.subr.mxu0 0.0
        %4149 = vmatpush1.msra.mxu0 0.0
        %4150 = vmatprep.subr.mxu0 0.0
        %4151 = vmatpush1.msra.mxu0 0.0
        %4152 = vmatprep.subr.mxu0 0.0
        %4153 = vmatpush1.msra.mxu0 0.0
        %4154 = vmatprep.subr.mxu0 0.0
        %4155 = vmatpush1.msra.mxu0 0.0
        %4156 = vmatprep.subr.mxu0 0.0
        %4157 = vmatpush1.msra.mxu0 0.0
        %4158 = vmatprep.subr.mxu0 0.0
        %4159 = vmatpush1.msra.mxu0 0.0
        %4160 = vmatprep.subr.mxu0 0.0
        %4161 = vmatpush1.msra.mxu0 0.0
        %4162 = vmatprep.subr.mxu0 0.0
        %4163 = vmatpush1.msra.mxu0 0.0
        %4164 = vmatprep.subr.mxu0 0.0
        %4165 = vmatpush1.msra.mxu0 0.0
        %4166 = vmatprep.subr.mxu0 0.0
        %4167 = vmatpush1.msra.mxu0 0.0
        %4168 = vmatprep.subr.mxu0 0.0
        %4169 = vmatpush1.msra.mxu0 0.0
        %4170 = vmatprep.subr.mxu0 0.0
        %4171 = vmatpush1.msra.mxu0 0.0
        %4172 = vmatprep.subr.mxu0 0.0
        %4173 = vmatpush1.msra.mxu0 0.0
        %4174 = vmatprep.subr.mxu0 0.0
        %4175 = vmatpush1.msra.mxu0 0.0
        %4176 = vmatprep.subr.mxu0 0.0
        %4177 = vmatpush1.msra.mxu0 0.0
        %4178 = vmatprep.subr.mxu0 0.0
        %4179 = vmatpush1.msra.mxu0 0.0
        %4180 = vmatprep.subr.mxu0 0.0
        %4181 = vmatpush1.msra.mxu0 0.0
        %4182 = vmatprep.subr.mxu0 0.0
        %4183 = vmatpush1.msra.mxu0 0.0
        %4184 = vmatprep.mubr.f32.mxu0 0.0
        %4185 = vmatmul.mubr.f32.gmra.mrb[0].mxu0 %v4112
        %v4186 = vpop.f32.mrb[0].mxu0
        %v4187 = vadd.f32 0.0, %v4186
        %v4188 = vpop.f32.mrb[0].mxu0
        %4189 = vmatprep.mubr.f32.mxu0 0.0
        %4190 = vmatmul.mubr.f32.gmra.mrb[0].mxu0 %v4115
        %v4191 = vpop.f32.mrb[0].mxu0
        %v4192 = vadd.f32 0.0, %v4191
        %v4193 = vpop.f32.mrb[0].mxu0
        %4194 = vmatprep.mubr.f32.mxu0 0.0
        %4195 = vmatmul.mubr.f32.gmra.mrb[0].mxu0 %v4118
        %v4196 = vpop.f32.mrb[0].mxu0
        %v4197 = vadd.f32 0.0, %v4196
        %v4198 = vpop.f32.mrb[0].mxu0
        %4199 = vdwg.mxu0
        %v4201 = vsel %vm3920, %v2974, 0
        %v4204 = vsel %vm3920, %v2975, 0
        %v4207 = vsel %vm3920, %v2976, 0
        %4209 = vmatprep.subr.mxu0 0.0
        %4210 = vmatpush1.msra.mxu0 %v3913
        %4211 = vmatprep.subr.mxu0 0.0
        %4212 = vmatpush1.msra.mxu0 %v3914
        %4213 = vmatprep.subr.mxu0 0.0
        %4214 = vmatpush1.msra.mxu0 %v4024
        %4215 = vmatprep.subr.mxu0 0.0
        %4216 = vmatpush1.msra.mxu0 0.0
        %4217 = vmatprep.subr.mxu0 0.0
        %4218 = vmatpush1.msra.mxu0 0.0
        %4219 = vmatprep.subr.mxu0 0.0
        %4220 = vmatpush1.msra.mxu0 0.0
        %4221 = vmatprep.subr.mxu0 0.0
        %4222 = vmatpush1.msra.mxu0 0.0
        %4223 = vmatprep.subr.mxu0 0.0
        %4224 = vmatpush1.msra.mxu0 0.0
        %4225 = vmatprep.subr.mxu0 0.0
        %4226 = vmatpush1.msra.mxu0 0.0
        %4227 = vmatprep.subr.mxu0 0.0
        %4228 = vmatpush1.msra.mxu0 0.0
        %4229 = vmatprep.subr.mxu0 0.0
        %4230 = vmatpush1.msra.mxu0 0.0
        %4231 = vmatprep.subr.mxu0 0.0
        %4232 = vmatpush1.msra.mxu0 0.0
        %4233 = vmatprep.subr.mxu0 0.0
        %4234 = vmatpush1.msra.mxu0 0.0
        %4235 = vmatprep.subr.mxu0 0.0
        %4236 = vmatpush1.msra.mxu0 0.0
        %4237 = vmatprep.subr.mxu0 0.0
        %4238 = vmatpush1.msra.mxu0 0.0
        %4239 = vmatprep.subr.mxu0 0.0
        %4240 = vmatpush1.msra.mxu0 0.0
        %4241 = vmatprep.subr.mxu0 0.0
        %4242 = vmatpush1.msra.mxu0 0.0
        %4243 = vmatprep.subr.mxu0 0.0
        %4244 = vmatpush1.msra.mxu0 0.0
        %4245 = vmatprep.subr.mxu0 0.0
        %4246 = vmatpush1.msra.mxu0 0.0
        %4247 = vmatprep.subr.mxu0 0.0
        %4248 = vmatpush1.msra.mxu0 0.0
        %4249 = vmatprep.subr.mxu0 0.0
        %4250 = vmatpush1.msra.mxu0 0.0
        %4251 = vmatprep.subr.mxu0 0.0
        %4252 = vmatpush1.msra.mxu0 0.0
        %4253 = vmatprep.subr.mxu0 0.0
        %4254 = vmatpush1.msra.mxu0 0.0
        %4255 = vmatprep.subr.mxu0 0.0
        %4256 = vmatpush1.msra.mxu0 0.0
        %4257 = vmatprep.subr.mxu0 0.0
        %4258 = vmatpush1.msra.mxu0 0.0
        %4259 = vmatprep.subr.mxu0 0.0
        %4260 = vmatpush1.msra.mxu0 0.0
        %4261 = vmatprep.subr.mxu0 0.0
        %4262 = vmatpush1.msra.mxu0 0.0
        %4263 = vmatprep.subr.mxu0 0.0
        %4264 = vmatpush1.msra.mxu0 0.0
        %4265 = vmatprep.subr.mxu0 0.0
        %4266 = vmatpush1.msra.mxu0 0.0
        %4267 = vmatprep.subr.mxu0 0.0
        %4268 = vmatpush1.msra.mxu0 0.0
        %4269 = vmatprep.subr.mxu0 0.0
        %4270 = vmatpush1.msra.mxu0 0.0
        %4271 = vmatprep.subr.mxu0 0.0
        %4272 = vmatpush1.msra.mxu0 0.0
        %4273 = vmatprep.mubr.f32.mxu0 0.0
        %4274 = vmatmul.mubr.f32.gmra.mrb[0].mxu0 %v4201
        %v4275 = vpop.f32.mrb[0].mxu0
        %v4276 = vadd.f32 %v4187, %v4275
        %v4277 = vpop.f32.mrb[0].mxu0
        %4278 = vmatprep.mubr.f32.mxu0 0.0
        %4279 = vmatmul.mubr.f32.gmra.mrb[0].mxu0 %v4204
        %v4280 = vpop.f32.mrb[0].mxu0
        %v4281 = vadd.f32 %v4192, %v4280
        %v4282 = vpop.f32.mrb[0].mxu0
        %4283 = vmatprep.mubr.f32.mxu0 0.0
        %4284 = vmatmul.mubr.f32.gmra.mrb[0].mxu0 %v4207
        %v4285 = vpop.f32.mrb[0].mxu0
        %v4286 = vadd.f32 %v4197, %v4285
        %v4287 = vpop.f32.mrb[0].mxu0
        %4288 = vdwg.mxu0
        %s4289 = scalar_lea.vmem %s2, 40
        %v4290 = vld [vmem:[%s4289] sm:$0xff]
        %v4291 = vld [vmem:[%s4289 + $0x8] sm:$0xff]
        %v4292 = vld [vmem:[%s4289 + $0x10] sm:$0xff]
        %v4293 = vld [vmem:[%s4289 + $0x18] sm:$0xff]
        %v4294 = vld [vmem:[%s4289 + $0x20] sm:$0x3]
        %v4296 = vsel %vm3920, %v4290, 0
        %v4299 = vsel %vm3920, %v4291, 0
        %v4302 = vsel %vm3920, %v4292, 0
        %v4305 = vsel %vm3920, %v4293, 0
        %v4308 = vsel %vm3920, %v4294, 0
        %v4311 = vsel %vm3930, %v4286, 0
        %4313 = vmatprep.subr.mxu0 0.0
        %4314 = vmatpush1.msra.mxu0 %v4276
        %4315 = vmatprep.subr.mxu0 0.0
        %4316 = vmatpush1.msra.mxu0 %v4281
        %4317 = vmatprep.subr.mxu0 0.0
        %4318 = vmatpush1.msra.mxu0 %v4311
        %4319 = vmatprep.subr.mxu0 0.0
        %4320 = vmatpush1.msra.mxu0 0.0
        %4321 = vmatprep.subr.mxu0 0.0
        %4322 = vmatpush1.msra.mxu0 0.0
        %4323 = vmatprep.subr.mxu0 0.0
        %4324 = vmatpush1.msra.mxu0 0.0
        %4325 = vmatprep.subr.mxu0 0.0
        %4326 = vmatpush1.msra.mxu0 0.0
        %4327 = vmatprep.subr.mxu0 0.0
        %4328 = vmatpush1.msra.mxu0 0.0
        %4329 = vmatprep.subr.mxu0 0.0
        %4330 = vmatpush1.msra.mxu0 0.0
        %4331 = vmatprep.subr.mxu0 0.0
        %4332 = vmatpush1.msra.mxu0 0.0
        %4333 = vmatprep.subr.mxu0 0.0
        %4334 = vmatpush1.msra.mxu0 0.0
        %4335 = vmatprep.subr.mxu0 0.0
        %4336 = vmatpush1.msra.mxu0 0.0
        %4337 = vmatprep.subr.mxu0 0.0
        %4338 = vmatpush1.msra.mxu0 0.0
        %4339 = vmatprep.subr.mxu0 0.0
        %4340 = vmatpush1.msra.mxu0 0.0
        %4341 = vmatprep.subr.mxu0 0.0
        %4342 = vmatpush1.msra.mxu0 0.0
        %4343 = vmatprep.subr.mxu0 0.0
        %4344 = vmatpush1.msra.mxu0 0.0
        %4345 = vmatprep.subr.mxu0 0.0
        %4346 = vmatpush1.msra.mxu0 0.0
        %4347 = vmatprep.subr.mxu0 0.0
        %4348 = vmatpush1.msra.mxu0 0.0
        %4349 = vmatprep.subr.mxu0 0.0
        %4350 = vmatpush1.msra.mxu0 0.0
        %4351 = vmatprep.subr.mxu0 0.0
        %4352 = vmatpush1.msra.mxu0 0.0
        %4353 = vmatprep.subr.mxu0 0.0
        %4354 = vmatpush1.msra.mxu0 0.0
        %4355 = vmatprep.subr.mxu0 0.0
        %4356 = vmatpush1.msra.mxu0 0.0
        %4357 = vmatprep.subr.mxu0 0.0
        %4358 = vmatpush1.msra.mxu0 0.0
        %4359 = vmatprep.subr.mxu0 0.0
        %4360 = vmatpush1.msra.mxu0 0.0
        %4361 = vmatprep.subr.mxu0 0.0
        %4362 = vmatpush1.msra.mxu0 0.0
        %4363 = vmatprep.subr.mxu0 0.0
        %4364 = vmatpush1.msra.mxu0 0.0
        %4365 = vmatprep.subr.mxu0 0.0
        %4366 = vmatpush1.msra.mxu0 0.0
        %4367 = vmatprep.subr.mxu0 0.0
        %4368 = vmatpush1.msra.mxu0 0.0
        %4369 = vmatprep.subr.mxu0 0.0
        %4370 = vmatpush1.msra.mxu0 0.0
        %4371 = vmatprep.subr.mxu0 0.0
        %4372 = vmatpush1.msra.mxu0 0.0
        %4373 = vmatprep.subr.mxu0 0.0
        %4374 = vmatpush1.msra.mxu0 0.0
        %4375 = vmatprep.subr.mxu0 0.0
        %4376 = vmatpush1.msra.mxu0 0.0
        %4377 = vmatprep.mubr.f32.mxu0 0.0
        %4378 = vmatmul.mubr.f32.gmra.mrb[0].mxu0 %v4296
        %v4379 = vpop.f32.mrb[0].mxu0
        %v4380 = vadd.f32 0.0, %v4379
        %v4381 = vpop.f32.mrb[0].mxu0
        %4382 = vmatprep.mubr.f32.mxu0 0.0
        %4383 = vmatmul.mubr.f32.gmra.mrb[0].mxu0 %v4299
        %v4384 = vpop.f32.mrb[0].mxu0
        %v4385 = vadd.f32 0.0, %v4384
        %v4386 = vpop.f32.mrb[0].mxu0
        %4387 = vmatprep.mubr.f32.mxu0 0.0
        %4388 = vmatmul.mubr.f32.gmra.mrb[0].mxu0 %v4302
        %v4389 = vpop.f32.mrb[0].mxu0
        %v4390 = vadd.f32 0.0, %v4389
        %v4391 = vpop.f32.mrb[0].mxu0
        %4392 = vmatprep.mubr.f32.mxu0 0.0
        %4393 = vmatmul.mubr.f32.gmra.mrb[0].mxu0 %v4305
        %v4394 = vpop.f32.mrb[0].mxu0
        %v4395 = vadd.f32 0.0, %v4394
        %v4396 = vpop.f32.mrb[0].mxu0
        %4397 = vmatprep.mubr.f32.mxu0 0.0
        %4398 = vmatmul.mubr.f32.gmra.mrb[0].mxu0 %v4308
        %v4399 = vpop.f32.mrb[0].mxu0
        %v4400 = vadd.f32 0.0, %v4399
        %v4401 = vpop.f32.mrb[0].mxu0
        %4402 = vdwg.mxu0
        %v4404 = vsel %vm3920, %v4106, 0
        %v4407 = vsel %vm3920, %v4107, 0
        %v4410 = vsel %vm3920, %v4108, 0
        %v4413 = vsel %vm3920, %v4109, 0
        %v4416 = vsel %vm3920, %v4110, 0
        %v4419 = vsel %vm3930, %v4103, 0
        %4421 = vmatprep.subr.mxu0 0.0
        %4422 = vmatpush1.msra.mxu0 %v4093
        %4423 = vmatprep.subr.mxu0 0.0
        %4424 = vmatpush1.msra.mxu0 %v4098
        %4425 = vmatprep.subr.mxu0 0.0
        %4426 = vmatpush1.msra.mxu0 %v4419
        %4427 = vmatprep.subr.mxu0 0.0
        %4428 = vmatpush1.msra.mxu0 0.0
        %4429 = vmatprep.subr.mxu0 0.0
        %4430 = vmatpush1.msra.mxu0 0.0
        %4431 = vmatprep.subr.mxu0 0.0
        %4432 = vmatpush1.msra.mxu0 0.0
        %4433 = vmatprep.subr.mxu0 0.0
        %4434 = vmatpush1.msra.mxu0 0.0
        %4435 = vmatprep.subr.mxu0 0.0
        %4436 = vmatpush1.msra.mxu0 0.0
        %4437 = vmatprep.subr.mxu0 0.0
        %4438 = vmatpush1.msra.mxu0 0.0
        %4439 = vmatprep.subr.mxu0 0.0
        %4440 = vmatpush1.msra.mxu0 0.0
        %4441 = vmatprep.subr.mxu0 0.0
        %4442 = vmatpush1.msra.mxu0 0.0
        %4443 = vmatprep.subr.mxu0 0.0
        %4444 = vmatpush1.msra.mxu0 0.0
        %4445 = vmatprep.subr.mxu0 0.0
        %4446 = vmatpush1.msra.mxu0 0.0
        %4447 = vmatprep.subr.mxu0 0.0
        %4448 = vmatpush1.msra.mxu0 0.0
        %4449 = vmatprep.subr.mxu0 0.0
        %4450 = vmatpush1.msra.mxu0 0.0
        %4451 = vmatprep.subr.mxu0 0.0
        %4452 = vmatpush1.msra.mxu0 0.0
        %4453 = vmatprep.subr.mxu0 0.0
        %4454 = vmatpush1.msra.mxu0 0.0
        %4455 = vmatprep.subr.mxu0 0.0
        %4456 = vmatpush1.msra.mxu0 0.0
        %4457 = vmatprep.subr.mxu0 0.0
        %4458 = vmatpush1.msra.mxu0 0.0
        %4459 = vmatprep.subr.mxu0 0.0
        %4460 = vmatpush1.msra.mxu0 0.0
        %4461 = vmatprep.subr.mxu0 0.0
        %4462 = vmatpush1.msra.mxu0 0.0
        %4463 = vmatprep.subr.mxu0 0.0
        %4464 = vmatpush1.msra.mxu0 0.0
        %4465 = vmatprep.subr.mxu0 0.0
        %4466 = vmatpush1.msra.mxu0 0.0
        %4467 = vmatprep.subr.mxu0 0.0
        %4468 = vmatpush1.msra.mxu0 0.0
        %4469 = vmatprep.subr.mxu0 0.0
        %4470 = vmatpush1.msra.mxu0 0.0
        %4471 = vmatprep.subr.mxu0 0.0
        %4472 = vmatpush1.msra.mxu0 0.0
        %4473 = vmatprep.subr.mxu0 0.0
        %4474 = vmatpush1.msra.mxu0 0.0
        %4475 = vmatprep.subr.mxu0 0.0
        %4476 = vmatpush1.msra.mxu0 0.0
        %4477 = vmatprep.subr.mxu0 0.0
        %4478 = vmatpush1.msra.mxu0 0.0
        %4479 = vmatprep.subr.mxu0 0.0
        %4480 = vmatpush1.msra.mxu0 0.0
        %4481 = vmatprep.subr.mxu0 0.0
        %4482 = vmatpush1.msra.mxu0 0.0
        %4483 = vmatprep.subr.mxu0 0.0
        %4484 = vmatpush1.msra.mxu0 0.0
        %4485 = vmatprep.mubr.f32.mxu0 0.0
        %4486 = vmatmul.mubr.f32.gmra.mrb[0].mxu0 %v4404
        %v4487 = vpop.f32.mrb[0].mxu0
        %v4488 = vadd.f32 %v4380, %v4487
        %v4489 = vpop.f32.mrb[0].mxu0
        %4490 = vmatprep.mubr.f32.mxu0 0.0
        %4491 = vmatmul.mubr.f32.gmra.mrb[0].mxu0 %v4407
        %v4492 = vpop.f32.mrb[0].mxu0
        %v4493 = vadd.f32 %v4385, %v4492
        %v4494 = vpop.f32.mrb[0].mxu0
        %4495 = vmatprep.mubr.f32.mxu0 0.0
        %4496 = vmatmul.mubr.f32.gmra.mrb[0].mxu0 %v4410
        %v4497 = vpop.f32.mrb[0].mxu0
        %v4498 = vadd.f32 %v4390, %v4497
        %v4499 = vpop.f32.mrb[0].mxu0
        %4500 = vmatprep.mubr.f32.mxu0 0.0
        %4501 = vmatmul.mubr.f32.gmra.mrb[0].mxu0 %v4413
        %v4502 = vpop.f32.mrb[0].mxu0
        %v4503 = vadd.f32 %v4395, %v4502
        %v4504 = vpop.f32.mrb[0].mxu0
        %4505 = vmatprep.mubr.f32.mxu0 0.0
        %4506 = vmatmul.mubr.f32.gmra.mrb[0].mxu0 %v4416
        %v4507 = vpop.f32.mrb[0].mxu0
        %v4508 = vadd.f32 %v4400, %v4507
        %v4509 = vpop.f32.mrb[0].mxu0
        %4510 = vdwg.mxu0
        %vm4511 = vcmask 277504
        %4512 = vst.msk [vmem:[%s238] sm:$0xff] %vm4511, %v4488
        %4513 = vst.msk [vmem:[%s238 + $0x8] sm:$0xff] %vm4511, %v4493
        %4514 = vst.msk [vmem:[%s238 + $0x10] sm:$0xff] %vm4511, %v4498
        %4515 = vst.msk [vmem:[%s238 + $0x18] sm:$0xff] %vm4511, %v4503
        %vm4516 = vcmask 271360
        %4517 = vst.msk [vmem:[%s238 + $0x20] sm:$0x3] %vm4516, %v4508
        %v4518 = vld [vmem:[%s3] sm:$0xff]
        %v4519 = vld [vmem:[%s3 + $0x8] sm:$0xff]
        %v4520 = vld [vmem:[%s3 + $0x10] sm:$0x1]
        %v4521 = vld [vmem:[%s3916] sm:$0xff]
        %v4522 = vld [vmem:[%s3916 + $0x8] sm:$0xff]
        %v4523 = vld [vmem:[%s3916 + $0x10] sm:$0x1]
        %v4525 = vsel %vm3920, %v2070, 0
        %v4528 = vsel %vm3920, %v2071, 0
        %v4531 = vsel %vm3920, %v2072, 0
        %v4534 = vsel %vm3930, %v4523, 0
        %4536 = vmatprep.subr.mxu0 0.0
        %4537 = vmatpush1.msra.mxu0 %v4521
        %4538 = vmatprep.subr.mxu0 0.0
        %4539 = vmatpush1.msra.mxu0 %v4522
        %4540 = vmatprep.subr.mxu0 0.0
        %4541 = vmatpush1.msra.mxu0 %v4534
        %4542 = vmatprep.subr.mxu0 0.0
        %4543 = vmatpush1.msra.mxu0 0.0
        %4544 = vmatprep.subr.mxu0 0.0
        %4545 = vmatpush1.msra.mxu0 0.0
        %4546 = vmatprep.subr.mxu0 0.0
        %4547 = vmatpush1.msra.mxu0 0.0
        %4548 = vmatprep.subr.mxu0 0.0
        %4549 = vmatpush1.msra.mxu0 0.0
        %4550 = vmatprep.subr.mxu0 0.0
        %4551 = vmatpush1.msra.mxu0 0.0
        %4552 = vmatprep.subr.mxu0 0.0
        %4553 = vmatpush1.msra.mxu0 0.0
        %4554 = vmatprep.subr.mxu0 0.0
        %4555 = vmatpush1.msra.mxu0 0.0
        %4556 = vmatprep.subr.mxu0 0.0
        %4557 = vmatpush1.msra.mxu0 0.0
        %4558 = vmatprep.subr.mxu0 0.0
        %4559 = vmatpush1.msra.mxu0 0.0
        %4560 = vmatprep.subr.mxu0 0.0
        %4561 = vmatpush1.msra.mxu0 0.0
        %4562 = vmatprep.subr.mxu0 0.0
        %4563 = vmatpush1.msra.mxu0 0.0
        %4564 = vmatprep.subr.mxu0 0.0
        %4565 = vmatpush1.msra.mxu0 0.0
        %4566 = vmatprep.subr.mxu0 0.0
        %4567 = vmatpush1.msra.mxu0 0.0
        %4568 = vmatprep.subr.mxu0 0.0
        %4569 = vmatpush1.msra.mxu0 0.0
        %4570 = vmatprep.subr.mxu0 0.0
        %4571 = vmatpush1.msra.mxu0 0.0
        %4572 = vmatprep.subr.mxu0 0.0
        %4573 = vmatpush1.msra.mxu0 0.0
        %4574 = vmatprep.subr.mxu0 0.0
        %4575 = vmatpush1.msra.mxu0 0.0
        %4576 = vmatprep.subr.mxu0 0.0
        %4577 = vmatpush1.msra.mxu0 0.0
        %4578 = vmatprep.subr.mxu0 0.0
        %4579 = vmatpush1.msra.mxu0 0.0
        %4580 = vmatprep.subr.mxu0 0.0
        %4581 = vmatpush1.msra.mxu0 0.0
        %4582 = vmatprep.subr.mxu0 0.0
        %4583 = vmatpush1.msra.mxu0 0.0
        %4584 = vmatprep.subr.mxu0 0.0
        %4585 = vmatpush1.msra.mxu0 0.0
        %4586 = vmatprep.subr.mxu0 0.0
        %4587 = vmatpush1.msra.mxu0 0.0
        %4588 = vmatprep.subr.mxu0 0.0
        %4589 = vmatpush1.msra.mxu0 0.0
        %4590 = vmatprep.subr.mxu0 0.0
        %4591 = vmatpush1.msra.mxu0 0.0
        %4592 = vmatprep.subr.mxu0 0.0
        %4593 = vmatpush1.msra.mxu0 0.0
        %4594 = vmatprep.subr.mxu0 0.0
        %4595 = vmatpush1.msra.mxu0 0.0
        %4596 = vmatprep.subr.mxu0 0.0
        %4597 = vmatpush1.msra.mxu0 0.0
        %4598 = vmatprep.subr.mxu0 0.0
        %4599 = vmatpush1.msra.mxu0 0.0
        %4600 = vmatprep.mubr.f32.mxu0 0.0
        %4601 = vmatmul.mubr.f32.gmra.mrb[0].mxu0 %v4525
        %v4602 = vpop.f32.mrb[0].mxu0
        %v4603 = vadd.f32 0.0, %v4602
        %v4604 = vpop.f32.mrb[0].mxu0
        %4605 = vmatprep.mubr.f32.mxu0 0.0
        %4606 = vmatmul.mubr.f32.gmra.mrb[0].mxu0 %v4528
        %v4607 = vpop.f32.mrb[0].mxu0
        %v4608 = vadd.f32 0.0, %v4607
        %v4609 = vpop.f32.mrb[0].mxu0
        %4610 = vmatprep.mubr.f32.mxu0 0.0
        %4611 = vmatmul.mubr.f32.gmra.mrb[0].mxu0 %v4531
        %v4612 = vpop.f32.mrb[0].mxu0
        %v4613 = vadd.f32 0.0, %v4612
        %v4614 = vpop.f32.mrb[0].mxu0
        %4615 = vdwg.mxu0
        %v4617 = vsel %vm3920, %v1158, 0
        %v4620 = vsel %vm3920, %v1159, 0
        %v4623 = vsel %vm3920, %v1160, 0
        %v4626 = vsel %vm3930, %v4520, 0
        %4628 = vmatprep.subr.mxu0 0.0
        %4629 = vmatpush1.msra.mxu0 %v4518
        %4630 = vmatprep.subr.mxu0 0.0
        %4631 = vmatpush1.msra.mxu0 %v4519
        %4632 = vmatprep.subr.mxu0 0.0
        %4633 = vmatpush1.msra.mxu0 %v4626
        %4634 = vmatprep.subr.mxu0 0.0
        %4635 = vmatpush1.msra.mxu0 0.0
        %4636 = vmatprep.subr.mxu0 0.0
        %4637 = vmatpush1.msra.mxu0 0.0
        %4638 = vmatprep.subr.mxu0 0.0
        %4639 = vmatpush1.msra.mxu0 0.0
        %4640 = vmatprep.subr.mxu0 0.0
        %4641 = vmatpush1.msra.mxu0 0.0
        %4642 = vmatprep.subr.mxu0 0.0
        %4643 = vmatpush1.msra.mxu0 0.0
        %4644 = vmatprep.subr.mxu0 0.0
        %4645 = vmatpush1.msra.mxu0 0.0
        %4646 = vmatprep.subr.mxu0 0.0
        %4647 = vmatpush1.msra.mxu0 0.0
        %4648 = vmatprep.subr.mxu0 0.0
        %4649 = vmatpush1.msra.mxu0 0.0
        %4650 = vmatprep.subr.mxu0 0.0
        %4651 = vmatpush1.msra.mxu0 0.0
        %4652 = vmatprep.subr.mxu0 0.0
        %4653 = vmatpush1.msra.mxu0 0.0
        %4654 = vmatprep.subr.mxu0 0.0
        %4655 = vmatpush1.msra.mxu0 0.0
        %4656 = vmatprep.subr.mxu0 0.0
        %4657 = vmatpush1.msra.mxu0 0.0
        %4658 = vmatprep.subr.mxu0 0.0
        %4659 = vmatpush1.msra.mxu0 0.0
        %4660 = vmatprep.subr.mxu0 0.0
        %4661 = vmatpush1.msra.mxu0 0.0
        %4662 = vmatprep.subr.mxu0 0.0
        %4663 = vmatpush1.msra.mxu0 0.0
        %4664 = vmatprep.subr.mxu0 0.0
        %4665 = vmatpush1.msra.mxu0 0.0
        %4666 = vmatprep.subr.mxu0 0.0
        %4667 = vmatpush1.msra.mxu0 0.0
        %4668 = vmatprep.subr.mxu0 0.0
        %4669 = vmatpush1.msra.mxu0 0.0
        %4670 = vmatprep.subr.mxu0 0.0
        %4671 = vmatpush1.msra.mxu0 0.0
        %4672 = vmatprep.subr.mxu0 0.0
        %4673 = vmatpush1.msra.mxu0 0.0
        %4674 = vmatprep.subr.mxu0 0.0
        %4675 = vmatpush1.msra.mxu0 0.0
        %4676 = vmatprep.subr.mxu0 0.0
        %4677 = vmatpush1.msra.mxu0 0.0
        %4678 = vmatprep.subr.mxu0 0.0
        %4679 = vmatpush1.msra.mxu0 0.0
        %4680 = vmatprep.subr.mxu0 0.0
        %4681 = vmatpush1.msra.mxu0 0.0
        %4682 = vmatprep.subr.mxu0 0.0
        %4683 = vmatpush1.msra.mxu0 0.0
        %4684 = vmatprep.subr.mxu0 0.0
        %4685 = vmatpush1.msra.mxu0 0.0
        %4686 = vmatprep.subr.mxu0 0.0
        %4687 = vmatpush1.msra.mxu0 0.0
        %4688 = vmatprep.subr.mxu0 0.0
        %4689 = vmatpush1.msra.mxu0 0.0
        %4690 = vmatprep.subr.mxu0 0.0
        %4691 = vmatpush1.msra.mxu0 0.0
        %4692 = vmatprep.mubr.f32.mxu0 0.0
        %4693 = vmatmul.mubr.f32.gmra.mrb[0].mxu0 %v4617
        %v4694 = vpop.f32.mrb[0].mxu0
        %v4695 = vadd.f32 %v4603, %v4694
        %v4696 = vpop.f32.mrb[0].mxu0
        %4697 = vmatprep.mubr.f32.mxu0 0.0
        %4698 = vmatmul.mubr.f32.gmra.mrb[0].mxu0 %v4620
        %v4699 = vpop.f32.mrb[0].mxu0
        %v4700 = vadd.f32 %v4608, %v4699
        %v4701 = vpop.f32.mrb[0].mxu0
        %4702 = vmatprep.mubr.f32.mxu0 0.0
        %4703 = vmatmul.mubr.f32.gmra.mrb[0].mxu0 %v4623
        %v4704 = vpop.f32.mrb[0].mxu0
        %v4705 = vadd.f32 %v4613, %v4704
        %v4706 = vpop.f32.mrb[0].mxu0
        %4707 = vdwg.mxu0
        %v4708 = vld [vmem:[%s2] sm:$0xff]
        %v4709 = vld [vmem:[%s2 + $0x8] sm:$0xff]
        %v4710 = vld [vmem:[%s2 + $0x10] sm:$0xff]
        %v4711 = vld [vmem:[%s2 + $0x18] sm:$0xff]
        %v4712 = vld [vmem:[%s2 + $0x20] sm:$0x3]
        %v4714 = vsel %vm3920, %v3894, 0
        %v4717 = vsel %vm3920, %v3895, 0
        %v4720 = vsel %vm3920, %v3896, 0
        %4722 = vmatprep.subr.mxu0 0.0
        %4723 = vmatpush1.msra.mxu0 %v4521
        %4724 = vmatprep.subr.mxu0 0.0
        %4725 = vmatpush1.msra.mxu0 %v4522
        %4726 = vmatprep.subr.mxu0 0.0
        %4727 = vmatpush1.msra.mxu0 %v4534
        %4728 = vmatprep.subr.mxu0 0.0
        %4729 = vmatpush1.msra.mxu0 0.0
        %4730 = vmatprep.subr.mxu0 0.0
        %4731 = vmatpush1.msra.mxu0 0.0
        %4732 = vmatprep.subr.mxu0 0.0
        %4733 = vmatpush1.msra.mxu0 0.0
        %4734 = vmatprep.subr.mxu0 0.0
        %4735 = vmatpush1.msra.mxu0 0.0
        %4736 = vmatprep.subr.mxu0 0.0
        %4737 = vmatpush1.msra.mxu0 0.0
        %4738 = vmatprep.subr.mxu0 0.0
        %4739 = vmatpush1.msra.mxu0 0.0
        %4740 = vmatprep.subr.mxu0 0.0
        %4741 = vmatpush1.msra.mxu0 0.0
        %4742 = vmatprep.subr.mxu0 0.0
        %4743 = vmatpush1.msra.mxu0 0.0
        %4744 = vmatprep.subr.mxu0 0.0
        %4745 = vmatpush1.msra.mxu0 0.0
        %4746 = vmatprep.subr.mxu0 0.0
        %4747 = vmatpush1.msra.mxu0 0.0
        %4748 = vmatprep.subr.mxu0 0.0
        %4749 = vmatpush1.msra.mxu0 0.0
        %4750 = vmatprep.subr.mxu0 0.0
        %4751 = vmatpush1.msra.mxu0 0.0
        %4752 = vmatprep.subr.mxu0 0.0
        %4753 = vmatpush1.msra.mxu0 0.0
        %4754 = vmatprep.subr.mxu0 0.0
        %4755 = vmatpush1.msra.mxu0 0.0
        %4756 = vmatprep.subr.mxu0 0.0
        %4757 = vmatpush1.msra.mxu0 0.0
        %4758 = vmatprep.subr.mxu0 0.0
        %4759 = vmatpush1.msra.mxu0 0.0
        %4760 = vmatprep.subr.mxu0 0.0
        %4761 = vmatpush1.msra.mxu0 0.0
        %4762 = vmatprep.subr.mxu0 0.0
        %4763 = vmatpush1.msra.mxu0 0.0
        %4764 = vmatprep.subr.mxu0 0.0
        %4765 = vmatpush1.msra.mxu0 0.0
        %4766 = vmatprep.subr.mxu0 0.0
        %4767 = vmatpush1.msra.mxu0 0.0
        %4768 = vmatprep.subr.mxu0 0.0
        %4769 = vmatpush1.msra.mxu0 0.0
        %4770 = vmatprep.subr.mxu0 0.0
        %4771 = vmatpush1.msra.mxu0 0.0
        %4772 = vmatprep.subr.mxu0 0.0
        %4773 = vmatpush1.msra.mxu0 0.0
        %4774 = vmatprep.subr.mxu0 0.0
        %4775 = vmatpush1.msra.mxu0 0.0
        %4776 = vmatprep.subr.mxu0 0.0
        %4777 = vmatpush1.msra.mxu0 0.0
        %4778 = vmatprep.subr.mxu0 0.0
        %4779 = vmatpush1.msra.mxu0 0.0
        %4780 = vmatprep.subr.mxu0 0.0
        %4781 = vmatpush1.msra.mxu0 0.0
        %4782 = vmatprep.subr.mxu0 0.0
        %4783 = vmatpush1.msra.mxu0 0.0
        %4784 = vmatprep.subr.mxu0 0.0
        %4785 = vmatpush1.msra.mxu0 0.0
        %4786 = vmatprep.mubr.f32.mxu0 0.0
        %4787 = vmatmul.mubr.f32.gmra.mrb[0].mxu0 %v4714
        %v4788 = vpop.f32.mrb[0].mxu0
        %v4789 = vadd.f32 0.0, %v4788
        %v4790 = vpop.f32.mrb[0].mxu0
        %4791 = vmatprep.mubr.f32.mxu0 0.0
        %4792 = vmatmul.mubr.f32.gmra.mrb[0].mxu0 %v4717
        %v4793 = vpop.f32.mrb[0].mxu0
        %v4794 = vadd.f32 0.0, %v4793
        %v4795 = vpop.f32.mrb[0].mxu0
        %4796 = vmatprep.mubr.f32.mxu0 0.0
        %4797 = vmatmul.mubr.f32.gmra.mrb[0].mxu0 %v4720
        %v4798 = vpop.f32.mrb[0].mxu0
        %v4799 = vadd.f32 0.0, %v4798
        %v4800 = vpop.f32.mrb[0].mxu0
        %4801 = vdwg.mxu0
        %v4803 = vsel %vm3920, %v2982, 0
        %v4806 = vsel %vm3920, %v2983, 0
        %v4809 = vsel %vm3920, %v2984, 0
        %4811 = vmatprep.subr.mxu0 0.0
        %4812 = vmatpush1.msra.mxu0 %v4518
        %4813 = vmatprep.subr.mxu0 0.0
        %4814 = vmatpush1.msra.mxu0 %v4519
        %4815 = vmatprep.subr.mxu0 0.0
        %4816 = vmatpush1.msra.mxu0 %v4626
        %4817 = vmatprep.subr.mxu0 0.0
        %4818 = vmatpush1.msra.mxu0 0.0
        %4819 = vmatprep.subr.mxu0 0.0
        %4820 = vmatpush1.msra.mxu0 0.0
        %4821 = vmatprep.subr.mxu0 0.0
        %4822 = vmatpush1.msra.mxu0 0.0
        %4823 = vmatprep.subr.mxu0 0.0
        %4824 = vmatpush1.msra.mxu0 0.0
        %4825 = vmatprep.subr.mxu0 0.0
        %4826 = vmatpush1.msra.mxu0 0.0
        %4827 = vmatprep.subr.mxu0 0.0
        %4828 = vmatpush1.msra.mxu0 0.0
        %4829 = vmatprep.subr.mxu0 0.0
        %4830 = vmatpush1.msra.mxu0 0.0
        %4831 = vmatprep.subr.mxu0 0.0
        %4832 = vmatpush1.msra.mxu0 0.0
        %4833 = vmatprep.subr.mxu0 0.0
        %4834 = vmatpush1.msra.mxu0 0.0
        %4835 = vmatprep.subr.mxu0 0.0
        %4836 = vmatpush1.msra.mxu0 0.0
        %4837 = vmatprep.subr.mxu0 0.0
        %4838 = vmatpush1.msra.mxu0 0.0
        %4839 = vmatprep.subr.mxu0 0.0
        %4840 = vmatpush1.msra.mxu0 0.0
        %4841 = vmatprep.subr.mxu0 0.0
        %4842 = vmatpush1.msra.mxu0 0.0
        %4843 = vmatprep.subr.mxu0 0.0
        %4844 = vmatpush1.msra.mxu0 0.0
        %4845 = vmatprep.subr.mxu0 0.0
        %4846 = vmatpush1.msra.mxu0 0.0
        %4847 = vmatprep.subr.mxu0 0.0
        %4848 = vmatpush1.msra.mxu0 0.0
        %4849 = vmatprep.subr.mxu0 0.0
        %4850 = vmatpush1.msra.mxu0 0.0
        %4851 = vmatprep.subr.mxu0 0.0
        %4852 = vmatpush1.msra.mxu0 0.0
        %4853 = vmatprep.subr.mxu0 0.0
        %4854 = vmatpush1.msra.mxu0 0.0
        %4855 = vmatprep.subr.mxu0 0.0
        %4856 = vmatpush1.msra.mxu0 0.0
        %4857 = vmatprep.subr.mxu0 0.0
        %4858 = vmatpush1.msra.mxu0 0.0
        %4859 = vmatprep.subr.mxu0 0.0
        %4860 = vmatpush1.msra.mxu0 0.0
        %4861 = vmatprep.subr.mxu0 0.0
        %4862 = vmatpush1.msra.mxu0 0.0
        %4863 = vmatprep.subr.mxu0 0.0
        %4864 = vmatpush1.msra.mxu0 0.0
        %4865 = vmatprep.subr.mxu0 0.0
        %4866 = vmatpush1.msra.mxu0 0.0
        %4867 = vmatprep.subr.mxu0 0.0
        %4868 = vmatpush1.msra.mxu0 0.0
        %4869 = vmatprep.subr.mxu0 0.0
        %4870 = vmatpush1.msra.mxu0 0.0
        %4871 = vmatprep.subr.mxu0 0.0
        %4872 = vmatpush1.msra.mxu0 0.0
        %4873 = vmatprep.subr.mxu0 0.0
        %4874 = vmatpush1.msra.mxu0 0.0
        %4875 = vmatprep.mubr.f32.mxu0 0.0
        %4876 = vmatmul.mubr.f32.gmra.mrb[0].mxu0 %v4803
        %v4877 = vpop.f32.mrb[0].mxu0
        %v4878 = vadd.f32 %v4789, %v4877
        %v4879 = vpop.f32.mrb[0].mxu0
        %4880 = vmatprep.mubr.f32.mxu0 0.0
        %4881 = vmatmul.mubr.f32.gmra.mrb[0].mxu0 %v4806
        %v4882 = vpop.f32.mrb[0].mxu0
        %v4883 = vadd.f32 %v4794, %v4882
        %v4884 = vpop.f32.mrb[0].mxu0
        %4885 = vmatprep.mubr.f32.mxu0 0.0
        %4886 = vmatmul.mubr.f32.gmra.mrb[0].mxu0 %v4809
        %v4887 = vpop.f32.mrb[0].mxu0
        %v4888 = vadd.f32 %v4799, %v4887
        %v4889 = vpop.f32.mrb[0].mxu0
        %4890 = vdwg.mxu0
        %v4891 = vld [vmem:[%s4289] sm:$0xff]
        %v4892 = vld [vmem:[%s4289 + $0x8] sm:$0xff]
        %v4893 = vld [vmem:[%s4289 + $0x10] sm:$0xff]
        %v4894 = vld [vmem:[%s4289 + $0x18] sm:$0xff]
        %v4895 = vld [vmem:[%s4289 + $0x20] sm:$0x3]
        %v4897 = vsel %vm3920, %v4891, 0
        %v4900 = vsel %vm3920, %v4892, 0
        %v4903 = vsel %vm3920, %v4893, 0
        %v4906 = vsel %vm3920, %v4894, 0
        %v4909 = vsel %vm3920, %v4895, 0
        %v4912 = vsel %vm3930, %v4888, 0
        %4914 = vmatprep.subr.mxu0 0.0
        %4915 = vmatpush1.msra.mxu0 %v4878
        %4916 = vmatprep.subr.mxu0 0.0
        %4917 = vmatpush1.msra.mxu0 %v4883
        %4918 = vmatprep.subr.mxu0 0.0
        %4919 = vmatpush1.msra.mxu0 %v4912
        %4920 = vmatprep.subr.mxu0 0.0
        %4921 = vmatpush1.msra.mxu0 0.0
        %4922 = vmatprep.subr.mxu0 0.0
        %4923 = vmatpush1.msra.mxu0 0.0
        %4924 = vmatprep.subr.mxu0 0.0
        %4925 = vmatpush1.msra.mxu0 0.0
        %4926 = vmatprep.subr.mxu0 0.0
        %4927 = vmatpush1.msra.mxu0 0.0
        %4928 = vmatprep.subr.mxu0 0.0
        %4929 = vmatpush1.msra.mxu0 0.0
        %4930 = vmatprep.subr.mxu0 0.0
        %4931 = vmatpush1.msra.mxu0 0.0
        %4932 = vmatprep.subr.mxu0 0.0
        %4933 = vmatpush1.msra.mxu0 0.0
        %4934 = vmatprep.subr.mxu0 0.0
        %4935 = vmatpush1.msra.mxu0 0.0
        %4936 = vmatprep.subr.mxu0 0.0
        %4937 = vmatpush1.msra.mxu0 0.0
        %4938 = vmatprep.subr.mxu0 0.0
        %4939 = vmatpush1.msra.mxu0 0.0
        %4940 = vmatprep.subr.mxu0 0.0
        %4941 = vmatpush1.msra.mxu0 0.0
        %4942 = vmatprep.subr.mxu0 0.0
        %4943 = vmatpush1.msra.mxu0 0.0
        %4944 = vmatprep.subr.mxu0 0.0
        %4945 = vmatpush1.msra.mxu0 0.0
        %4946 = vmatprep.subr.mxu0 0.0
        %4947 = vmatpush1.msra.mxu0 0.0
        %4948 = vmatprep.subr.mxu0 0.0
        %4949 = vmatpush1.msra.mxu0 0.0
        %4950 = vmatprep.subr.mxu0 0.0
        %4951 = vmatpush1.msra.mxu0 0.0
        %4952 = vmatprep.subr.mxu0 0.0
        %4953 = vmatpush1.msra.mxu0 0.0
        %4954 = vmatprep.subr.mxu0 0.0
        %4955 = vmatpush1.msra.mxu0 0.0
        %4956 = vmatprep.subr.mxu0 0.0
        %4957 = vmatpush1.msra.mxu0 0.0
        %4958 = vmatprep.subr.mxu0 0.0
        %4959 = vmatpush1.msra.mxu0 0.0
        %4960 = vmatprep.subr.mxu0 0.0
        %4961 = vmatpush1.msra.mxu0 0.0
        %4962 = vmatprep.subr.mxu0 0.0
        %4963 = vmatpush1.msra.mxu0 0.0
        %4964 = vmatprep.subr.mxu0 0.0
        %4965 = vmatpush1.msra.mxu0 0.0
        %4966 = vmatprep.subr.mxu0 0.0
        %4967 = vmatpush1.msra.mxu0 0.0
        %4968 = vmatprep.subr.mxu0 0.0
        %4969 = vmatpush1.msra.mxu0 0.0
        %4970 = vmatprep.subr.mxu0 0.0
        %4971 = vmatpush1.msra.mxu0 0.0
        %4972 = vmatprep.subr.mxu0 0.0
        %4973 = vmatpush1.msra.mxu0 0.0
        %4974 = vmatprep.subr.mxu0 0.0
        %4975 = vmatpush1.msra.mxu0 0.0
        %4976 = vmatprep.subr.mxu0 0.0
        %4977 = vmatpush1.msra.mxu0 0.0
        %4978 = vmatprep.mubr.f32.mxu0 0.0
        %4979 = vmatmul.mubr.f32.gmra.mrb[0].mxu0 %v4897
        %v4980 = vpop.f32.mrb[0].mxu0
        %v4981 = vadd.f32 0.0, %v4980
        %v4982 = vpop.f32.mrb[0].mxu0
        %4983 = vmatprep.mubr.f32.mxu0 0.0
        %4984 = vmatmul.mubr.f32.gmra.mrb[0].mxu0 %v4900
        %v4985 = vpop.f32.mrb[0].mxu0
        %v4986 = vadd.f32 0.0, %v4985
        %v4987 = vpop.f32.mrb[0].mxu0
        %4988 = vmatprep.mubr.f32.mxu0 0.0
        %4989 = vmatmul.mubr.f32.gmra.mrb[0].mxu0 %v4903
        %v4990 = vpop.f32.mrb[0].mxu0
        %v4991 = vadd.f32 0.0, %v4990
        %v4992 = vpop.f32.mrb[0].mxu0
        %4993 = vmatprep.mubr.f32.mxu0 0.0
        %4994 = vmatmul.mubr.f32.gmra.mrb[0].mxu0 %v4906
        %v4995 = vpop.f32.mrb[0].mxu0
        %v4996 = vadd.f32 0.0, %v4995
        %v4997 = vpop.f32.mrb[0].mxu0
        %4998 = vmatprep.mubr.f32.mxu0 0.0
        %4999 = vmatmul.mubr.f32.gmra.mrb[0].mxu0 %v4909
        %v5000 = vpop.f32.mrb[0].mxu0
        %v5001 = vadd.f32 0.0, %v5000
        %v5002 = vpop.f32.mrb[0].mxu0
        %5003 = vdwg.mxu0
        %v5005 = vsel %vm3920, %v4708, 0
        %v5008 = vsel %vm3920, %v4709, 0
        %v5011 = vsel %vm3920, %v4710, 0
        %v5014 = vsel %vm3920, %v4711, 0
        %v5017 = vsel %vm3920, %v4712, 0
        %v5020 = vsel %vm3930, %v4705, 0
        %5022 = vmatprep.subr.mxu0 0.0
        %5023 = vmatpush1.msra.mxu0 %v4695
        %5024 = vmatprep.subr.mxu0 0.0
        %5025 = vmatpush1.msra.mxu0 %v4700
        %5026 = vmatprep.subr.mxu0 0.0
        %5027 = vmatpush1.msra.mxu0 %v5020
        %5028 = vmatprep.subr.mxu0 0.0
        %5029 = vmatpush1.msra.mxu0 0.0
        %5030 = vmatprep.subr.mxu0 0.0
        %5031 = vmatpush1.msra.mxu0 0.0
        %5032 = vmatprep.subr.mxu0 0.0
        %5033 = vmatpush1.msra.mxu0 0.0
        %5034 = vmatprep.subr.mxu0 0.0
        %5035 = vmatpush1.msra.mxu0 0.0
        %5036 = vmatprep.subr.mxu0 0.0
        %5037 = vmatpush1.msra.mxu0 0.0
        %5038 = vmatprep.subr.mxu0 0.0
        %5039 = vmatpush1.msra.mxu0 0.0
        %5040 = vmatprep.subr.mxu0 0.0
        %5041 = vmatpush1.msra.mxu0 0.0
        %5042 = vmatprep.subr.mxu0 0.0
        %5043 = vmatpush1.msra.mxu0 0.0
        %5044 = vmatprep.subr.mxu0 0.0
        %5045 = vmatpush1.msra.mxu0 0.0
        %5046 = vmatprep.subr.mxu0 0.0
        %5047 = vmatpush1.msra.mxu0 0.0
        %5048 = vmatprep.subr.mxu0 0.0
        %5049 = vmatpush1.msra.mxu0 0.0
        %5050 = vmatprep.subr.mxu0 0.0
        %5051 = vmatpush1.msra.mxu0 0.0
        %5052 = vmatprep.subr.mxu0 0.0
        %5053 = vmatpush1.msra.mxu0 0.0
        %5054 = vmatprep.subr.mxu0 0.0
        %5055 = vmatpush1.msra.mxu0 0.0
        %5056 = vmatprep.subr.mxu0 0.0
        %5057 = vmatpush1.msra.mxu0 0.0
        %5058 = vmatprep.subr.mxu0 0.0
        %5059 = vmatpush1.msra.mxu0 0.0
        %5060 = vmatprep.subr.mxu0 0.0
        %5061 = vmatpush1.msra.mxu0 0.0
        %5062 = vmatprep.subr.mxu0 0.0
        %5063 = vmatpush1.msra.mxu0 0.0
        %5064 = vmatprep.subr.mxu0 0.0
        %5065 = vmatpush1.msra.mxu0 0.0
        %5066 = vmatprep.subr.mxu0 0.0
        %5067 = vmatpush1.msra.mxu0 0.0
        %5068 = vmatprep.subr.mxu0 0.0
        %5069 = vmatpush1.msra.mxu0 0.0
        %5070 = vmatprep.subr.mxu0 0.0
        %5071 = vmatpush1.msra.mxu0 0.0
        %5072 = vmatprep.subr.mxu0 0.0
        %5073 = vmatpush1.msra.mxu0 0.0
        %5074 = vmatprep.subr.mxu0 0.0
        %5075 = vmatpush1.msra.mxu0 0.0
        %5076 = vmatprep.subr.mxu0 0.0
        %5077 = vmatpush1.msra.mxu0 0.0
        %5078 = vmatprep.subr.mxu0 0.0
        %5079 = vmatpush1.msra.mxu0 0.0
        %5080 = vmatprep.subr.mxu0 0.0
        %5081 = vmatpush1.msra.mxu0 0.0
        %5082 = vmatprep.subr.mxu0 0.0
        %5083 = vmatpush1.msra.mxu0 0.0
        %5084 = vmatprep.subr.mxu0 0.0
        %5085 = vmatpush1.msra.mxu0 0.0
        %5086 = vmatprep.mubr.f32.mxu0 0.0
        %5087 = vmatmul.mubr.f32.gmra.mrb[0].mxu0 %v5005
        %v5088 = vpop.f32.mrb[0].mxu0
        %v5089 = vadd.f32 %v4981, %v5088
        %v5090 = vpop.f32.mrb[0].mxu0
        %5091 = vmatprep.mubr.f32.mxu0 0.0
        %5092 = vmatmul.mubr.f32.gmra.mrb[0].mxu0 %v5008
        %v5093 = vpop.f32.mrb[0].mxu0
        %v5094 = vadd.f32 %v4986, %v5093
        %v5095 = vpop.f32.mrb[0].mxu0
        %5096 = vmatprep.mubr.f32.mxu0 0.0
        %5097 = vmatmul.mubr.f32.gmra.mrb[0].mxu0 %v5011
        %v5098 = vpop.f32.mrb[0].mxu0
        %v5099 = vadd.f32 %v4991, %v5098
        %v5100 = vpop.f32.mrb[0].mxu0
        %5101 = vmatprep.mubr.f32.mxu0 0.0
        %5102 = vmatmul.mubr.f32.gmra.mrb[0].mxu0 %v5014
        %v5103 = vpop.f32.mrb[0].mxu0
        %v5104 = vadd.f32 %v4996, %v5103
        %v5105 = vpop.f32.mrb[0].mxu0
        %5106 = vmatprep.mubr.f32.mxu0 0.0
        %5107 = vmatmul.mubr.f32.gmra.mrb[0].mxu0 %v5017
        %v5108 = vpop.f32.mrb[0].mxu0
        %v5109 = vadd.f32 %v5001, %v5108
        %v5110 = vpop.f32.mrb[0].mxu0
        %5111 = vdwg.mxu0
        %s5112 = scalar_lea.vmem %s238, 40
        %5113 = vst.msk [vmem:[%s5112] sm:$0xff] %vm4511, %v5089
        %5114 = vst.msk [vmem:[%s5112 + $0x8] sm:$0xff] %vm4511, %v5094
        %5115 = vst.msk [vmem:[%s5112 + $0x10] sm:$0xff] %vm4511, %v5099
        %5116 = vst.msk [vmem:[%s5112 + $0x18] sm:$0xff] %vm4511, %v5104
        %5117 = vst.msk [vmem:[%s5112 + $0x20] sm:$0x3] %vm4516, %v5109
        %v5118 = vld [vmem:[%s3] sm:$0xff]
        %v5119 = vld [vmem:[%s3 + $0x8] sm:$0xff]
        %v5120 = vld [vmem:[%s3 + $0x10] sm:$0x1]
        %v5121 = vld [vmem:[%s3916] sm:$0xff]
        %v5122 = vld [vmem:[%s3916 + $0x8] sm:$0xff]
        %v5123 = vld [vmem:[%s3916 + $0x10] sm:$0x1]
        %v5125 = vsel %vm3920, %v2078, 0
        %v5128 = vsel %vm3920, %v2079, 0
        %v5131 = vsel %vm3920, %v2080, 0
        %v5134 = vsel %vm3930, %v5123, 0
        %5136 = vmatprep.subr.mxu0 0.0
        %5137 = vmatpush1.msra.mxu0 %v5121
        %5138 = vmatprep.subr.mxu0 0.0
        %5139 = vmatpush1.msra.mxu0 %v5122
        %5140 = vmatprep.subr.mxu0 0.0
        %5141 = vmatpush1.msra.mxu0 %v5134
        %5142 = vmatprep.subr.mxu0 0.0
        %5143 = vmatpush1.msra.mxu0 0.0
        %5144 = vmatprep.subr.mxu0 0.0
        %5145 = vmatpush1.msra.mxu0 0.0
        %5146 = vmatprep.subr.mxu0 0.0
        %5147 = vmatpush1.msra.mxu0 0.0
        %5148 = vmatprep.subr.mxu0 0.0
        %5149 = vmatpush1.msra.mxu0 0.0
        %5150 = vmatprep.subr.mxu0 0.0
        %5151 = vmatpush1.msra.mxu0 0.0
        %5152 = vmatprep.subr.mxu0 0.0
        %5153 = vmatpush1.msra.mxu0 0.0
        %5154 = vmatprep.subr.mxu0 0.0
        %5155 = vmatpush1.msra.mxu0 0.0
        %5156 = vmatprep.subr.mxu0 0.0
        %5157 = vmatpush1.msra.mxu0 0.0
        %5158 = vmatprep.subr.mxu0 0.0
        %5159 = vmatpush1.msra.mxu0 0.0
        %5160 = vmatprep.subr.mxu0 0.0
        %5161 = vmatpush1.msra.mxu0 0.0
        %5162 = vmatprep.subr.mxu0 0.0
        %5163 = vmatpush1.msra.mxu0 0.0
        %5164 = vmatprep.subr.mxu0 0.0
        %5165 = vmatpush1.msra.mxu0 0.0
        %5166 = vmatprep.subr.mxu0 0.0
        %5167 = vmatpush1.msra.mxu0 0.0
        %5168 = vmatprep.subr.mxu0 0.0
        %5169 = vmatpush1.msra.mxu0 0.0
        %5170 = vmatprep.subr.mxu0 0.0
        %5171 = vmatpush1.msra.mxu0 0.0
        %5172 = vmatprep.subr.mxu0 0.0
        %5173 = vmatpush1.msra.mxu0 0.0
        %5174 = vmatprep.subr.mxu0 0.0
        %5175 = vmatpush1.msra.mxu0 0.0
        %5176 = vmatprep.subr.mxu0 0.0
        %5177 = vmatpush1.msra.mxu0 0.0
        %5178 = vmatprep.subr.mxu0 0.0
        %5179 = vmatpush1.msra.mxu0 0.0
        %5180 = vmatprep.subr.mxu0 0.0
        %5181 = vmatpush1.msra.mxu0 0.0
        %5182 = vmatprep.subr.mxu0 0.0
        %5183 = vmatpush1.msra.mxu0 0.0
        %5184 = vmatprep.subr.mxu0 0.0
        %5185 = vmatpush1.msra.mxu0 0.0
        %5186 = vmatprep.subr.mxu0 0.0
        %5187 = vmatpush1.msra.mxu0 0.0
        %5188 = vmatprep.subr.mxu0 0.0
        %5189 = vmatpush1.msra.mxu0 0.0
        %5190 = vmatprep.subr.mxu0 0.0
        %5191 = vmatpush1.msra.mxu0 0.0
        %5192 = vmatprep.subr.mxu0 0.0
        %5193 = vmatpush1.msra.mxu0 0.0
        %5194 = vmatprep.subr.mxu0 0.0
        %5195 = vmatpush1.msra.mxu0 0.0
        %5196 = vmatprep.subr.mxu0 0.0
        %5197 = vmatpush1.msra.mxu0 0.0
        %5198 = vmatprep.subr.mxu0 0.0
        %5199 = vmatpush1.msra.mxu0 0.0
        %5200 = vmatprep.mubr.f32.mxu0 0.0
        %5201 = vmatmul.mubr.f32.gmra.mrb[0].mxu0 %v5125
        %v5202 = vpop.f32.mrb[0].mxu0
        %v5203 = vadd.f32 0.0, %v5202
        %v5204 = vpop.f32.mrb[0].mxu0
        %5205 = vmatprep.mubr.f32.mxu0 0.0
        %5206 = vmatmul.mubr.f32.gmra.mrb[0].mxu0 %v5128
        %v5207 = vpop.f32.mrb[0].mxu0
        %v5208 = vadd.f32 0.0, %v5207
        %v5209 = vpop.f32.mrb[0].mxu0
        %5210 = vmatprep.mubr.f32.mxu0 0.0
        %5211 = vmatmul.mubr.f32.gmra.mrb[0].mxu0 %v5131
        %v5212 = vpop.f32.mrb[0].mxu0
        %v5213 = vadd.f32 0.0, %v5212
        %v5214 = vpop.f32.mrb[0].mxu0
        %5215 = vdwg.mxu0
        %v5217 = vsel %vm3920, %v1166, 0
        %v5220 = vsel %vm3920, %v1167, 0
        %v5223 = vsel %vm3920, %v1168, 0
        %v5226 = vsel %vm3930, %v5120, 0
        %5228 = vmatprep.subr.mxu0 0.0
        %5229 = vmatpush1.msra.mxu0 %v5118
        %5230 = vmatprep.subr.mxu0 0.0
        %5231 = vmatpush1.msra.mxu0 %v5119
        %5232 = vmatprep.subr.mxu0 0.0
        %5233 = vmatpush1.msra.mxu0 %v5226
        %5234 = vmatprep.subr.mxu0 0.0
        %5235 = vmatpush1.msra.mxu0 0.0
        %5236 = vmatprep.subr.mxu0 0.0
        %5237 = vmatpush1.msra.mxu0 0.0
        %5238 = vmatprep.subr.mxu0 0.0
        %5239 = vmatpush1.msra.mxu0 0.0
        %5240 = vmatprep.subr.mxu0 0.0
        %5241 = vmatpush1.msra.mxu0 0.0
        %5242 = vmatprep.subr.mxu0 0.0
        %5243 = vmatpush1.msra.mxu0 0.0
        %5244 = vmatprep.subr.mxu0 0.0
        %5245 = vmatpush1.msra.mxu0 0.0
        %5246 = vmatprep.subr.mxu0 0.0
        %5247 = vmatpush1.msra.mxu0 0.0
        %5248 = vmatprep.subr.mxu0 0.0
        %5249 = vmatpush1.msra.mxu0 0.0
        %5250 = vmatprep.subr.mxu0 0.0
        %5251 = vmatpush1.msra.mxu0 0.0
        %5252 = vmatprep.subr.mxu0 0.0
        %5253 = vmatpush1.msra.mxu0 0.0
        %5254 = vmatprep.subr.mxu0 0.0
        %5255 = vmatpush1.msra.mxu0 0.0
        %5256 = vmatprep.subr.mxu0 0.0
        %5257 = vmatpush1.msra.mxu0 0.0
        %5258 = vmatprep.subr.mxu0 0.0
        %5259 = vmatpush1.msra.mxu0 0.0
        %5260 = vmatprep.subr.mxu0 0.0
        %5261 = vmatpush1.msra.mxu0 0.0
        %5262 = vmatprep.subr.mxu0 0.0
        %5263 = vmatpush1.msra.mxu0 0.0
        %5264 = vmatprep.subr.mxu0 0.0
        %5265 = vmatpush1.msra.mxu0 0.0
        %5266 = vmatprep.subr.mxu0 0.0
        %5267 = vmatpush1.msra.mxu0 0.0
        %5268 = vmatprep.subr.mxu0 0.0
        %5269 = vmatpush1.msra.mxu0 0.0
        %5270 = vmatprep.subr.mxu0 0.0
        %5271 = vmatpush1.msra.mxu0 0.0
        %5272 = vmatprep.subr.mxu0 0.0
        %5273 = vmatpush1.msra.mxu0 0.0
        %5274 = vmatprep.subr.mxu0 0.0
        %5275 = vmatpush1.msra.mxu0 0.0
        %5276 = vmatprep.subr.mxu0 0.0
        %5277 = vmatpush1.msra.mxu0 0.0
        %5278 = vmatprep.subr.mxu0 0.0
        %5279 = vmatpush1.msra.mxu0 0.0
        %5280 = vmatprep.subr.mxu0 0.0
        %5281 = vmatpush1.msra.mxu0 0.0
        %5282 = vmatprep.subr.mxu0 0.0
        %5283 = vmatpush1.msra.mxu0 0.0
        %5284 = vmatprep.subr.mxu0 0.0
        %5285 = vmatpush1.msra.mxu0 0.0
        %5286 = vmatprep.subr.mxu0 0.0
        %5287 = vmatpush1.msra.mxu0 0.0
        %5288 = vmatprep.subr.mxu0 0.0
        %5289 = vmatpush1.msra.mxu0 0.0
        %5290 = vmatprep.subr.mxu0 0.0
        %5291 = vmatpush1.msra.mxu0 0.0
        %5292 = vmatprep.mubr.f32.mxu0 0.0
        %5293 = vmatmul.mubr.f32.gmra.mrb[0].mxu0 %v5217
        %v5294 = vpop.f32.mrb[0].mxu0
        %v5295 = vadd.f32 %v5203, %v5294
        %v5296 = vpop.f32.mrb[0].mxu0
        %5297 = vmatprep.mubr.f32.mxu0 0.0
        %5298 = vmatmul.mubr.f32.gmra.mrb[0].mxu0 %v5220
        %v5299 = vpop.f32.mrb[0].mxu0
        %v5300 = vadd.f32 %v5208, %v5299
        %v5301 = vpop.f32.mrb[0].mxu0
        %5302 = vmatprep.mubr.f32.mxu0 0.0
        %5303 = vmatmul.mubr.f32.gmra.mrb[0].mxu0 %v5223
        %v5304 = vpop.f32.mrb[0].mxu0
        %v5305 = vadd.f32 %v5213, %v5304
        %v5306 = vpop.f32.mrb[0].mxu0
        %5307 = vdwg.mxu0
        %v5308 = vld [vmem:[%s2] sm:$0xff]
        %v5309 = vld [vmem:[%s2 + $0x8] sm:$0xff]
        %v5310 = vld [vmem:[%s2 + $0x10] sm:$0xff]
        %v5311 = vld [vmem:[%s2 + $0x18] sm:$0xff]
        %v5312 = vld [vmem:[%s2 + $0x20] sm:$0x3]
        %v5314 = vsel %vm3920, %v3902, 0
        %v5317 = vsel %vm3920, %v3903, 0
        %v5320 = vsel %vm3920, %v3904, 0
        %5322 = vmatprep.subr.mxu0 0.0
        %5323 = vmatpush1.msra.mxu0 %v5121
        %5324 = vmatprep.subr.mxu0 0.0
        %5325 = vmatpush1.msra.mxu0 %v5122
        %5326 = vmatprep.subr.mxu0 0.0
        %5327 = vmatpush1.msra.mxu0 %v5134
        %5328 = vmatprep.subr.mxu0 0.0
        %5329 = vmatpush1.msra.mxu0 0.0
        %5330 = vmatprep.subr.mxu0 0.0
        %5331 = vmatpush1.msra.mxu0 0.0
        %5332 = vmatprep.subr.mxu0 0.0
        %5333 = vmatpush1.msra.mxu0 0.0
        %5334 = vmatprep.subr.mxu0 0.0
        %5335 = vmatpush1.msra.mxu0 0.0
        %5336 = vmatprep.subr.mxu0 0.0
        %5337 = vmatpush1.msra.mxu0 0.0
        %5338 = vmatprep.subr.mxu0 0.0
        %5339 = vmatpush1.msra.mxu0 0.0
        %5340 = vmatprep.subr.mxu0 0.0
        %5341 = vmatpush1.msra.mxu0 0.0
        %5342 = vmatprep.subr.mxu0 0.0
        %5343 = vmatpush1.msra.mxu0 0.0
        %5344 = vmatprep.subr.mxu0 0.0
        %5345 = vmatpush1.msra.mxu0 0.0
        %5346 = vmatprep.subr.mxu0 0.0
        %5347 = vmatpush1.msra.mxu0 0.0
        %5348 = vmatprep.subr.mxu0 0.0
        %5349 = vmatpush1.msra.mxu0 0.0
        %5350 = vmatprep.subr.mxu0 0.0
        %5351 = vmatpush1.msra.mxu0 0.0
        %5352 = vmatprep.subr.mxu0 0.0
        %5353 = vmatpush1.msra.mxu0 0.0
        %5354 = vmatprep.subr.mxu0 0.0
        %5355 = vmatpush1.msra.mxu0 0.0
        %5356 = vmatprep.subr.mxu0 0.0
        %5357 = vmatpush1.msra.mxu0 0.0
        %5358 = vmatprep.subr.mxu0 0.0
        %5359 = vmatpush1.msra.mxu0 0.0
        %5360 = vmatprep.subr.mxu0 0.0
        %5361 = vmatpush1.msra.mxu0 0.0
        %5362 = vmatprep.subr.mxu0 0.0
        %5363 = vmatpush1.msra.mxu0 0.0
        %5364 = vmatprep.subr.mxu0 0.0
        %5365 = vmatpush1.msra.mxu0 0.0
        %5366 = vmatprep.subr.mxu0 0.0
        %5367 = vmatpush1.msra.mxu0 0.0
        %5368 = vmatprep.subr.mxu0 0.0
        %5369 = vmatpush1.msra.mxu0 0.0
        %5370 = vmatprep.subr.mxu0 0.0
        %5371 = vmatpush1.msra.mxu0 0.0
        %5372 = vmatprep.subr.mxu0 0.0
        %5373 = vmatpush1.msra.mxu0 0.0
        %5374 = vmatprep.subr.mxu0 0.0
        %5375 = vmatpush1.msra.mxu0 0.0
        %5376 = vmatprep.subr.mxu0 0.0
        %5377 = vmatpush1.msra.mxu0 0.0
        %5378 = vmatprep.subr.mxu0 0.0
        %5379 = vmatpush1.msra.mxu0 0.0
        %5380 = vmatprep.subr.mxu0 0.0
        %5381 = vmatpush1.msra.mxu0 0.0
        %5382 = vmatprep.subr.mxu0 0.0
        %5383 = vmatpush1.msra.mxu0 0.0
        %5384 = vmatprep.subr.mxu0 0.0
        %5385 = vmatpush1.msra.mxu0 0.0
        %5386 = vmatprep.mubr.f32.mxu0 0.0
        %5387 = vmatmul.mubr.f32.gmra.mrb[0].mxu0 %v5314
        %v5388 = vpop.f32.mrb[0].mxu0
        %v5389 = vadd.f32 0.0, %v5388
        %v5390 = vpop.f32.mrb[0].mxu0
        %5391 = vmatprep.mubr.f32.mxu0 0.0
        %5392 = vmatmul.mubr.f32.gmra.mrb[0].mxu0 %v5317
        %v5393 = vpop.f32.mrb[0].mxu0
        %v5394 = vadd.f32 0.0, %v5393
        %v5395 = vpop.f32.mrb[0].mxu0
        %5396 = vmatprep.mubr.f32.mxu0 0.0
        %5397 = vmatmul.mubr.f32.gmra.mrb[0].mxu0 %v5320
        %v5398 = vpop.f32.mrb[0].mxu0
        %v5399 = vadd.f32 0.0, %v5398
        %v5400 = vpop.f32.mrb[0].mxu0
        %5401 = vdwg.mxu0
        %v5403 = vsel %vm3920, %v2990, 0
        %v5406 = vsel %vm3920, %v2991, 0
        %v5409 = vsel %vm3920, %v2992, 0
        %5411 = vmatprep.subr.mxu0 0.0
        %5412 = vmatpush1.msra.mxu0 %v5118
        %5413 = vmatprep.subr.mxu0 0.0
        %5414 = vmatpush1.msra.mxu0 %v5119
        %5415 = vmatprep.subr.mxu0 0.0
        %5416 = vmatpush1.msra.mxu0 %v5226
        %5417 = vmatprep.subr.mxu0 0.0
        %5418 = vmatpush1.msra.mxu0 0.0
        %5419 = vmatprep.subr.mxu0 0.0
        %5420 = vmatpush1.msra.mxu0 0.0
        %5421 = vmatprep.subr.mxu0 0.0
        %5422 = vmatpush1.msra.mxu0 0.0
        %5423 = vmatprep.subr.mxu0 0.0
        %5424 = vmatpush1.msra.mxu0 0.0
        %5425 = vmatprep.subr.mxu0 0.0
        %5426 = vmatpush1.msra.mxu0 0.0
        %5427 = vmatprep.subr.mxu0 0.0
        %5428 = vmatpush1.msra.mxu0 0.0
        %5429 = vmatprep.subr.mxu0 0.0
        %5430 = vmatpush1.msra.mxu0 0.0
        %5431 = vmatprep.subr.mxu0 0.0
        %5432 = vmatpush1.msra.mxu0 0.0
        %5433 = vmatprep.subr.mxu0 0.0
        %5434 = vmatpush1.msra.mxu0 0.0
        %5435 = vmatprep.subr.mxu0 0.0
        %5436 = vmatpush1.msra.mxu0 0.0
        %5437 = vmatprep.subr.mxu0 0.0
        %5438 = vmatpush1.msra.mxu0 0.0
        %5439 = vmatprep.subr.mxu0 0.0
        %5440 = vmatpush1.msra.mxu0 0.0
        %5441 = vmatprep.subr.mxu0 0.0
        %5442 = vmatpush1.msra.mxu0 0.0
        %5443 = vmatprep.subr.mxu0 0.0
        %5444 = vmatpush1.msra.mxu0 0.0
        %5445 = vmatprep.subr.mxu0 0.0
        %5446 = vmatpush1.msra.mxu0 0.0
        %5447 = vmatprep.subr.mxu0 0.0
        %5448 = vmatpush1.msra.mxu0 0.0
        %5449 = vmatprep.subr.mxu0 0.0
        %5450 = vmatpush1.msra.mxu0 0.0
        %5451 = vmatprep.subr.mxu0 0.0
        %5452 = vmatpush1.msra.mxu0 0.0
        %5453 = vmatprep.subr.mxu0 0.0
        %5454 = vmatpush1.msra.mxu0 0.0
        %5455 = vmatprep.subr.mxu0 0.0
        %5456 = vmatpush1.msra.mxu0 0.0
        %5457 = vmatprep.subr.mxu0 0.0
        %5458 = vmatpush1.msra.mxu0 0.0
        %5459 = vmatprep.subr.mxu0 0.0
        %5460 = vmatpush1.msra.mxu0 0.0
        %5461 = vmatprep.subr.mxu0 0.0
        %5462 = vmatpush1.msra.mxu0 0.0
        %5463 = vmatprep.subr.mxu0 0.0
        %5464 = vmatpush1.msra.mxu0 0.0
        %5465 = vmatprep.subr.mxu0 0.0
        %5466 = vmatpush1.msra.mxu0 0.0
        %5467 = vmatprep.subr.mxu0 0.0
        %5468 = vmatpush1.msra.mxu0 0.0
        %5469 = vmatprep.subr.mxu0 0.0
        %5470 = vmatpush1.msra.mxu0 0.0
        %5471 = vmatprep.subr.mxu0 0.0
        %5472 = vmatpush1.msra.mxu0 0.0
        %5473 = vmatprep.subr.mxu0 0.0
        %5474 = vmatpush1.msra.mxu0 0.0
        %5475 = vmatprep.mubr.f32.mxu0 0.0
        %5476 = vmatmul.mubr.f32.gmra.mrb[0].mxu0 %v5403
        %v5477 = vpop.f32.mrb[0].mxu0
        %v5478 = vadd.f32 %v5389, %v5477
        %v5479 = vpop.f32.mrb[0].mxu0
        %5480 = vmatprep.mubr.f32.mxu0 0.0
        %5481 = vmatmul.mubr.f32.gmra.mrb[0].mxu0 %v5406
        %v5482 = vpop.f32.mrb[0].mxu0
        %v5483 = vadd.f32 %v5394, %v5482
        %v5484 = vpop.f32.mrb[0].mxu0
        %5485 = vmatprep.mubr.f32.mxu0 0.0
        %5486 = vmatmul.mubr.f32.gmra.mrb[0].mxu0 %v5409
        %v5487 = vpop.f32.mrb[0].mxu0
        %v5488 = vadd.f32 %v5399, %v5487
        %v5489 = vpop.f32.mrb[0].mxu0
        %5490 = vdwg.mxu0
        %v5491 = vld [vmem:[%s4289] sm:$0xff]
        %v5492 = vld [vmem:[%s4289 + $0x8] sm:$0xff]
        %v5493 = vld [vmem:[%s4289 + $0x10] sm:$0xff]
        %v5494 = vld [vmem:[%s4289 + $0x18] sm:$0xff]
        %v5495 = vld [vmem:[%s4289 + $0x20] sm:$0x3]
        %v5497 = vsel %vm3920, %v5491, 0
        %v5500 = vsel %vm3920, %v5492, 0
        %v5503 = vsel %vm3920, %v5493, 0
        %v5506 = vsel %vm3920, %v5494, 0
        %v5509 = vsel %vm3920, %v5495, 0
        %v5512 = vsel %vm3930, %v5488, 0
        %5514 = vmatprep.subr.mxu0 0.0
        %5515 = vmatpush1.msra.mxu0 %v5478
        %5516 = vmatprep.subr.mxu0 0.0
        %5517 = vmatpush1.msra.mxu0 %v5483
        %5518 = vmatprep.subr.mxu0 0.0
        %5519 = vmatpush1.msra.mxu0 %v5512
        %5520 = vmatprep.subr.mxu0 0.0
        %5521 = vmatpush1.msra.mxu0 0.0
        %5522 = vmatprep.subr.mxu0 0.0
        %5523 = vmatpush1.msra.mxu0 0.0
        %5524 = vmatprep.subr.mxu0 0.0
        %5525 = vmatpush1.msra.mxu0 0.0
        %5526 = vmatprep.subr.mxu0 0.0
        %5527 = vmatpush1.msra.mxu0 0.0
        %5528 = vmatprep.subr.mxu0 0.0
        %5529 = vmatpush1.msra.mxu0 0.0
        %5530 = vmatprep.subr.mxu0 0.0
        %5531 = vmatpush1.msra.mxu0 0.0
        %5532 = vmatprep.subr.mxu0 0.0
        %5533 = vmatpush1.msra.mxu0 0.0
        %5534 = vmatprep.subr.mxu0 0.0
        %5535 = vmatpush1.msra.mxu0 0.0
        %5536 = vmatprep.subr.mxu0 0.0
        %5537 = vmatpush1.msra.mxu0 0.0
        %5538 = vmatprep.subr.mxu0 0.0
        %5539 = vmatpush1.msra.mxu0 0.0
        %5540 = vmatprep.subr.mxu0 0.0
        %5541 = vmatpush1.msra.mxu0 0.0
        %5542 = vmatprep.subr.mxu0 0.0
        %5543 = vmatpush1.msra.mxu0 0.0
        %5544 = vmatprep.subr.mxu0 0.0
        %5545 = vmatpush1.msra.mxu0 0.0
        %5546 = vmatprep.subr.mxu0 0.0
        %5547 = vmatpush1.msra.mxu0 0.0
        %5548 = vmatprep.subr.mxu0 0.0
        %5549 = vmatpush1.msra.mxu0 0.0
        %5550 = vmatprep.subr.mxu0 0.0
        %5551 = vmatpush1.msra.mxu0 0.0
        %5552 = vmatprep.subr.mxu0 0.0
        %5553 = vmatpush1.msra.mxu0 0.0
        %5554 = vmatprep.subr.mxu0 0.0
        %5555 = vmatpush1.msra.mxu0 0.0
        %5556 = vmatprep.subr.mxu0 0.0
        %5557 = vmatpush1.msra.mxu0 0.0
        %5558 = vmatprep.subr.mxu0 0.0
        %5559 = vmatpush1.msra.mxu0 0.0
        %5560 = vmatprep.subr.mxu0 0.0
        %5561 = vmatpush1.msra.mxu0 0.0
        %5562 = vmatprep.subr.mxu0 0.0
        %5563 = vmatpush1.msra.mxu0 0.0
        %5564 = vmatprep.subr.mxu0 0.0
        %5565 = vmatpush1.msra.mxu0 0.0
        %5566 = vmatprep.subr.mxu0 0.0
        %5567 = vmatpush1.msra.mxu0 0.0
        %5568 = vmatprep.subr.mxu0 0.0
        %5569 = vmatpush1.msra.mxu0 0.0
        %5570 = vmatprep.subr.mxu0 0.0
        %5571 = vmatpush1.msra.mxu0 0.0
        %5572 = vmatprep.subr.mxu0 0.0
        %5573 = vmatpush1.msra.mxu0 0.0
        %5574 = vmatprep.subr.mxu0 0.0
        %5575 = vmatpush1.msra.mxu0 0.0
        %5576 = vmatprep.subr.mxu0 0.0
        %5577 = vmatpush1.msra.mxu0 0.0
        %5578 = vmatprep.mubr.f32.mxu0 0.0
        %5579 = vmatmul.mubr.f32.gmra.mrb[0].mxu0 %v5497
        %v5580 = vpop.f32.mrb[0].mxu0
        %v5581 = vadd.f32 0.0, %v5580
        %v5582 = vpop.f32.mrb[0].mxu0
        %5583 = vmatprep.mubr.f32.mxu0 0.0
        %5584 = vmatmul.mubr.f32.gmra.mrb[0].mxu0 %v5500
        %v5585 = vpop.f32.mrb[0].mxu0
        %v5586 = vadd.f32 0.0, %v5585
        %v5587 = vpop.f32.mrb[0].mxu0
        %5588 = vmatprep.mubr.f32.mxu0 0.0
        %5589 = vmatmul.mubr.f32.gmra.mrb[0].mxu0 %v5503
        %v5590 = vpop.f32.mrb[0].mxu0
        %v5591 = vadd.f32 0.0, %v5590
        %v5592 = vpop.f32.mrb[0].mxu0
        %5593 = vmatprep.mubr.f32.mxu0 0.0
        %5594 = vmatmul.mubr.f32.gmra.mrb[0].mxu0 %v5506
        %v5595 = vpop.f32.mrb[0].mxu0
        %v5596 = vadd.f32 0.0, %v5595
        %v5597 = vpop.f32.mrb[0].mxu0
        %5598 = vmatprep.mubr.f32.mxu0 0.0
        %5599 = vmatmul.mubr.f32.gmra.mrb[0].mxu0 %v5509
        %v5600 = vpop.f32.mrb[0].mxu0
        %v5601 = vadd.f32 0.0, %v5600
        %v5602 = vpop.f32.mrb[0].mxu0
        %5603 = vdwg.mxu0
        %v5605 = vsel %vm3920, %v5308, 0
        %v5608 = vsel %vm3920, %v5309, 0
        %v5611 = vsel %vm3920, %v5310, 0
        %v5614 = vsel %vm3920, %v5311, 0
        %v5617 = vsel %vm3920, %v5312, 0
        %v5620 = vsel %vm3930, %v5305, 0
        %5622 = vmatprep.subr.mxu0 0.0
        %5623 = vmatpush1.msra.mxu0 %v5295
        %5624 = vmatprep.subr.mxu0 0.0
        %5625 = vmatpush1.msra.mxu0 %v5300
        %5626 = vmatprep.subr.mxu0 0.0
        %5627 = vmatpush1.msra.mxu0 %v5620
        %5628 = vmatprep.subr.mxu0 0.0
        %5629 = vmatpush1.msra.mxu0 0.0
        %5630 = vmatprep.subr.mxu0 0.0
        %5631 = vmatpush1.msra.mxu0 0.0
        %5632 = vmatprep.subr.mxu0 0.0
        %5633 = vmatpush1.msra.mxu0 0.0
        %5634 = vmatprep.subr.mxu0 0.0
        %5635 = vmatpush1.msra.mxu0 0.0
        %5636 = vmatprep.subr.mxu0 0.0
        %5637 = vmatpush1.msra.mxu0 0.0
        %5638 = vmatprep.subr.mxu0 0.0
        %5639 = vmatpush1.msra.mxu0 0.0
        %5640 = vmatprep.subr.mxu0 0.0
        %5641 = vmatpush1.msra.mxu0 0.0
        %5642 = vmatprep.subr.mxu0 0.0
        %5643 = vmatpush1.msra.mxu0 0.0
        %5644 = vmatprep.subr.mxu0 0.0
        %5645 = vmatpush1.msra.mxu0 0.0
        %5646 = vmatprep.subr.mxu0 0.0
        %5647 = vmatpush1.msra.mxu0 0.0
        %5648 = vmatprep.subr.mxu0 0.0
        %5649 = vmatpush1.msra.mxu0 0.0
        %5650 = vmatprep.subr.mxu0 0.0
        %5651 = vmatpush1.msra.mxu0 0.0
        %5652 = vmatprep.subr.mxu0 0.0
        %5653 = vmatpush1.msra.mxu0 0.0
        %5654 = vmatprep.subr.mxu0 0.0
        %5655 = vmatpush1.msra.mxu0 0.0
        %5656 = vmatprep.subr.mxu0 0.0
        %5657 = vmatpush1.msra.mxu0 0.0
        %5658 = vmatprep.subr.mxu0 0.0
        %5659 = vmatpush1.msra.mxu0 0.0
        %5660 = vmatprep.subr.mxu0 0.0
        %5661 = vmatpush1.msra.mxu0 0.0
        %5662 = vmatprep.subr.mxu0 0.0
        %5663 = vmatpush1.msra.mxu0 0.0
        %5664 = vmatprep.subr.mxu0 0.0
        %5665 = vmatpush1.msra.mxu0 0.0
        %5666 = vmatprep.subr.mxu0 0.0
        %5667 = vmatpush1.msra.mxu0 0.0
        %5668 = vmatprep.subr.mxu0 0.0
        %5669 = vmatpush1.msra.mxu0 0.0
        %5670 = vmatprep.subr.mxu0 0.0
        %5671 = vmatpush1.msra.mxu0 0.0
        %5672 = vmatprep.subr.mxu0 0.0
        %5673 = vmatpush1.msra.mxu0 0.0
        %5674 = vmatprep.subr.mxu0 0.0
        %5675 = vmatpush1.msra.mxu0 0.0
        %5676 = vmatprep.subr.mxu0 0.0
        %5677 = vmatpush1.msra.mxu0 0.0
        %5678 = vmatprep.subr.mxu0 0.0
        %5679 = vmatpush1.msra.mxu0 0.0
        %5680 = vmatprep.subr.mxu0 0.0
        %5681 = vmatpush1.msra.mxu0 0.0
        %5682 = vmatprep.subr.mxu0 0.0
        %5683 = vmatpush1.msra.mxu0 0.0
        %5684 = vmatprep.subr.mxu0 0.0
        %5685 = vmatpush1.msra.mxu0 0.0
        %5686 = vmatprep.mubr.f32.mxu0 0.0
        %5687 = vmatmul.mubr.f32.gmra.mrb[0].mxu0 %v5605
        %v5688 = vpop.f32.mrb[0].mxu0
        %v5689 = vadd.f32 %v5581, %v5688
        %v5690 = vpop.f32.mrb[0].mxu0
        %5691 = vmatprep.mubr.f32.mxu0 0.0
        %5692 = vmatmul.mubr.f32.gmra.mrb[0].mxu0 %v5608
        %v5693 = vpop.f32.mrb[0].mxu0
        %v5694 = vadd.f32 %v5586, %v5693
        %v5695 = vpop.f32.mrb[0].mxu0
        %5696 = vmatprep.mubr.f32.mxu0 0.0
        %5697 = vmatmul.mubr.f32.gmra.mrb[0].mxu0 %v5611
        %v5698 = vpop.f32.mrb[0].mxu0
        %v5699 = vadd.f32 %v5591, %v5698
        %v5700 = vpop.f32.mrb[0].mxu0
        %5701 = vmatprep.mubr.f32.mxu0 0.0
        %5702 = vmatmul.mubr.f32.gmra.mrb[0].mxu0 %v5614
        %v5703 = vpop.f32.mrb[0].mxu0
        %v5704 = vadd.f32 %v5596, %v5703
        %v5705 = vpop.f32.mrb[0].mxu0
        %5706 = vmatprep.mubr.f32.mxu0 0.0
        %5707 = vmatmul.mubr.f32.gmra.mrb[0].mxu0 %v5617
        %v5708 = vpop.f32.mrb[0].mxu0
        %v5709 = vadd.f32 %v5601, %v5708
        %v5710 = vpop.f32.mrb[0].mxu0
        %5711 = vdwg.mxu0
        %s5712 = scalar_lea.vmem %s238, 80
        %5713 = vst.msk [vmem:[%s5712] sm:$0xff] %vm4511, %v5689
        %5714 = vst.msk [vmem:[%s5712 + $0x8] sm:$0xff] %vm4511, %v5694
        %5715 = vst.msk [vmem:[%s5712 + $0x10] sm:$0xff] %vm4511, %v5699
        %5716 = vst.msk [vmem:[%s5712 + $0x18] sm:$0xff] %vm4511, %v5704
        %5717 = vst.msk [vmem:[%s5712 + $0x20] sm:$0x3] %vm4516, %v5709
        %v5718 = vld [vmem:[%s3] sm:$0xff]
        %v5719 = vld [vmem:[%s3 + $0x8] sm:$0xff]
        %v5720 = vld [vmem:[%s3 + $0x10] sm:$0x1]
        %v5721 = vld [vmem:[%s3916] sm:$0xff]
        %v5722 = vld [vmem:[%s3916 + $0x8] sm:$0xff]
        %v5723 = vld [vmem:[%s3916 + $0x10] sm:$0x1]
        %v5725 = vsel %vm3920, %v2086, 0
        %v5728 = vsel %vm3920, %v2087, 0
        %v5731 = vsel %vm3920, %v2088, 0
        %v5734 = vsel %vm3930, %v5723, 0
        %5736 = vmatprep.subr.mxu0 0.0
        %5737 = vmatpush1.msra.mxu0 %v5721
        %5738 = vmatprep.subr.mxu0 0.0
        %5739 = vmatpush1.msra.mxu0 %v5722
        %5740 = vmatprep.subr.mxu0 0.0
        %5741 = vmatpush1.msra.mxu0 %v5734
        %5742 = vmatprep.subr.mxu0 0.0
        %5743 = vmatpush1.msra.mxu0 0.0
        %5744 = vmatprep.subr.mxu0 0.0
        %5745 = vmatpush1.msra.mxu0 0.0
        %5746 = vmatprep.subr.mxu0 0.0
        %5747 = vmatpush1.msra.mxu0 0.0
        %5748 = vmatprep.subr.mxu0 0.0
        %5749 = vmatpush1.msra.mxu0 0.0
        %5750 = vmatprep.subr.mxu0 0.0
        %5751 = vmatpush1.msra.mxu0 0.0
        %5752 = vmatprep.subr.mxu0 0.0
        %5753 = vmatpush1.msra.mxu0 0.0
        %5754 = vmatprep.subr.mxu0 0.0
        %5755 = vmatpush1.msra.mxu0 0.0
        %5756 = vmatprep.subr.mxu0 0.0
        %5757 = vmatpush1.msra.mxu0 0.0
        %5758 = vmatprep.subr.mxu0 0.0
        %5759 = vmatpush1.msra.mxu0 0.0
        %5760 = vmatprep.subr.mxu0 0.0
        %5761 = vmatpush1.msra.mxu0 0.0
        %5762 = vmatprep.subr.mxu0 0.0
        %5763 = vmatpush1.msra.mxu0 0.0
        %5764 = vmatprep.subr.mxu0 0.0
        %5765 = vmatpush1.msra.mxu0 0.0
        %5766 = vmatprep.subr.mxu0 0.0
        %5767 = vmatpush1.msra.mxu0 0.0
        %5768 = vmatprep.subr.mxu0 0.0
        %5769 = vmatpush1.msra.mxu0 0.0
        %5770 = vmatprep.subr.mxu0 0.0
        %5771 = vmatpush1.msra.mxu0 0.0
        %5772 = vmatprep.subr.mxu0 0.0
        %5773 = vmatpush1.msra.mxu0 0.0
        %5774 = vmatprep.subr.mxu0 0.0
        %5775 = vmatpush1.msra.mxu0 0.0
        %5776 = vmatprep.subr.mxu0 0.0
        %5777 = vmatpush1.msra.mxu0 0.0
        %5778 = vmatprep.subr.mxu0 0.0
        %5779 = vmatpush1.msra.mxu0 0.0
        %5780 = vmatprep.subr.mxu0 0.0
        %5781 = vmatpush1.msra.mxu0 0.0
        %5782 = vmatprep.subr.mxu0 0.0
        %5783 = vmatpush1.msra.mxu0 0.0
        %5784 = vmatprep.subr.mxu0 0.0
        %5785 = vmatpush1.msra.mxu0 0.0
        %5786 = vmatprep.subr.mxu0 0.0
        %5787 = vmatpush1.msra.mxu0 0.0
        %5788 = vmatprep.subr.mxu0 0.0
        %5789 = vmatpush1.msra.mxu0 0.0
        %5790 = vmatprep.subr.mxu0 0.0
        %5791 = vmatpush1.msra.mxu0 0.0
        %5792 = vmatprep.subr.mxu0 0.0
        %5793 = vmatpush1.msra.mxu0 0.0
        %5794 = vmatprep.subr.mxu0 0.0
        %5795 = vmatpush1.msra.mxu0 0.0
        %5796 = vmatprep.subr.mxu0 0.0
        %5797 = vmatpush1.msra.mxu0 0.0
        %5798 = vmatprep.subr.mxu0 0.0
        %5799 = vmatpush1.msra.mxu0 0.0
        %5800 = vmatprep.mubr.f32.mxu0 0.0
        %5801 = vmatmul.mubr.f32.gmra.mrb[0].mxu0 %v5725
        %v5802 = vpop.f32.mrb[0].mxu0
        %v5803 = vadd.f32 0.0, %v5802
        %v5804 = vpop.f32.mrb[0].mxu0
        %5805 = vmatprep.mubr.f32.mxu0 0.0
        %5806 = vmatmul.mubr.f32.gmra.mrb[0].mxu0 %v5728
        %v5807 = vpop.f32.mrb[0].mxu0
        %v5808 = vadd.f32 0.0, %v5807
        %v5809 = vpop.f32.mrb[0].mxu0
        %5810 = vmatprep.mubr.f32.mxu0 0.0
        %5811 = vmatmul.mubr.f32.gmra.mrb[0].mxu0 %v5731
        %v5812 = vpop.f32.mrb[0].mxu0
        %v5813 = vadd.f32 0.0, %v5812
        %v5814 = vpop.f32.mrb[0].mxu0
        %5815 = vdwg.mxu0
        %v5817 = vsel %vm3920, %v1174, 0
        %v5820 = vsel %vm3920, %v1175, 0
        %v5823 = vsel %vm3920, %v1176, 0
        %v5826 = vsel %vm3930, %v5720, 0
        %5828 = vmatprep.subr.mxu0 0.0
        %5829 = vmatpush1.msra.mxu0 %v5718
        %5830 = vmatprep.subr.mxu0 0.0
        %5831 = vmatpush1.msra.mxu0 %v5719
        %5832 = vmatprep.subr.mxu0 0.0
        %5833 = vmatpush1.msra.mxu0 %v5826
        %5834 = vmatprep.subr.mxu0 0.0
        %5835 = vmatpush1.msra.mxu0 0.0
        %5836 = vmatprep.subr.mxu0 0.0
        %5837 = vmatpush1.msra.mxu0 0.0
        %5838 = vmatprep.subr.mxu0 0.0
        %5839 = vmatpush1.msra.mxu0 0.0
        %5840 = vmatprep.subr.mxu0 0.0
        %5841 = vmatpush1.msra.mxu0 0.0
        %5842 = vmatprep.subr.mxu0 0.0
        %5843 = vmatpush1.msra.mxu0 0.0
        %5844 = vmatprep.subr.mxu0 0.0
        %5845 = vmatpush1.msra.mxu0 0.0
        %5846 = vmatprep.subr.mxu0 0.0
        %5847 = vmatpush1.msra.mxu0 0.0
        %5848 = vmatprep.subr.mxu0 0.0
        %5849 = vmatpush1.msra.mxu0 0.0
        %5850 = vmatprep.subr.mxu0 0.0
        %5851 = vmatpush1.msra.mxu0 0.0
        %5852 = vmatprep.subr.mxu0 0.0
        %5853 = vmatpush1.msra.mxu0 0.0
        %5854 = vmatprep.subr.mxu0 0.0
        %5855 = vmatpush1.msra.mxu0 0.0
        %5856 = vmatprep.subr.mxu0 0.0
        %5857 = vmatpush1.msra.mxu0 0.0
        %5858 = vmatprep.subr.mxu0 0.0
        %5859 = vmatpush1.msra.mxu0 0.0
        %5860 = vmatprep.subr.mxu0 0.0
        %5861 = vmatpush1.msra.mxu0 0.0
        %5862 = vmatprep.subr.mxu0 0.0
        %5863 = vmatpush1.msra.mxu0 0.0
        %5864 = vmatprep.subr.mxu0 0.0
        %5865 = vmatpush1.msra.mxu0 0.0
        %5866 = vmatprep.subr.mxu0 0.0
        %5867 = vmatpush1.msra.mxu0 0.0
        %5868 = vmatprep.subr.mxu0 0.0
        %5869 = vmatpush1.msra.mxu0 0.0
        %5870 = vmatprep.subr.mxu0 0.0
        %5871 = vmatpush1.msra.mxu0 0.0
        %5872 = vmatprep.subr.mxu0 0.0
        %5873 = vmatpush1.msra.mxu0 0.0
        %5874 = vmatprep.subr.mxu0 0.0
        %5875 = vmatpush1.msra.mxu0 0.0
        %5876 = vmatprep.subr.mxu0 0.0
        %5877 = vmatpush1.msra.mxu0 0.0
        %5878 = vmatprep.subr.mxu0 0.0
        %5879 = vmatpush1.msra.mxu0 0.0
        %5880 = vmatprep.subr.mxu0 0.0
        %5881 = vmatpush1.msra.mxu0 0.0
        %5882 = vmatprep.subr.mxu0 0.0
        %5883 = vmatpush1.msra.mxu0 0.0
        %5884 = vmatprep.subr.mxu0 0.0
        %5885 = vmatpush1.msra.mxu0 0.0
        %5886 = vmatprep.subr.mxu0 0.0
        %5887 = vmatpush1.msra.mxu0 0.0
        %5888 = vmatprep.subr.mxu0 0.0
        %5889 = vmatpush1.msra.mxu0 0.0
        %5890 = vmatprep.subr.mxu0 0.0
        %5891 = vmatpush1.msra.mxu0 0.0
        %5892 = vmatprep.mubr.f32.mxu0 0.0
        %5893 = vmatmul.mubr.f32.gmra.mrb[0].mxu0 %v5817
        %v5894 = vpop.f32.mrb[0].mxu0
        %v5895 = vadd.f32 %v5803, %v5894
        %v5896 = vpop.f32.mrb[0].mxu0
        %5897 = vmatprep.mubr.f32.mxu0 0.0
        %5898 = vmatmul.mubr.f32.gmra.mrb[0].mxu0 %v5820
        %v5899 = vpop.f32.mrb[0].mxu0
        %v5900 = vadd.f32 %v5808, %v5899
        %v5901 = vpop.f32.mrb[0].mxu0
        %5902 = vmatprep.mubr.f32.mxu0 0.0
        %5903 = vmatmul.mubr.f32.gmra.mrb[0].mxu0 %v5823
        %v5904 = vpop.f32.mrb[0].mxu0
        %v5905 = vadd.f32 %v5813, %v5904
        %v5906 = vpop.f32.mrb[0].mxu0
        %5907 = vdwg.mxu0
        %v5908 = vld [vmem:[%s2] sm:$0xff]
        %v5909 = vld [vmem:[%s2 + $0x8] sm:$0xff]
        %v5910 = vld [vmem:[%s2 + $0x10] sm:$0xff]
        %v5911 = vld [vmem:[%s2 + $0x18] sm:$0xff]
        %v5912 = vld [vmem:[%s2 + $0x20] sm:$0x3]
        %v5914 = vsel %vm3920, %v3910, 0
        %v5917 = vsel %vm3920, %v3911, 0
        %v5920 = vsel %vm3920, %v3912, 0
        %5922 = vmatprep.subr.mxu0 0.0
        %5923 = vmatpush1.msra.mxu0 %v5721
        %5924 = vmatprep.subr.mxu0 0.0
        %5925 = vmatpush1.msra.mxu0 %v5722
        %5926 = vmatprep.subr.mxu0 0.0
        %5927 = vmatpush1.msra.mxu0 %v5734
        %5928 = vmatprep.subr.mxu0 0.0
        %5929 = vmatpush1.msra.mxu0 0.0
        %5930 = vmatprep.subr.mxu0 0.0
        %5931 = vmatpush1.msra.mxu0 0.0
        %5932 = vmatprep.subr.mxu0 0.0
        %5933 = vmatpush1.msra.mxu0 0.0
        %5934 = vmatprep.subr.mxu0 0.0
        %5935 = vmatpush1.msra.mxu0 0.0
        %5936 = vmatprep.subr.mxu0 0.0
        %5937 = vmatpush1.msra.mxu0 0.0
        %5938 = vmatprep.subr.mxu0 0.0
        %5939 = vmatpush1.msra.mxu0 0.0
        %5940 = vmatprep.subr.mxu0 0.0
        %5941 = vmatpush1.msra.mxu0 0.0
        %5942 = vmatprep.subr.mxu0 0.0
        %5943 = vmatpush1.msra.mxu0 0.0
        %5944 = vmatprep.subr.mxu0 0.0
        %5945 = vmatpush1.msra.mxu0 0.0
        %5946 = vmatprep.subr.mxu0 0.0
        %5947 = vmatpush1.msra.mxu0 0.0
        %5948 = vmatprep.subr.mxu0 0.0
        %5949 = vmatpush1.msra.mxu0 0.0
        %5950 = vmatprep.subr.mxu0 0.0
        %5951 = vmatpush1.msra.mxu0 0.0
        %5952 = vmatprep.subr.mxu0 0.0
        %5953 = vmatpush1.msra.mxu0 0.0
        %5954 = vmatprep.subr.mxu0 0.0
        %5955 = vmatpush1.msra.mxu0 0.0
        %5956 = vmatprep.subr.mxu0 0.0
        %5957 = vmatpush1.msra.mxu0 0.0
        %5958 = vmatprep.subr.mxu0 0.0
        %5959 = vmatpush1.msra.mxu0 0.0
        %5960 = vmatprep.subr.mxu0 0.0
        %5961 = vmatpush1.msra.mxu0 0.0
        %5962 = vmatprep.subr.mxu0 0.0
        %5963 = vmatpush1.msra.mxu0 0.0
        %5964 = vmatprep.subr.mxu0 0.0
        %5965 = vmatpush1.msra.mxu0 0.0
        %5966 = vmatprep.subr.mxu0 0.0
        %5967 = vmatpush1.msra.mxu0 0.0
        %5968 = vmatprep.subr.mxu0 0.0
        %5969 = vmatpush1.msra.mxu0 0.0
        %5970 = vmatprep.subr.mxu0 0.0
        %5971 = vmatpush1.msra.mxu0 0.0
        %5972 = vmatprep.subr.mxu0 0.0
        %5973 = vmatpush1.msra.mxu0 0.0
        %5974 = vmatprep.subr.mxu0 0.0
        %5975 = vmatpush1.msra.mxu0 0.0
        %5976 = vmatprep.subr.mxu0 0.0
        %5977 = vmatpush1.msra.mxu0 0.0
        %5978 = vmatprep.subr.mxu0 0.0
        %5979 = vmatpush1.msra.mxu0 0.0
        %5980 = vmatprep.subr.mxu0 0.0
        %5981 = vmatpush1.msra.mxu0 0.0
        %5982 = vmatprep.subr.mxu0 0.0
        %5983 = vmatpush1.msra.mxu0 0.0
        %5984 = vmatprep.subr.mxu0 0.0
        %5985 = vmatpush1.msra.mxu0 0.0
        %5986 = vmatprep.mubr.f32.mxu0 0.0
        %5987 = vmatmul.mubr.f32.gmra.mrb[0].mxu0 %v5914
        %v5988 = vpop.f32.mrb[0].mxu0
        %v5989 = vadd.f32 0.0, %v5988
        %v5990 = vpop.f32.mrb[0].mxu0
        %5991 = vmatprep.mubr.f32.mxu0 0.0
        %5992 = vmatmul.mubr.f32.gmra.mrb[0].mxu0 %v5917
        %v5993 = vpop.f32.mrb[0].mxu0
        %v5994 = vadd.f32 0.0, %v5993
        %v5995 = vpop.f32.mrb[0].mxu0
        %5996 = vmatprep.mubr.f32.mxu0 0.0
        %5997 = vmatmul.mubr.f32.gmra.mrb[0].mxu0 %v5920
        %v5998 = vpop.f32.mrb[0].mxu0
        %v5999 = vadd.f32 0.0, %v5998
        %v6000 = vpop.f32.mrb[0].mxu0
        %6001 = vdwg.mxu0
        %v6003 = vsel %vm3920, %v2998, 0
        %v6006 = vsel %vm3920, %v2999, 0
        %v6009 = vsel %vm3920, %v3000, 0
        %6011 = vmatprep.subr.mxu0 0.0
        %6012 = vmatpush1.msra.mxu0 %v5718
        %6013 = vmatprep.subr.mxu0 0.0
        %6014 = vmatpush1.msra.mxu0 %v5719
        %6015 = vmatprep.subr.mxu0 0.0
        %6016 = vmatpush1.msra.mxu0 %v5826
        %6017 = vmatprep.subr.mxu0 0.0
        %6018 = vmatpush1.msra.mxu0 0.0
        %6019 = vmatprep.subr.mxu0 0.0
        %6020 = vmatpush1.msra.mxu0 0.0
        %6021 = vmatprep.subr.mxu0 0.0
        %6022 = vmatpush1.msra.mxu0 0.0
        %6023 = vmatprep.subr.mxu0 0.0
        %6024 = vmatpush1.msra.mxu0 0.0
        %6025 = vmatprep.subr.mxu0 0.0
        %6026 = vmatpush1.msra.mxu0 0.0
        %6027 = vmatprep.subr.mxu0 0.0
        %6028 = vmatpush1.msra.mxu0 0.0
        %6029 = vmatprep.subr.mxu0 0.0
        %6030 = vmatpush1.msra.mxu0 0.0
        %6031 = vmatprep.subr.mxu0 0.0
        %6032 = vmatpush1.msra.mxu0 0.0
        %6033 = vmatprep.subr.mxu0 0.0
        %6034 = vmatpush1.msra.mxu0 0.0
        %6035 = vmatprep.subr.mxu0 0.0
        %6036 = vmatpush1.msra.mxu0 0.0
        %6037 = vmatprep.subr.mxu0 0.0
        %6038 = vmatpush1.msra.mxu0 0.0
        %6039 = vmatprep.subr.mxu0 0.0
        %6040 = vmatpush1.msra.mxu0 0.0
        %6041 = vmatprep.subr.mxu0 0.0
        %6042 = vmatpush1.msra.mxu0 0.0
        %6043 = vmatprep.subr.mxu0 0.0
        %6044 = vmatpush1.msra.mxu0 0.0
        %6045 = vmatprep.subr.mxu0 0.0
        %6046 = vmatpush1.msra.mxu0 0.0
        %6047 = vmatprep.subr.mxu0 0.0
        %6048 = vmatpush1.msra.mxu0 0.0
        %6049 = vmatprep.subr.mxu0 0.0
        %6050 = vmatpush1.msra.mxu0 0.0
        %6051 = vmatprep.subr.mxu0 0.0
        %6052 = vmatpush1.msra.mxu0 0.0
        %6053 = vmatprep.subr.mxu0 0.0
        %6054 = vmatpush1.msra.mxu0 0.0
        %6055 = vmatprep.subr.mxu0 0.0
        %6056 = vmatpush1.msra.mxu0 0.0
        %6057 = vmatprep.subr.mxu0 0.0
        %6058 = vmatpush1.msra.mxu0 0.0
        %6059 = vmatprep.subr.mxu0 0.0
        %6060 = vmatpush1.msra.mxu0 0.0
        %6061 = vmatprep.subr.mxu0 0.0
        %6062 = vmatpush1.msra.mxu0 0.0
        %6063 = vmatprep.subr.mxu0 0.0
        %6064 = vmatpush1.msra.mxu0 0.0
        %6065 = vmatprep.subr.mxu0 0.0
        %6066 = vmatpush1.msra.mxu0 0.0
        %6067 = vmatprep.subr.mxu0 0.0
        %6068 = vmatpush1.msra.mxu0 0.0
        %6069 = vmatprep.subr.mxu0 0.0
        %6070 = vmatpush1.msra.mxu0 0.0
        %6071 = vmatprep.subr.mxu0 0.0
        %6072 = vmatpush1.msra.mxu0 0.0
        %6073 = vmatprep.subr.mxu0 0.0
        %6074 = vmatpush1.msra.mxu0 0.0
        %6075 = vmatprep.mubr.f32.mxu0 0.0
        %6076 = vmatmul.mubr.f32.gmra.mrb[0].mxu0 %v6003
        %v6077 = vpop.f32.mrb[0].mxu0
        %v6078 = vadd.f32 %v5989, %v6077
        %v6079 = vpop.f32.mrb[0].mxu0
        %6080 = vmatprep.mubr.f32.mxu0 0.0
        %6081 = vmatmul.mubr.f32.gmra.mrb[0].mxu0 %v6006
        %v6082 = vpop.f32.mrb[0].mxu0
        %v6083 = vadd.f32 %v5994, %v6082
        %v6084 = vpop.f32.mrb[0].mxu0
        %6085 = vmatprep.mubr.f32.mxu0 0.0
        %6086 = vmatmul.mubr.f32.gmra.mrb[0].mxu0 %v6009
        %v6087 = vpop.f32.mrb[0].mxu0
        %v6088 = vadd.f32 %v5999, %v6087
        %v6089 = vpop.f32.mrb[0].mxu0
        %6090 = vdwg.mxu0
        %v6091 = vld [vmem:[%s4289] sm:$0xff]
        %v6092 = vld [vmem:[%s4289 + $0x8] sm:$0xff]
        %v6093 = vld [vmem:[%s4289 + $0x10] sm:$0xff]
        %v6094 = vld [vmem:[%s4289 + $0x18] sm:$0xff]
        %v6095 = vld [vmem:[%s4289 + $0x20] sm:$0x3]
        %v6097 = vsel %vm3920, %v6091, 0
        %v6100 = vsel %vm3920, %v6092, 0
        %v6103 = vsel %vm3920, %v6093, 0
        %v6106 = vsel %vm3920, %v6094, 0
        %v6109 = vsel %vm3920, %v6095, 0
        %v6112 = vsel %vm3930, %v6088, 0
        %6114 = vmatprep.subr.mxu0 0.0
        %6115 = vmatpush1.msra.mxu0 %v6078
        %6116 = vmatprep.subr.mxu0 0.0
        %6117 = vmatpush1.msra.mxu0 %v6083
        %6118 = vmatprep.subr.mxu0 0.0
        %6119 = vmatpush1.msra.mxu0 %v6112
        %6120 = vmatprep.subr.mxu0 0.0
        %6121 = vmatpush1.msra.mxu0 0.0
        %6122 = vmatprep.subr.mxu0 0.0
        %6123 = vmatpush1.msra.mxu0 0.0
        %6124 = vmatprep.subr.mxu0 0.0
        %6125 = vmatpush1.msra.mxu0 0.0
        %6126 = vmatprep.subr.mxu0 0.0
        %6127 = vmatpush1.msra.mxu0 0.0
        %6128 = vmatprep.subr.mxu0 0.0
        %6129 = vmatpush1.msra.mxu0 0.0
        %6130 = vmatprep.subr.mxu0 0.0
        %6131 = vmatpush1.msra.mxu0 0.0
        %6132 = vmatprep.subr.mxu0 0.0
        %6133 = vmatpush1.msra.mxu0 0.0
        %6134 = vmatprep.subr.mxu0 0.0
        %6135 = vmatpush1.msra.mxu0 0.0
        %6136 = vmatprep.subr.mxu0 0.0
        %6137 = vmatpush1.msra.mxu0 0.0
        %6138 = vmatprep.subr.mxu0 0.0
        %6139 = vmatpush1.msra.mxu0 0.0
        %6140 = vmatprep.subr.mxu0 0.0
        %6141 = vmatpush1.msra.mxu0 0.0
        %6142 = vmatprep.subr.mxu0 0.0
        %6143 = vmatpush1.msra.mxu0 0.0
        %6144 = vmatprep.subr.mxu0 0.0
        %6145 = vmatpush1.msra.mxu0 0.0
        %6146 = vmatprep.subr.mxu0 0.0
        %6147 = vmatpush1.msra.mxu0 0.0
        %6148 = vmatprep.subr.mxu0 0.0
        %6149 = vmatpush1.msra.mxu0 0.0
        %6150 = vmatprep.subr.mxu0 0.0
        %6151 = vmatpush1.msra.mxu0 0.0
        %6152 = vmatprep.subr.mxu0 0.0
        %6153 = vmatpush1.msra.mxu0 0.0
        %6154 = vmatprep.subr.mxu0 0.0
        %6155 = vmatpush1.msra.mxu0 0.0
        %6156 = vmatprep.subr.mxu0 0.0
        %6157 = vmatpush1.msra.mxu0 0.0
        %6158 = vmatprep.subr.mxu0 0.0
        %6159 = vmatpush1.msra.mxu0 0.0
        %6160 = vmatprep.subr.mxu0 0.0
        %6161 = vmatpush1.msra.mxu0 0.0
        %6162 = vmatprep.subr.mxu0 0.0
        %6163 = vmatpush1.msra.mxu0 0.0
        %6164 = vmatprep.subr.mxu0 0.0
        %6165 = vmatpush1.msra.mxu0 0.0
        %6166 = vmatprep.subr.mxu0 0.0
        %6167 = vmatpush1.msra.mxu0 0.0
        %6168 = vmatprep.subr.mxu0 0.0
        %6169 = vmatpush1.msra.mxu0 0.0
        %6170 = vmatprep.subr.mxu0 0.0
        %6171 = vmatpush1.msra.mxu0 0.0
        %6172 = vmatprep.subr.mxu0 0.0
        %6173 = vmatpush1.msra.mxu0 0.0
        %6174 = vmatprep.subr.mxu0 0.0
        %6175 = vmatpush1.msra.mxu0 0.0
        %6176 = vmatprep.subr.mxu0 0.0
        %6177 = vmatpush1.msra.mxu0 0.0
        %6178 = vmatprep.mubr.f32.mxu0 0.0
        %6179 = vmatmul.mubr.f32.gmra.mrb[0].mxu0 %v6097
        %v6180 = vpop.f32.mrb[0].mxu0
        %v6181 = vadd.f32 0.0, %v6180
        %v6182 = vpop.f32.mrb[0].mxu0
        %6183 = vmatprep.mubr.f32.mxu0 0.0
        %6184 = vmatmul.mubr.f32.gmra.mrb[0].mxu0 %v6100
        %v6185 = vpop.f32.mrb[0].mxu0
        %v6186 = vadd.f32 0.0, %v6185
        %v6187 = vpop.f32.mrb[0].mxu0
        %6188 = vmatprep.mubr.f32.mxu0 0.0
        %6189 = vmatmul.mubr.f32.gmra.mrb[0].mxu0 %v6103
        %v6190 = vpop.f32.mrb[0].mxu0
        %v6191 = vadd.f32 0.0, %v6190
        %v6192 = vpop.f32.mrb[0].mxu0
        %6193 = vmatprep.mubr.f32.mxu0 0.0
        %6194 = vmatmul.mubr.f32.gmra.mrb[0].mxu0 %v6106
        %v6195 = vpop.f32.mrb[0].mxu0
        %v6196 = vadd.f32 0.0, %v6195
        %v6197 = vpop.f32.mrb[0].mxu0
        %6198 = vmatprep.mubr.f32.mxu0 0.0
        %6199 = vmatmul.mubr.f32.gmra.mrb[0].mxu0 %v6109
        %v6200 = vpop.f32.mrb[0].mxu0
        %v6201 = vadd.f32 0.0, %v6200
        %v6202 = vpop.f32.mrb[0].mxu0
        %6203 = vdwg.mxu0
        %v6205 = vsel %vm3920, %v5908, 0
        %v6208 = vsel %vm3920, %v5909, 0
        %v6211 = vsel %vm3920, %v5910, 0
        %v6214 = vsel %vm3920, %v5911, 0
        %v6217 = vsel %vm3920, %v5912, 0
        %v6220 = vsel %vm3930, %v5905, 0
        %6222 = vmatprep.subr.mxu0 0.0
        %6223 = vmatpush1.msra.mxu0 %v5895
        %6224 = vmatprep.subr.mxu0 0.0
        %6225 = vmatpush1.msra.mxu0 %v5900
        %6226 = vmatprep.subr.mxu0 0.0
        %6227 = vmatpush1.msra.mxu0 %v6220
        %6228 = vmatprep.subr.mxu0 0.0
        %6229 = vmatpush1.msra.mxu0 0.0
        %6230 = vmatprep.subr.mxu0 0.0
        %6231 = vmatpush1.msra.mxu0 0.0
        %6232 = vmatprep.subr.mxu0 0.0
        %6233 = vmatpush1.msra.mxu0 0.0
        %6234 = vmatprep.subr.mxu0 0.0
        %6235 = vmatpush1.msra.mxu0 0.0
        %6236 = vmatprep.subr.mxu0 0.0
        %6237 = vmatpush1.msra.mxu0 0.0
        %6238 = vmatprep.subr.mxu0 0.0
        %6239 = vmatpush1.msra.mxu0 0.0
        %6240 = vmatprep.subr.mxu0 0.0
        %6241 = vmatpush1.msra.mxu0 0.0
        %6242 = vmatprep.subr.mxu0 0.0
        %6243 = vmatpush1.msra.mxu0 0.0
        %6244 = vmatprep.subr.mxu0 0.0
        %6245 = vmatpush1.msra.mxu0 0.0
        %6246 = vmatprep.subr.mxu0 0.0
        %6247 = vmatpush1.msra.mxu0 0.0
        %6248 = vmatprep.subr.mxu0 0.0
        %6249 = vmatpush1.msra.mxu0 0.0
        %6250 = vmatprep.subr.mxu0 0.0
        %6251 = vmatpush1.msra.mxu0 0.0
        %6252 = vmatprep.subr.mxu0 0.0
        %6253 = vmatpush1.msra.mxu0 0.0
        %6254 = vmatprep.subr.mxu0 0.0
        %6255 = vmatpush1.msra.mxu0 0.0
        %6256 = vmatprep.subr.mxu0 0.0
        %6257 = vmatpush1.msra.mxu0 0.0
        %6258 = vmatprep.subr.mxu0 0.0
        %6259 = vmatpush1.msra.mxu0 0.0
        %6260 = vmatprep.subr.mxu0 0.0
        %6261 = vmatpush1.msra.mxu0 0.0
        %6262 = vmatprep.subr.mxu0 0.0
        %6263 = vmatpush1.msra.mxu0 0.0
        %6264 = vmatprep.subr.mxu0 0.0
        %6265 = vmatpush1.msra.mxu0 0.0
        %6266 = vmatprep.subr.mxu0 0.0
        %6267 = vmatpush1.msra.mxu0 0.0
        %6268 = vmatprep.subr.mxu0 0.0
        %6269 = vmatpush1.msra.mxu0 0.0
        %6270 = vmatprep.subr.mxu0 0.0
        %6271 = vmatpush1.msra.mxu0 0.0
        %6272 = vmatprep.subr.mxu0 0.0
        %6273 = vmatpush1.msra.mxu0 0.0
        %6274 = vmatprep.subr.mxu0 0.0
        %6275 = vmatpush1.msra.mxu0 0.0
        %6276 = vmatprep.subr.mxu0 0.0
        %6277 = vmatpush1.msra.mxu0 0.0
        %6278 = vmatprep.subr.mxu0 0.0
        %6279 = vmatpush1.msra.mxu0 0.0
        %6280 = vmatprep.subr.mxu0 0.0
        %6281 = vmatpush1.msra.mxu0 0.0
        %6282 = vmatprep.subr.mxu0 0.0
        %6283 = vmatpush1.msra.mxu0 0.0
        %6284 = vmatprep.subr.mxu0 0.0
        %6285 = vmatpush1.msra.mxu0 0.0
        %6286 = vmatprep.mubr.f32.mxu0 0.0
        %6287 = vmatmul.mubr.f32.gmra.mrb[0].mxu0 %v6205
        %v6288 = vpop.f32.mrb[0].mxu0
        %v6289 = vadd.f32 %v6181, %v6288
        %v6290 = vpop.f32.mrb[0].mxu0
        %6291 = vmatprep.mubr.f32.mxu0 0.0
        %6292 = vmatmul.mubr.f32.gmra.mrb[0].mxu0 %v6208
        %v6293 = vpop.f32.mrb[0].mxu0
        %v6294 = vadd.f32 %v6186, %v6293
        %v6295 = vpop.f32.mrb[0].mxu0
        %6296 = vmatprep.mubr.f32.mxu0 0.0
        %6297 = vmatmul.mubr.f32.gmra.mrb[0].mxu0 %v6211
        %v6298 = vpop.f32.mrb[0].mxu0
        %v6299 = vadd.f32 %v6191, %v6298
        %v6300 = vpop.f32.mrb[0].mxu0
        %6301 = vmatprep.mubr.f32.mxu0 0.0
        %6302 = vmatmul.mubr.f32.gmra.mrb[0].mxu0 %v6214
        %v6303 = vpop.f32.mrb[0].mxu0
        %v6304 = vadd.f32 %v6196, %v6303
        %v6305 = vpop.f32.mrb[0].mxu0
        %6306 = vmatprep.mubr.f32.mxu0 0.0
        %6307 = vmatmul.mubr.f32.gmra.mrb[0].mxu0 %v6217
        %v6308 = vpop.f32.mrb[0].mxu0
        %v6309 = vadd.f32 %v6201, %v6308
        %v6310 = vpop.f32.mrb[0].mxu0
        %6311 = vdwg.mxu0
        %s6312 = scalar_lea.vmem %s238, 120
        %6313 = vst.msk [vmem:[%s6312] sm:$0xff] %vm4511, %v6289
        %6314 = vst.msk [vmem:[%s6312 + $0x8] sm:$0xff] %vm4511, %v6294
        %6315 = vst.msk [vmem:[%s6312 + $0x10] sm:$0xff] %vm4511, %v6299
        %6316 = vst.msk [vmem:[%s6312 + $0x18] sm:$0xff] %vm4511, %v6304
        %6317 = vst.msk [vmem:[%s6312 + $0x20] sm:$0x3] %vm4516, %v6309
        %p6318 = scmp.lt.s32.totalorder %s17, 1
        %s6319 = scalar_select %p6318, %s17, 1
        %s6320 = smul.addr %s6319, 20
        %s6321 = smul.addr %s6320, 8
        %s6322 = scalar_lea.vmem %s5, %s6321
        // Predicated region
        $region45: #{tpu_custom_call.1} parent=39 // pred_check
          %p6323 = pneg %p145
        $region46: #{tpu_custom_call.1} parent=39 // pred_check_branch
          %6325 = sbr.rel (%p6323) target = $region48
        $region47: #{tpu_custom_call.1} parent=39 // pred_region
          _
        $region48: #{tpu_custom_call.1} parent=39 // pred_fallthru
          _
      $region40: #{tpu_custom_call.1} parent=5 // pred_fallthru
        _
      %p6326 = scmp.le.s32.totalorder 2, %s12
      // Predicated region
      $region49: #{tpu_custom_call.1} parent=5 // pred_check
        %p6327 = pneg %p6326
      $region50: #{tpu_custom_call.1} parent=5 // pred_check_branch
        %6329 = sbr.rel (%p6327) target = $region52
      $region51: #{tpu_custom_call.1} parent=5 // pred_region
        %s6330 = ssub.s32 %s12, 2
        // Predicated region
        $region53: #{tpu_custom_call.1} parent=51 // pred_check
          %p6331 = pneg %p151
        $region54: #{tpu_custom_call.1} parent=51 // pred_check_branch
          %6333 = sbr.rel (%p6331) target = $region56
        $region55: #{tpu_custom_call.1} parent=51 // pred_region
          %p6334 = scmp.lt.s32.totalorder %s18, 1
          %s6335 = scalar_select %p6334, %s18, 1
          %s6336 = smul.addr %s6335, 20
          %s6337 = smul.addr %s6336, 8
          %s6338 = scalar_lea.vmem %s5, %s6337
        $region56: #{tpu_custom_call.1} parent=51 // pred_fallthru
          _
      $region52: #{tpu_custom_call.1} parent=5 // pred_fallthru
        _
    $region6: #{tpu_custom_call.1} parent=1 // loop_footer
      %s16 = sadd.s32 1, %s12
    $region7: #{tpu_custom_call.1} parent=1 // loop_footer_branch
      %11 = sbr.rel target = $region3
    $region8: #{tpu_custom_call.1} parent=1 // loop_exit
      _
    %6339 = vsyncpa [#allocation3], 1
    %s6340 = scalar_lea.sflag [#allocation3], 1
    %6341 = vsyncpa %s6340, 1

</llo_original>
